<compile_context>
chip_gen: v7x
topology: tpu7x:2x2x1
jax: 0.10.0
libtpu: 0.0.40
codegen_flags: <defaults>
</compile_context>

<pallas_src>
import numpy as np

import jax
import jax.numpy as jnp
from jax.experimental import pallas as pl
from jax.experimental.pallas import tpu as pltpu


# ---------------------------------------------------------------------------
# Fused decoder kernel
# ---------------------------------------------------------------------------
def _make_decoder_kernel(batch):
    B = batch
    # Padded ("zero-dilated + padded") row spaces of the 3 transposed convs:
    #   lo = k-1-p, hi = lo+output_padding, Hp = (H-1)*2+1+lo+hi, Ho = Hp-k+1
    WP1, HW1, LO1, HO1 = 9, 81, 2, 7        # convT1: 3x3   -> 7x7   (pad 2/2)
    WP2, HW2, LO2, HO2 = 16, 256, 1, 14     # convT2: 7x7   -> 14x14 (pad 1/2)
    WP3, HW3, LO3, HO3 = 30, 900, 1, 28     # convT3: 14x14 -> 28x28 (pad 1/2)
    R1, R2, R3 = B * HW1, B * HW2, B * HW3
    N1, N2 = float(B * HO1 * HO1), float(B * HO2 * HO2)
    EPS = 1e-5
    NT = (((1,), (1,)), ((), ()))           # contract last dims: A @ B.T

    def kernel(x_ref, w1_ref, b1_ref, w2_ref, b2_ref,
               wc1_ref, bc1_ref, g1_ref, be1_ref, m1_ref,
               wc2_ref, bc2_ref, g2_ref, be2_ref, m2_ref,
               wc3_ref, bc3_ref,
               out_ref,
               xp1, cat1, xp2, cat2, xp3, cat3):
        f32 = jnp.float32

        def dil_matrix(w_src, wp_dst, lo):
            # D[w_src, w_dst] = 1  iff  w_dst == lo + 2*w_src (stride-2 insert)
            r = jax.lax.broadcasted_iota(jnp.int32, (w_src, wp_dst), 0)
            c = jax.lax.broadcasted_iota(jnp.int32, (w_src, wp_dst), 1)
            return (c == lo + 2 * r).astype(f32)

        def convT(xp_ref, cat_ref, w_ref, b_ref, cin, wp, rows):
            # Dilated buffer is loaded ONCE; its 9 taps are laid out along the
            # contraction dim so the whole conv is a single MXU matmul.
            xv = xp_ref[...]                                   # (Cin, rows+tail)
            for t in range(9):
                off = (t // 3) * wp + (t % 3)
                cat_ref[t * cin:(t + 1) * cin, :] = xv[:, off:off + rows]
            return jnp.dot(w_ref[...], cat_ref[...],
                           preferred_element_type=f32) + b_ref[...]

        def bn_relu(z, m, n, g, be):
            # Training-mode BatchNorm over the valid (non-padding) pixels only.
            inv_n = 1.0 / n
            mean = jnp.sum(z * m, axis=1, keepdims=True) * inv_n
            xc = z - mean
            var = jnp.sum(xc * xc * m, axis=1, keepdims=True) * inv_n
            scale = jax.lax.rsqrt(var + EPS) * g
            return jnp.maximum(xc * scale + be, 0.0)

        def stage(y, xp_dst, o_src, wp_src, hw_src, lo_dst, wp_dst, hw_dst):
            # Scatter the valid rows of y (previous layer's padded-row space)
            # into the next layer's pre-zeroed dilated/padded buffer:
            # W-dilation via a tiny matmul, H-dilation/padding via static row
            # placement (contiguous stores only).
            d = dil_matrix(o_src, wp_dst, lo_dst)              # (Wo_src, Wp_dst)
            for b in range(B):
                for oh in range(o_src):
                    s0 = b * hw_src + oh * wp_src
                    row = jnp.dot(y[:, s0:s0 + o_src], d,
                                  preferred_element_type=f32)  # (C, Wp_dst)
                    d0 = b * hw_dst + (lo_dst + 2 * oh) * wp_dst
                    xp_dst[:, d0:d0 + wp_dst] = row

        # ---- MLP: relu(W1 x + b1), relu(W2 . + b2), transposed (feat, batch) --
        h1 = jnp.maximum(
            jax.lax.dot_general(w1_ref[...], x_ref[...], NT,
                                preferred_element_type=f32) + b1_ref[...], 0.0)
        h2 = jnp.maximum(
            jnp.dot(w2_ref[...], h1, preferred_element_type=f32)
            + b2_ref[...], 0.0)                                # (288, B), (h,w,c) rows

        # ---- zero the dilated/padded staging buffers once ---------------------
        xp1[...] = jnp.zeros_like(xp1)
        xp2[...] = jnp.zeros_like(xp2)
        xp3[...] = jnp.zeros_like(xp3)

        # ---- stage the 3x3x32 MLP image into convT1's dilated buffer ----------
        for b in range(B):
            for h in range(3):
                for w in range(3):
                    col = b * HW1 + (LO1 + 2 * h) * WP1 + (LO1 + 2 * w)
                    r0 = (h * 3 + w) * 32
                    xp1[:, col:col + 1] = h2[r0:r0 + 32, b:b + 1]

        # ---- convT1 + BatchNorm + ReLU ----------------------------------------
        z1 = convT(xp1, cat1, wc1_ref, bc1_ref, 32, WP1, R1)   # (16, R1)
        y1 = bn_relu(z1, m1_ref[...], N1, g1_ref[...], be1_ref[...])

        # ---- convT2 + BatchNorm + ReLU ----------------------------------------
        stage(y1, xp2, HO1, WP1, HW1, LO2, WP2, HW2)
        z2 = convT(xp2, cat2, wc2_ref, bc2_ref, 16, WP2, R2)   # (8, R2)
        y2 = bn_relu(z2, m2_ref[...], N2, g2_ref[...], be2_ref[...])

        # ---- convT3 + sigmoid ---------------------------------------------------
        stage(y2, xp3, HO2, WP2, HW2, LO3, WP3, HW3)
        z3 = convT(xp3, cat3, wc3_ref, bc3_ref, 8, WP3, R3)    # (8, R3); row 0 real
        y3 = jax.nn.sigmoid(z3)

        # ---- crop padded rows -> (B*28, 28) lane-dense output stores -----------
        for b in range(B):
            for oh in range(HO3):
                c0 = b * HW3 + oh * WP3
                r = b * HO3 + oh
                out_ref[r:r + 1, :] = y3[0:1, c0:c0 + HO3]

    return kernel


# ---------------------------------------------------------------------------
# One-time parameter layout transforms (NOT in the per-call path)
# ---------------------------------------------------------------------------
def prepare_params(params):
    def stack_convt(w):
        # PyTorch ConvTranspose2d weight (Cin, Cout, k, k) -> (Cout, k*k*Cin):
        # spatially flipped + tap-stacked so the transposed conv becomes a
        # VALID direct conv on the zero-dilated, padded input.
        cin, cout, k, _ = w.shape
        wf = jnp.flip(w, axis=(2, 3))
        return wf.transpose(1, 2, 3, 0).reshape(cout, k * k * cin)

    col = lambda v: v.reshape(-1, 1)
    # linear2 output features: PyTorch (c, h, w) order -> (h, w, c) order so the
    # MLP output is directly the NHWC 3x3x32 image (no activation transpose).
    w2p = params["w2"].reshape(32, 3, 3, 128).transpose(1, 2, 0, 3).reshape(288, 128)
    b2p = params["b2"].reshape(32, 3, 3).transpose(1, 2, 0).reshape(288, 1)
    wc3 = stack_convt(params["wt3"])                      # (1, 72)
    bc3 = col(params["bt3"])                              # (1, 1)
    # pad convT3's single output channel to 8 rows (MXU-friendly M); extra rows
    # are zero and ignored by the kernel.
    wc3 = jnp.concatenate([wc3, jnp.zeros((7, wc3.shape[1]), jnp.float32)], 0)
    bc3 = jnp.concatenate([bc3, jnp.zeros((7, 1), jnp.float32)], 0)
    return {
        "w1": params["w1"], "b1": col(params["b1"]),
        "w2p": w2p, "b2p": b2p,
        "wc1": stack_convt(params["wt1"]), "bc1": col(params["bt1"]),
        "g1": col(params["g1"]), "be1": col(params["be1"]),
        "wc2": stack_convt(params["wt2"]), "bc2": col(params["bt2"]),
        "g2": col(params["g2"]), "be2": col(params["be2"]),
        "wc3": wc3, "bc3": bc3,
    }


def _valid_mask(batch, hp, wp, ho, wo):
    # Compile-time constant: 1.0 on padded-row-space positions that are real
    # conv outputs, 0.0 on padding/garbage rows (only used by BatchNorm stats).
    r = np.arange(batch * hp * wp)
    ok = ((r % wp) < wo) & (((r // wp) % hp) < ho)
    return jnp.asarray(ok.astype(np.float32).reshape(1, -1))


# ---------------------------------------------------------------------------
# Decoder forward: single pallas_call
# ---------------------------------------------------------------------------
def decoder_forward(prep, x):
    B = x.shape[0]
    m1 = _valid_mask(B, 9, 9, 7, 7)
    m2 = _valid_mask(B, 16, 16, 14, 14)
    args = (x, prep["w1"], prep["b1"], prep["w2p"], prep["b2p"],
            prep["wc1"], prep["bc1"], prep["g1"], prep["be1"], m1,
            prep["wc2"], prep["bc2"], prep["g2"], prep["be2"], m2,
            prep["wc3"], prep["bc3"])
    out = pl.pallas_call(
        _make_decoder_kernel(B),
        out_shape=jax.ShapeDtypeStruct((B * 28, 28), jnp.float32),
        grid=(1,),
        in_specs=[pl.BlockSpec(a.shape, lambda i: (0, 0)) for a in args],
        out_specs=pl.BlockSpec((B * 28, 28), lambda i: (0, 0)),
        scratch_shapes=[
            pltpu.VMEM((32, B * 81 + 20), jnp.float32),    # convT1 dilated input
            pltpu.VMEM((288, B * 81), jnp.float32),        # convT1 9-tap im2col
            pltpu.VMEM((16, B * 256 + 34), jnp.float32),   # convT2 dilated input
            pltpu.VMEM((144, B * 256), jnp.float32),       # convT2 9-tap im2col
            pltpu.VMEM((8, B * 900 + 62), jnp.float32),    # convT3 dilated input
            pltpu.VMEM((72, B * 900), jnp.float32),        # convT3 9-tap im2col
        ],
        compiler_params=pltpu.CompilerParams(dimension_semantics=("arbitrary",)),
    )(*args)
    # C == 1, so NHWC == NCHW; this reshape is metadata-only.
    return out.reshape(B, 1, 28, 28)


# ---------------------------------------------------------------------------
# Deterministic parameter init (PyTorch-style uniform(-1/sqrt(fan), 1/sqrt(fan)))
# ---------------------------------------------------------------------------
def init_params(key, latent_dims):
    ks = jax.random.split(key, 5)

    def lin(k, out_f, in_f):
        bound = 1.0 / float(in_f) ** 0.5
        w = jax.random.uniform(k, (out_f, in_f), jnp.float32, -bound, bound)
        b = jax.random.uniform(jax.random.fold_in(k, 1), (out_f,),
                               jnp.float32, -bound, bound)
        return w, b

    def convt(k, cin, cout, ksz):
        bound = 1.0 / float(cin * ksz * ksz) ** 0.5
        w = jax.random.uniform(k, (cin, cout, ksz, ksz), jnp.float32,
                               -bound, bound)
        b = jax.random.uniform(jax.random.fold_in(k, 1), (cout,),
                               jnp.float32, -bound, bound)
        return w, b

    w1, b1 = lin(ks[0], 128, latent_dims)
    w2, b2 = lin(ks[1], 3 * 3 * 32, 128)
    wt1, bt1 = convt(ks[2], 32, 16, 3)
    wt2, bt2 = convt(ks[3], 16, 8, 3)
    wt3, bt3 = convt(ks[4], 8, 1, 3)
    return {
        "w1": w1, "b1": b1, "w2": w2, "b2": b2,
        "wt1": wt1, "bt1": bt1, "g1": jnp.ones((16,), jnp.float32),
        "be1": jnp.zeros((16,), jnp.float32),
        "wt2": wt2, "bt2": bt2, "g2": jnp.ones((8,), jnp.float32),
        "be2": jnp.zeros((8,), jnp.float32),
        "wt3": wt3, "bt3": bt3,
    }


if __name__ == "__main__":
    latent_dims = 4
    batch = 2
    key = jax.random.PRNGKey(0)
    pkey, xkey = jax.random.split(key)

    params = init_params(pkey, latent_dims)
    prep = prepare_params(params)          # layout transforms done ONCE
    x = jax.random.normal(xkey, (batch, latent_dims), jnp.float32)

    out = jax.jit(decoder_forward)(prep, x)
    out = jax.block_until_ready(out)

    assert out.shape == (batch, 1, 28, 28), out.shape
    assert out.dtype == jnp.float32
    assert bool(jnp.all(jnp.isfinite(out)))
    assert bool(jnp.all((out >= 0.0) & (out <= 1.0)))   # sigmoid range
    print("KERNEL_OK")
</pallas_src>

<mosaic_0001>
module attributes {stable_mosaic.version = 11 : i64} {
  func.func @kernel(%arg0: i32, %arg1: memref<2x4xf32, #tpu.memory_space<vmem>>, %arg2: memref<128x4xf32, #tpu.memory_space<vmem>>, %arg3: memref<128x1xf32, #tpu.memory_space<vmem>>, %arg4: memref<288x128xf32, #tpu.memory_space<vmem>>, %arg5: memref<288x1xf32, #tpu.memory_space<vmem>>, %arg6: memref<16x288xf32, #tpu.memory_space<vmem>>, %arg7: memref<16x1xf32, #tpu.memory_space<vmem>>, %arg8: memref<16x1xf32, #tpu.memory_space<vmem>>, %arg9: memref<16x1xf32, #tpu.memory_space<vmem>>, %arg10: memref<1x162xf32, #tpu.memory_space<vmem>>, %arg11: memref<8x144xf32, #tpu.memory_space<vmem>>, %arg12: memref<8x1xf32, #tpu.memory_space<vmem>>, %arg13: memref<8x1xf32, #tpu.memory_space<vmem>>, %arg14: memref<8x1xf32, #tpu.memory_space<vmem>>, %arg15: memref<1x512xf32, #tpu.memory_space<vmem>>, %arg16: memref<8x72xf32, #tpu.memory_space<vmem>>, %arg17: memref<8x1xf32, #tpu.memory_space<vmem>>, %arg18: memref<56x28xf32, #tpu.memory_space<vmem>>, %arg19: memref<32x182xf32, #tpu.memory_space<vmem>>, %arg20: memref<288x162xf32, #tpu.memory_space<vmem>>, %arg21: memref<16x546xf32, #tpu.memory_space<vmem>>, %arg22: memref<144x512xf32, #tpu.memory_space<vmem>>, %arg23: memref<8x1862xf32, #tpu.memory_space<vmem>>, %arg24: memref<72x1800xf32, #tpu.memory_space<vmem>>) attributes {dimension_semantics = [#tpu.dimension_semantics<arbitrary>], iteration_bounds = array<i64: 1>, scalar_prefetch = 0 : i64, scratch_operands = 6 : i64, tpu.core_type = #tpu.core_type<tc>, window_params = [{pipeline_mode = #tpu.pipeline_mode<synchronous>, transform_indices = @transform_0, window_bounds = array<i64: 2, 4>}, {pipeline_mode = #tpu.pipeline_mode<synchronous>, transform_indices = @transform_1, window_bounds = array<i64: 128, 4>}, {pipeline_mode = #tpu.pipeline_mode<synchronous>, transform_indices = @transform_2, window_bounds = array<i64: 128, 1>}, {pipeline_mode = #tpu.pipeline_mode<synchronous>, transform_indices = @transform_3, window_bounds = array<i64: 288, 128>}, {pipeline_mode = #tpu.pipeline_mode<synchronous>, transform_indices = @transform_4, window_bounds = array<i64: 288, 1>}, {pipeline_mode = #tpu.pipeline_mode<synchronous>, transform_indices = @transform_5, window_bounds = array<i64: 16, 288>}, {pipeline_mode = #tpu.pipeline_mode<synchronous>, transform_indices = @transform_6, window_bounds = array<i64: 16, 1>}, {pipeline_mode = #tpu.pipeline_mode<synchronous>, transform_indices = @transform_7, window_bounds = array<i64: 16, 1>}, {pipeline_mode = #tpu.pipeline_mode<synchronous>, transform_indices = @transform_8, window_bounds = array<i64: 16, 1>}, {pipeline_mode = #tpu.pipeline_mode<synchronous>, transform_indices = @transform_9, window_bounds = array<i64: 1, 162>}, {pipeline_mode = #tpu.pipeline_mode<synchronous>, transform_indices = @transform_10, window_bounds = array<i64: 8, 144>}, {pipeline_mode = #tpu.pipeline_mode<synchronous>, transform_indices = @transform_11, window_bounds = array<i64: 8, 1>}, {pipeline_mode = #tpu.pipeline_mode<synchronous>, transform_indices = @transform_12, window_bounds = array<i64: 8, 1>}, {pipeline_mode = #tpu.pipeline_mode<synchronous>, transform_indices = @transform_13, window_bounds = array<i64: 8, 1>}, {pipeline_mode = #tpu.pipeline_mode<synchronous>, transform_indices = @transform_14, window_bounds = array<i64: 1, 512>}, {pipeline_mode = #tpu.pipeline_mode<synchronous>, transform_indices = @transform_15, window_bounds = array<i64: 8, 72>}, {pipeline_mode = #tpu.pipeline_mode<synchronous>, transform_indices = @transform_16, window_bounds = array<i64: 8, 1>}, {pipeline_mode = #tpu.pipeline_mode<synchronous>, transform_indices = @transform_17, window_bounds = array<i64: 56, 28>}]} {
    %c0 = arith.constant 0 : index
    %c0_0 = arith.constant 0 : index
    %0 = vector.load %arg2[%c0, %c0_0] : memref<128x4xf32, #tpu.memory_space<vmem>>, vector<128x4xf32>
    %c0_1 = arith.constant 0 : index
    %c0_2 = arith.constant 0 : index
    %1 = vector.load %arg1[%c0_1, %c0_2] : memref<2x4xf32, #tpu.memory_space<vmem>>, vector<2x4xf32>
    %cst = arith.constant dense<0.000000e+00> : vector<128x2xf32>
    %2 = tpu.matmul %0, %1, %cst {dimension_numbers = #tpu.dot_dimension_numbers<[1], [1], [0], [0], [0, 0, 1, 0], [], []>} : vector<128x4xf32>, vector<2x4xf32>, vector<128x2xf32> -> vector<128x2xf32>
    %c0_3 = arith.constant 0 : index
    %c0_4 = arith.constant 0 : index
    %3 = vector.load %arg3[%c0_3, %c0_4] : memref<128x1xf32, #tpu.memory_space<vmem>>, vector<128x1xf32>
    %4 = vector.broadcast %3 : vector<128x1xf32> to vector<128x2xf32>
    %5 = arith.addf %2, %4 : vector<128x2xf32>
    %cst_5 = arith.constant 0.000000e+00 : f32
    %6 = vector.broadcast %cst_5 : f32 to vector<128x2xf32>
    %7 = arith.maximumf %5, %6 : vector<128x2xf32>
    %c0_6 = arith.constant 0 : index
    %c0_7 = arith.constant 0 : index
    %8 = vector.load %arg4[%c0_6, %c0_7] : memref<288x128xf32, #tpu.memory_space<vmem>>, vector<288x128xf32>
    %cst_8 = arith.constant dense<0.000000e+00> : vector<288x2xf32>
    %9 = tpu.matmul %8, %7, %cst_8 {dimension_numbers = #tpu.dot_dimension_numbers<[1], [0], [0], [1], [0, 0, 1, 1], [], []>} : vector<288x128xf32>, vector<128x2xf32>, vector<288x2xf32> -> vector<288x2xf32>
    %c0_9 = arith.constant 0 : index
    %c0_10 = arith.constant 0 : index
    %10 = vector.load %arg5[%c0_9, %c0_10] : memref<288x1xf32, #tpu.memory_space<vmem>>, vector<288x1xf32>
    %11 = vector.broadcast %10 : vector<288x1xf32> to vector<288x2xf32>
    %12 = arith.addf %9, %11 : vector<288x2xf32>
    %cst_11 = arith.constant 0.000000e+00 : f32
    %13 = vector.broadcast %cst_11 : f32 to vector<288x2xf32>
    %14 = arith.maximumf %12, %13 : vector<288x2xf32>
    %cst_12 = arith.constant 0.000000e+00 : f32
    %15 = vector.broadcast %cst_12 : f32 to vector<32x182xf32>
    %c0_13 = arith.constant 0 : index
    %c0_14 = arith.constant 0 : index
    %16 = vector.load %arg19[%c0_13, %c0_14] : memref<32x182xf32, #tpu.memory_space<vmem>>, vector<32x182xf32>
    tpu.vector_store %arg19[%c0_13, %c0_14], %15 {strides = array<i32>} : memref<32x182xf32, #tpu.memory_space<vmem>>, vector<32x182xf32>,
    %cst_15 = arith.constant 0.000000e+00 : f32
    %17 = vector.broadcast %cst_15 : f32 to vector<16x546xf32>
    %c0_16 = arith.constant 0 : index
    %c0_17 = arith.constant 0 : index
    %18 = vector.load %arg21[%c0_16, %c0_17] : memref<16x546xf32, #tpu.memory_space<vmem>>, vector<16x546xf32>
    tpu.vector_store %arg21[%c0_16, %c0_17], %17 {strides = array<i32>} : memref<16x546xf32, #tpu.memory_space<vmem>>, vector<16x546xf32>,
    %cst_18 = arith.constant 0.000000e+00 : f32
    %19 = vector.broadcast %cst_18 : f32 to vector<8x1862xf32>
    %c0_19 = arith.constant 0 : index
    %c0_20 = arith.constant 0 : index
    %20 = vector.load %arg23[%c0_19, %c0_20] : memref<8x1862xf32, #tpu.memory_space<vmem>>, vector<8x1862xf32>
    tpu.vector_store %arg23[%c0_19, %c0_20], %19 {strides = array<i32>} : memref<8x1862xf32, #tpu.memory_space<vmem>>, vector<8x1862xf32>,
    %21 = vector.extract_strided_slice %14 {offsets = [0, 0], sizes = [32, 1], strides = [1, 1]} : vector<288x2xf32> to vector<32x1xf32>
    %c0_21 = arith.constant 0 : index
    %c20 = arith.constant 20 : index
    %22 = vector.load %arg19[%c0_21, %c20] : memref<32x182xf32, #tpu.memory_space<vmem>>, vector<32x1xf32>
    tpu.vector_store %arg19[%c0_21, %c20], %21 {strides = array<i32>} : memref<32x182xf32, #tpu.memory_space<vmem>>, vector<32x1xf32>,
    %23 = vector.extract_strided_slice %14 {offsets = [32, 0], sizes = [32, 1], strides = [1, 1]} : vector<288x2xf32> to vector<32x1xf32>
    %c0_22 = arith.constant 0 : index
    %c22 = arith.constant 22 : index
    %24 = vector.load %arg19[%c0_22, %c22] : memref<32x182xf32, #tpu.memory_space<vmem>>, vector<32x1xf32>
    tpu.vector_store %arg19[%c0_22, %c22], %23 {strides = array<i32>} : memref<32x182xf32, #tpu.memory_space<vmem>>, vector<32x1xf32>,
    %25 = vector.extract_strided_slice %14 {offsets = [64, 0], sizes = [32, 1], strides = [1, 1]} : vector<288x2xf32> to vector<32x1xf32>
    %c0_23 = arith.constant 0 : index
    %c24 = arith.constant 24 : index
    %26 = vector.load %arg19[%c0_23, %c24] : memref<32x182xf32, #tpu.memory_space<vmem>>, vector<32x1xf32>
    tpu.vector_store %arg19[%c0_23, %c24], %25 {strides = array<i32>} : memref<32x182xf32, #tpu.memory_space<vmem>>, vector<32x1xf32>,
    %27 = vector.extract_strided_slice %14 {offsets = [96, 0], sizes = [32, 1], strides = [1, 1]} : vector<288x2xf32> to vector<32x1xf32>
    %c0_24 = arith.constant 0 : index
    %c38 = arith.constant 38 : index
    %28 = vector.load %arg19[%c0_24, %c38] : memref<32x182xf32, #tpu.memory_space<vmem>>, vector<32x1xf32>
    tpu.vector_store %arg19[%c0_24, %c38], %27 {strides = array<i32>} : memref<32x182xf32, #tpu.memory_space<vmem>>, vector<32x1xf32>,
    %29 = vector.extract_strided_slice %14 {offsets = [128, 0], sizes = [32, 1], strides = [1, 1]} : vector<288x2xf32> to vector<32x1xf32>
    %c0_25 = arith.constant 0 : index
    %c40 = arith.constant 40 : index
    %30 = vector.load %arg19[%c0_25, %c40] : memref<32x182xf32, #tpu.memory_space<vmem>>, vector<32x1xf32>
    tpu.vector_store %arg19[%c0_25, %c40], %29 {strides = array<i32>} : memref<32x182xf32, #tpu.memory_space<vmem>>, vector<32x1xf32>,
    %31 = vector.extract_strided_slice %14 {offsets = [160, 0], sizes = [32, 1], strides = [1, 1]} : vector<288x2xf32> to vector<32x1xf32>
    %c0_26 = arith.constant 0 : index
    %c42 = arith.constant 42 : index
    %32 = vector.load %arg19[%c0_26, %c42] : memref<32x182xf32, #tpu.memory_space<vmem>>, vector<32x1xf32>
    tpu.vector_store %arg19[%c0_26, %c42], %31 {strides = array<i32>} : memref<32x182xf32, #tpu.memory_space<vmem>>, vector<32x1xf32>,
    %33 = vector.extract_strided_slice %14 {offsets = [192, 0], sizes = [32, 1], strides = [1, 1]} : vector<288x2xf32> to vector<32x1xf32>
    %c0_27 = arith.constant 0 : index
    %c56 = arith.constant 56 : index
    %34 = vector.load %arg19[%c0_27, %c56] : memref<32x182xf32, #tpu.memory_space<vmem>>, vector<32x1xf32>
    tpu.vector_store %arg19[%c0_27, %c56], %33 {strides = array<i32>} : memref<32x182xf32, #tpu.memory_space<vmem>>, vector<32x1xf32>,
    %35 = vector.extract_strided_slice %14 {offsets = [224, 0], sizes = [32, 1], strides = [1, 1]} : vector<288x2xf32> to vector<32x1xf32>
    %c0_28 = arith.constant 0 : index
    %c58 = arith.constant 58 : index
    %36 = vector.load %arg19[%c0_28, %c58] : memref<32x182xf32, #tpu.memory_space<vmem>>, vector<32x1xf32>
    tpu.vector_store %arg19[%c0_28, %c58], %35 {strides = array<i32>} : memref<32x182xf32, #tpu.memory_space<vmem>>, vector<32x1xf32>,
    %37 = vector.extract_strided_slice %14 {offsets = [256, 0], sizes = [32, 1], strides = [1, 1]} : vector<288x2xf32> to vector<32x1xf32>
    %c0_29 = arith.constant 0 : index
    %c60 = arith.constant 60 : index
    %38 = vector.load %arg19[%c0_29, %c60] : memref<32x182xf32, #tpu.memory_space<vmem>>, vector<32x1xf32>
    tpu.vector_store %arg19[%c0_29, %c60], %37 {strides = array<i32>} : memref<32x182xf32, #tpu.memory_space<vmem>>, vector<32x1xf32>,
    %39 = vector.extract_strided_slice %14 {offsets = [0, 1], sizes = [32, 1], strides = [1, 1]} : vector<288x2xf32> to vector<32x1xf32>
    %c0_30 = arith.constant 0 : index
    %c101 = arith.constant 101 : index
    %40 = vector.load %arg19[%c0_30, %c101] : memref<32x182xf32, #tpu.memory_space<vmem>>, vector<32x1xf32>
    tpu.vector_store %arg19[%c0_30, %c101], %39 {strides = array<i32>} : memref<32x182xf32, #tpu.memory_space<vmem>>, vector<32x1xf32>,
    %41 = vector.extract_strided_slice %14 {offsets = [32, 1], sizes = [32, 1], strides = [1, 1]} : vector<288x2xf32> to vector<32x1xf32>
    %c0_31 = arith.constant 0 : index
    %c103 = arith.constant 103 : index
    %42 = vector.load %arg19[%c0_31, %c103] : memref<32x182xf32, #tpu.memory_space<vmem>>, vector<32x1xf32>
    tpu.vector_store %arg19[%c0_31, %c103], %41 {strides = array<i32>} : memref<32x182xf32, #tpu.memory_space<vmem>>, vector<32x1xf32>,
    %43 = vector.extract_strided_slice %14 {offsets = [64, 1], sizes = [32, 1], strides = [1, 1]} : vector<288x2xf32> to vector<32x1xf32>
    %c0_32 = arith.constant 0 : index
    %c105 = arith.constant 105 : index
    %44 = vector.load %arg19[%c0_32, %c105] : memref<32x182xf32, #tpu.memory_space<vmem>>, vector<32x1xf32>
    tpu.vector_store %arg19[%c0_32, %c105], %43 {strides = array<i32>} : memref<32x182xf32, #tpu.memory_space<vmem>>, vector<32x1xf32>,
    %45 = vector.extract_strided_slice %14 {offsets = [96, 1], sizes = [32, 1], strides = [1, 1]} : vector<288x2xf32> to vector<32x1xf32>
    %c0_33 = arith.constant 0 : index
    %c119 = arith.constant 119 : index
    %46 = vector.load %arg19[%c0_33, %c119] : memref<32x182xf32, #tpu.memory_space<vmem>>, vector<32x1xf32>
    tpu.vector_store %arg19[%c0_33, %c119], %45 {strides = array<i32>} : memref<32x182xf32, #tpu.memory_space<vmem>>, vector<32x1xf32>,
    %47 = vector.extract_strided_slice %14 {offsets = [128, 1], sizes = [32, 1], strides = [1, 1]} : vector<288x2xf32> to vector<32x1xf32>
    %c0_34 = arith.constant 0 : index
    %c121 = arith.constant 121 : index
    %48 = vector.load %arg19[%c0_34, %c121] : memref<32x182xf32, #tpu.memory_space<vmem>>, vector<32x1xf32>
    tpu.vector_store %arg19[%c0_34, %c121], %47 {strides = array<i32>} : memref<32x182xf32, #tpu.memory_space<vmem>>, vector<32x1xf32>,
    %49 = vector.extract_strided_slice %14 {offsets = [160, 1], sizes = [32, 1], strides = [1, 1]} : vector<288x2xf32> to vector<32x1xf32>
    %c0_35 = arith.constant 0 : index
    %c123 = arith.constant 123 : index
    %50 = vector.load %arg19[%c0_35, %c123] : memref<32x182xf32, #tpu.memory_space<vmem>>, vector<32x1xf32>
    tpu.vector_store %arg19[%c0_35, %c123], %49 {strides = array<i32>} : memref<32x182xf32, #tpu.memory_space<vmem>>, vector<32x1xf32>,
    %51 = vector.extract_strided_slice %14 {offsets = [192, 1], sizes = [32, 1], strides = [1, 1]} : vector<288x2xf32> to vector<32x1xf32>
    %c0_36 = arith.constant 0 : index
    %c137 = arith.constant 137 : index
    %52 = vector.load %arg19[%c0_36, %c137] : memref<32x182xf32, #tpu.memory_space<vmem>>, vector<32x1xf32>
    tpu.vector_store %arg19[%c0_36, %c137], %51 {strides = array<i32>} : memref<32x182xf32, #tpu.memory_space<vmem>>, vector<32x1xf32>,
    %53 = vector.extract_strided_slice %14 {offsets = [224, 1], sizes = [32, 1], strides = [1, 1]} : vector<288x2xf32> to vector<32x1xf32>
    %c0_37 = arith.constant 0 : index
    %c139 = arith.constant 139 : index
    %54 = vector.load %arg19[%c0_37, %c139] : memref<32x182xf32, #tpu.memory_space<vmem>>, vector<32x1xf32>
    tpu.vector_store %arg19[%c0_37, %c139], %53 {strides = array<i32>} : memref<32x182xf32, #tpu.memory_space<vmem>>, vector<32x1xf32>,
    %55 = vector.extract_strided_slice %14 {offsets = [256, 1], sizes = [32, 1], strides = [1, 1]} : vector<288x2xf32> to vector<32x1xf32>
    %c0_38 = arith.constant 0 : index
    %c141 = arith.constant 141 : index
    %56 = vector.load %arg19[%c0_38, %c141] : memref<32x182xf32, #tpu.memory_space<vmem>>, vector<32x1xf32>
    tpu.vector_store %arg19[%c0_38, %c141], %55 {strides = array<i32>} : memref<32x182xf32, #tpu.memory_space<vmem>>, vector<32x1xf32>,
    %c0_39 = arith.constant 0 : index
    %c0_40 = arith.constant 0 : index
    %57 = vector.load %arg19[%c0_39, %c0_40] : memref<32x182xf32, #tpu.memory_space<vmem>>, vector<32x182xf32>
    %58 = vector.extract_strided_slice %57 {offsets = [0, 0], sizes = [32, 162], strides = [1, 1]} : vector<32x182xf32> to vector<32x162xf32>
    %c0_41 = arith.constant 0 : index
    %c0_42 = arith.constant 0 : index
    %59 = vector.load %arg20[%c0_41, %c0_42] : memref<288x162xf32, #tpu.memory_space<vmem>>, vector<32x162xf32>
    tpu.vector_store %arg20[%c0_41, %c0_42], %58 {strides = array<i32>} : memref<288x162xf32, #tpu.memory_space<vmem>>, vector<32x162xf32>,
    %60 = vector.extract_strided_slice %57 {offsets = [0, 1], sizes = [32, 162], strides = [1, 1]} : vector<32x182xf32> to vector<32x162xf32>
    %c32 = arith.constant 32 : index
    %c0_43 = arith.constant 0 : index
    %61 = vector.load %arg20[%c32, %c0_43] : memref<288x162xf32, #tpu.memory_space<vmem>>, vector<32x162xf32>
    tpu.vector_store %arg20[%c32, %c0_43], %60 {strides = array<i32>} : memref<288x162xf32, #tpu.memory_space<vmem>>, vector<32x162xf32>,
    %62 = vector.extract_strided_slice %57 {offsets = [0, 2], sizes = [32, 162], strides = [1, 1]} : vector<32x182xf32> to vector<32x162xf32>
    %c64 = arith.constant 64 : index
    %c0_44 = arith.constant 0 : index
    %63 = vector.load %arg20[%c64, %c0_44] : memref<288x162xf32, #tpu.memory_space<vmem>>, vector<32x162xf32>
    tpu.vector_store %arg20[%c64, %c0_44], %62 {strides = array<i32>} : memref<288x162xf32, #tpu.memory_space<vmem>>, vector<32x162xf32>,
    %64 = vector.extract_strided_slice %57 {offsets = [0, 9], sizes = [32, 162], strides = [1, 1]} : vector<32x182xf32> to vector<32x162xf32>
    %c96 = arith.constant 96 : index
    %c0_45 = arith.constant 0 : index
    %65 = vector.load %arg20[%c96, %c0_45] : memref<288x162xf32, #tpu.memory_space<vmem>>, vector<32x162xf32>
    tpu.vector_store %arg20[%c96, %c0_45], %64 {strides = array<i32>} : memref<288x162xf32, #tpu.memory_space<vmem>>, vector<32x162xf32>,
    %66 = vector.extract_strided_slice %57 {offsets = [0, 10], sizes = [32, 162], strides = [1, 1]} : vector<32x182xf32> to vector<32x162xf32>
    %c128 = arith.constant 128 : index
    %c0_46 = arith.constant 0 : index
    %67 = vector.load %arg20[%c128, %c0_46] : memref<288x162xf32, #tpu.memory_space<vmem>>, vector<32x162xf32>
    tpu.vector_store %arg20[%c128, %c0_46], %66 {strides = array<i32>} : memref<288x162xf32, #tpu.memory_space<vmem>>, vector<32x162xf32>,
    %68 = vector.extract_strided_slice %57 {offsets = [0, 11], sizes = [32, 162], strides = [1, 1]} : vector<32x182xf32> to vector<32x162xf32>
    %c160 = arith.constant 160 : index
    %c0_47 = arith.constant 0 : index
    %69 = vector.load %arg20[%c160, %c0_47] : memref<288x162xf32, #tpu.memory_space<vmem>>, vector<32x162xf32>
    tpu.vector_store %arg20[%c160, %c0_47], %68 {strides = array<i32>} : memref<288x162xf32, #tpu.memory_space<vmem>>, vector<32x162xf32>,
    %70 = vector.extract_strided_slice %57 {offsets = [0, 18], sizes = [32, 162], strides = [1, 1]} : vector<32x182xf32> to vector<32x162xf32>
    %c192 = arith.constant 192 : index
    %c0_48 = arith.constant 0 : index
    %71 = vector.load %arg20[%c192, %c0_48] : memref<288x162xf32, #tpu.memory_space<vmem>>, vector<32x162xf32>
    tpu.vector_store %arg20[%c192, %c0_48], %70 {strides = array<i32>} : memref<288x162xf32, #tpu.memory_space<vmem>>, vector<32x162xf32>,
    %72 = vector.extract_strided_slice %57 {offsets = [0, 19], sizes = [32, 162], strides = [1, 1]} : vector<32x182xf32> to vector<32x162xf32>
    %c224 = arith.constant 224 : index
    %c0_49 = arith.constant 0 : index
    %73 = vector.load %arg20[%c224, %c0_49] : memref<288x162xf32, #tpu.memory_space<vmem>>, vector<32x162xf32>
    tpu.vector_store %arg20[%c224, %c0_49], %72 {strides = array<i32>} : memref<288x162xf32, #tpu.memory_space<vmem>>, vector<32x162xf32>,
    %74 = vector.extract_strided_slice %57 {offsets = [0, 20], sizes = [32, 162], strides = [1, 1]} : vector<32x182xf32> to vector<32x162xf32>
    %c256 = arith.constant 256 : index
    %c0_50 = arith.constant 0 : index
    %75 = vector.load %arg20[%c256, %c0_50] : memref<288x162xf32, #tpu.memory_space<vmem>>, vector<32x162xf32>
    tpu.vector_store %arg20[%c256, %c0_50], %74 {strides = array<i32>} : memref<288x162xf32, #tpu.memory_space<vmem>>, vector<32x162xf32>,
    %c0_51 = arith.constant 0 : index
    %c0_52 = arith.constant 0 : index
    %76 = vector.load %arg6[%c0_51, %c0_52] : memref<16x288xf32, #tpu.memory_space<vmem>>, vector<16x288xf32>
    %c0_53 = arith.constant 0 : index
    %c0_54 = arith.constant 0 : index
    %77 = vector.load %arg20[%c0_53, %c0_54] : memref<288x162xf32, #tpu.memory_space<vmem>>, vector<288x162xf32>
    %cst_55 = arith.constant dense<0.000000e+00> : vector<16x162xf32>
    %78 = tpu.matmul %76, %77, %cst_55 {dimension_numbers = #tpu.dot_dimension_numbers<[1], [0], [0], [1], [0, 0, 1, 1], [], []>} : vector<16x288xf32>, vector<288x162xf32>, vector<16x162xf32> -> vector<16x162xf32>
    %c0_56 = arith.constant 0 : index
    %c0_57 = arith.constant 0 : index
    %79 = vector.load %arg7[%c0_56, %c0_57] : memref<16x1xf32, #tpu.memory_space<vmem>>, vector<16x1xf32>
    %80 = vector.broadcast %79 : vector<16x1xf32> to vector<16x162xf32>
    %81 = arith.addf %78, %80 : vector<16x162xf32>
    %c0_58 = arith.constant 0 : index
    %c0_59 = arith.constant 0 : index
    %82 = vector.load %arg10[%c0_58, %c0_59] : memref<1x162xf32, #tpu.memory_space<vmem>>, vector<1x162xf32>
    %c0_60 = arith.constant 0 : index
    %c0_61 = arith.constant 0 : index
    %83 = vector.load %arg8[%c0_60, %c0_61] : memref<16x1xf32, #tpu.memory_space<vmem>>, vector<16x1xf32>
    %c0_62 = arith.constant 0 : index
    %c0_63 = arith.constant 0 : index
    %84 = vector.load %arg9[%c0_62, %c0_63] : memref<16x1xf32, #tpu.memory_space<vmem>>, vector<16x1xf32>
    %85 = vector.broadcast %82 : vector<1x162xf32> to vector<16x162xf32>
    %86 = arith.mulf %81, %85 : vector<16x162xf32>
    %cst_64 = arith.constant dense<0.000000e+00> : vector<16xf32>
    %87 = vector.multi_reduction <add>, %86, %cst_64 [1] : vector<16x162xf32> to vector<16xf32>
    %88 = vector.shape_cast %87 : vector<16xf32> to vector<16x1xf32>
    %cst_65 = arith.constant 0.0102040814 : f32
    %89 = vector.broadcast %cst_65 : f32 to vector<16x1xf32>
    %90 = arith.mulf %88, %89 : vector<16x1xf32>
    %91 = vector.broadcast %90 : vector<16x1xf32> to vector<16x162xf32>
    %92 = arith.subf %81, %91 : vector<16x162xf32>
    %93 = arith.mulf %92, %92 : vector<16x162xf32>
    %94 = vector.broadcast %82 : vector<1x162xf32> to vector<16x162xf32>
    %95 = arith.mulf %93, %94 : vector<16x162xf32>
    %cst_66 = arith.constant dense<0.000000e+00> : vector<16xf32>
    %96 = vector.multi_reduction <add>, %95, %cst_66 [1] : vector<16x162xf32> to vector<16xf32>
    %97 = vector.shape_cast %96 : vector<16xf32> to vector<16x1xf32>
    %cst_67 = arith.constant 0.0102040814 : f32
    %98 = vector.broadcast %cst_67 : f32 to vector<16x1xf32>
    %99 = arith.mulf %97, %98 : vector<16x1xf32>
    %cst_68 = arith.constant 9.99999974E-6 : f32
    %100 = vector.broadcast %cst_68 : f32 to vector<16x1xf32>
    %101 = arith.addf %99, %100 : vector<16x1xf32>
    %102 = math.rsqrt %101 : vector<16x1xf32>
    %103 = arith.mulf %102, %83 : vector<16x1xf32>
    %104 = vector.broadcast %103 : vector<16x1xf32> to vector<16x162xf32>
    %105 = arith.mulf %92, %104 : vector<16x162xf32>
    %106 = vector.broadcast %84 : vector<16x1xf32> to vector<16x162xf32>
    %107 = arith.addf %105, %106 : vector<16x162xf32>
    %cst_69 = arith.constant 0.000000e+00 : f32
    %108 = vector.broadcast %cst_69 : f32 to vector<16x162xf32>
    %109 = arith.maximumf %107, %108 : vector<16x162xf32>
    %110 = tpu.iota {dimensions = array<i32: 0>} : vector<7x16xi32>
    %111 = tpu.iota {dimensions = array<i32: 1>} : vector<7x16xi32>
    %c2_i32 = arith.constant 2 : i32
    %112 = vector.broadcast %c2_i32 : i32 to vector<7x16xi32>
    %113 = arith.muli %112, %110 : vector<7x16xi32>
    %c1_i32 = arith.constant 1 : i32
    %114 = vector.broadcast %c1_i32 : i32 to vector<7x16xi32>
    %115 = arith.addi %114, %113 : vector<7x16xi32>
    %116 = arith.cmpi eq, %111, %115 : vector<7x16xi32>
    %117 = arith.extui %116 : vector<7x16xi1> to vector<7x16xi32>
    %118 = arith.sitofp %117 : vector<7x16xi32> to vector<7x16xf32>
    %119 = vector.extract_strided_slice %109 {offsets = [0, 0], sizes = [16, 7], strides = [1, 1]} : vector<16x162xf32> to vector<16x7xf32>
    %cst_70 = arith.constant dense<0.000000e+00> : vector<16x16xf32>
    %120 = tpu.matmul %119, %118, %cst_70 {dimension_numbers = #tpu.dot_dimension_numbers<[1], [0], [0], [1], [0, 0, 1, 1], [], []>} : vector<16x7xf32>, vector<7x16xf32>, vector<16x16xf32> -> vector<16x16xf32>
    %c0_71 = arith.constant 0 : index
    %c16 = arith.constant 16 : index
    %121 = vector.load %arg21[%c0_71, %c16] : memref<16x546xf32, #tpu.memory_space<vmem>>, vector<16x16xf32>
    tpu.vector_store %arg21[%c0_71, %c16], %120 {strides = array<i32>} : memref<16x546xf32, #tpu.memory_space<vmem>>, vector<16x16xf32>,
    %122 = vector.extract_strided_slice %109 {offsets = [0, 9], sizes = [16, 7], strides = [1, 1]} : vector<16x162xf32> to vector<16x7xf32>
    %cst_72 = arith.constant dense<0.000000e+00> : vector<16x16xf32>
    %123 = tpu.matmul %122, %118, %cst_72 {dimension_numbers = #tpu.dot_dimension_numbers<[1], [0], [0], [1], [0, 0, 1, 1], [], []>} : vector<16x7xf32>, vector<7x16xf32>, vector<16x16xf32> -> vector<16x16xf32>
    %c0_73 = arith.constant 0 : index
    %c48 = arith.constant 48 : index
    %124 = vector.load %arg21[%c0_73, %c48] : memref<16x546xf32, #tpu.memory_space<vmem>>, vector<16x16xf32>
    tpu.vector_store %arg21[%c0_73, %c48], %123 {strides = array<i32>} : memref<16x546xf32, #tpu.memory_space<vmem>>, vector<16x16xf32>,
    %125 = vector.extract_strided_slice %109 {offsets = [0, 18], sizes = [16, 7], strides = [1, 1]} : vector<16x162xf32> to vector<16x7xf32>
    %cst_74 = arith.constant dense<0.000000e+00> : vector<16x16xf32>
    %126 = tpu.matmul %125, %118, %cst_74 {dimension_numbers = #tpu.dot_dimension_numbers<[1], [0], [0], [1], [0, 0, 1, 1], [], []>} : vector<16x7xf32>, vector<7x16xf32>, vector<16x16xf32> -> vector<16x16xf32>
    %c0_75 = arith.constant 0 : index
    %c80 = arith.constant 80 : index
    %127 = vector.load %arg21[%c0_75, %c80] : memref<16x546xf32, #tpu.memory_space<vmem>>, vector<16x16xf32>
    tpu.vector_store %arg21[%c0_75, %c80], %126 {strides = array<i32>} : memref<16x546xf32, #tpu.memory_space<vmem>>, vector<16x16xf32>,
    %128 = vector.extract_strided_slice %109 {offsets = [0, 27], sizes = [16, 7], strides = [1, 1]} : vector<16x162xf32> to vector<16x7xf32>
    %cst_76 = arith.constant dense<0.000000e+00> : vector<16x16xf32>
    %129 = tpu.matmul %128, %118, %cst_76 {dimension_numbers = #tpu.dot_dimension_numbers<[1], [0], [0], [1], [0, 0, 1, 1], [], []>} : vector<16x7xf32>, vector<7x16xf32>, vector<16x16xf32> -> vector<16x16xf32>
    %c0_77 = arith.constant 0 : index
    %c112 = arith.constant 112 : index
    %130 = vector.load %arg21[%c0_77, %c112] : memref<16x546xf32, #tpu.memory_space<vmem>>, vector<16x16xf32>
    tpu.vector_store %arg21[%c0_77, %c112], %129 {strides = array<i32>} : memref<16x546xf32, #tpu.memory_space<vmem>>, vector<16x16xf32>,
    %131 = vector.extract_strided_slice %109 {offsets = [0, 36], sizes = [16, 7], strides = [1, 1]} : vector<16x162xf32> to vector<16x7xf32>
    %cst_78 = arith.constant dense<0.000000e+00> : vector<16x16xf32>
    %132 = tpu.matmul %131, %118, %cst_78 {dimension_numbers = #tpu.dot_dimension_numbers<[1], [0], [0], [1], [0, 0, 1, 1], [], []>} : vector<16x7xf32>, vector<7x16xf32>, vector<16x16xf32> -> vector<16x16xf32>
    %c0_79 = arith.constant 0 : index
    %c144 = arith.constant 144 : index
    %133 = vector.load %arg21[%c0_79, %c144] : memref<16x546xf32, #tpu.memory_space<vmem>>, vector<16x16xf32>
    tpu.vector_store %arg21[%c0_79, %c144], %132 {strides = array<i32>} : memref<16x546xf32, #tpu.memory_space<vmem>>, vector<16x16xf32>,
    %134 = vector.extract_strided_slice %109 {offsets = [0, 45], sizes = [16, 7], strides = [1, 1]} : vector<16x162xf32> to vector<16x7xf32>
    %cst_80 = arith.constant dense<0.000000e+00> : vector<16x16xf32>
    %135 = tpu.matmul %134, %118, %cst_80 {dimension_numbers = #tpu.dot_dimension_numbers<[1], [0], [0], [1], [0, 0, 1, 1], [], []>} : vector<16x7xf32>, vector<7x16xf32>, vector<16x16xf32> -> vector<16x16xf32>
    %c0_81 = arith.constant 0 : index
    %c176 = arith.constant 176 : index
    %136 = vector.load %arg21[%c0_81, %c176] : memref<16x546xf32, #tpu.memory_space<vmem>>, vector<16x16xf32>
    tpu.vector_store %arg21[%c0_81, %c176], %135 {strides = array<i32>} : memref<16x546xf32, #tpu.memory_space<vmem>>, vector<16x16xf32>,
    %137 = vector.extract_strided_slice %109 {offsets = [0, 54], sizes = [16, 7], strides = [1, 1]} : vector<16x162xf32> to vector<16x7xf32>
    %cst_82 = arith.constant dense<0.000000e+00> : vector<16x16xf32>
    %138 = tpu.matmul %137, %118, %cst_82 {dimension_numbers = #tpu.dot_dimension_numbers<[1], [0], [0], [1], [0, 0, 1, 1], [], []>} : vector<16x7xf32>, vector<7x16xf32>, vector<16x16xf32> -> vector<16x16xf32>
    %c0_83 = arith.constant 0 : index
    %c208 = arith.constant 208 : index
    %139 = vector.load %arg21[%c0_83, %c208] : memref<16x546xf32, #tpu.memory_space<vmem>>, vector<16x16xf32>
    tpu.vector_store %arg21[%c0_83, %c208], %138 {strides = array<i32>} : memref<16x546xf32, #tpu.memory_space<vmem>>, vector<16x16xf32>,
    %140 = vector.extract_strided_slice %109 {offsets = [0, 81], sizes = [16, 7], strides = [1, 1]} : vector<16x162xf32> to vector<16x7xf32>
    %cst_84 = arith.constant dense<0.000000e+00> : vector<16x16xf32>
    %141 = tpu.matmul %140, %118, %cst_84 {dimension_numbers = #tpu.dot_dimension_numbers<[1], [0], [0], [1], [0, 0, 1, 1], [], []>} : vector<16x7xf32>, vector<7x16xf32>, vector<16x16xf32> -> vector<16x16xf32>
    %c0_85 = arith.constant 0 : index
    %c272 = arith.constant 272 : index
    %142 = vector.load %arg21[%c0_85, %c272] : memref<16x546xf32, #tpu.memory_space<vmem>>, vector<16x16xf32>
    tpu.vector_store %arg21[%c0_85, %c272], %141 {strides = array<i32>} : memref<16x546xf32, #tpu.memory_space<vmem>>, vector<16x16xf32>,
    %143 = vector.extract_strided_slice %109 {offsets = [0, 90], sizes = [16, 7], strides = [1, 1]} : vector<16x162xf32> to vector<16x7xf32>
    %cst_86 = arith.constant dense<0.000000e+00> : vector<16x16xf32>
    %144 = tpu.matmul %143, %118, %cst_86 {dimension_numbers = #tpu.dot_dimension_numbers<[1], [0], [0], [1], [0, 0, 1, 1], [], []>} : vector<16x7xf32>, vector<7x16xf32>, vector<16x16xf32> -> vector<16x16xf32>
    %c0_87 = arith.constant 0 : index
    %c304 = arith.constant 304 : index
    %145 = vector.load %arg21[%c0_87, %c304] : memref<16x546xf32, #tpu.memory_space<vmem>>, vector<16x16xf32>
    tpu.vector_store %arg21[%c0_87, %c304], %144 {strides = array<i32>} : memref<16x546xf32, #tpu.memory_space<vmem>>, vector<16x16xf32>,
    %146 = vector.extract_strided_slice %109 {offsets = [0, 99], sizes = [16, 7], strides = [1, 1]} : vector<16x162xf32> to vector<16x7xf32>
    %cst_88 = arith.constant dense<0.000000e+00> : vector<16x16xf32>
    %147 = tpu.matmul %146, %118, %cst_88 {dimension_numbers = #tpu.dot_dimension_numbers<[1], [0], [0], [1], [0, 0, 1, 1], [], []>} : vector<16x7xf32>, vector<7x16xf32>, vector<16x16xf32> -> vector<16x16xf32>
    %c0_89 = arith.constant 0 : index
    %c336 = arith.constant 336 : index
    %148 = vector.load %arg21[%c0_89, %c336] : memref<16x546xf32, #tpu.memory_space<vmem>>, vector<16x16xf32>
    tpu.vector_store %arg21[%c0_89, %c336], %147 {strides = array<i32>} : memref<16x546xf32, #tpu.memory_space<vmem>>, vector<16x16xf32>,
    %149 = vector.extract_strided_slice %109 {offsets = [0, 108], sizes = [16, 7], strides = [1, 1]} : vector<16x162xf32> to vector<16x7xf32>
    %cst_90 = arith.constant dense<0.000000e+00> : vector<16x16xf32>
    %150 = tpu.matmul %149, %118, %cst_90 {dimension_numbers = #tpu.dot_dimension_numbers<[1], [0], [0], [1], [0, 0, 1, 1], [], []>} : vector<16x7xf32>, vector<7x16xf32>, vector<16x16xf32> -> vector<16x16xf32>
    %c0_91 = arith.constant 0 : index
    %c368 = arith.constant 368 : index
    %151 = vector.load %arg21[%c0_91, %c368] : memref<16x546xf32, #tpu.memory_space<vmem>>, vector<16x16xf32>
    tpu.vector_store %arg21[%c0_91, %c368], %150 {strides = array<i32>} : memref<16x546xf32, #tpu.memory_space<vmem>>, vector<16x16xf32>,
    %152 = vector.extract_strided_slice %109 {offsets = [0, 117], sizes = [16, 7], strides = [1, 1]} : vector<16x162xf32> to vector<16x7xf32>
    %cst_92 = arith.constant dense<0.000000e+00> : vector<16x16xf32>
    %153 = tpu.matmul %152, %118, %cst_92 {dimension_numbers = #tpu.dot_dimension_numbers<[1], [0], [0], [1], [0, 0, 1, 1], [], []>} : vector<16x7xf32>, vector<7x16xf32>, vector<16x16xf32> -> vector<16x16xf32>
    %c0_93 = arith.constant 0 : index
    %c400 = arith.constant 400 : index
    %154 = vector.load %arg21[%c0_93, %c400] : memref<16x546xf32, #tpu.memory_space<vmem>>, vector<16x16xf32>
    tpu.vector_store %arg21[%c0_93, %c400], %153 {strides = array<i32>} : memref<16x546xf32, #tpu.memory_space<vmem>>, vector<16x16xf32>,
    %155 = vector.extract_strided_slice %109 {offsets = [0, 126], sizes = [16, 7], strides = [1, 1]} : vector<16x162xf32> to vector<16x7xf32>
    %cst_94 = arith.constant dense<0.000000e+00> : vector<16x16xf32>
    %156 = tpu.matmul %155, %118, %cst_94 {dimension_numbers = #tpu.dot_dimension_numbers<[1], [0], [0], [1], [0, 0, 1, 1], [], []>} : vector<16x7xf32>, vector<7x16xf32>, vector<16x16xf32> -> vector<16x16xf32>
    %c0_95 = arith.constant 0 : index
    %c432 = arith.constant 432 : index
    %157 = vector.load %arg21[%c0_95, %c432] : memref<16x546xf32, #tpu.memory_space<vmem>>, vector<16x16xf32>
    tpu.vector_store %arg21[%c0_95, %c432], %156 {strides = array<i32>} : memref<16x546xf32, #tpu.memory_space<vmem>>, vector<16x16xf32>,
    %158 = vector.extract_strided_slice %109 {offsets = [0, 135], sizes = [16, 7], strides = [1, 1]} : vector<16x162xf32> to vector<16x7xf32>
    %cst_96 = arith.constant dense<0.000000e+00> : vector<16x16xf32>
    %159 = tpu.matmul %158, %118, %cst_96 {dimension_numbers = #tpu.dot_dimension_numbers<[1], [0], [0], [1], [0, 0, 1, 1], [], []>} : vector<16x7xf32>, vector<7x16xf32>, vector<16x16xf32> -> vector<16x16xf32>
    %c0_97 = arith.constant 0 : index
    %c464 = arith.constant 464 : index
    %160 = vector.load %arg21[%c0_97, %c464] : memref<16x546xf32, #tpu.memory_space<vmem>>, vector<16x16xf32>
    tpu.vector_store %arg21[%c0_97, %c464], %159 {strides = array<i32>} : memref<16x546xf32, #tpu.memory_space<vmem>>, vector<16x16xf32>,
    %c0_98 = arith.constant 0 : index
    %c0_99 = arith.constant 0 : index
    %161 = vector.load %arg21[%c0_98, %c0_99] : memref<16x546xf32, #tpu.memory_space<vmem>>, vector<16x546xf32>
    %162 = vector.extract_strided_slice %161 {offsets = [0, 0], sizes = [16, 512], strides = [1, 1]} : vector<16x546xf32> to vector<16x512xf32>
    %c0_100 = arith.constant 0 : index
    %c0_101 = arith.constant 0 : index
    %163 = vector.load %arg22[%c0_100, %c0_101] : memref<144x512xf32, #tpu.memory_space<vmem>>, vector<16x512xf32>
    tpu.vector_store %arg22[%c0_100, %c0_101], %162 {strides = array<i32>} : memref<144x512xf32, #tpu.memory_space<vmem>>, vector<16x512xf32>,
    %164 = vector.extract_strided_slice %161 {offsets = [0, 1], sizes = [16, 512], strides = [1, 1]} : vector<16x546xf32> to vector<16x512xf32>
    %c16_102 = arith.constant 16 : index
    %c0_103 = arith.constant 0 : index
    %165 = vector.load %arg22[%c16_102, %c0_103] : memref<144x512xf32, #tpu.memory_space<vmem>>, vector<16x512xf32>
    tpu.vector_store %arg22[%c16_102, %c0_103], %164 {strides = array<i32>} : memref<144x512xf32, #tpu.memory_space<vmem>>, vector<16x512xf32>,
    %166 = vector.extract_strided_slice %161 {offsets = [0, 2], sizes = [16, 512], strides = [1, 1]} : vector<16x546xf32> to vector<16x512xf32>
    %c32_104 = arith.constant 32 : index
    %c0_105 = arith.constant 0 : index
    %167 = vector.load %arg22[%c32_104, %c0_105] : memref<144x512xf32, #tpu.memory_space<vmem>>, vector<16x512xf32>
    tpu.vector_store %arg22[%c32_104, %c0_105], %166 {strides = array<i32>} : memref<144x512xf32, #tpu.memory_space<vmem>>, vector<16x512xf32>,
    %168 = vector.extract_strided_slice %161 {offsets = [0, 16], sizes = [16, 512], strides = [1, 1]} : vector<16x546xf32> to vector<16x512xf32>
    %c48_106 = arith.constant 48 : index
    %c0_107 = arith.constant 0 : index
    %169 = vector.load %arg22[%c48_106, %c0_107] : memref<144x512xf32, #tpu.memory_space<vmem>>, vector<16x512xf32>
    tpu.vector_store %arg22[%c48_106, %c0_107], %168 {strides = array<i32>} : memref<144x512xf32, #tpu.memory_space<vmem>>, vector<16x512xf32>,
    %170 = vector.extract_strided_slice %161 {offsets = [0, 17], sizes = [16, 512], strides = [1, 1]} : vector<16x546xf32> to vector<16x512xf32>
    %c64_108 = arith.constant 64 : index
    %c0_109 = arith.constant 0 : index
    %171 = vector.load %arg22[%c64_108, %c0_109] : memref<144x512xf32, #tpu.memory_space<vmem>>, vector<16x512xf32>
    tpu.vector_store %arg22[%c64_108, %c0_109], %170 {strides = array<i32>} : memref<144x512xf32, #tpu.memory_space<vmem>>, vector<16x512xf32>,
    %172 = vector.extract_strided_slice %161 {offsets = [0, 18], sizes = [16, 512], strides = [1, 1]} : vector<16x546xf32> to vector<16x512xf32>
    %c80_110 = arith.constant 80 : index
    %c0_111 = arith.constant 0 : index
    %173 = vector.load %arg22[%c80_110, %c0_111] : memref<144x512xf32, #tpu.memory_space<vmem>>, vector<16x512xf32>
    tpu.vector_store %arg22[%c80_110, %c0_111], %172 {strides = array<i32>} : memref<144x512xf32, #tpu.memory_space<vmem>>, vector<16x512xf32>,
    %174 = vector.extract_strided_slice %161 {offsets = [0, 32], sizes = [16, 512], strides = [1, 1]} : vector<16x546xf32> to vector<16x512xf32>
    %c96_112 = arith.constant 96 : index
    %c0_113 = arith.constant 0 : index
    %175 = vector.load %arg22[%c96_112, %c0_113] : memref<144x512xf32, #tpu.memory_space<vmem>>, vector<16x512xf32>
    tpu.vector_store %arg22[%c96_112, %c0_113], %174 {strides = array<i32>} : memref<144x512xf32, #tpu.memory_space<vmem>>, vector<16x512xf32>,
    %176 = vector.extract_strided_slice %161 {offsets = [0, 33], sizes = [16, 512], strides = [1, 1]} : vector<16x546xf32> to vector<16x512xf32>
    %c112_114 = arith.constant 112 : index
    %c0_115 = arith.constant 0 : index
    %177 = vector.load %arg22[%c112_114, %c0_115] : memref<144x512xf32, #tpu.memory_space<vmem>>, vector<16x512xf32>
    tpu.vector_store %arg22[%c112_114, %c0_115], %176 {strides = array<i32>} : memref<144x512xf32, #tpu.memory_space<vmem>>, vector<16x512xf32>,
    %178 = vector.extract_strided_slice %161 {offsets = [0, 34], sizes = [16, 512], strides = [1, 1]} : vector<16x546xf32> to vector<16x512xf32>
    %c128_116 = arith.constant 128 : index
    %c0_117 = arith.constant 0 : index
    %179 = vector.load %arg22[%c128_116, %c0_117] : memref<144x512xf32, #tpu.memory_space<vmem>>, vector<16x512xf32>
    tpu.vector_store %arg22[%c128_116, %c0_117], %178 {strides = array<i32>} : memref<144x512xf32, #tpu.memory_space<vmem>>, vector<16x512xf32>,
    %c0_118 = arith.constant 0 : index
    %c0_119 = arith.constant 0 : index
    %180 = vector.load %arg11[%c0_118, %c0_119] : memref<8x144xf32, #tpu.memory_space<vmem>>, vector<8x144xf32>
    %c0_120 = arith.constant 0 : index
    %c0_121 = arith.constant 0 : index
    %181 = vector.load %arg22[%c0_120, %c0_121] : memref<144x512xf32, #tpu.memory_space<vmem>>, vector<144x512xf32>
    %cst_122 = arith.constant dense<0.000000e+00> : vector<8x512xf32>
    %182 = tpu.matmul %180, %181, %cst_122 {dimension_numbers = #tpu.dot_dimension_numbers<[1], [0], [0], [1], [0, 0, 1, 1], [], []>} : vector<8x144xf32>, vector<144x512xf32>, vector<8x512xf32> -> vector<8x512xf32>
    %c0_123 = arith.constant 0 : index
    %c0_124 = arith.constant 0 : index
    %183 = vector.load %arg12[%c0_123, %c0_124] : memref<8x1xf32, #tpu.memory_space<vmem>>, vector<8x1xf32>
    %184 = vector.broadcast %183 : vector<8x1xf32> to vector<8x512xf32>
    %185 = arith.addf %182, %184 : vector<8x512xf32>
    %c0_125 = arith.constant 0 : index
    %c0_126 = arith.constant 0 : index
    %186 = vector.load %arg15[%c0_125, %c0_126] : memref<1x512xf32, #tpu.memory_space<vmem>>, vector<1x512xf32>
    %c0_127 = arith.constant 0 : index
    %c0_128 = arith.constant 0 : index
    %187 = vector.load %arg13[%c0_127, %c0_128] : memref<8x1xf32, #tpu.memory_space<vmem>>, vector<8x1xf32>
    %c0_129 = arith.constant 0 : index
    %c0_130 = arith.constant 0 : index
    %188 = vector.load %arg14[%c0_129, %c0_130] : memref<8x1xf32, #tpu.memory_space<vmem>>, vector<8x1xf32>
    %189 = vector.broadcast %186 : vector<1x512xf32> to vector<8x512xf32>
    %190 = arith.mulf %185, %189 : vector<8x512xf32>
    %cst_131 = arith.constant dense<0.000000e+00> : vector<8xf32>
    %191 = vector.multi_reduction <add>, %190, %cst_131 [1] : vector<8x512xf32> to vector<8xf32>
    %192 = vector.shape_cast %191 : vector<8xf32> to vector<8x1xf32>
    %cst_132 = arith.constant 0.00255102036 : f32
    %193 = vector.broadcast %cst_132 : f32 to vector<8x1xf32>
    %194 = arith.mulf %192, %193 : vector<8x1xf32>
    %195 = vector.broadcast %194 : vector<8x1xf32> to vector<8x512xf32>
    %196 = arith.subf %185, %195 : vector<8x512xf32>
    %197 = arith.mulf %196, %196 : vector<8x512xf32>
    %198 = vector.broadcast %186 : vector<1x512xf32> to vector<8x512xf32>
    %199 = arith.mulf %197, %198 : vector<8x512xf32>
    %cst_133 = arith.constant dense<0.000000e+00> : vector<8xf32>
    %200 = vector.multi_reduction <add>, %199, %cst_133 [1] : vector<8x512xf32> to vector<8xf32>
    %201 = vector.shape_cast %200 : vector<8xf32> to vector<8x1xf32>
    %cst_134 = arith.constant 0.00255102036 : f32
    %202 = vector.broadcast %cst_134 : f32 to vector<8x1xf32>
    %203 = arith.mulf %201, %202 : vector<8x1xf32>
    %cst_135 = arith.constant 9.99999974E-6 : f32
    %204 = vector.broadcast %cst_135 : f32 to vector<8x1xf32>
    %205 = arith.addf %203, %204 : vector<8x1xf32>
    %206 = math.rsqrt %205 : vector<8x1xf32>
    %207 = arith.mulf %206, %187 : vector<8x1xf32>
    %208 = vector.broadcast %207 : vector<8x1xf32> to vector<8x512xf32>
    %209 = arith.mulf %196, %208 : vector<8x512xf32>
    %210 = vector.broadcast %188 : vector<8x1xf32> to vector<8x512xf32>
    %211 = arith.addf %209, %210 : vector<8x512xf32>
    %cst_136 = arith.constant 0.000000e+00 : f32
    %212 = vector.broadcast %cst_136 : f32 to vector<8x512xf32>
    %213 = arith.maximumf %211, %212 : vector<8x512xf32>
    %214 = tpu.iota {dimensions = array<i32: 0>} : vector<14x30xi32>
    %215 = tpu.iota {dimensions = array<i32: 1>} : vector<14x30xi32>
    %c2_i32_137 = arith.constant 2 : i32
    %216 = vector.broadcast %c2_i32_137 : i32 to vector<14x30xi32>
    %217 = arith.muli %216, %214 : vector<14x30xi32>
    %c1_i32_138 = arith.constant 1 : i32
    %218 = vector.broadcast %c1_i32_138 : i32 to vector<14x30xi32>
    %219 = arith.addi %218, %217 : vector<14x30xi32>
    %220 = arith.cmpi eq, %215, %219 : vector<14x30xi32>
    %221 = arith.extui %220 : vector<14x30xi1> to vector<14x30xi32>
    %222 = arith.sitofp %221 : vector<14x30xi32> to vector<14x30xf32>
    %223 = vector.extract_strided_slice %213 {offsets = [0, 0], sizes = [8, 14], strides = [1, 1]} : vector<8x512xf32> to vector<8x14xf32>
    %cst_139 = arith.constant dense<0.000000e+00> : vector<8x30xf32>
    %224 = tpu.matmul %223, %222, %cst_139 {dimension_numbers = #tpu.dot_dimension_numbers<[1], [0], [0], [1], [0, 0, 1, 1], [], []>} : vector<8x14xf32>, vector<14x30xf32>, vector<8x30xf32> -> vector<8x30xf32>
    %c0_140 = arith.constant 0 : index
    %c30 = arith.constant 30 : index
    %225 = vector.load %arg23[%c0_140, %c30] : memref<8x1862xf32, #tpu.memory_space<vmem>>, vector<8x30xf32>
    tpu.vector_store %arg23[%c0_140, %c30], %224 {strides = array<i32>} : memref<8x1862xf32, #tpu.memory_space<vmem>>, vector<8x30xf32>,
    %226 = vector.extract_strided_slice %213 {offsets = [0, 16], sizes = [8, 14], strides = [1, 1]} : vector<8x512xf32> to vector<8x14xf32>
    %cst_141 = arith.constant dense<0.000000e+00> : vector<8x30xf32>
    %227 = tpu.matmul %226, %222, %cst_141 {dimension_numbers = #tpu.dot_dimension_numbers<[1], [0], [0], [1], [0, 0, 1, 1], [], []>} : vector<8x14xf32>, vector<14x30xf32>, vector<8x30xf32> -> vector<8x30xf32>
    %c0_142 = arith.constant 0 : index
    %c90 = arith.constant 90 : index
    %228 = vector.load %arg23[%c0_142, %c90] : memref<8x1862xf32, #tpu.memory_space<vmem>>, vector<8x30xf32>
    tpu.vector_store %arg23[%c0_142, %c90], %227 {strides = array<i32>} : memref<8x1862xf32, #tpu.memory_space<vmem>>, vector<8x30xf32>,
    %229 = vector.extract_strided_slice %213 {offsets = [0, 32], sizes = [8, 14], strides = [1, 1]} : vector<8x512xf32> to vector<8x14xf32>
    %cst_143 = arith.constant dense<0.000000e+00> : vector<8x30xf32>
    %230 = tpu.matmul %229, %222, %cst_143 {dimension_numbers = #tpu.dot_dimension_numbers<[1], [0], [0], [1], [0, 0, 1, 1], [], []>} : vector<8x14xf32>, vector<14x30xf32>, vector<8x30xf32> -> vector<8x30xf32>
    %c0_144 = arith.constant 0 : index
    %c150 = arith.constant 150 : index
    %231 = vector.load %arg23[%c0_144, %c150] : memref<8x1862xf32, #tpu.memory_space<vmem>>, vector<8x30xf32>
    tpu.vector_store %arg23[%c0_144, %c150], %230 {strides = array<i32>} : memref<8x1862xf32, #tpu.memory_space<vmem>>, vector<8x30xf32>,
    %232 = vector.extract_strided_slice %213 {offsets = [0, 48], sizes = [8, 14], strides = [1, 1]} : vector<8x512xf32> to vector<8x14xf32>
    %cst_145 = arith.constant dense<0.000000e+00> : vector<8x30xf32>
    %233 = tpu.matmul %232, %222, %cst_145 {dimension_numbers = #tpu.dot_dimension_numbers<[1], [0], [0], [1], [0, 0, 1, 1], [], []>} : vector<8x14xf32>, vector<14x30xf32>, vector<8x30xf32> -> vector<8x30xf32>
    %c0_146 = arith.constant 0 : index
    %c210 = arith.constant 210 : index
    %234 = vector.load %arg23[%c0_146, %c210] : memref<8x1862xf32, #tpu.memory_space<vmem>>, vector<8x30xf32>
    tpu.vector_store %arg23[%c0_146, %c210], %233 {strides = array<i32>} : memref<8x1862xf32, #tpu.memory_space<vmem>>, vector<8x30xf32>,
    %235 = vector.extract_strided_slice %213 {offsets = [0, 64], sizes = [8, 14], strides = [1, 1]} : vector<8x512xf32> to vector<8x14xf32>
    %cst_147 = arith.constant dense<0.000000e+00> : vector<8x30xf32>
    %236 = tpu.matmul %235, %222, %cst_147 {dimension_numbers = #tpu.dot_dimension_numbers<[1], [0], [0], [1], [0, 0, 1, 1], [], []>} : vector<8x14xf32>, vector<14x30xf32>, vector<8x30xf32> -> vector<8x30xf32>
    %c0_148 = arith.constant 0 : index
    %c270 = arith.constant 270 : index
    %237 = vector.load %arg23[%c0_148, %c270] : memref<8x1862xf32, #tpu.memory_space<vmem>>, vector<8x30xf32>
    tpu.vector_store %arg23[%c0_148, %c270], %236 {strides = array<i32>} : memref<8x1862xf32, #tpu.memory_space<vmem>>, vector<8x30xf32>,
    %238 = vector.extract_strided_slice %213 {offsets = [0, 80], sizes = [8, 14], strides = [1, 1]} : vector<8x512xf32> to vector<8x14xf32>
    %cst_149 = arith.constant dense<0.000000e+00> : vector<8x30xf32>
    %239 = tpu.matmul %238, %222, %cst_149 {dimension_numbers = #tpu.dot_dimension_numbers<[1], [0], [0], [1], [0, 0, 1, 1], [], []>} : vector<8x14xf32>, vector<14x30xf32>, vector<8x30xf32> -> vector<8x30xf32>
    %c0_150 = arith.constant 0 : index
    %c330 = arith.constant 330 : index
    %240 = vector.load %arg23[%c0_150, %c330] : memref<8x1862xf32, #tpu.memory_space<vmem>>, vector<8x30xf32>
    tpu.vector_store %arg23[%c0_150, %c330], %239 {strides = array<i32>} : memref<8x1862xf32, #tpu.memory_space<vmem>>, vector<8x30xf32>,
    %241 = vector.extract_strided_slice %213 {offsets = [0, 96], sizes = [8, 14], strides = [1, 1]} : vector<8x512xf32> to vector<8x14xf32>
    %cst_151 = arith.constant dense<0.000000e+00> : vector<8x30xf32>
    %242 = tpu.matmul %241, %222, %cst_151 {dimension_numbers = #tpu.dot_dimension_numbers<[1], [0], [0], [1], [0, 0, 1, 1], [], []>} : vector<8x14xf32>, vector<14x30xf32>, vector<8x30xf32> -> vector<8x30xf32>
    %c0_152 = arith.constant 0 : index
    %c390 = arith.constant 390 : index
    %243 = vector.load %arg23[%c0_152, %c390] : memref<8x1862xf32, #tpu.memory_space<vmem>>, vector<8x30xf32>
    tpu.vector_store %arg23[%c0_152, %c390], %242 {strides = array<i32>} : memref<8x1862xf32, #tpu.memory_space<vmem>>, vector<8x30xf32>,
    %244 = vector.extract_strided_slice %213 {offsets = [0, 112], sizes = [8, 14], strides = [1, 1]} : vector<8x512xf32> to vector<8x14xf32>
    %cst_153 = arith.constant dense<0.000000e+00> : vector<8x30xf32>
    %245 = tpu.matmul %244, %222, %cst_153 {dimension_numbers = #tpu.dot_dimension_numbers<[1], [0], [0], [1], [0, 0, 1, 1], [], []>} : vector<8x14xf32>, vector<14x30xf32>, vector<8x30xf32> -> vector<8x30xf32>
    %c0_154 = arith.constant 0 : index
    %c450 = arith.constant 450 : index
    %246 = vector.load %arg23[%c0_154, %c450] : memref<8x1862xf32, #tpu.memory_space<vmem>>, vector<8x30xf32>
    tpu.vector_store %arg23[%c0_154, %c450], %245 {strides = array<i32>} : memref<8x1862xf32, #tpu.memory_space<vmem>>, vector<8x30xf32>,
    %247 = vector.extract_strided_slice %213 {offsets = [0, 128], sizes = [8, 14], strides = [1, 1]} : vector<8x512xf32> to vector<8x14xf32>
    %cst_155 = arith.constant dense<0.000000e+00> : vector<8x30xf32>
    %248 = tpu.matmul %247, %222, %cst_155 {dimension_numbers = #tpu.dot_dimension_numbers<[1], [0], [0], [1], [0, 0, 1, 1], [], []>} : vector<8x14xf32>, vector<14x30xf32>, vector<8x30xf32> -> vector<8x30xf32>
    %c0_156 = arith.constant 0 : index
    %c510 = arith.constant 510 : index
    %249 = vector.load %arg23[%c0_156, %c510] : memref<8x1862xf32, #tpu.memory_space<vmem>>, vector<8x30xf32>
    tpu.vector_store %arg23[%c0_156, %c510], %248 {strides = array<i32>} : memref<8x1862xf32, #tpu.memory_space<vmem>>, vector<8x30xf32>,
    %250 = vector.extract_strided_slice %213 {offsets = [0, 144], sizes = [8, 14], strides = [1, 1]} : vector<8x512xf32> to vector<8x14xf32>
    %cst_157 = arith.constant dense<0.000000e+00> : vector<8x30xf32>
    %251 = tpu.matmul %250, %222, %cst_157 {dimension_numbers = #tpu.dot_dimension_numbers<[1], [0], [0], [1], [0, 0, 1, 1], [], []>} : vector<8x14xf32>, vector<14x30xf32>, vector<8x30xf32> -> vector<8x30xf32>
    %c0_158 = arith.constant 0 : index
    %c570 = arith.constant 570 : index
    %252 = vector.load %arg23[%c0_158, %c570] : memref<8x1862xf32, #tpu.memory_space<vmem>>, vector<8x30xf32>
    tpu.vector_store %arg23[%c0_158, %c570], %251 {strides = array<i32>} : memref<8x1862xf32, #tpu.memory_space<vmem>>, vector<8x30xf32>,
    %253 = vector.extract_strided_slice %213 {offsets = [0, 160], sizes = [8, 14], strides = [1, 1]} : vector<8x512xf32> to vector<8x14xf32>
    %cst_159 = arith.constant dense<0.000000e+00> : vector<8x30xf32>
    %254 = tpu.matmul %253, %222, %cst_159 {dimension_numbers = #tpu.dot_dimension_numbers<[1], [0], [0], [1], [0, 0, 1, 1], [], []>} : vector<8x14xf32>, vector<14x30xf32>, vector<8x30xf32> -> vector<8x30xf32>
    %c0_160 = arith.constant 0 : index
    %c630 = arith.constant 630 : index
    %255 = vector.load %arg23[%c0_160, %c630] : memref<8x1862xf32, #tpu.memory_space<vmem>>, vector<8x30xf32>
    tpu.vector_store %arg23[%c0_160, %c630], %254 {strides = array<i32>} : memref<8x1862xf32, #tpu.memory_space<vmem>>, vector<8x30xf32>,
    %256 = vector.extract_strided_slice %213 {offsets = [0, 176], sizes = [8, 14], strides = [1, 1]} : vector<8x512xf32> to vector<8x14xf32>
    %cst_161 = arith.constant dense<0.000000e+00> : vector<8x30xf32>
    %257 = tpu.matmul %256, %222, %cst_161 {dimension_numbers = #tpu.dot_dimension_numbers<[1], [0], [0], [1], [0, 0, 1, 1], [], []>} : vector<8x14xf32>, vector<14x30xf32>, vector<8x30xf32> -> vector<8x30xf32>
    %c0_162 = arith.constant 0 : index
    %c690 = arith.constant 690 : index
    %258 = vector.load %arg23[%c0_162, %c690] : memref<8x1862xf32, #tpu.memory_space<vmem>>, vector<8x30xf32>
    tpu.vector_store %arg23[%c0_162, %c690], %257 {strides = array<i32>} : memref<8x1862xf32, #tpu.memory_space<vmem>>, vector<8x30xf32>,
    %259 = vector.extract_strided_slice %213 {offsets = [0, 192], sizes = [8, 14], strides = [1, 1]} : vector<8x512xf32> to vector<8x14xf32>
    %cst_163 = arith.constant dense<0.000000e+00> : vector<8x30xf32>
    %260 = tpu.matmul %259, %222, %cst_163 {dimension_numbers = #tpu.dot_dimension_numbers<[1], [0], [0], [1], [0, 0, 1, 1], [], []>} : vector<8x14xf32>, vector<14x30xf32>, vector<8x30xf32> -> vector<8x30xf32>
    %c0_164 = arith.constant 0 : index
    %c750 = arith.constant 750 : index
    %261 = vector.load %arg23[%c0_164, %c750] : memref<8x1862xf32, #tpu.memory_space<vmem>>, vector<8x30xf32>
    tpu.vector_store %arg23[%c0_164, %c750], %260 {strides = array<i32>} : memref<8x1862xf32, #tpu.memory_space<vmem>>, vector<8x30xf32>,
    %262 = vector.extract_strided_slice %213 {offsets = [0, 208], sizes = [8, 14], strides = [1, 1]} : vector<8x512xf32> to vector<8x14xf32>
    %cst_165 = arith.constant dense<0.000000e+00> : vector<8x30xf32>
    %263 = tpu.matmul %262, %222, %cst_165 {dimension_numbers = #tpu.dot_dimension_numbers<[1], [0], [0], [1], [0, 0, 1, 1], [], []>} : vector<8x14xf32>, vector<14x30xf32>, vector<8x30xf32> -> vector<8x30xf32>
    %c0_166 = arith.constant 0 : index
    %c810 = arith.constant 810 : index
    %264 = vector.load %arg23[%c0_166, %c810] : memref<8x1862xf32, #tpu.memory_space<vmem>>, vector<8x30xf32>
    tpu.vector_store %arg23[%c0_166, %c810], %263 {strides = array<i32>} : memref<8x1862xf32, #tpu.memory_space<vmem>>, vector<8x30xf32>,
    %265 = vector.extract_strided_slice %213 {offsets = [0, 256], sizes = [8, 14], strides = [1, 1]} : vector<8x512xf32> to vector<8x14xf32>
    %cst_167 = arith.constant dense<0.000000e+00> : vector<8x30xf32>
    %266 = tpu.matmul %265, %222, %cst_167 {dimension_numbers = #tpu.dot_dimension_numbers<[1], [0], [0], [1], [0, 0, 1, 1], [], []>} : vector<8x14xf32>, vector<14x30xf32>, vector<8x30xf32> -> vector<8x30xf32>
    %c0_168 = arith.constant 0 : index
    %c930 = arith.constant 930 : index
    %267 = vector.load %arg23[%c0_168, %c930] : memref<8x1862xf32, #tpu.memory_space<vmem>>, vector<8x30xf32>
    tpu.vector_store %arg23[%c0_168, %c930], %266 {strides = array<i32>} : memref<8x1862xf32, #tpu.memory_space<vmem>>, vector<8x30xf32>,
    %268 = vector.extract_strided_slice %213 {offsets = [0, 272], sizes = [8, 14], strides = [1, 1]} : vector<8x512xf32> to vector<8x14xf32>
    %cst_169 = arith.constant dense<0.000000e+00> : vector<8x30xf32>
    %269 = tpu.matmul %268, %222, %cst_169 {dimension_numbers = #tpu.dot_dimension_numbers<[1], [0], [0], [1], [0, 0, 1, 1], [], []>} : vector<8x14xf32>, vector<14x30xf32>, vector<8x30xf32> -> vector<8x30xf32>
    %c0_170 = arith.constant 0 : index
    %c990 = arith.constant 990 : index
    %270 = vector.load %arg23[%c0_170, %c990] : memref<8x1862xf32, #tpu.memory_space<vmem>>, vector<8x30xf32>
    tpu.vector_store %arg23[%c0_170, %c990], %269 {strides = array<i32>} : memref<8x1862xf32, #tpu.memory_space<vmem>>, vector<8x30xf32>,
    %271 = vector.extract_strided_slice %213 {offsets = [0, 288], sizes = [8, 14], strides = [1, 1]} : vector<8x512xf32> to vector<8x14xf32>
    %cst_171 = arith.constant dense<0.000000e+00> : vector<8x30xf32>
    %272 = tpu.matmul %271, %222, %cst_171 {dimension_numbers = #tpu.dot_dimension_numbers<[1], [0], [0], [1], [0, 0, 1, 1], [], []>} : vector<8x14xf32>, vector<14x30xf32>, vector<8x30xf32> -> vector<8x30xf32>
    %c0_172 = arith.constant 0 : index
    %c1050 = arith.constant 1050 : index
    %273 = vector.load %arg23[%c0_172, %c1050] : memref<8x1862xf32, #tpu.memory_space<vmem>>, vector<8x30xf32>
    tpu.vector_store %arg23[%c0_172, %c1050], %272 {strides = array<i32>} : memref<8x1862xf32, #tpu.memory_space<vmem>>, vector<8x30xf32>,
    %274 = vector.extract_strided_slice %213 {offsets = [0, 304], sizes = [8, 14], strides = [1, 1]} : vector<8x512xf32> to vector<8x14xf32>
    %cst_173 = arith.constant dense<0.000000e+00> : vector<8x30xf32>
    %275 = tpu.matmul %274, %222, %cst_173 {dimension_numbers = #tpu.dot_dimension_numbers<[1], [0], [0], [1], [0, 0, 1, 1], [], []>} : vector<8x14xf32>, vector<14x30xf32>, vector<8x30xf32> -> vector<8x30xf32>
    %c0_174 = arith.constant 0 : index
    %c1110 = arith.constant 1110 : index
    %276 = vector.load %arg23[%c0_174, %c1110] : memref<8x1862xf32, #tpu.memory_space<vmem>>, vector<8x30xf32>
    tpu.vector_store %arg23[%c0_174, %c1110], %275 {strides = array<i32>} : memref<8x1862xf32, #tpu.memory_space<vmem>>, vector<8x30xf32>,
    %277 = vector.extract_strided_slice %213 {offsets = [0, 320], sizes = [8, 14], strides = [1, 1]} : vector<8x512xf32> to vector<8x14xf32>
    %cst_175 = arith.constant dense<0.000000e+00> : vector<8x30xf32>
    %278 = tpu.matmul %277, %222, %cst_175 {dimension_numbers = #tpu.dot_dimension_numbers<[1], [0], [0], [1], [0, 0, 1, 1], [], []>} : vector<8x14xf32>, vector<14x30xf32>, vector<8x30xf32> -> vector<8x30xf32>
    %c0_176 = arith.constant 0 : index
    %c1170 = arith.constant 1170 : index
    %279 = vector.load %arg23[%c0_176, %c1170] : memref<8x1862xf32, #tpu.memory_space<vmem>>, vector<8x30xf32>
    tpu.vector_store %arg23[%c0_176, %c1170], %278 {strides = array<i32>} : memref<8x1862xf32, #tpu.memory_space<vmem>>, vector<8x30xf32>,
    %280 = vector.extract_strided_slice %213 {offsets = [0, 336], sizes = [8, 14], strides = [1, 1]} : vector<8x512xf32> to vector<8x14xf32>
    %cst_177 = arith.constant dense<0.000000e+00> : vector<8x30xf32>
    %281 = tpu.matmul %280, %222, %cst_177 {dimension_numbers = #tpu.dot_dimension_numbers<[1], [0], [0], [1], [0, 0, 1, 1], [], []>} : vector<8x14xf32>, vector<14x30xf32>, vector<8x30xf32> -> vector<8x30xf32>
    %c0_178 = arith.constant 0 : index
    %c1230 = arith.constant 1230 : index
    %282 = vector.load %arg23[%c0_178, %c1230] : memref<8x1862xf32, #tpu.memory_space<vmem>>, vector<8x30xf32>
    tpu.vector_store %arg23[%c0_178, %c1230], %281 {strides = array<i32>} : memref<8x1862xf32, #tpu.memory_space<vmem>>, vector<8x30xf32>,
    %283 = vector.extract_strided_slice %213 {offsets = [0, 352], sizes = [8, 14], strides = [1, 1]} : vector<8x512xf32> to vector<8x14xf32>
    %cst_179 = arith.constant dense<0.000000e+00> : vector<8x30xf32>
    %284 = tpu.matmul %283, %222, %cst_179 {dimension_numbers = #tpu.dot_dimension_numbers<[1], [0], [0], [1], [0, 0, 1, 1], [], []>} : vector<8x14xf32>, vector<14x30xf32>, vector<8x30xf32> -> vector<8x30xf32>
    %c0_180 = arith.constant 0 : index
    %c1290 = arith.constant 1290 : index
    %285 = vector.load %arg23[%c0_180, %c1290] : memref<8x1862xf32, #tpu.memory_space<vmem>>, vector<8x30xf32>
    tpu.vector_store %arg23[%c0_180, %c1290], %284 {strides = array<i32>} : memref<8x1862xf32, #tpu.memory_space<vmem>>, vector<8x30xf32>,
    %286 = vector.extract_strided_slice %213 {offsets = [0, 368], sizes = [8, 14], strides = [1, 1]} : vector<8x512xf32> to vector<8x14xf32>
    %cst_181 = arith.constant dense<0.000000e+00> : vector<8x30xf32>
    %287 = tpu.matmul %286, %222, %cst_181 {dimension_numbers = #tpu.dot_dimension_numbers<[1], [0], [0], [1], [0, 0, 1, 1], [], []>} : vector<8x14xf32>, vector<14x30xf32>, vector<8x30xf32> -> vector<8x30xf32>
    %c0_182 = arith.constant 0 : index
    %c1350 = arith.constant 1350 : index
    %288 = vector.load %arg23[%c0_182, %c1350] : memref<8x1862xf32, #tpu.memory_space<vmem>>, vector<8x30xf32>
    tpu.vector_store %arg23[%c0_182, %c1350], %287 {strides = array<i32>} : memref<8x1862xf32, #tpu.memory_space<vmem>>, vector<8x30xf32>,
    %289 = vector.extract_strided_slice %213 {offsets = [0, 384], sizes = [8, 14], strides = [1, 1]} : vector<8x512xf32> to vector<8x14xf32>
    %cst_183 = arith.constant dense<0.000000e+00> : vector<8x30xf32>
    %290 = tpu.matmul %289, %222, %cst_183 {dimension_numbers = #tpu.dot_dimension_numbers<[1], [0], [0], [1], [0, 0, 1, 1], [], []>} : vector<8x14xf32>, vector<14x30xf32>, vector<8x30xf32> -> vector<8x30xf32>
    %c0_184 = arith.constant 0 : index
    %c1410 = arith.constant 1410 : index
    %291 = vector.load %arg23[%c0_184, %c1410] : memref<8x1862xf32, #tpu.memory_space<vmem>>, vector<8x30xf32>
    tpu.vector_store %arg23[%c0_184, %c1410], %290 {strides = array<i32>} : memref<8x1862xf32, #tpu.memory_space<vmem>>, vector<8x30xf32>,
    %292 = vector.extract_strided_slice %213 {offsets = [0, 400], sizes = [8, 14], strides = [1, 1]} : vector<8x512xf32> to vector<8x14xf32>
    %cst_185 = arith.constant dense<0.000000e+00> : vector<8x30xf32>
    %293 = tpu.matmul %292, %222, %cst_185 {dimension_numbers = #tpu.dot_dimension_numbers<[1], [0], [0], [1], [0, 0, 1, 1], [], []>} : vector<8x14xf32>, vector<14x30xf32>, vector<8x30xf32> -> vector<8x30xf32>
    %c0_186 = arith.constant 0 : index
    %c1470 = arith.constant 1470 : index
    %294 = vector.load %arg23[%c0_186, %c1470] : memref<8x1862xf32, #tpu.memory_space<vmem>>, vector<8x30xf32>
    tpu.vector_store %arg23[%c0_186, %c1470], %293 {strides = array<i32>} : memref<8x1862xf32, #tpu.memory_space<vmem>>, vector<8x30xf32>,
    %295 = vector.extract_strided_slice %213 {offsets = [0, 416], sizes = [8, 14], strides = [1, 1]} : vector<8x512xf32> to vector<8x14xf32>
    %cst_187 = arith.constant dense<0.000000e+00> : vector<8x30xf32>
    %296 = tpu.matmul %295, %222, %cst_187 {dimension_numbers = #tpu.dot_dimension_numbers<[1], [0], [0], [1], [0, 0, 1, 1], [], []>} : vector<8x14xf32>, vector<14x30xf32>, vector<8x30xf32> -> vector<8x30xf32>
    %c0_188 = arith.constant 0 : index
    %c1530 = arith.constant 1530 : index
    %297 = vector.load %arg23[%c0_188, %c1530] : memref<8x1862xf32, #tpu.memory_space<vmem>>, vector<8x30xf32>
    tpu.vector_store %arg23[%c0_188, %c1530], %296 {strides = array<i32>} : memref<8x1862xf32, #tpu.memory_space<vmem>>, vector<8x30xf32>,
    %298 = vector.extract_strided_slice %213 {offsets = [0, 432], sizes = [8, 14], strides = [1, 1]} : vector<8x512xf32> to vector<8x14xf32>
    %cst_189 = arith.constant dense<0.000000e+00> : vector<8x30xf32>
    %299 = tpu.matmul %298, %222, %cst_189 {dimension_numbers = #tpu.dot_dimension_numbers<[1], [0], [0], [1], [0, 0, 1, 1], [], []>} : vector<8x14xf32>, vector<14x30xf32>, vector<8x30xf32> -> vector<8x30xf32>
    %c0_190 = arith.constant 0 : index
    %c1590 = arith.constant 1590 : index
    %300 = vector.load %arg23[%c0_190, %c1590] : memref<8x1862xf32, #tpu.memory_space<vmem>>, vector<8x30xf32>
    tpu.vector_store %arg23[%c0_190, %c1590], %299 {strides = array<i32>} : memref<8x1862xf32, #tpu.memory_space<vmem>>, vector<8x30xf32>,
    %301 = vector.extract_strided_slice %213 {offsets = [0, 448], sizes = [8, 14], strides = [1, 1]} : vector<8x512xf32> to vector<8x14xf32>
    %cst_191 = arith.constant dense<0.000000e+00> : vector<8x30xf32>
    %302 = tpu.matmul %301, %222, %cst_191 {dimension_numbers = #tpu.dot_dimension_numbers<[1], [0], [0], [1], [0, 0, 1, 1], [], []>} : vector<8x14xf32>, vector<14x30xf32>, vector<8x30xf32> -> vector<8x30xf32>
    %c0_192 = arith.constant 0 : index
    %c1650 = arith.constant 1650 : index
    %303 = vector.load %arg23[%c0_192, %c1650] : memref<8x1862xf32, #tpu.memory_space<vmem>>, vector<8x30xf32>
    tpu.vector_store %arg23[%c0_192, %c1650], %302 {strides = array<i32>} : memref<8x1862xf32, #tpu.memory_space<vmem>>, vector<8x30xf32>,
    %304 = vector.extract_strided_slice %213 {offsets = [0, 464], sizes = [8, 14], strides = [1, 1]} : vector<8x512xf32> to vector<8x14xf32>
    %cst_193 = arith.constant dense<0.000000e+00> : vector<8x30xf32>
    %305 = tpu.matmul %304, %222, %cst_193 {dimension_numbers = #tpu.dot_dimension_numbers<[1], [0], [0], [1], [0, 0, 1, 1], [], []>} : vector<8x14xf32>, vector<14x30xf32>, vector<8x30xf32> -> vector<8x30xf32>
    %c0_194 = arith.constant 0 : index
    %c1710 = arith.constant 1710 : index
    %306 = vector.load %arg23[%c0_194, %c1710] : memref<8x1862xf32, #tpu.memory_space<vmem>>, vector<8x30xf32>
    tpu.vector_store %arg23[%c0_194, %c1710], %305 {strides = array<i32>} : memref<8x1862xf32, #tpu.memory_space<vmem>>, vector<8x30xf32>,
    %c0_195 = arith.constant 0 : index
    %c0_196 = arith.constant 0 : index
    %307 = vector.load %arg23[%c0_195, %c0_196] : memref<8x1862xf32, #tpu.memory_space<vmem>>, vector<8x1862xf32>
    %308 = vector.extract_strided_slice %307 {offsets = [0, 0], sizes = [8, 1800], strides = [1, 1]} : vector<8x1862xf32> to vector<8x1800xf32>
    %c0_197 = arith.constant 0 : index
    %c0_198 = arith.constant 0 : index
    %309 = vector.load %arg24[%c0_197, %c0_198] : memref<72x1800xf32, #tpu.memory_space<vmem>>, vector<8x1800xf32>
    tpu.vector_store %arg24[%c0_197, %c0_198], %308 {strides = array<i32>} : memref<72x1800xf32, #tpu.memory_space<vmem>>, vector<8x1800xf32>,
    %310 = vector.extract_strided_slice %307 {offsets = [0, 1], sizes = [8, 1800], strides = [1, 1]} : vector<8x1862xf32> to vector<8x1800xf32>
    %c8 = arith.constant 8 : index
    %c0_199 = arith.constant 0 : index
    %311 = vector.load %arg24[%c8, %c0_199] : memref<72x1800xf32, #tpu.memory_space<vmem>>, vector<8x1800xf32>
    tpu.vector_store %arg24[%c8, %c0_199], %310 {strides = array<i32>} : memref<72x1800xf32, #tpu.memory_space<vmem>>, vector<8x1800xf32>,
    %312 = vector.extract_strided_slice %307 {offsets = [0, 2], sizes = [8, 1800], strides = [1, 1]} : vector<8x1862xf32> to vector<8x1800xf32>
    %c16_200 = arith.constant 16 : index
    %c0_201 = arith.constant 0 : index
    %313 = vector.load %arg24[%c16_200, %c0_201] : memref<72x1800xf32, #tpu.memory_space<vmem>>, vector<8x1800xf32>
    tpu.vector_store %arg24[%c16_200, %c0_201], %312 {strides = array<i32>} : memref<72x1800xf32, #tpu.memory_space<vmem>>, vector<8x1800xf32>,
    %314 = vector.extract_strided_slice %307 {offsets = [0, 30], sizes = [8, 1800], strides = [1, 1]} : vector<8x1862xf32> to vector<8x1800xf32>
    %c24_202 = arith.constant 24 : index
    %c0_203 = arith.constant 0 : index
    %315 = vector.load %arg24[%c24_202, %c0_203] : memref<72x1800xf32, #tpu.memory_space<vmem>>, vector<8x1800xf32>
    tpu.vector_store %arg24[%c24_202, %c0_203], %314 {strides = array<i32>} : memref<72x1800xf32, #tpu.memory_space<vmem>>, vector<8x1800xf32>,
    %316 = vector.extract_strided_slice %307 {offsets = [0, 31], sizes = [8, 1800], strides = [1, 1]} : vector<8x1862xf32> to vector<8x1800xf32>
    %c32_204 = arith.constant 32 : index
    %c0_205 = arith.constant 0 : index
    %317 = vector.load %arg24[%c32_204, %c0_205] : memref<72x1800xf32, #tpu.memory_space<vmem>>, vector<8x1800xf32>
    tpu.vector_store %arg24[%c32_204, %c0_205], %316 {strides = array<i32>} : memref<72x1800xf32, #tpu.memory_space<vmem>>, vector<8x1800xf32>,
    %318 = vector.extract_strided_slice %307 {offsets = [0, 32], sizes = [8, 1800], strides = [1, 1]} : vector<8x1862xf32> to vector<8x1800xf32>
    %c40_206 = arith.constant 40 : index
    %c0_207 = arith.constant 0 : index
    %319 = vector.load %arg24[%c40_206, %c0_207] : memref<72x1800xf32, #tpu.memory_space<vmem>>, vector<8x1800xf32>
    tpu.vector_store %arg24[%c40_206, %c0_207], %318 {strides = array<i32>} : memref<72x1800xf32, #tpu.memory_space<vmem>>, vector<8x1800xf32>,
    %320 = vector.extract_strided_slice %307 {offsets = [0, 60], sizes = [8, 1800], strides = [1, 1]} : vector<8x1862xf32> to vector<8x1800xf32>
    %c48_208 = arith.constant 48 : index
    %c0_209 = arith.constant 0 : index
    %321 = vector.load %arg24[%c48_208, %c0_209] : memref<72x1800xf32, #tpu.memory_space<vmem>>, vector<8x1800xf32>
    tpu.vector_store %arg24[%c48_208, %c0_209], %320 {strides = array<i32>} : memref<72x1800xf32, #tpu.memory_space<vmem>>, vector<8x1800xf32>,
    %322 = vector.extract_strided_slice %307 {offsets = [0, 61], sizes = [8, 1800], strides = [1, 1]} : vector<8x1862xf32> to vector<8x1800xf32>
    %c56_210 = arith.constant 56 : index
    %c0_211 = arith.constant 0 : index
    %323 = vector.load %arg24[%c56_210, %c0_211] : memref<72x1800xf32, #tpu.memory_space<vmem>>, vector<8x1800xf32>
    tpu.vector_store %arg24[%c56_210, %c0_211], %322 {strides = array<i32>} : memref<72x1800xf32, #tpu.memory_space<vmem>>, vector<8x1800xf32>,
    %324 = vector.extract_strided_slice %307 {offsets = [0, 62], sizes = [8, 1800], strides = [1, 1]} : vector<8x1862xf32> to vector<8x1800xf32>
    %c64_212 = arith.constant 64 : index
    %c0_213 = arith.constant 0 : index
    %325 = vector.load %arg24[%c64_212, %c0_213] : memref<72x1800xf32, #tpu.memory_space<vmem>>, vector<8x1800xf32>
    tpu.vector_store %arg24[%c64_212, %c0_213], %324 {strides = array<i32>} : memref<72x1800xf32, #tpu.memory_space<vmem>>, vector<8x1800xf32>,
    %c0_214 = arith.constant 0 : index
    %c0_215 = arith.constant 0 : index
    %326 = vector.load %arg16[%c0_214, %c0_215] : memref<8x72xf32, #tpu.memory_space<vmem>>, vector<8x72xf32>
    %c0_216 = arith.constant 0 : index
    %c0_217 = arith.constant 0 : index
    %327 = vector.load %arg24[%c0_216, %c0_217] : memref<72x1800xf32, #tpu.memory_space<vmem>>, vector<72x1800xf32>
    %cst_218 = arith.constant dense<0.000000e+00> : vector<8x1800xf32>
    %328 = tpu.matmul %326, %327, %cst_218 {dimension_numbers = #tpu.dot_dimension_numbers<[1], [0], [0], [1], [0, 0, 1, 1], [], []>} : vector<8x72xf32>, vector<72x1800xf32>, vector<8x1800xf32> -> vector<8x1800xf32>
    %c0_219 = arith.constant 0 : index
    %c0_220 = arith.constant 0 : index
    %329 = vector.load %arg17[%c0_219, %c0_220] : memref<8x1xf32, #tpu.memory_space<vmem>>, vector<8x1xf32>
    %330 = vector.broadcast %329 : vector<8x1xf32> to vector<8x1800xf32>
    %331 = arith.addf %328, %330 : vector<8x1800xf32>
    %332 = arith.negf %331 : vector<8x1800xf32>
    %333 = math.exp %332 : vector<8x1800xf32>
    %cst_221 = arith.constant 1.000000e+00 : f32
    %334 = vector.broadcast %cst_221 : f32 to vector<8x1800xf32>
    %335 = arith.addf %334, %333 : vector<8x1800xf32>
    %336 = arith.divf %334, %335 : vector<8x1800xf32>
    %337 = vector.extract_strided_slice %336 {offsets = [0, 0], sizes = [1, 28], strides = [1, 1]} : vector<8x1800xf32> to vector<1x28xf32>
    %c0_222 = arith.constant 0 : index
    %c0_223 = arith.constant 0 : index
    %338 = vector.load %arg18[%c0_222, %c0_223] : memref<56x28xf32, #tpu.memory_space<vmem>>, vector<1x28xf32>
    tpu.vector_store %arg18[%c0_222, %c0_223], %337 {strides = array<i32>} : memref<56x28xf32, #tpu.memory_space<vmem>>, vector<1x28xf32>,
    %339 = vector.extract_strided_slice %336 {offsets = [0, 30], sizes = [1, 28], strides = [1, 1]} : vector<8x1800xf32> to vector<1x28xf32>
    %c1 = arith.constant 1 : index
    %c0_224 = arith.constant 0 : index
    %340 = vector.load %arg18[%c1, %c0_224] : memref<56x28xf32, #tpu.memory_space<vmem>>, vector<1x28xf32>
    tpu.vector_store %arg18[%c1, %c0_224], %339 {strides = array<i32>} : memref<56x28xf32, #tpu.memory_space<vmem>>, vector<1x28xf32>,
    %341 = vector.extract_strided_slice %336 {offsets = [0, 60], sizes = [1, 28], strides = [1, 1]} : vector<8x1800xf32> to vector<1x28xf32>
    %c2 = arith.constant 2 : index
    %c0_225 = arith.constant 0 : index
    %342 = vector.load %arg18[%c2, %c0_225] : memref<56x28xf32, #tpu.memory_space<vmem>>, vector<1x28xf32>
    tpu.vector_store %arg18[%c2, %c0_225], %341 {strides = array<i32>} : memref<56x28xf32, #tpu.memory_space<vmem>>, vector<1x28xf32>,
    %343 = vector.extract_strided_slice %336 {offsets = [0, 90], sizes = [1, 28], strides = [1, 1]} : vector<8x1800xf32> to vector<1x28xf32>
    %c3 = arith.constant 3 : index
    %c0_226 = arith.constant 0 : index
    %344 = vector.load %arg18[%c3, %c0_226] : memref<56x28xf32, #tpu.memory_space<vmem>>, vector<1x28xf32>
    tpu.vector_store %arg18[%c3, %c0_226], %343 {strides = array<i32>} : memref<56x28xf32, #tpu.memory_space<vmem>>, vector<1x28xf32>,
    %345 = vector.extract_strided_slice %336 {offsets = [0, 120], sizes = [1, 28], strides = [1, 1]} : vector<8x1800xf32> to vector<1x28xf32>
    %c4 = arith.constant 4 : index
    %c0_227 = arith.constant 0 : index
    %346 = vector.load %arg18[%c4, %c0_227] : memref<56x28xf32, #tpu.memory_space<vmem>>, vector<1x28xf32>
    tpu.vector_store %arg18[%c4, %c0_227], %345 {strides = array<i32>} : memref<56x28xf32, #tpu.memory_space<vmem>>, vector<1x28xf32>,
    %347 = vector.extract_strided_slice %336 {offsets = [0, 150], sizes = [1, 28], strides = [1, 1]} : vector<8x1800xf32> to vector<1x28xf32>
    %c5 = arith.constant 5 : index
    %c0_228 = arith.constant 0 : index
    %348 = vector.load %arg18[%c5, %c0_228] : memref<56x28xf32, #tpu.memory_space<vmem>>, vector<1x28xf32>
    tpu.vector_store %arg18[%c5, %c0_228], %347 {strides = array<i32>} : memref<56x28xf32, #tpu.memory_space<vmem>>, vector<1x28xf32>,
    %349 = vector.extract_strided_slice %336 {offsets = [0, 180], sizes = [1, 28], strides = [1, 1]} : vector<8x1800xf32> to vector<1x28xf32>
    %c6 = arith.constant 6 : index
    %c0_229 = arith.constant 0 : index
    %350 = vector.load %arg18[%c6, %c0_229] : memref<56x28xf32, #tpu.memory_space<vmem>>, vector<1x28xf32>
    tpu.vector_store %arg18[%c6, %c0_229], %349 {strides = array<i32>} : memref<56x28xf32, #tpu.memory_space<vmem>>, vector<1x28xf32>,
    %351 = vector.extract_strided_slice %336 {offsets = [0, 210], sizes = [1, 28], strides = [1, 1]} : vector<8x1800xf32> to vector<1x28xf32>
    %c7 = arith.constant 7 : index
    %c0_230 = arith.constant 0 : index
    %352 = vector.load %arg18[%c7, %c0_230] : memref<56x28xf32, #tpu.memory_space<vmem>>, vector<1x28xf32>
    tpu.vector_store %arg18[%c7, %c0_230], %351 {strides = array<i32>} : memref<56x28xf32, #tpu.memory_space<vmem>>, vector<1x28xf32>,
    %353 = vector.extract_strided_slice %336 {offsets = [0, 240], sizes = [1, 28], strides = [1, 1]} : vector<8x1800xf32> to vector<1x28xf32>
    %c8_231 = arith.constant 8 : index
    %c0_232 = arith.constant 0 : index
    %354 = vector.load %arg18[%c8_231, %c0_232] : memref<56x28xf32, #tpu.memory_space<vmem>>, vector<1x28xf32>
    tpu.vector_store %arg18[%c8_231, %c0_232], %353 {strides = array<i32>} : memref<56x28xf32, #tpu.memory_space<vmem>>, vector<1x28xf32>,
    %355 = vector.extract_strided_slice %336 {offsets = [0, 270], sizes = [1, 28], strides = [1, 1]} : vector<8x1800xf32> to vector<1x28xf32>
    %c9 = arith.constant 9 : index
    %c0_233 = arith.constant 0 : index
    %356 = vector.load %arg18[%c9, %c0_233] : memref<56x28xf32, #tpu.memory_space<vmem>>, vector<1x28xf32>
    tpu.vector_store %arg18[%c9, %c0_233], %355 {strides = array<i32>} : memref<56x28xf32, #tpu.memory_space<vmem>>, vector<1x28xf32>,
    %357 = vector.extract_strided_slice %336 {offsets = [0, 300], sizes = [1, 28], strides = [1, 1]} : vector<8x1800xf32> to vector<1x28xf32>
    %c10 = arith.constant 10 : index
    %c0_234 = arith.constant 0 : index
    %358 = vector.load %arg18[%c10, %c0_234] : memref<56x28xf32, #tpu.memory_space<vmem>>, vector<1x28xf32>
    tpu.vector_store %arg18[%c10, %c0_234], %357 {strides = array<i32>} : memref<56x28xf32, #tpu.memory_space<vmem>>, vector<1x28xf32>,
    %359 = vector.extract_strided_slice %336 {offsets = [0, 330], sizes = [1, 28], strides = [1, 1]} : vector<8x1800xf32> to vector<1x28xf32>
    %c11 = arith.constant 11 : index
    %c0_235 = arith.constant 0 : index
    %360 = vector.load %arg18[%c11, %c0_235] : memref<56x28xf32, #tpu.memory_space<vmem>>, vector<1x28xf32>
    tpu.vector_store %arg18[%c11, %c0_235], %359 {strides = array<i32>} : memref<56x28xf32, #tpu.memory_space<vmem>>, vector<1x28xf32>,
    %361 = vector.extract_strided_slice %336 {offsets = [0, 360], sizes = [1, 28], strides = [1, 1]} : vector<8x1800xf32> to vector<1x28xf32>
    %c12 = arith.constant 12 : index
    %c0_236 = arith.constant 0 : index
    %362 = vector.load %arg18[%c12, %c0_236] : memref<56x28xf32, #tpu.memory_space<vmem>>, vector<1x28xf32>
    tpu.vector_store %arg18[%c12, %c0_236], %361 {strides = array<i32>} : memref<56x28xf32, #tpu.memory_space<vmem>>, vector<1x28xf32>,
    %363 = vector.extract_strided_slice %336 {offsets = [0, 390], sizes = [1, 28], strides = [1, 1]} : vector<8x1800xf32> to vector<1x28xf32>
    %c13 = arith.constant 13 : index
    %c0_237 = arith.constant 0 : index
    %364 = vector.load %arg18[%c13, %c0_237] : memref<56x28xf32, #tpu.memory_space<vmem>>, vector<1x28xf32>
    tpu.vector_store %arg18[%c13, %c0_237], %363 {strides = array<i32>} : memref<56x28xf32, #tpu.memory_space<vmem>>, vector<1x28xf32>,
    %365 = vector.extract_strided_slice %336 {offsets = [0, 420], sizes = [1, 28], strides = [1, 1]} : vector<8x1800xf32> to vector<1x28xf32>
    %c14 = arith.constant 14 : index
    %c0_238 = arith.constant 0 : index
    %366 = vector.load %arg18[%c14, %c0_238] : memref<56x28xf32, #tpu.memory_space<vmem>>, vector<1x28xf32>
    tpu.vector_store %arg18[%c14, %c0_238], %365 {strides = array<i32>} : memref<56x28xf32, #tpu.memory_space<vmem>>, vector<1x28xf32>,
    %367 = vector.extract_strided_slice %336 {offsets = [0, 450], sizes = [1, 28], strides = [1, 1]} : vector<8x1800xf32> to vector<1x28xf32>
    %c15 = arith.constant 15 : index
    %c0_239 = arith.constant 0 : index
    %368 = vector.load %arg18[%c15, %c0_239] : memref<56x28xf32, #tpu.memory_space<vmem>>, vector<1x28xf32>
    tpu.vector_store %arg18[%c15, %c0_239], %367 {strides = array<i32>} : memref<56x28xf32, #tpu.memory_space<vmem>>, vector<1x28xf32>,
    %369 = vector.extract_strided_slice %336 {offsets = [0, 480], sizes = [1, 28], strides = [1, 1]} : vector<8x1800xf32> to vector<1x28xf32>
    %c16_240 = arith.constant 16 : index
    %c0_241 = arith.constant 0 : index
    %370 = vector.load %arg18[%c16_240, %c0_241] : memref<56x28xf32, #tpu.memory_space<vmem>>, vector<1x28xf32>
    tpu.vector_store %arg18[%c16_240, %c0_241], %369 {strides = array<i32>} : memref<56x28xf32, #tpu.memory_space<vmem>>, vector<1x28xf32>,
    %371 = vector.extract_strided_slice %336 {offsets = [0, 510], sizes = [1, 28], strides = [1, 1]} : vector<8x1800xf32> to vector<1x28xf32>
    %c17 = arith.constant 17 : index
    %c0_242 = arith.constant 0 : index
    %372 = vector.load %arg18[%c17, %c0_242] : memref<56x28xf32, #tpu.memory_space<vmem>>, vector<1x28xf32>
    tpu.vector_store %arg18[%c17, %c0_242], %371 {strides = array<i32>} : memref<56x28xf32, #tpu.memory_space<vmem>>, vector<1x28xf32>,
    %373 = vector.extract_strided_slice %336 {offsets = [0, 540], sizes = [1, 28], strides = [1, 1]} : vector<8x1800xf32> to vector<1x28xf32>
    %c18 = arith.constant 18 : index
    %c0_243 = arith.constant 0 : index
    %374 = vector.load %arg18[%c18, %c0_243] : memref<56x28xf32, #tpu.memory_space<vmem>>, vector<1x28xf32>
    tpu.vector_store %arg18[%c18, %c0_243], %373 {strides = array<i32>} : memref<56x28xf32, #tpu.memory_space<vmem>>, vector<1x28xf32>,
    %375 = vector.extract_strided_slice %336 {offsets = [0, 570], sizes = [1, 28], strides = [1, 1]} : vector<8x1800xf32> to vector<1x28xf32>
    %c19 = arith.constant 19 : index
    %c0_244 = arith.constant 0 : index
    %376 = vector.load %arg18[%c19, %c0_244] : memref<56x28xf32, #tpu.memory_space<vmem>>, vector<1x28xf32>
    tpu.vector_store %arg18[%c19, %c0_244], %375 {strides = array<i32>} : memref<56x28xf32, #tpu.memory_space<vmem>>, vector<1x28xf32>,
    %377 = vector.extract_strided_slice %336 {offsets = [0, 600], sizes = [1, 28], strides = [1, 1]} : vector<8x1800xf32> to vector<1x28xf32>
    %c20_245 = arith.constant 20 : index
    %c0_246 = arith.constant 0 : index
    %378 = vector.load %arg18[%c20_245, %c0_246] : memref<56x28xf32, #tpu.memory_space<vmem>>, vector<1x28xf32>
    tpu.vector_store %arg18[%c20_245, %c0_246], %377 {strides = array<i32>} : memref<56x28xf32, #tpu.memory_space<vmem>>, vector<1x28xf32>,
    %379 = vector.extract_strided_slice %336 {offsets = [0, 630], sizes = [1, 28], strides = [1, 1]} : vector<8x1800xf32> to vector<1x28xf32>
    %c21 = arith.constant 21 : index
    %c0_247 = arith.constant 0 : index
    %380 = vector.load %arg18[%c21, %c0_247] : memref<56x28xf32, #tpu.memory_space<vmem>>, vector<1x28xf32>
    tpu.vector_store %arg18[%c21, %c0_247], %379 {strides = array<i32>} : memref<56x28xf32, #tpu.memory_space<vmem>>, vector<1x28xf32>,
    %381 = vector.extract_strided_slice %336 {offsets = [0, 660], sizes = [1, 28], strides = [1, 1]} : vector<8x1800xf32> to vector<1x28xf32>
    %c22_248 = arith.constant 22 : index
    %c0_249 = arith.constant 0 : index
    %382 = vector.load %arg18[%c22_248, %c0_249] : memref<56x28xf32, #tpu.memory_space<vmem>>, vector<1x28xf32>
    tpu.vector_store %arg18[%c22_248, %c0_249], %381 {strides = array<i32>} : memref<56x28xf32, #tpu.memory_space<vmem>>, vector<1x28xf32>,
    %383 = vector.extract_strided_slice %336 {offsets = [0, 690], sizes = [1, 28], strides = [1, 1]} : vector<8x1800xf32> to vector<1x28xf32>
    %c23 = arith.constant 23 : index
    %c0_250 = arith.constant 0 : index
    %384 = vector.load %arg18[%c23, %c0_250] : memref<56x28xf32, #tpu.memory_space<vmem>>, vector<1x28xf32>
    tpu.vector_store %arg18[%c23, %c0_250], %383 {strides = array<i32>} : memref<56x28xf32, #tpu.memory_space<vmem>>, vector<1x28xf32>,
    %385 = vector.extract_strided_slice %336 {offsets = [0, 720], sizes = [1, 28], strides = [1, 1]} : vector<8x1800xf32> to vector<1x28xf32>
    %c24_251 = arith.constant 24 : index
    %c0_252 = arith.constant 0 : index
    %386 = vector.load %arg18[%c24_251, %c0_252] : memref<56x28xf32, #tpu.memory_space<vmem>>, vector<1x28xf32>
    tpu.vector_store %arg18[%c24_251, %c0_252], %385 {strides = array<i32>} : memref<56x28xf32, #tpu.memory_space<vmem>>, vector<1x28xf32>,
    %387 = vector.extract_strided_slice %336 {offsets = [0, 750], sizes = [1, 28], strides = [1, 1]} : vector<8x1800xf32> to vector<1x28xf32>
    %c25 = arith.constant 25 : index
    %c0_253 = arith.constant 0 : index
    %388 = vector.load %arg18[%c25, %c0_253] : memref<56x28xf32, #tpu.memory_space<vmem>>, vector<1x28xf32>
    tpu.vector_store %arg18[%c25, %c0_253], %387 {strides = array<i32>} : memref<56x28xf32, #tpu.memory_space<vmem>>, vector<1x28xf32>,
    %389 = vector.extract_strided_slice %336 {offsets = [0, 780], sizes = [1, 28], strides = [1, 1]} : vector<8x1800xf32> to vector<1x28xf32>
    %c26 = arith.constant 26 : index
    %c0_254 = arith.constant 0 : index
    %390 = vector.load %arg18[%c26, %c0_254] : memref<56x28xf32, #tpu.memory_space<vmem>>, vector<1x28xf32>
    tpu.vector_store %arg18[%c26, %c0_254], %389 {strides = array<i32>} : memref<56x28xf32, #tpu.memory_space<vmem>>, vector<1x28xf32>,
    %391 = vector.extract_strided_slice %336 {offsets = [0, 810], sizes = [1, 28], strides = [1, 1]} : vector<8x1800xf32> to vector<1x28xf32>
    %c27 = arith.constant 27 : index
    %c0_255 = arith.constant 0 : index
    %392 = vector.load %arg18[%c27, %c0_255] : memref<56x28xf32, #tpu.memory_space<vmem>>, vector<1x28xf32>
    tpu.vector_store %arg18[%c27, %c0_255], %391 {strides = array<i32>} : memref<56x28xf32, #tpu.memory_space<vmem>>, vector<1x28xf32>,
    %393 = vector.extract_strided_slice %336 {offsets = [0, 900], sizes = [1, 28], strides = [1, 1]} : vector<8x1800xf32> to vector<1x28xf32>
    %c28 = arith.constant 28 : index
    %c0_256 = arith.constant 0 : index
    %394 = vector.load %arg18[%c28, %c0_256] : memref<56x28xf32, #tpu.memory_space<vmem>>, vector<1x28xf32>
    tpu.vector_store %arg18[%c28, %c0_256], %393 {strides = array<i32>} : memref<56x28xf32, #tpu.memory_space<vmem>>, vector<1x28xf32>,
    %395 = vector.extract_strided_slice %336 {offsets = [0, 930], sizes = [1, 28], strides = [1, 1]} : vector<8x1800xf32> to vector<1x28xf32>
    %c29 = arith.constant 29 : index
    %c0_257 = arith.constant 0 : index
    %396 = vector.load %arg18[%c29, %c0_257] : memref<56x28xf32, #tpu.memory_space<vmem>>, vector<1x28xf32>
    tpu.vector_store %arg18[%c29, %c0_257], %395 {strides = array<i32>} : memref<56x28xf32, #tpu.memory_space<vmem>>, vector<1x28xf32>,
    %397 = vector.extract_strided_slice %336 {offsets = [0, 960], sizes = [1, 28], strides = [1, 1]} : vector<8x1800xf32> to vector<1x28xf32>
    %c30_258 = arith.constant 30 : index
    %c0_259 = arith.constant 0 : index
    %398 = vector.load %arg18[%c30_258, %c0_259] : memref<56x28xf32, #tpu.memory_space<vmem>>, vector<1x28xf32>
    tpu.vector_store %arg18[%c30_258, %c0_259], %397 {strides = array<i32>} : memref<56x28xf32, #tpu.memory_space<vmem>>, vector<1x28xf32>,
    %399 = vector.extract_strided_slice %336 {offsets = [0, 990], sizes = [1, 28], strides = [1, 1]} : vector<8x1800xf32> to vector<1x28xf32>
    %c31 = arith.constant 31 : index
    %c0_260 = arith.constant 0 : index
    %400 = vector.load %arg18[%c31, %c0_260] : memref<56x28xf32, #tpu.memory_space<vmem>>, vector<1x28xf32>
    tpu.vector_store %arg18[%c31, %c0_260], %399 {strides = array<i32>} : memref<56x28xf32, #tpu.memory_space<vmem>>, vector<1x28xf32>,
    %401 = vector.extract_strided_slice %336 {offsets = [0, 1020], sizes = [1, 28], strides = [1, 1]} : vector<8x1800xf32> to vector<1x28xf32>
    %c32_261 = arith.constant 32 : index
    %c0_262 = arith.constant 0 : index
    %402 = vector.load %arg18[%c32_261, %c0_262] : memref<56x28xf32, #tpu.memory_space<vmem>>, vector<1x28xf32>
    tpu.vector_store %arg18[%c32_261, %c0_262], %401 {strides = array<i32>} : memref<56x28xf32, #tpu.memory_space<vmem>>, vector<1x28xf32>,
    %403 = vector.extract_strided_slice %336 {offsets = [0, 1050], sizes = [1, 28], strides = [1, 1]} : vector<8x1800xf32> to vector<1x28xf32>
    %c33 = arith.constant 33 : index
    %c0_263 = arith.constant 0 : index
    %404 = vector.load %arg18[%c33, %c0_263] : memref<56x28xf32, #tpu.memory_space<vmem>>, vector<1x28xf32>
    tpu.vector_store %arg18[%c33, %c0_263], %403 {strides = array<i32>} : memref<56x28xf32, #tpu.memory_space<vmem>>, vector<1x28xf32>,
    %405 = vector.extract_strided_slice %336 {offsets = [0, 1080], sizes = [1, 28], strides = [1, 1]} : vector<8x1800xf32> to vector<1x28xf32>
    %c34 = arith.constant 34 : index
    %c0_264 = arith.constant 0 : index
    %406 = vector.load %arg18[%c34, %c0_264] : memref<56x28xf32, #tpu.memory_space<vmem>>, vector<1x28xf32>
    tpu.vector_store %arg18[%c34, %c0_264], %405 {strides = array<i32>} : memref<56x28xf32, #tpu.memory_space<vmem>>, vector<1x28xf32>,
    %407 = vector.extract_strided_slice %336 {offsets = [0, 1110], sizes = [1, 28], strides = [1, 1]} : vector<8x1800xf32> to vector<1x28xf32>
    %c35 = arith.constant 35 : index
    %c0_265 = arith.constant 0 : index
    %408 = vector.load %arg18[%c35, %c0_265] : memref<56x28xf32, #tpu.memory_space<vmem>>, vector<1x28xf32>
    tpu.vector_store %arg18[%c35, %c0_265], %407 {strides = array<i32>} : memref<56x28xf32, #tpu.memory_space<vmem>>, vector<1x28xf32>,
    %409 = vector.extract_strided_slice %336 {offsets = [0, 1140], sizes = [1, 28], strides = [1, 1]} : vector<8x1800xf32> to vector<1x28xf32>
    %c36 = arith.constant 36 : index
    %c0_266 = arith.constant 0 : index
    %410 = vector.load %arg18[%c36, %c0_266] : memref<56x28xf32, #tpu.memory_space<vmem>>, vector<1x28xf32>
    tpu.vector_store %arg18[%c36, %c0_266], %409 {strides = array<i32>} : memref<56x28xf32, #tpu.memory_space<vmem>>, vector<1x28xf32>,
    %411 = vector.extract_strided_slice %336 {offsets = [0, 1170], sizes = [1, 28], strides = [1, 1]} : vector<8x1800xf32> to vector<1x28xf32>
    %c37 = arith.constant 37 : index
    %c0_267 = arith.constant 0 : index
    %412 = vector.load %arg18[%c37, %c0_267] : memref<56x28xf32, #tpu.memory_space<vmem>>, vector<1x28xf32>
    tpu.vector_store %arg18[%c37, %c0_267], %411 {strides = array<i32>} : memref<56x28xf32, #tpu.memory_space<vmem>>, vector<1x28xf32>,
    %413 = vector.extract_strided_slice %336 {offsets = [0, 1200], sizes = [1, 28], strides = [1, 1]} : vector<8x1800xf32> to vector<1x28xf32>
    %c38_268 = arith.constant 38 : index
    %c0_269 = arith.constant 0 : index
    %414 = vector.load %arg18[%c38_268, %c0_269] : memref<56x28xf32, #tpu.memory_space<vmem>>, vector<1x28xf32>
    tpu.vector_store %arg18[%c38_268, %c0_269], %413 {strides = array<i32>} : memref<56x28xf32, #tpu.memory_space<vmem>>, vector<1x28xf32>,
    %415 = vector.extract_strided_slice %336 {offsets = [0, 1230], sizes = [1, 28], strides = [1, 1]} : vector<8x1800xf32> to vector<1x28xf32>
    %c39 = arith.constant 39 : index
    %c0_270 = arith.constant 0 : index
    %416 = vector.load %arg18[%c39, %c0_270] : memref<56x28xf32, #tpu.memory_space<vmem>>, vector<1x28xf32>
    tpu.vector_store %arg18[%c39, %c0_270], %415 {strides = array<i32>} : memref<56x28xf32, #tpu.memory_space<vmem>>, vector<1x28xf32>,
    %417 = vector.extract_strided_slice %336 {offsets = [0, 1260], sizes = [1, 28], strides = [1, 1]} : vector<8x1800xf32> to vector<1x28xf32>
    %c40_271 = arith.constant 40 : index
    %c0_272 = arith.constant 0 : index
    %418 = vector.load %arg18[%c40_271, %c0_272] : memref<56x28xf32, #tpu.memory_space<vmem>>, vector<1x28xf32>
    tpu.vector_store %arg18[%c40_271, %c0_272], %417 {strides = array<i32>} : memref<56x28xf32, #tpu.memory_space<vmem>>, vector<1x28xf32>,
    %419 = vector.extract_strided_slice %336 {offsets = [0, 1290], sizes = [1, 28], strides = [1, 1]} : vector<8x1800xf32> to vector<1x28xf32>
    %c41 = arith.constant 41 : index
    %c0_273 = arith.constant 0 : index
    %420 = vector.load %arg18[%c41, %c0_273] : memref<56x28xf32, #tpu.memory_space<vmem>>, vector<1x28xf32>
    tpu.vector_store %arg18[%c41, %c0_273], %419 {strides = array<i32>} : memref<56x28xf32, #tpu.memory_space<vmem>>, vector<1x28xf32>,
    %421 = vector.extract_strided_slice %336 {offsets = [0, 1320], sizes = [1, 28], strides = [1, 1]} : vector<8x1800xf32> to vector<1x28xf32>
    %c42_274 = arith.constant 42 : index
    %c0_275 = arith.constant 0 : index
    %422 = vector.load %arg18[%c42_274, %c0_275] : memref<56x28xf32, #tpu.memory_space<vmem>>, vector<1x28xf32>
    tpu.vector_store %arg18[%c42_274, %c0_275], %421 {strides = array<i32>} : memref<56x28xf32, #tpu.memory_space<vmem>>, vector<1x28xf32>,
    %423 = vector.extract_strided_slice %336 {offsets = [0, 1350], sizes = [1, 28], strides = [1, 1]} : vector<8x1800xf32> to vector<1x28xf32>
    %c43 = arith.constant 43 : index
    %c0_276 = arith.constant 0 : index
    %424 = vector.load %arg18[%c43, %c0_276] : memref<56x28xf32, #tpu.memory_space<vmem>>, vector<1x28xf32>
    tpu.vector_store %arg18[%c43, %c0_276], %423 {strides = array<i32>} : memref<56x28xf32, #tpu.memory_space<vmem>>, vector<1x28xf32>,
    %425 = vector.extract_strided_slice %336 {offsets = [0, 1380], sizes = [1, 28], strides = [1, 1]} : vector<8x1800xf32> to vector<1x28xf32>
    %c44 = arith.constant 44 : index
    %c0_277 = arith.constant 0 : index
    %426 = vector.load %arg18[%c44, %c0_277] : memref<56x28xf32, #tpu.memory_space<vmem>>, vector<1x28xf32>
    tpu.vector_store %arg18[%c44, %c0_277], %425 {strides = array<i32>} : memref<56x28xf32, #tpu.memory_space<vmem>>, vector<1x28xf32>,
    %427 = vector.extract_strided_slice %336 {offsets = [0, 1410], sizes = [1, 28], strides = [1, 1]} : vector<8x1800xf32> to vector<1x28xf32>
    %c45 = arith.constant 45 : index
    %c0_278 = arith.constant 0 : index
    %428 = vector.load %arg18[%c45, %c0_278] : memref<56x28xf32, #tpu.memory_space<vmem>>, vector<1x28xf32>
    tpu.vector_store %arg18[%c45, %c0_278], %427 {strides = array<i32>} : memref<56x28xf32, #tpu.memory_space<vmem>>, vector<1x28xf32>,
    %429 = vector.extract_strided_slice %336 {offsets = [0, 1440], sizes = [1, 28], strides = [1, 1]} : vector<8x1800xf32> to vector<1x28xf32>
    %c46 = arith.constant 46 : index
    %c0_279 = arith.constant 0 : index
    %430 = vector.load %arg18[%c46, %c0_279] : memref<56x28xf32, #tpu.memory_space<vmem>>, vector<1x28xf32>
    tpu.vector_store %arg18[%c46, %c0_279], %429 {strides = array<i32>} : memref<56x28xf32, #tpu.memory_space<vmem>>, vector<1x28xf32>,
    %431 = vector.extract_strided_slice %336 {offsets = [0, 1470], sizes = [1, 28], strides = [1, 1]} : vector<8x1800xf32> to vector<1x28xf32>
    %c47 = arith.constant 47 : index
    %c0_280 = arith.constant 0 : index
    %432 = vector.load %arg18[%c47, %c0_280] : memref<56x28xf32, #tpu.memory_space<vmem>>, vector<1x28xf32>
    tpu.vector_store %arg18[%c47, %c0_280], %431 {strides = array<i32>} : memref<56x28xf32, #tpu.memory_space<vmem>>, vector<1x28xf32>,
    %433 = vector.extract_strided_slice %336 {offsets = [0, 1500], sizes = [1, 28], strides = [1, 1]} : vector<8x1800xf32> to vector<1x28xf32>
    %c48_281 = arith.constant 48 : index
    %c0_282 = arith.constant 0 : index
    %434 = vector.load %arg18[%c48_281, %c0_282] : memref<56x28xf32, #tpu.memory_space<vmem>>, vector<1x28xf32>
    tpu.vector_store %arg18[%c48_281, %c0_282], %433 {strides = array<i32>} : memref<56x28xf32, #tpu.memory_space<vmem>>, vector<1x28xf32>,
    %435 = vector.extract_strided_slice %336 {offsets = [0, 1530], sizes = [1, 28], strides = [1, 1]} : vector<8x1800xf32> to vector<1x28xf32>
    %c49 = arith.constant 49 : index
    %c0_283 = arith.constant 0 : index
    %436 = vector.load %arg18[%c49, %c0_283] : memref<56x28xf32, #tpu.memory_space<vmem>>, vector<1x28xf32>
    tpu.vector_store %arg18[%c49, %c0_283], %435 {strides = array<i32>} : memref<56x28xf32, #tpu.memory_space<vmem>>, vector<1x28xf32>,
    %437 = vector.extract_strided_slice %336 {offsets = [0, 1560], sizes = [1, 28], strides = [1, 1]} : vector<8x1800xf32> to vector<1x28xf32>
    %c50 = arith.constant 50 : index
    %c0_284 = arith.constant 0 : index
    %438 = vector.load %arg18[%c50, %c0_284] : memref<56x28xf32, #tpu.memory_space<vmem>>, vector<1x28xf32>
    tpu.vector_store %arg18[%c50, %c0_284], %437 {strides = array<i32>} : memref<56x28xf32, #tpu.memory_space<vmem>>, vector<1x28xf32>,
    %439 = vector.extract_strided_slice %336 {offsets = [0, 1590], sizes = [1, 28], strides = [1, 1]} : vector<8x1800xf32> to vector<1x28xf32>
    %c51 = arith.constant 51 : index
    %c0_285 = arith.constant 0 : index
    %440 = vector.load %arg18[%c51, %c0_285] : memref<56x28xf32, #tpu.memory_space<vmem>>, vector<1x28xf32>
    tpu.vector_store %arg18[%c51, %c0_285], %439 {strides = array<i32>} : memref<56x28xf32, #tpu.memory_space<vmem>>, vector<1x28xf32>,
    %441 = vector.extract_strided_slice %336 {offsets = [0, 1620], sizes = [1, 28], strides = [1, 1]} : vector<8x1800xf32> to vector<1x28xf32>
    %c52 = arith.constant 52 : index
    %c0_286 = arith.constant 0 : index
    %442 = vector.load %arg18[%c52, %c0_286] : memref<56x28xf32, #tpu.memory_space<vmem>>, vector<1x28xf32>
    tpu.vector_store %arg18[%c52, %c0_286], %441 {strides = array<i32>} : memref<56x28xf32, #tpu.memory_space<vmem>>, vector<1x28xf32>,
    %443 = vector.extract_strided_slice %336 {offsets = [0, 1650], sizes = [1, 28], strides = [1, 1]} : vector<8x1800xf32> to vector<1x28xf32>
    %c53 = arith.constant 53 : index
    %c0_287 = arith.constant 0 : index
    %444 = vector.load %arg18[%c53, %c0_287] : memref<56x28xf32, #tpu.memory_space<vmem>>, vector<1x28xf32>
    tpu.vector_store %arg18[%c53, %c0_287], %443 {strides = array<i32>} : memref<56x28xf32, #tpu.memory_space<vmem>>, vector<1x28xf32>,
    %445 = vector.extract_strided_slice %336 {offsets = [0, 1680], sizes = [1, 28], strides = [1, 1]} : vector<8x1800xf32> to vector<1x28xf32>
    %c54 = arith.constant 54 : index
    %c0_288 = arith.constant 0 : index
    %446 = vector.load %arg18[%c54, %c0_288] : memref<56x28xf32, #tpu.memory_space<vmem>>, vector<1x28xf32>
    tpu.vector_store %arg18[%c54, %c0_288], %445 {strides = array<i32>} : memref<56x28xf32, #tpu.memory_space<vmem>>, vector<1x28xf32>,
    %447 = vector.extract_strided_slice %336 {offsets = [0, 1710], sizes = [1, 28], strides = [1, 1]} : vector<8x1800xf32> to vector<1x28xf32>
    %c55 = arith.constant 55 : index
    %c0_289 = arith.constant 0 : index
    %448 = vector.load %arg18[%c55, %c0_289] : memref<56x28xf32, #tpu.memory_space<vmem>>, vector<1x28xf32>
    tpu.vector_store %arg18[%c55, %c0_289], %447 {strides = array<i32>} : memref<56x28xf32, #tpu.memory_space<vmem>>, vector<1x28xf32>,
    return
  }
  func.func @transform_0(%arg0: i32) -> (i32, i32) {
    %c0_i32 = arith.constant 0 : i32
    %c0_i32_0 = arith.constant 0 : i32
    %c0_i32_1 = arith.constant 0 : i32
    return %c0_i32, %c0_i32_0 : i32, i32
  }
  func.func @transform_1(%arg0: i32) -> (i32, i32) {
    %c0_i32 = arith.constant 0 : i32
    %c0_i32_0 = arith.constant 0 : i32
    %c0_i32_1 = arith.constant 0 : i32
    return %c0_i32, %c0_i32_0 : i32, i32
  }
  func.func @transform_2(%arg0: i32) -> (i32, i32) {
    %c0_i32 = arith.constant 0 : i32
    %c0_i32_0 = arith.constant 0 : i32
    %c0_i32_1 = arith.constant 0 : i32
    return %c0_i32, %c0_i32_0 : i32, i32
  }
  func.func @transform_3(%arg0: i32) -> (i32, i32) {
    %c0_i32 = arith.constant 0 : i32
    %c0_i32_0 = arith.constant 0 : i32
    %c0_i32_1 = arith.constant 0 : i32
    return %c0_i32, %c0_i32_0 : i32, i32
  }
  func.func @transform_4(%arg0: i32) -> (i32, i32) {
    %c0_i32 = arith.constant 0 : i32
    %c0_i32_0 = arith.constant 0 : i32
    %c0_i32_1 = arith.constant 0 : i32
    return %c0_i32, %c0_i32_0 : i32, i32
  }
  func.func @transform_5(%arg0: i32) -> (i32, i32) {
    %c0_i32 = arith.constant 0 : i32
    %c0_i32_0 = arith.constant 0 : i32
    %c0_i32_1 = arith.constant 0 : i32
    return %c0_i32, %c0_i32_0 : i32, i32
  }
  func.func @transform_6(%arg0: i32) -> (i32, i32) {
    %c0_i32 = arith.constant 0 : i32
    %c0_i32_0 = arith.constant 0 : i32
    %c0_i32_1 = arith.constant 0 : i32
    return %c0_i32, %c0_i32_0 : i32, i32
  }
  func.func @transform_7(%arg0: i32) -> (i32, i32) {
    %c0_i32 = arith.constant 0 : i32
    %c0_i32_0 = arith.constant 0 : i32
    %c0_i32_1 = arith.constant 0 : i32
    return %c0_i32, %c0_i32_0 : i32, i32
  }
  func.func @transform_8(%arg0: i32) -> (i32, i32) {
    %c0_i32 = arith.constant 0 : i32
    %c0_i32_0 = arith.constant 0 : i32
    %c0_i32_1 = arith.constant 0 : i32
    return %c0_i32, %c0_i32_0 : i32, i32
  }
  func.func @transform_9(%arg0: i32) -> (i32, i32) {
    %c0_i32 = arith.constant 0 : i32
    %c0_i32_0 = arith.constant 0 : i32
    %c0_i32_1 = arith.constant 0 : i32
    return %c0_i32, %c0_i32_0 : i32, i32
  }
  func.func @transform_10(%arg0: i32) -> (i32, i32) {
    %c0_i32 = arith.constant 0 : i32
    %c0_i32_0 = arith.constant 0 : i32
    %c0_i32_1 = arith.constant 0 : i32
    return %c0_i32, %c0_i32_0 : i32, i32
  }
  func.func @transform_11(%arg0: i32) -> (i32, i32) {
    %c0_i32 = arith.constant 0 : i32
    %c0_i32_0 = arith.constant 0 : i32
    %c0_i32_1 = arith.constant 0 : i32
    return %c0_i32, %c0_i32_0 : i32, i32
  }
  func.func @transform_12(%arg0: i32) -> (i32, i32) {
    %c0_i32 = arith.constant 0 : i32
    %c0_i32_0 = arith.constant 0 : i32
    %c0_i32_1 = arith.constant 0 : i32
    return %c0_i32, %c0_i32_0 : i32, i32
  }
  func.func @transform_13(%arg0: i32) -> (i32, i32) {
    %c0_i32 = arith.constant 0 : i32
    %c0_i32_0 = arith.constant 0 : i32
    %c0_i32_1 = arith.constant 0 : i32
    return %c0_i32, %c0_i32_0 : i32, i32
  }
  func.func @transform_14(%arg0: i32) -> (i32, i32) {
    %c0_i32 = arith.constant 0 : i32
    %c0_i32_0 = arith.constant 0 : i32
    %c0_i32_1 = arith.constant 0 : i32
    return %c0_i32, %c0_i32_0 : i32, i32
  }
  func.func @transform_15(%arg0: i32) -> (i32, i32) {
    %c0_i32 = arith.constant 0 : i32
    %c0_i32_0 = arith.constant 0 : i32
    %c0_i32_1 = arith.constant 0 : i32
    return %c0_i32, %c0_i32_0 : i32, i32
  }
  func.func @transform_16(%arg0: i32) -> (i32, i32) {
    %c0_i32 = arith.constant 0 : i32
    %c0_i32_0 = arith.constant 0 : i32
    %c0_i32_1 = arith.constant 0 : i32
    return %c0_i32, %c0_i32_0 : i32, i32
  }
  func.func @transform_17(%arg0: i32) -> (i32, i32) {
    %c0_i32 = arith.constant 0 : i32
    %c0_i32_0 = arith.constant 0 : i32
    %c0_i32_1 = arith.constant 0 : i32
    return %c0_i32, %c0_i32_0 : i32, i32
  }
}

</mosaic_0001>

<llo_original>
// kernel: decoder_forward.1
$region0: #{decoder_forward.1}
  #allocation0 [shape = 'u32[]', space=smem, size = 0x4, offset = 0x4, fixed_abs, tag = 'smem constant byte address 0x4 - core index']
  #allocation1 [shape = 'u32[144,128]{1,0:T(1,128)}', space=vmem, size = 0x12000, scoped, tag = 'internal scratch']
  #allocation2 [shape = 'f32[32,182]{1,0:T(8,128)}', space=vmem, size = 0x8000, scoped, tag = 'scratch operand']
  #allocation3 [shape = 'f32[288,162]{1,0:T(8,128)}', space=vmem, size = 0x48000, scoped, tag = 'scratch operand']
  #allocation4 [shape = 'f32[16,546]{1,0:T(8,128)}', space=vmem, size = 0xa000, scoped, tag = 'scratch operand']
  #allocation5 [shape = 'f32[144,512]{1,0:T(8,128)}', space=vmem, size = 0x48000, scoped, tag = 'scratch operand']
  #allocation6 [shape = 'f32[8,1862]{1,0:T(8,128)}', space=vmem, size = 0xf000, scoped, tag = 'scratch operand']
  #allocation7 [shape = 'f32[72,1800]{1,0:T(8,128)}', space=vmem, size = 0x87000, scoped, tag = 'scratch operand']
  %s0 = inlined_call_operand.vmem [shape: f32[2,4], index: 0, kind: input, shape index: {}]
  %s1 = inlined_call_operand.vmem [shape: f32[128,4], index: 1, kind: input, shape index: {}]
  %s2 = inlined_call_operand.vmem [shape: f32[128,1], index: 2, kind: input, shape index: {}]
  %s3 = inlined_call_operand.vmem [shape: f32[288,128], index: 3, kind: input, shape index: {}]
  %s4 = inlined_call_operand.vmem [shape: f32[288,1], index: 4, kind: input, shape index: {}]
  %s5 = inlined_call_operand.vmem [shape: f32[16,288], index: 5, kind: input, shape index: {}]
  %s6 = inlined_call_operand.vmem [shape: f32[16,1], index: 6, kind: input, shape index: {}]
  %s7 = inlined_call_operand.vmem [shape: f32[16,1], index: 7, kind: input, shape index: {}]
  %s8 = inlined_call_operand.vmem [shape: f32[16,1], index: 8, kind: input, shape index: {}]
  %s9 = inlined_call_operand.vmem [shape: f32[1,162], index: 9, kind: input, shape index: {}]
  %s10 = inlined_call_operand.vmem [shape: f32[8,144], index: 10, kind: input, shape index: {}]
  %s11 = inlined_call_operand.vmem [shape: f32[8,1], index: 11, kind: input, shape index: {}]
  %s12 = inlined_call_operand.vmem [shape: f32[8,1], index: 12, kind: input, shape index: {}]
  %s13 = inlined_call_operand.vmem [shape: f32[8,1], index: 13, kind: input, shape index: {}]
  %s14 = inlined_call_operand.vmem [shape: f32[1,512], index: 14, kind: input, shape index: {}]
  %s15 = inlined_call_operand.vmem [shape: f32[8,72], index: 15, kind: input, shape index: {}]
  %s16 = inlined_call_operand.vmem [shape: f32[8,1], index: 16, kind: input, shape index: {}]
  %s17 = inlined_call_operand.hbm [shape: f32[56,28], index: 17, kind: output, shape index: {}]
  %s18 = sld [smem:[#allocation0]]
  $region78: #{decoder_forward.1} parent=0
    _
  %s20 = ssub.s32 1, %s18
  %s21 = scalar_select 0, %s20, %s18
  $region1: #{decoder_forward.1} parent=0
    #allocation8 [shape = 'u8[28672]{0}', space=vmem, size = 0x7000, scoped, tag = 'output window, operand 0, single buffered']
    #allocation9 [shape = 's32[1]{0}', space=sflag, size = 0x4, scoped, tag = 'scoped memory for decoder_forward.1']
    %22 = vsyncpa [#allocation9], 0
    // Predicated region
    $region2: #{decoder_forward.1} parent=1 // pred_check
      _
    $region3: #{decoder_forward.1} parent=1 // pred_check_branch
      %24 = sbr.rel (0) target = $region5
    $region4: #{decoder_forward.1} parent=1 // pred_region
      _
    $region5: #{decoder_forward.1} parent=1 // pred_fallthru
      _
    // Predicated region
    $region6: #{decoder_forward.1} parent=1 // pred_check
      _
    $region7: #{decoder_forward.1} parent=1 // pred_check_branch
      %26 = sbr.rel (0) target = $region9
    $region8: #{decoder_forward.1} parent=1 // pred_region
      _
    $region9: #{decoder_forward.1} parent=1 // pred_fallthru
      _
    // Predicated region
    $region10: #{decoder_forward.1} parent=1 // pred_check
      _
    $region11: #{decoder_forward.1} parent=1 // pred_check_branch
      %28 = sbr.rel (0) target = $region13
    $region12: #{decoder_forward.1} parent=1 // pred_region
      _
    $region13: #{decoder_forward.1} parent=1 // pred_fallthru
      _
    // Predicated region
    $region14: #{decoder_forward.1} parent=1 // pred_check
      _
    $region15: #{decoder_forward.1} parent=1 // pred_check_branch
      %30 = sbr.rel (0) target = $region17
    $region16: #{decoder_forward.1} parent=1 // pred_region
      _
    $region17: #{decoder_forward.1} parent=1 // pred_fallthru
      _
    // Predicated region
    $region18: #{decoder_forward.1} parent=1 // pred_check
      _
    $region19: #{decoder_forward.1} parent=1 // pred_check_branch
      %32 = sbr.rel (0) target = $region21
    $region20: #{decoder_forward.1} parent=1 // pred_region
      _
    $region21: #{decoder_forward.1} parent=1 // pred_fallthru
      _
    // Predicated region
    $region22: #{decoder_forward.1} parent=1 // pred_check
      _
    $region23: #{decoder_forward.1} parent=1 // pred_check_branch
      %34 = sbr.rel (0) target = $region25
    $region24: #{decoder_forward.1} parent=1 // pred_region
      _
    $region25: #{decoder_forward.1} parent=1 // pred_fallthru
      _
    // Predicated region
    $region26: #{decoder_forward.1} parent=1 // pred_check
      _
    $region27: #{decoder_forward.1} parent=1 // pred_check_branch
      %36 = sbr.rel (0) target = $region29
    $region28: #{decoder_forward.1} parent=1 // pred_region
      _
    $region29: #{decoder_forward.1} parent=1 // pred_fallthru
      _
    // Predicated region
    $region30: #{decoder_forward.1} parent=1 // pred_check
      _
    $region31: #{decoder_forward.1} parent=1 // pred_check_branch
      %38 = sbr.rel (0) target = $region33
    $region32: #{decoder_forward.1} parent=1 // pred_region
      _
    $region33: #{decoder_forward.1} parent=1 // pred_fallthru
      _
    // Predicated region
    $region34: #{decoder_forward.1} parent=1 // pred_check
      _
    $region35: #{decoder_forward.1} parent=1 // pred_check_branch
      %40 = sbr.rel (0) target = $region37
    $region36: #{decoder_forward.1} parent=1 // pred_region
      _
    $region37: #{decoder_forward.1} parent=1 // pred_fallthru
      _
    // Predicated region
    $region38: #{decoder_forward.1} parent=1 // pred_check
      _
    $region39: #{decoder_forward.1} parent=1 // pred_check_branch
      %42 = sbr.rel (0) target = $region41
    $region40: #{decoder_forward.1} parent=1 // pred_region
      _
    $region41: #{decoder_forward.1} parent=1 // pred_fallthru
      _
    // Predicated region
    $region42: #{decoder_forward.1} parent=1 // pred_check
      _
    $region43: #{decoder_forward.1} parent=1 // pred_check_branch
      %44 = sbr.rel (0) target = $region45
    $region44: #{decoder_forward.1} parent=1 // pred_region
      _
    $region45: #{decoder_forward.1} parent=1 // pred_fallthru
      _
    // Predicated region
    $region46: #{decoder_forward.1} parent=1 // pred_check
      _
    $region47: #{decoder_forward.1} parent=1 // pred_check_branch
      %46 = sbr.rel (0) target = $region49
    $region48: #{decoder_forward.1} parent=1 // pred_region
      _
    $region49: #{decoder_forward.1} parent=1 // pred_fallthru
      _
    // Predicated region
    $region50: #{decoder_forward.1} parent=1 // pred_check
      _
    $region51: #{decoder_forward.1} parent=1 // pred_check_branch
      %48 = sbr.rel (0) target = $region53
    $region52: #{decoder_forward.1} parent=1 // pred_region
      _
    $region53: #{decoder_forward.1} parent=1 // pred_fallthru
      _
    // Predicated region
    $region54: #{decoder_forward.1} parent=1 // pred_check
      _
    $region55: #{decoder_forward.1} parent=1 // pred_check_branch
      %50 = sbr.rel (0) target = $region57
    $region56: #{decoder_forward.1} parent=1 // pred_region
      _
    $region57: #{decoder_forward.1} parent=1 // pred_fallthru
      _
    // Predicated region
    $region58: #{decoder_forward.1} parent=1 // pred_check
      _
    $region59: #{decoder_forward.1} parent=1 // pred_check_branch
      %52 = sbr.rel (0) target = $region61
    $region60: #{decoder_forward.1} parent=1 // pred_region
      _
    $region61: #{decoder_forward.1} parent=1 // pred_fallthru
      _
    // Predicated region
    $region62: #{decoder_forward.1} parent=1 // pred_check
      _
    $region63: #{decoder_forward.1} parent=1 // pred_check_branch
      %54 = sbr.rel (0) target = $region65
    $region64: #{decoder_forward.1} parent=1 // pred_region
      _
    $region65: #{decoder_forward.1} parent=1 // pred_fallthru
      _
    // Predicated region
    $region66: #{decoder_forward.1} parent=1 // pred_check
      _
    $region67: #{decoder_forward.1} parent=1 // pred_check_branch
      %56 = sbr.rel (0) target = $region69
    $region68: #{decoder_forward.1} parent=1 // pred_region
      _
    $region69: #{decoder_forward.1} parent=1 // pred_fallthru
      _
    %v57 = vld [vmem:[%s1] sm:$0xff]
    %v58 = vld [vmem:[%s1 + $0x8] sm:$0xff]
    %v59 = vld [vmem:[%s1 + $0x10] sm:$0xff]
    %v60 = vld [vmem:[%s1 + $0x18] sm:$0xff]
    %v61 = vld [vmem:[%s1 + $0x20] sm:$0xff]
    %v62 = vld [vmem:[%s1 + $0x28] sm:$0xff]
    %v63 = vld [vmem:[%s1 + $0x30] sm:$0xff]
    %v64 = vld [vmem:[%s1 + $0x38] sm:$0xff]
    %v65 = vld [vmem:[%s1 + $0x40] sm:$0xff]
    %v66 = vld [vmem:[%s1 + $0x48] sm:$0xff]
    %v67 = vld [vmem:[%s1 + $0x50] sm:$0xff]
    %v68 = vld [vmem:[%s1 + $0x58] sm:$0xff]
    %v69 = vld [vmem:[%s1 + $0x60] sm:$0xff]
    %v70 = vld [vmem:[%s1 + $0x68] sm:$0xff]
    %v71 = vld [vmem:[%s1 + $0x70] sm:$0xff]
    %v72 = vld [vmem:[%s1 + $0x78] sm:$0xff]
    %v73 = vld [vmem:[%s0] sm:$0x3]
    %v74 = vld [vmem:[%s2] sm:$0xff]
    %v75 = vld [vmem:[%s2 + $0x8] sm:$0xff]
    %v76 = vld [vmem:[%s2 + $0x10] sm:$0xff]
    %v77 = vld [vmem:[%s2 + $0x18] sm:$0xff]
    %v78 = vld [vmem:[%s2 + $0x20] sm:$0xff]
    %v79 = vld [vmem:[%s2 + $0x28] sm:$0xff]
    %v80 = vld [vmem:[%s2 + $0x30] sm:$0xff]
    %v81 = vld [vmem:[%s2 + $0x38] sm:$0xff]
    %v82 = vld [vmem:[%s2 + $0x40] sm:$0xff]
    %v83 = vld [vmem:[%s2 + $0x48] sm:$0xff]
    %v84 = vld [vmem:[%s2 + $0x50] sm:$0xff]
    %v85 = vld [vmem:[%s2 + $0x58] sm:$0xff]
    %v86 = vld [vmem:[%s2 + $0x60] sm:$0xff]
    %v87 = vld [vmem:[%s2 + $0x68] sm:$0xff]
    %v88 = vld [vmem:[%s2 + $0x70] sm:$0xff]
    %v89 = vld [vmem:[%s2 + $0x78] sm:$0xff]
    %91 = vset.pattern.permute.xlu0 0
    %92 = vperm.xlu0 %91, %v74
    %v93 = vpop.permute.xlu0 %92
    %96 = vset.pattern.permute.xlu0 0
    %97 = vperm.xlu0 %96, %v75
    %v98 = vpop.permute.xlu0 %97
    %101 = vset.pattern.permute.xlu0 0
    %102 = vperm.xlu0 %101, %v76
    %v103 = vpop.permute.xlu0 %102
    %106 = vset.pattern.permute.xlu0 0
    %107 = vperm.xlu0 %106, %v77
    %v108 = vpop.permute.xlu0 %107
    %111 = vset.pattern.permute.xlu0 0
    %112 = vperm.xlu0 %111, %v78
    %v113 = vpop.permute.xlu0 %112
    %116 = vset.pattern.permute.xlu0 0
    %117 = vperm.xlu0 %116, %v79
    %v118 = vpop.permute.xlu0 %117
    %121 = vset.pattern.permute.xlu0 0
    %122 = vperm.xlu0 %121, %v80
    %v123 = vpop.permute.xlu0 %122
    %126 = vset.pattern.permute.xlu0 0
    %127 = vperm.xlu0 %126, %v81
    %v128 = vpop.permute.xlu0 %127
    %131 = vset.pattern.permute.xlu0 0
    %132 = vperm.xlu0 %131, %v82
    %v133 = vpop.permute.xlu0 %132
    %136 = vset.pattern.permute.xlu0 0
    %137 = vperm.xlu0 %136, %v83
    %v138 = vpop.permute.xlu0 %137
    %141 = vset.pattern.permute.xlu0 0
    %142 = vperm.xlu0 %141, %v84
    %v143 = vpop.permute.xlu0 %142
    %146 = vset.pattern.permute.xlu0 0
    %147 = vperm.xlu0 %146, %v85
    %v148 = vpop.permute.xlu0 %147
    %151 = vset.pattern.permute.xlu0 0
    %152 = vperm.xlu0 %151, %v86
    %v153 = vpop.permute.xlu0 %152
    %156 = vset.pattern.permute.xlu0 0
    %157 = vperm.xlu0 %156, %v87
    %v158 = vpop.permute.xlu0 %157
    %161 = vset.pattern.permute.xlu0 0
    %162 = vperm.xlu0 %161, %v88
    %v163 = vpop.permute.xlu0 %162
    %166 = vset.pattern.permute.xlu0 0
    %167 = vperm.xlu0 %166, %v89
    %v168 = vpop.permute.xlu0 %167
    %vm170 = vcmask 31744
    %v172 = vsel %vm170, %v57, 0
    %v175 = vsel %vm170, %v58, 0
    %v178 = vsel %vm170, %v59, 0
    %v181 = vsel %vm170, %v60, 0
    %v184 = vsel %vm170, %v61, 0
    %v187 = vsel %vm170, %v62, 0
    %v190 = vsel %vm170, %v63, 0
    %v193 = vsel %vm170, %v64, 0
    %v196 = vsel %vm170, %v65, 0
    %v199 = vsel %vm170, %v66, 0
    %v202 = vsel %vm170, %v67, 0
    %v205 = vsel %vm170, %v68, 0
    %v208 = vsel %vm170, %v69, 0
    %v211 = vsel %vm170, %v70, 0
    %v214 = vsel %vm170, %v71, 0
    %v217 = vsel %vm170, %v72, 0
    %v220 = vsel %vm170, %v73, 0
    %222 = vmatprep.subr.mxu0 0.0
    %223 = vmatpush1.xpose.msra.mxu0 %v220
    %224 = vmatprep.subr.mxu0 0.0
    %225 = vmatpush1.xpose.msra.mxu0 0.0
    %226 = vmatprep.subr.mxu0 0.0
    %227 = vmatpush1.xpose.msra.mxu0 0.0
    %228 = vmatprep.subr.mxu0 0.0
    %229 = vmatpush1.xpose.msra.mxu0 0.0
    %230 = vmatprep.subr.mxu0 0.0
    %231 = vmatpush1.xpose.msra.mxu0 0.0
    %232 = vmatprep.subr.mxu0 0.0
    %233 = vmatpush1.xpose.msra.mxu0 0.0
    %234 = vmatprep.subr.mxu0 0.0
    %235 = vmatpush1.xpose.msra.mxu0 0.0
    %236 = vmatprep.subr.mxu0 0.0
    %237 = vmatpush1.xpose.msra.mxu0 0.0
    %238 = vmatprep.subr.mxu0 0.0
    %239 = vmatpush1.xpose.msra.mxu0 0.0
    %240 = vmatprep.subr.mxu0 0.0
    %241 = vmatpush1.xpose.msra.mxu0 0.0
    %242 = vmatprep.subr.mxu0 0.0
    %243 = vmatpush1.xpose.msra.mxu0 0.0
    %244 = vmatprep.subr.mxu0 0.0
    %245 = vmatpush1.xpose.msra.mxu0 0.0
    %246 = vmatprep.subr.mxu0 0.0
    %247 = vmatpush1.xpose.msra.mxu0 0.0
    %248 = vmatprep.subr.mxu0 0.0
    %249 = vmatpush1.xpose.msra.mxu0 0.0
    %250 = vmatprep.subr.mxu0 0.0
    %251 = vmatpush1.xpose.msra.mxu0 0.0
    %252 = vmatprep.subr.mxu0 0.0
    %253 = vmatpush1.xpose.msra.mxu0 0.0
    %254 = vmatprep.subr.mxu0 0.0
    %255 = vmatpush1.xpose.msra.mxu0 0.0
    %256 = vmatprep.subr.mxu0 0.0
    %257 = vmatpush1.xpose.msra.mxu0 0.0
    %258 = vmatprep.subr.mxu0 0.0
    %259 = vmatpush1.xpose.msra.mxu0 0.0
    %260 = vmatprep.subr.mxu0 0.0
    %261 = vmatpush1.xpose.msra.mxu0 0.0
    %262 = vmatprep.subr.mxu0 0.0
    %263 = vmatpush1.xpose.msra.mxu0 0.0
    %264 = vmatprep.subr.mxu0 0.0
    %265 = vmatpush1.xpose.msra.mxu0 0.0
    %266 = vmatprep.subr.mxu0 0.0
    %267 = vmatpush1.xpose.msra.mxu0 0.0
    %268 = vmatprep.subr.mxu0 0.0
    %269 = vmatpush1.xpose.msra.mxu0 0.0
    %270 = vmatprep.subr.mxu0 0.0
    %271 = vmatpush1.xpose.msra.mxu0 0.0
    %272 = vmatprep.subr.mxu0 0.0
    %273 = vmatpush1.xpose.msra.mxu0 0.0
    %274 = vmatprep.subr.mxu0 0.0
    %275 = vmatpush1.xpose.msra.mxu0 0.0
    %276 = vmatprep.subr.mxu0 0.0
    %277 = vmatpush1.xpose.msra.mxu0 0.0
    %278 = vmatprep.subr.mxu0 0.0
    %279 = vmatpush1.xpose.msra.mxu0 0.0
    %280 = vmatprep.subr.mxu0 0.0
    %281 = vmatpush1.xpose.msra.mxu0 0.0
    %282 = vmatprep.subr.mxu0 0.0
    %283 = vmatpush1.xpose.msra.mxu0 0.0
    %284 = vmatprep.subr.mxu0 0.0
    %285 = vmatpush1.xpose.msra.mxu0 0.0
    %286 = vmatprep.mubr.f32.mxu0 0.0
    %287 = vmatmul.mubr.f32.gmra.mrb[0].mxu0 %v172
    %v288 = vpop.f32.mrb[0].mxu0
    %v289 = vadd.f32 %v93, %v288
    %v290 = vpop.f32.mrb[0].mxu0
    %291 = vmatprep.mubr.f32.mxu0 0.0
    %292 = vmatmul.mubr.f32.gmra.mrb[0].mxu0 %v175
    %v293 = vpop.f32.mrb[0].mxu0
    %v294 = vadd.f32 %v98, %v293
    %v295 = vpop.f32.mrb[0].mxu0
    %296 = vmatprep.mubr.f32.mxu0 0.0
    %297 = vmatmul.mubr.f32.gmra.mrb[0].mxu0 %v178
    %v298 = vpop.f32.mrb[0].mxu0
    %v299 = vadd.f32 %v103, %v298
    %v300 = vpop.f32.mrb[0].mxu0
    %301 = vmatprep.mubr.f32.mxu0 0.0
    %302 = vmatmul.mubr.f32.gmra.mrb[0].mxu0 %v181
    %v303 = vpop.f32.mrb[0].mxu0
    %v304 = vadd.f32 %v108, %v303
    %v305 = vpop.f32.mrb[0].mxu0
    %306 = vmatprep.mubr.f32.mxu0 0.0
    %307 = vmatmul.mubr.f32.gmra.mrb[0].mxu0 %v184
    %v308 = vpop.f32.mrb[0].mxu0
    %v309 = vadd.f32 %v113, %v308
    %v310 = vpop.f32.mrb[0].mxu0
    %311 = vmatprep.mubr.f32.mxu0 0.0
    %312 = vmatmul.mubr.f32.gmra.mrb[0].mxu0 %v187
    %v313 = vpop.f32.mrb[0].mxu0
    %v314 = vadd.f32 %v118, %v313
    %v315 = vpop.f32.mrb[0].mxu0
    %316 = vmatprep.mubr.f32.mxu0 0.0
    %317 = vmatmul.mubr.f32.gmra.mrb[0].mxu0 %v190
    %v318 = vpop.f32.mrb[0].mxu0
    %v319 = vadd.f32 %v123, %v318
    %v320 = vpop.f32.mrb[0].mxu0
    %321 = vmatprep.mubr.f32.mxu0 0.0
    %322 = vmatmul.mubr.f32.gmra.mrb[0].mxu0 %v193
    %v323 = vpop.f32.mrb[0].mxu0
    %v324 = vadd.f32 %v128, %v323
    %v325 = vpop.f32.mrb[0].mxu0
    %326 = vmatprep.mubr.f32.mxu0 0.0
    %327 = vmatmul.mubr.f32.gmra.mrb[0].mxu0 %v196
    %v328 = vpop.f32.mrb[0].mxu0
    %v329 = vadd.f32 %v133, %v328
    %v330 = vpop.f32.mrb[0].mxu0
    %331 = vmatprep.mubr.f32.mxu0 0.0
    %332 = vmatmul.mubr.f32.gmra.mrb[0].mxu0 %v199
    %v333 = vpop.f32.mrb[0].mxu0
    %v334 = vadd.f32 %v138, %v333
    %v335 = vpop.f32.mrb[0].mxu0
    %336 = vmatprep.mubr.f32.mxu0 0.0
    %337 = vmatmul.mubr.f32.gmra.mrb[0].mxu0 %v202
    %v338 = vpop.f32.mrb[0].mxu0
    %v339 = vadd.f32 %v143, %v338
    %v340 = vpop.f32.mrb[0].mxu0
    %341 = vmatprep.mubr.f32.mxu0 0.0
    %342 = vmatmul.mubr.f32.gmra.mrb[0].mxu0 %v205
    %v343 = vpop.f32.mrb[0].mxu0
    %v344 = vadd.f32 %v148, %v343
    %v345 = vpop.f32.mrb[0].mxu0
    %346 = vmatprep.mubr.f32.mxu0 0.0
    %347 = vmatmul.mubr.f32.gmra.mrb[0].mxu0 %v208
    %v348 = vpop.f32.mrb[0].mxu0
    %v349 = vadd.f32 %v153, %v348
    %v350 = vpop.f32.mrb[0].mxu0
    %351 = vmatprep.mubr.f32.mxu0 0.0
    %352 = vmatmul.mubr.f32.gmra.mrb[0].mxu0 %v211
    %v353 = vpop.f32.mrb[0].mxu0
    %v354 = vadd.f32 %v158, %v353
    %v355 = vpop.f32.mrb[0].mxu0
    %356 = vmatprep.mubr.f32.mxu0 0.0
    %357 = vmatmul.mubr.f32.gmra.mrb[0].mxu0 %v214
    %v358 = vpop.f32.mrb[0].mxu0
    %v359 = vadd.f32 %v163, %v358
    %v360 = vpop.f32.mrb[0].mxu0
    %361 = vmatprep.mubr.f32.mxu0 0.0
    %362 = vmatmul.mubr.f32.gmra.mrb[0].mxu0 %v217
    %v363 = vpop.f32.mrb[0].mxu0
    %v364 = vadd.f32 %v168, %v363
    %v365 = vpop.f32.mrb[0].mxu0
    %366 = vdwg.mxu0
    %v367 = vmax.f32 %v289, 0.0
    %v368 = vmax.f32 %v294, 0.0
    %v369 = vmax.f32 %v299, 0.0
    %v370 = vmax.f32 %v304, 0.0
    %v371 = vmax.f32 %v309, 0.0
    %v372 = vmax.f32 %v314, 0.0
    %v373 = vmax.f32 %v319, 0.0
    %v374 = vmax.f32 %v324, 0.0
    %v375 = vmax.f32 %v329, 0.0
    %v376 = vmax.f32 %v334, 0.0
    %v377 = vmax.f32 %v339, 0.0
    %v378 = vmax.f32 %v344, 0.0
    %v379 = vmax.f32 %v349, 0.0
    %v380 = vmax.f32 %v354, 0.0
    %v381 = vmax.f32 %v359, 0.0
    %v382 = vmax.f32 %v364, 0.0
    %v383 = vld [vmem:[%s3] sm:$0xff]
    %v384 = vld [vmem:[%s3 + $0x8] sm:$0xff]
    %v385 = vld [vmem:[%s3 + $0x10] sm:$0xff]
    %v386 = vld [vmem:[%s3 + $0x18] sm:$0xff]
    %v387 = vld [vmem:[%s3 + $0x20] sm:$0xff]
    %v388 = vld [vmem:[%s3 + $0x28] sm:$0xff]
    %v389 = vld [vmem:[%s3 + $0x30] sm:$0xff]
    %v390 = vld [vmem:[%s3 + $0x38] sm:$0xff]
    %v391 = vld [vmem:[%s3 + $0x40] sm:$0xff]
    %v392 = vld [vmem:[%s3 + $0x48] sm:$0xff]
    %v393 = vld [vmem:[%s3 + $0x50] sm:$0xff]
    %v394 = vld [vmem:[%s3 + $0x58] sm:$0xff]
    %v395 = vld [vmem:[%s3 + $0x60] sm:$0xff]
    %v396 = vld [vmem:[%s3 + $0x68] sm:$0xff]
    %v397 = vld [vmem:[%s3 + $0x70] sm:$0xff]
    %v398 = vld [vmem:[%s3 + $0x78] sm:$0xff]
    %v399 = vld [vmem:[%s3 + $0x80] sm:$0xff]
    %v400 = vld [vmem:[%s3 + $0x88] sm:$0xff]
    %v401 = vld [vmem:[%s3 + $0x90] sm:$0xff]
    %v402 = vld [vmem:[%s3 + $0x98] sm:$0xff]
    %v403 = vld [vmem:[%s3 + $0xa0] sm:$0xff]
    %v404 = vld [vmem:[%s3 + $0xa8] sm:$0xff]
    %v405 = vld [vmem:[%s3 + $0xb0] sm:$0xff]
    %v406 = vld [vmem:[%s3 + $0xb8] sm:$0xff]
    %v407 = vld [vmem:[%s3 + $0xc0] sm:$0xff]
    %v408 = vld [vmem:[%s3 + $0xc8] sm:$0xff]
    %v409 = vld [vmem:[%s3 + $0xd0] sm:$0xff]
    %v410 = vld [vmem:[%s3 + $0xd8] sm:$0xff]
    %v411 = vld [vmem:[%s3 + $0xe0] sm:$0xff]
    %v412 = vld [vmem:[%s3 + $0xe8] sm:$0xff]
    %v413 = vld [vmem:[%s3 + $0xf0] sm:$0xff]
    %v414 = vld [vmem:[%s3 + $0xf8] sm:$0xff]
    %v415 = vld [vmem:[%s3 + $0x100] sm:$0xff]
    %v416 = vld [vmem:[%s3 + $0x108] sm:$0xff]
    %v417 = vld [vmem:[%s3 + $0x110] sm:$0xff]
    %v418 = vld [vmem:[%s3 + $0x118] sm:$0xff]
    %v419 = vld [vmem:[%s4] sm:$0xff]
    %v420 = vld [vmem:[%s4 + $0x8] sm:$0xff]
    %v421 = vld [vmem:[%s4 + $0x10] sm:$0xff]
    %v422 = vld [vmem:[%s4 + $0x18] sm:$0xff]
    %v423 = vld [vmem:[%s4 + $0x20] sm:$0xff]
    %v424 = vld [vmem:[%s4 + $0x28] sm:$0xff]
    %v425 = vld [vmem:[%s4 + $0x30] sm:$0xff]
    %v426 = vld [vmem:[%s4 + $0x38] sm:$0xff]
    %v427 = vld [vmem:[%s4 + $0x40] sm:$0xff]
    %v428 = vld [vmem:[%s4 + $0x48] sm:$0xff]
    %v429 = vld [vmem:[%s4 + $0x50] sm:$0xff]
    %v430 = vld [vmem:[%s4 + $0x58] sm:$0xff]
    %v431 = vld [vmem:[%s4 + $0x60] sm:$0xff]
    %v432 = vld [vmem:[%s4 + $0x68] sm:$0xff]
    %v433 = vld [vmem:[%s4 + $0x70] sm:$0xff]
    %v434 = vld [vmem:[%s4 + $0x78] sm:$0xff]
    %v435 = vld [vmem:[%s4 + $0x80] sm:$0xff]
    %v436 = vld [vmem:[%s4 + $0x88] sm:$0xff]
    %v437 = vld [vmem:[%s4 + $0x90] sm:$0xff]
    %v438 = vld [vmem:[%s4 + $0x98] sm:$0xff]
    %v439 = vld [vmem:[%s4 + $0xa0] sm:$0xff]
    %v440 = vld [vmem:[%s4 + $0xa8] sm:$0xff]
    %v441 = vld [vmem:[%s4 + $0xb0] sm:$0xff]
    %v442 = vld [vmem:[%s4 + $0xb8] sm:$0xff]
    %v443 = vld [vmem:[%s4 + $0xc0] sm:$0xff]
    %v444 = vld [vmem:[%s4 + $0xc8] sm:$0xff]
    %v445 = vld [vmem:[%s4 + $0xd0] sm:$0xff]
    %v446 = vld [vmem:[%s4 + $0xd8] sm:$0xff]
    %v447 = vld [vmem:[%s4 + $0xe0] sm:$0xff]
    %v448 = vld [vmem:[%s4 + $0xe8] sm:$0xff]
    %v449 = vld [vmem:[%s4 + $0xf0] sm:$0xff]
    %v450 = vld [vmem:[%s4 + $0xf8] sm:$0xff]
    %v451 = vld [vmem:[%s4 + $0x100] sm:$0xff]
    %v452 = vld [vmem:[%s4 + $0x108] sm:$0xff]
    %v453 = vld [vmem:[%s4 + $0x110] sm:$0xff]
    %v454 = vld [vmem:[%s4 + $0x118] sm:$0xff]
    %456 = vset.pattern.permute.xlu0 0
    %457 = vperm.xlu0 %456, %v419
    %v458 = vpop.permute.xlu0 %457
    %461 = vset.pattern.permute.xlu0 0
    %462 = vperm.xlu0 %461, %v420
    %v463 = vpop.permute.xlu0 %462
    %466 = vset.pattern.permute.xlu0 0
    %467 = vperm.xlu0 %466, %v421
    %v468 = vpop.permute.xlu0 %467
    %471 = vset.pattern.permute.xlu0 0
    %472 = vperm.xlu0 %471, %v422
    %v473 = vpop.permute.xlu0 %472
    %476 = vset.pattern.permute.xlu0 0
    %477 = vperm.xlu0 %476, %v423
    %v478 = vpop.permute.xlu0 %477
    %481 = vset.pattern.permute.xlu0 0
    %482 = vperm.xlu0 %481, %v424
    %v483 = vpop.permute.xlu0 %482
    %486 = vset.pattern.permute.xlu0 0
    %487 = vperm.xlu0 %486, %v425
    %v488 = vpop.permute.xlu0 %487
    %491 = vset.pattern.permute.xlu0 0
    %492 = vperm.xlu0 %491, %v426
    %v493 = vpop.permute.xlu0 %492
    %496 = vset.pattern.permute.xlu0 0
    %497 = vperm.xlu0 %496, %v427
    %v498 = vpop.permute.xlu0 %497
    %501 = vset.pattern.permute.xlu0 0
    %502 = vperm.xlu0 %501, %v428
    %v503 = vpop.permute.xlu0 %502
    %506 = vset.pattern.permute.xlu0 0
    %507 = vperm.xlu0 %506, %v429
    %v508 = vpop.permute.xlu0 %507
    %511 = vset.pattern.permute.xlu0 0
    %512 = vperm.xlu0 %511, %v430
    %v513 = vpop.permute.xlu0 %512
    %516 = vset.pattern.permute.xlu0 0
    %517 = vperm.xlu0 %516, %v431
    %v518 = vpop.permute.xlu0 %517
    %521 = vset.pattern.permute.xlu0 0
    %522 = vperm.xlu0 %521, %v432
    %v523 = vpop.permute.xlu0 %522
    %526 = vset.pattern.permute.xlu0 0
    %527 = vperm.xlu0 %526, %v433
    %v528 = vpop.permute.xlu0 %527
    %531 = vset.pattern.permute.xlu0 0
    %532 = vperm.xlu0 %531, %v434
    %v533 = vpop.permute.xlu0 %532
    %536 = vset.pattern.permute.xlu0 0
    %537 = vperm.xlu0 %536, %v435
    %v538 = vpop.permute.xlu0 %537
    %541 = vset.pattern.permute.xlu0 0
    %542 = vperm.xlu0 %541, %v436
    %v543 = vpop.permute.xlu0 %542
    %546 = vset.pattern.permute.xlu0 0
    %547 = vperm.xlu0 %546, %v437
    %v548 = vpop.permute.xlu0 %547
    %551 = vset.pattern.permute.xlu0 0
    %552 = vperm.xlu0 %551, %v438
    %v553 = vpop.permute.xlu0 %552
    %556 = vset.pattern.permute.xlu0 0
    %557 = vperm.xlu0 %556, %v439
    %v558 = vpop.permute.xlu0 %557
    %561 = vset.pattern.permute.xlu0 0
    %562 = vperm.xlu0 %561, %v440
    %v563 = vpop.permute.xlu0 %562
    %566 = vset.pattern.permute.xlu0 0
    %567 = vperm.xlu0 %566, %v441
    %v568 = vpop.permute.xlu0 %567
    %571 = vset.pattern.permute.xlu0 0
    %572 = vperm.xlu0 %571, %v442
    %v573 = vpop.permute.xlu0 %572
    %576 = vset.pattern.permute.xlu0 0
    %577 = vperm.xlu0 %576, %v443
    %v578 = vpop.permute.xlu0 %577
    %581 = vset.pattern.permute.xlu0 0
    %582 = vperm.xlu0 %581, %v444
    %v583 = vpop.permute.xlu0 %582
    %586 = vset.pattern.permute.xlu0 0
    %587 = vperm.xlu0 %586, %v445
    %v588 = vpop.permute.xlu0 %587
    %591 = vset.pattern.permute.xlu0 0
    %592 = vperm.xlu0 %591, %v446
    %v593 = vpop.permute.xlu0 %592
    %596 = vset.pattern.permute.xlu0 0
    %597 = vperm.xlu0 %596, %v447
    %v598 = vpop.permute.xlu0 %597
    %601 = vset.pattern.permute.xlu0 0
    %602 = vperm.xlu0 %601, %v448
    %v603 = vpop.permute.xlu0 %602
    %606 = vset.pattern.permute.xlu0 0
    %607 = vperm.xlu0 %606, %v449
    %v608 = vpop.permute.xlu0 %607
    %611 = vset.pattern.permute.xlu0 0
    %612 = vperm.xlu0 %611, %v450
    %v613 = vpop.permute.xlu0 %612
    %616 = vset.pattern.permute.xlu0 0
    %617 = vperm.xlu0 %616, %v451
    %v618 = vpop.permute.xlu0 %617
    %621 = vset.pattern.permute.xlu0 0
    %622 = vperm.xlu0 %621, %v452
    %v623 = vpop.permute.xlu0 %622
    %626 = vset.pattern.permute.xlu0 0
    %627 = vperm.xlu0 %626, %v453
    %v628 = vpop.permute.xlu0 %627
    %631 = vset.pattern.permute.xlu0 0
    %632 = vperm.xlu0 %631, %v454
    %v633 = vpop.permute.xlu0 %632
    %635 = vmatprep.subr.mxu0 0.0
    %636 = vmatpush1.msra.mxu0 %v367
    %637 = vmatprep.subr.mxu0 0.0
    %638 = vmatpush1.msra.mxu0 %v368
    %639 = vmatprep.subr.mxu0 0.0
    %640 = vmatpush1.msra.mxu0 %v369
    %641 = vmatprep.subr.mxu0 0.0
    %642 = vmatpush1.msra.mxu0 %v370
    %643 = vmatprep.subr.mxu0 0.0
    %644 = vmatpush1.msra.mxu0 %v371
    %645 = vmatprep.subr.mxu0 0.0
    %646 = vmatpush1.msra.mxu0 %v372
    %647 = vmatprep.subr.mxu0 0.0
    %648 = vmatpush1.msra.mxu0 %v373
    %649 = vmatprep.subr.mxu0 0.0
    %650 = vmatpush1.msra.mxu0 %v374
    %651 = vmatprep.subr.mxu0 0.0
    %652 = vmatpush1.msra.mxu0 %v375
    %653 = vmatprep.subr.mxu0 0.0
    %654 = vmatpush1.msra.mxu0 %v376
    %655 = vmatprep.subr.mxu0 0.0
    %656 = vmatpush1.msra.mxu0 %v377
    %657 = vmatprep.subr.mxu0 0.0
    %658 = vmatpush1.msra.mxu0 %v378
    %659 = vmatprep.subr.mxu0 0.0
    %660 = vmatpush1.msra.mxu0 %v379
    %661 = vmatprep.subr.mxu0 0.0
    %662 = vmatpush1.msra.mxu0 %v380
    %663 = vmatprep.subr.mxu0 0.0
    %664 = vmatpush1.msra.mxu0 %v381
    %665 = vmatprep.subr.mxu0 0.0
    %666 = vmatpush1.msra.mxu0 %v382
    %667 = vmatprep.subr.mxu0 0.0
    %668 = vmatpush1.msra.mxu0 0.0
    %669 = vmatprep.subr.mxu0 0.0
    %670 = vmatpush1.msra.mxu0 0.0
    %671 = vmatprep.subr.mxu0 0.0
    %672 = vmatpush1.msra.mxu0 0.0
    %673 = vmatprep.subr.mxu0 0.0
    %674 = vmatpush1.msra.mxu0 0.0
    %675 = vmatprep.subr.mxu0 0.0
    %676 = vmatpush1.msra.mxu0 0.0
    %677 = vmatprep.subr.mxu0 0.0
    %678 = vmatpush1.msra.mxu0 0.0
    %679 = vmatprep.subr.mxu0 0.0
    %680 = vmatpush1.msra.mxu0 0.0
    %681 = vmatprep.subr.mxu0 0.0
    %682 = vmatpush1.msra.mxu0 0.0
    %683 = vmatprep.subr.mxu0 0.0
    %684 = vmatpush1.msra.mxu0 0.0
    %685 = vmatprep.subr.mxu0 0.0
    %686 = vmatpush1.msra.mxu0 0.0
    %687 = vmatprep.subr.mxu0 0.0
    %688 = vmatpush1.msra.mxu0 0.0
    %689 = vmatprep.subr.mxu0 0.0
    %690 = vmatpush1.msra.mxu0 0.0
    %691 = vmatprep.subr.mxu0 0.0
    %692 = vmatpush1.msra.mxu0 0.0
    %693 = vmatprep.subr.mxu0 0.0
    %694 = vmatpush1.msra.mxu0 0.0
    %695 = vmatprep.subr.mxu0 0.0
    %696 = vmatpush1.msra.mxu0 0.0
    %697 = vmatprep.subr.mxu0 0.0
    %698 = vmatpush1.msra.mxu0 0.0
    %699 = vmatprep.mubr.f32.mxu0 0.0
    %700 = vmatmul.mubr.f32.gmra.mrb[0].mxu0 %v383
    %v701 = vpop.f32.mrb[0].mxu0
    %v702 = vadd.f32 %v458, %v701
    %v703 = vpop.f32.mrb[0].mxu0
    %704 = vmatprep.mubr.f32.mxu0 0.0
    %705 = vmatmul.mubr.f32.gmra.mrb[0].mxu0 %v384
    %v706 = vpop.f32.mrb[0].mxu0
    %v707 = vadd.f32 %v463, %v706
    %v708 = vpop.f32.mrb[0].mxu0
    %709 = vmatprep.mubr.f32.mxu0 0.0
    %710 = vmatmul.mubr.f32.gmra.mrb[0].mxu0 %v385
    %v711 = vpop.f32.mrb[0].mxu0
    %v712 = vadd.f32 %v468, %v711
    %v713 = vpop.f32.mrb[0].mxu0
    %714 = vmatprep.mubr.f32.mxu0 0.0
    %715 = vmatmul.mubr.f32.gmra.mrb[0].mxu0 %v386
    %v716 = vpop.f32.mrb[0].mxu0
    %v717 = vadd.f32 %v473, %v716
    %v718 = vpop.f32.mrb[0].mxu0
    %719 = vmatprep.mubr.f32.mxu0 0.0
    %720 = vmatmul.mubr.f32.gmra.mrb[0].mxu0 %v387
    %v721 = vpop.f32.mrb[0].mxu0
    %v722 = vadd.f32 %v478, %v721
    %v723 = vpop.f32.mrb[0].mxu0
    %724 = vmatprep.mubr.f32.mxu0 0.0
    %725 = vmatmul.mubr.f32.gmra.mrb[0].mxu0 %v388
    %v726 = vpop.f32.mrb[0].mxu0
    %v727 = vadd.f32 %v483, %v726
    %v728 = vpop.f32.mrb[0].mxu0
    %729 = vmatprep.mubr.f32.mxu0 0.0
    %730 = vmatmul.mubr.f32.gmra.mrb[0].mxu0 %v389
    %v731 = vpop.f32.mrb[0].mxu0
    %v732 = vadd.f32 %v488, %v731
    %v733 = vpop.f32.mrb[0].mxu0
    %734 = vmatprep.mubr.f32.mxu0 0.0
    %735 = vmatmul.mubr.f32.gmra.mrb[0].mxu0 %v390
    %v736 = vpop.f32.mrb[0].mxu0
    %v737 = vadd.f32 %v493, %v736
    %v738 = vpop.f32.mrb[0].mxu0
    %739 = vmatprep.mubr.f32.mxu0 0.0
    %740 = vmatmul.mubr.f32.gmra.mrb[0].mxu0 %v391
    %v741 = vpop.f32.mrb[0].mxu0
    %v742 = vadd.f32 %v498, %v741
    %v743 = vpop.f32.mrb[0].mxu0
    %744 = vmatprep.mubr.f32.mxu0 0.0
    %745 = vmatmul.mubr.f32.gmra.mrb[0].mxu0 %v392
    %v746 = vpop.f32.mrb[0].mxu0
    %v747 = vadd.f32 %v503, %v746
    %v748 = vpop.f32.mrb[0].mxu0
    %749 = vmatprep.mubr.f32.mxu0 0.0
    %750 = vmatmul.mubr.f32.gmra.mrb[0].mxu0 %v393
    %v751 = vpop.f32.mrb[0].mxu0
    %v752 = vadd.f32 %v508, %v751
    %v753 = vpop.f32.mrb[0].mxu0
    %754 = vmatprep.mubr.f32.mxu0 0.0
    %755 = vmatmul.mubr.f32.gmra.mrb[0].mxu0 %v394
    %v756 = vpop.f32.mrb[0].mxu0
    %v757 = vadd.f32 %v513, %v756
    %v758 = vpop.f32.mrb[0].mxu0
    %759 = vmatprep.mubr.f32.mxu0 0.0
    %760 = vmatmul.mubr.f32.gmra.mrb[0].mxu0 %v395
    %v761 = vpop.f32.mrb[0].mxu0
    %v762 = vadd.f32 %v518, %v761
    %v763 = vpop.f32.mrb[0].mxu0
    %764 = vmatprep.mubr.f32.mxu0 0.0
    %765 = vmatmul.mubr.f32.gmra.mrb[0].mxu0 %v396
    %v766 = vpop.f32.mrb[0].mxu0
    %v767 = vadd.f32 %v523, %v766
    %v768 = vpop.f32.mrb[0].mxu0
    %769 = vmatprep.mubr.f32.mxu0 0.0
    %770 = vmatmul.mubr.f32.gmra.mrb[0].mxu0 %v397
    %v771 = vpop.f32.mrb[0].mxu0
    %v772 = vadd.f32 %v528, %v771
    %v773 = vpop.f32.mrb[0].mxu0
    %774 = vmatprep.mubr.f32.mxu0 0.0
    %775 = vmatmul.mubr.f32.gmra.mrb[0].mxu0 %v398
    %v776 = vpop.f32.mrb[0].mxu0
    %v777 = vadd.f32 %v533, %v776
    %v778 = vpop.f32.mrb[0].mxu0
    %779 = vmatprep.mubr.f32.mxu0 0.0
    %780 = vmatmul.mubr.f32.gmra.mrb[0].mxu0 %v399
    %v781 = vpop.f32.mrb[0].mxu0
    %v782 = vadd.f32 %v538, %v781
    %v783 = vpop.f32.mrb[0].mxu0
    %784 = vmatprep.mubr.f32.mxu0 0.0
    %785 = vmatmul.mubr.f32.gmra.mrb[0].mxu0 %v400
    %v786 = vpop.f32.mrb[0].mxu0
    %v787 = vadd.f32 %v543, %v786
    %v788 = vpop.f32.mrb[0].mxu0
    %789 = vmatprep.mubr.f32.mxu0 0.0
    %790 = vmatmul.mubr.f32.gmra.mrb[0].mxu0 %v401
    %v791 = vpop.f32.mrb[0].mxu0
    %v792 = vadd.f32 %v548, %v791
    %v793 = vpop.f32.mrb[0].mxu0
    %794 = vmatprep.mubr.f32.mxu0 0.0
    %795 = vmatmul.mubr.f32.gmra.mrb[0].mxu0 %v402
    %v796 = vpop.f32.mrb[0].mxu0
    %v797 = vadd.f32 %v553, %v796
    %v798 = vpop.f32.mrb[0].mxu0
    %799 = vmatprep.mubr.f32.mxu0 0.0
    %800 = vmatmul.mubr.f32.gmra.mrb[0].mxu0 %v403
    %v801 = vpop.f32.mrb[0].mxu0
    %v802 = vadd.f32 %v558, %v801
    %v803 = vpop.f32.mrb[0].mxu0
    %804 = vmatprep.mubr.f32.mxu0 0.0
    %805 = vmatmul.mubr.f32.gmra.mrb[0].mxu0 %v404
    %v806 = vpop.f32.mrb[0].mxu0
    %v807 = vadd.f32 %v563, %v806
    %v808 = vpop.f32.mrb[0].mxu0
    %809 = vmatprep.mubr.f32.mxu0 0.0
    %810 = vmatmul.mubr.f32.gmra.mrb[0].mxu0 %v405
    %v811 = vpop.f32.mrb[0].mxu0
    %v812 = vadd.f32 %v568, %v811
    %v813 = vpop.f32.mrb[0].mxu0
    %814 = vmatprep.mubr.f32.mxu0 0.0
    %815 = vmatmul.mubr.f32.gmra.mrb[0].mxu0 %v406
    %v816 = vpop.f32.mrb[0].mxu0
    %v817 = vadd.f32 %v573, %v816
    %v818 = vpop.f32.mrb[0].mxu0
    %819 = vmatprep.mubr.f32.mxu0 0.0
    %820 = vmatmul.mubr.f32.gmra.mrb[0].mxu0 %v407
    %v821 = vpop.f32.mrb[0].mxu0
    %v822 = vadd.f32 %v578, %v821
    %v823 = vpop.f32.mrb[0].mxu0
    %824 = vmatprep.mubr.f32.mxu0 0.0
    %825 = vmatmul.mubr.f32.gmra.mrb[0].mxu0 %v408
    %v826 = vpop.f32.mrb[0].mxu0
    %v827 = vadd.f32 %v583, %v826
    %v828 = vpop.f32.mrb[0].mxu0
    %829 = vmatprep.mubr.f32.mxu0 0.0
    %830 = vmatmul.mubr.f32.gmra.mrb[0].mxu0 %v409
    %v831 = vpop.f32.mrb[0].mxu0
    %v832 = vadd.f32 %v588, %v831
    %v833 = vpop.f32.mrb[0].mxu0
    %834 = vmatprep.mubr.f32.mxu0 0.0
    %835 = vmatmul.mubr.f32.gmra.mrb[0].mxu0 %v410
    %v836 = vpop.f32.mrb[0].mxu0
    %v837 = vadd.f32 %v593, %v836
    %v838 = vpop.f32.mrb[0].mxu0
    %839 = vmatprep.mubr.f32.mxu0 0.0
    %840 = vmatmul.mubr.f32.gmra.mrb[0].mxu0 %v411
    %v841 = vpop.f32.mrb[0].mxu0
    %v842 = vadd.f32 %v598, %v841
    %v843 = vpop.f32.mrb[0].mxu0
    %844 = vmatprep.mubr.f32.mxu0 0.0
    %845 = vmatmul.mubr.f32.gmra.mrb[0].mxu0 %v412
    %v846 = vpop.f32.mrb[0].mxu0
    %v847 = vadd.f32 %v603, %v846
    %v848 = vpop.f32.mrb[0].mxu0
    %849 = vmatprep.mubr.f32.mxu0 0.0
    %850 = vmatmul.mubr.f32.gmra.mrb[0].mxu0 %v413
    %v851 = vpop.f32.mrb[0].mxu0
    %v852 = vadd.f32 %v608, %v851
    %v853 = vpop.f32.mrb[0].mxu0
    %854 = vmatprep.mubr.f32.mxu0 0.0
    %855 = vmatmul.mubr.f32.gmra.mrb[0].mxu0 %v414
    %v856 = vpop.f32.mrb[0].mxu0
    %v857 = vadd.f32 %v613, %v856
    %v858 = vpop.f32.mrb[0].mxu0
    %859 = vmatprep.mubr.f32.mxu0 0.0
    %860 = vmatmul.mubr.f32.gmra.mrb[0].mxu0 %v415
    %v861 = vpop.f32.mrb[0].mxu0
    %v862 = vadd.f32 %v618, %v861
    %v863 = vpop.f32.mrb[0].mxu0
    %864 = vmatprep.mubr.f32.mxu0 0.0
    %865 = vmatmul.mubr.f32.gmra.mrb[0].mxu0 %v416
    %v866 = vpop.f32.mrb[0].mxu0
    %v867 = vadd.f32 %v623, %v866
    %v868 = vpop.f32.mrb[0].mxu0
    %869 = vmatprep.mubr.f32.mxu0 0.0
    %870 = vmatmul.mubr.f32.gmra.mrb[0].mxu0 %v417
    %v871 = vpop.f32.mrb[0].mxu0
    %v872 = vadd.f32 %v628, %v871
    %v873 = vpop.f32.mrb[0].mxu0
    %874 = vmatprep.mubr.f32.mxu0 0.0
    %875 = vmatmul.mubr.f32.gmra.mrb[0].mxu0 %v418
    %v876 = vpop.f32.mrb[0].mxu0
    %v877 = vadd.f32 %v633, %v876
    %v878 = vpop.f32.mrb[0].mxu0
    %879 = vdwg.mxu0
    %v880 = vmax.f32 %v702, 0.0
    %v881 = vmax.f32 %v707, 0.0
    %v882 = vmax.f32 %v712, 0.0
    %v883 = vmax.f32 %v717, 0.0
    %v884 = vmax.f32 %v722, 0.0
    %v885 = vmax.f32 %v727, 0.0
    %v886 = vmax.f32 %v732, 0.0
    %v887 = vmax.f32 %v737, 0.0
    %v888 = vmax.f32 %v742, 0.0
    %v889 = vmax.f32 %v747, 0.0
    %v890 = vmax.f32 %v752, 0.0
    %v891 = vmax.f32 %v757, 0.0
    %v892 = vmax.f32 %v762, 0.0
    %v893 = vmax.f32 %v767, 0.0
    %v894 = vmax.f32 %v772, 0.0
    %v895 = vmax.f32 %v777, 0.0
    %v896 = vmax.f32 %v782, 0.0
    %v897 = vmax.f32 %v787, 0.0
    %v898 = vmax.f32 %v792, 0.0
    %v899 = vmax.f32 %v797, 0.0
    %v900 = vmax.f32 %v802, 0.0
    %v901 = vmax.f32 %v807, 0.0
    %v902 = vmax.f32 %v812, 0.0
    %v903 = vmax.f32 %v817, 0.0
    %v904 = vmax.f32 %v822, 0.0
    %v905 = vmax.f32 %v827, 0.0
    %v906 = vmax.f32 %v832, 0.0
    %v907 = vmax.f32 %v837, 0.0
    %v908 = vmax.f32 %v842, 0.0
    %v909 = vmax.f32 %v847, 0.0
    %v910 = vmax.f32 %v852, 0.0
    %v911 = vmax.f32 %v857, 0.0
    %v912 = vmax.f32 %v862, 0.0
    %v913 = vmax.f32 %v867, 0.0
    %v914 = vmax.f32 %v872, 0.0
    %v915 = vmax.f32 %v877, 0.0
    %916 = vst [vmem:[#allocation2] sm:$0xff] 0.0
    %vm917 = vcmask 441344
    %918 = vst.msk [vmem:[#allocation2 + $0x8] sm:$0xff] %vm917, 0.0
    %919 = vst [vmem:[#allocation2 + $0x10] sm:$0xff] 0.0
    %920 = vst.msk [vmem:[#allocation2 + $0x18] sm:$0xff] %vm917, 0.0
    %921 = vst [vmem:[#allocation2 + $0x20] sm:$0xff] 0.0
    %922 = vst.msk [vmem:[#allocation2 + $0x28] sm:$0xff] %vm917, 0.0
    %923 = vst [vmem:[#allocation2 + $0x30] sm:$0xff] 0.0
    %924 = vst.msk [vmem:[#allocation2 + $0x38] sm:$0xff] %vm917, 0.0
    %925 = vst [vmem:[#allocation4] sm:$0xff] 0.0
    %926 = vst [vmem:[#allocation4 + $0x8] sm:$0xff] 0.0
    %927 = vst [vmem:[#allocation4 + $0x10] sm:$0xff] 0.0
    %928 = vst [vmem:[#allocation4 + $0x18] sm:$0xff] 0.0
    %vm929 = vcmask 277504
    %930 = vst.msk [vmem:[#allocation4 + $0x20] sm:$0xff] %vm929, 0.0
    %931 = vst [vmem:[#allocation4 + $0x28] sm:$0xff] 0.0
    %932 = vst [vmem:[#allocation4 + $0x30] sm:$0xff] 0.0
    %933 = vst [vmem:[#allocation4 + $0x38] sm:$0xff] 0.0
    %934 = vst [vmem:[#allocation4 + $0x40] sm:$0xff] 0.0
    %935 = vst.msk [vmem:[#allocation4 + $0x48] sm:$0xff] %vm929, 0.0
    %936 = vst [vmem:[#allocation6] sm:$0xff] 0.0
    %937 = vst [vmem:[#allocation6 + $0x8] sm:$0xff] 0.0
    %938 = vst [vmem:[#allocation6 + $0x10] sm:$0xff] 0.0
    %939 = vst [vmem:[#allocation6 + $0x18] sm:$0xff] 0.0
    %940 = vst [vmem:[#allocation6 + $0x20] sm:$0xff] 0.0
    %941 = vst [vmem:[#allocation6 + $0x28] sm:$0xff] 0.0
    %942 = vst [vmem:[#allocation6 + $0x30] sm:$0xff] 0.0
    %943 = vst [vmem:[#allocation6 + $0x38] sm:$0xff] 0.0
    %944 = vst [vmem:[#allocation6 + $0x40] sm:$0xff] 0.0
    %945 = vst [vmem:[#allocation6 + $0x48] sm:$0xff] 0.0
    %946 = vst [vmem:[#allocation6 + $0x50] sm:$0xff] 0.0
    %947 = vst [vmem:[#allocation6 + $0x58] sm:$0xff] 0.0
    %948 = vst [vmem:[#allocation6 + $0x60] sm:$0xff] 0.0
    %949 = vst [vmem:[#allocation6 + $0x68] sm:$0xff] 0.0
    %vm950 = vcmask 572416
    %951 = vst.msk [vmem:[#allocation6 + $0x70] sm:$0xff] %vm950, 0.0
    %956 = vrot.lane.b32.xlu0 %v880, 20
    %v957 = vpop.permute.xlu0 %956
    %958 = vrot.lane.b32.xlu0 %v881, 20
    %v959 = vpop.permute.xlu0 %958
    %960 = vrot.lane.b32.xlu0 %v882, 20
    %v961 = vpop.permute.xlu0 %960
    %962 = vrot.lane.b32.xlu0 %v883, 20
    %v963 = vpop.permute.xlu0 %962
    %vm968 = vcmask 171168
    %969 = vst.msk [vmem:[#allocation2] sm:$0xff] %vm968, %v957
    %970 = vst.msk [vmem:[#allocation2 + $0x10] sm:$0xff] %vm968, %v959
    %971 = vst.msk [vmem:[#allocation2 + $0x20] sm:$0xff] %vm968, %v961
    %972 = vst.msk [vmem:[#allocation2 + $0x30] sm:$0xff] %vm968, %v963
    %977 = vrot.lane.b32.xlu0 %v884, 22
    %v978 = vpop.permute.xlu0 %977
    %979 = vrot.lane.b32.xlu0 %v885, 22
    %v980 = vpop.permute.xlu0 %979
    %981 = vrot.lane.b32.xlu0 %v886, 22
    %v982 = vpop.permute.xlu0 %981
    %983 = vrot.lane.b32.xlu0 %v887, 22
    %v984 = vpop.permute.xlu0 %983
    %vm989 = vcmask 187568
    %990 = vst.msk [vmem:[#allocation2] sm:$0xff] %vm989, %v978
    %991 = vst.msk [vmem:[#allocation2 + $0x10] sm:$0xff] %vm989, %v980
    %992 = vst.msk [vmem:[#allocation2 + $0x20] sm:$0xff] %vm989, %v982
    %993 = vst.msk [vmem:[#allocation2 + $0x30] sm:$0xff] %vm989, %v984
    %998 = vrot.lane.b32.xlu0 %v888, 24
    %v999 = vpop.permute.xlu0 %998
    %1000 = vrot.lane.b32.xlu0 %v889, 24
    %v1001 = vpop.permute.xlu0 %1000
    %1002 = vrot.lane.b32.xlu0 %v890, 24
    %v1003 = vpop.permute.xlu0 %1002
    %1004 = vrot.lane.b32.xlu0 %v891, 24
    %v1005 = vpop.permute.xlu0 %1004
    %vm1010 = vcmask 203968
    %1011 = vst.msk [vmem:[#allocation2] sm:$0xff] %vm1010, %v999
    %1012 = vst.msk [vmem:[#allocation2 + $0x10] sm:$0xff] %vm1010, %v1001
    %1013 = vst.msk [vmem:[#allocation2 + $0x20] sm:$0xff] %vm1010, %v1003
    %1014 = vst.msk [vmem:[#allocation2 + $0x30] sm:$0xff] %vm1010, %v1005
    %1019 = vrot.lane.b32.xlu0 %v892, 38
    %v1020 = vpop.permute.xlu0 %1019
    %1021 = vrot.lane.b32.xlu0 %v893, 38
    %v1022 = vpop.permute.xlu0 %1021
    %1023 = vrot.lane.b32.xlu0 %v894, 38
    %v1024 = vpop.permute.xlu0 %1023
    %1025 = vrot.lane.b32.xlu0 %v895, 38
    %v1026 = vpop.permute.xlu0 %1025
    %vm1031 = vcmask 318768
    %1032 = vst.msk [vmem:[#allocation2] sm:$0xff] %vm1031, %v1020
    %1033 = vst.msk [vmem:[#allocation2 + $0x10] sm:$0xff] %vm1031, %v1022
    %1034 = vst.msk [vmem:[#allocation2 + $0x20] sm:$0xff] %vm1031, %v1024
    %1035 = vst.msk [vmem:[#allocation2 + $0x30] sm:$0xff] %vm1031, %v1026
    %1040 = vrot.lane.b32.xlu0 %v896, 40
    %v1041 = vpop.permute.xlu0 %1040
    %1042 = vrot.lane.b32.xlu0 %v897, 40
    %v1043 = vpop.permute.xlu0 %1042
    %1044 = vrot.lane.b32.xlu0 %v898, 40
    %v1045 = vpop.permute.xlu0 %1044
    %1046 = vrot.lane.b32.xlu0 %v899, 40
    %v1047 = vpop.permute.xlu0 %1046
    %vm1052 = vcmask 335168
    %1053 = vst.msk [vmem:[#allocation2] sm:$0xff] %vm1052, %v1041
    %1054 = vst.msk [vmem:[#allocation2 + $0x10] sm:$0xff] %vm1052, %v1043
    %1055 = vst.msk [vmem:[#allocation2 + $0x20] sm:$0xff] %vm1052, %v1045
    %1056 = vst.msk [vmem:[#allocation2 + $0x30] sm:$0xff] %vm1052, %v1047
    %1061 = vrot.lane.b32.xlu0 %v900, 42
    %v1062 = vpop.permute.xlu0 %1061
    %1063 = vrot.lane.b32.xlu0 %v901, 42
    %v1064 = vpop.permute.xlu0 %1063
    %1065 = vrot.lane.b32.xlu0 %v902, 42
    %v1066 = vpop.permute.xlu0 %1065
    %1067 = vrot.lane.b32.xlu0 %v903, 42
    %v1068 = vpop.permute.xlu0 %1067
    %vm1073 = vcmask 351568
    %1074 = vst.msk [vmem:[#allocation2] sm:$0xff] %vm1073, %v1062
    %1075 = vst.msk [vmem:[#allocation2 + $0x10] sm:$0xff] %vm1073, %v1064
    %1076 = vst.msk [vmem:[#allocation2 + $0x20] sm:$0xff] %vm1073, %v1066
    %1077 = vst.msk [vmem:[#allocation2 + $0x30] sm:$0xff] %vm1073, %v1068
    %1082 = vrot.lane.b32.xlu0 %v904, 56
    %v1083 = vpop.permute.xlu0 %1082
    %1084 = vrot.lane.b32.xlu0 %v905, 56
    %v1085 = vpop.permute.xlu0 %1084
    %1086 = vrot.lane.b32.xlu0 %v906, 56
    %v1087 = vpop.permute.xlu0 %1086
    %1088 = vrot.lane.b32.xlu0 %v907, 56
    %v1089 = vpop.permute.xlu0 %1088
    %vm1094 = vcmask 466368
    %1095 = vst.msk [vmem:[#allocation2] sm:$0xff] %vm1094, %v1083
    %1096 = vst.msk [vmem:[#allocation2 + $0x10] sm:$0xff] %vm1094, %v1085
    %1097 = vst.msk [vmem:[#allocation2 + $0x20] sm:$0xff] %vm1094, %v1087
    %1098 = vst.msk [vmem:[#allocation2 + $0x30] sm:$0xff] %vm1094, %v1089
    %1103 = vrot.lane.b32.xlu0 %v908, 58
    %v1104 = vpop.permute.xlu0 %1103
    %1105 = vrot.lane.b32.xlu0 %v909, 58
    %v1106 = vpop.permute.xlu0 %1105
    %1107 = vrot.lane.b32.xlu0 %v910, 58
    %v1108 = vpop.permute.xlu0 %1107
    %1109 = vrot.lane.b32.xlu0 %v911, 58
    %v1110 = vpop.permute.xlu0 %1109
    %vm1115 = vcmask 482768
    %1116 = vst.msk [vmem:[#allocation2] sm:$0xff] %vm1115, %v1104
    %1117 = vst.msk [vmem:[#allocation2 + $0x10] sm:$0xff] %vm1115, %v1106
    %1118 = vst.msk [vmem:[#allocation2 + $0x20] sm:$0xff] %vm1115, %v1108
    %1119 = vst.msk [vmem:[#allocation2 + $0x30] sm:$0xff] %vm1115, %v1110
    %1124 = vrot.lane.b32.xlu0 %v912, 60
    %v1125 = vpop.permute.xlu0 %1124
    %1126 = vrot.lane.b32.xlu0 %v913, 60
    %v1127 = vpop.permute.xlu0 %1126
    %1128 = vrot.lane.b32.xlu0 %v914, 60
    %v1129 = vpop.permute.xlu0 %1128
    %1130 = vrot.lane.b32.xlu0 %v915, 60
    %v1131 = vpop.permute.xlu0 %1130
    %vm1136 = vcmask 499168
    %1137 = vst.msk [vmem:[#allocation2] sm:$0xff] %vm1136, %v1125
    %1138 = vst.msk [vmem:[#allocation2 + $0x10] sm:$0xff] %vm1136, %v1127
    %1139 = vst.msk [vmem:[#allocation2 + $0x20] sm:$0xff] %vm1136, %v1129
    %1140 = vst.msk [vmem:[#allocation2 + $0x30] sm:$0xff] %vm1136, %v1131
    %1141 = vrot.lane.b32.xlu0 %v880, 100
    %v1142 = vpop.permute.xlu0 %1141
    %1143 = vrot.lane.b32.xlu0 %v881, 100
    %v1144 = vpop.permute.xlu0 %1143
    %1145 = vrot.lane.b32.xlu0 %v882, 100
    %v1146 = vpop.permute.xlu0 %1145
    %1147 = vrot.lane.b32.xlu0 %v883, 100
    %v1148 = vpop.permute.xlu0 %1147
    %vm1153 = vcmask 835368
    %1154 = vst.msk [vmem:[#allocation2] sm:$0xff] %vm1153, %v1142
    %1155 = vst.msk [vmem:[#allocation2 + $0x10] sm:$0xff] %vm1153, %v1144
    %1156 = vst.msk [vmem:[#allocation2 + $0x20] sm:$0xff] %vm1153, %v1146
    %1157 = vst.msk [vmem:[#allocation2 + $0x30] sm:$0xff] %vm1153, %v1148
    %1158 = vrot.lane.b32.xlu0 %v884, 102
    %v1159 = vpop.permute.xlu0 %1158
    %1160 = vrot.lane.b32.xlu0 %v885, 102
    %v1161 = vpop.permute.xlu0 %1160
    %1162 = vrot.lane.b32.xlu0 %v886, 102
    %v1163 = vpop.permute.xlu0 %1162
    %1164 = vrot.lane.b32.xlu0 %v887, 102
    %v1165 = vpop.permute.xlu0 %1164
    %vm1170 = vcmask 851768
    %1171 = vst.msk [vmem:[#allocation2] sm:$0xff] %vm1170, %v1159
    %1172 = vst.msk [vmem:[#allocation2 + $0x10] sm:$0xff] %vm1170, %v1161
    %1173 = vst.msk [vmem:[#allocation2 + $0x20] sm:$0xff] %vm1170, %v1163
    %1174 = vst.msk [vmem:[#allocation2 + $0x30] sm:$0xff] %vm1170, %v1165
    %1175 = vrot.lane.b32.xlu0 %v888, 104
    %v1176 = vpop.permute.xlu0 %1175
    %1177 = vrot.lane.b32.xlu0 %v889, 104
    %v1178 = vpop.permute.xlu0 %1177
    %1179 = vrot.lane.b32.xlu0 %v890, 104
    %v1180 = vpop.permute.xlu0 %1179
    %1181 = vrot.lane.b32.xlu0 %v891, 104
    %v1182 = vpop.permute.xlu0 %1181
    %vm1187 = vcmask 868168
    %1188 = vst.msk [vmem:[#allocation2] sm:$0xff] %vm1187, %v1176
    %1189 = vst.msk [vmem:[#allocation2 + $0x10] sm:$0xff] %vm1187, %v1178
    %1190 = vst.msk [vmem:[#allocation2 + $0x20] sm:$0xff] %vm1187, %v1180
    %1191 = vst.msk [vmem:[#allocation2 + $0x30] sm:$0xff] %vm1187, %v1182
    %1192 = vrot.lane.b32.xlu0 %v892, 118
    %v1193 = vpop.permute.xlu0 %1192
    %1194 = vrot.lane.b32.xlu0 %v893, 118
    %v1195 = vpop.permute.xlu0 %1194
    %1196 = vrot.lane.b32.xlu0 %v894, 118
    %v1197 = vpop.permute.xlu0 %1196
    %1198 = vrot.lane.b32.xlu0 %v895, 118
    %v1199 = vpop.permute.xlu0 %1198
    %vm1204 = vcmask 982968
    %1205 = vst.msk [vmem:[#allocation2] sm:$0xff] %vm1204, %v1193
    %1206 = vst.msk [vmem:[#allocation2 + $0x10] sm:$0xff] %vm1204, %v1195
    %1207 = vst.msk [vmem:[#allocation2 + $0x20] sm:$0xff] %vm1204, %v1197
    %1208 = vst.msk [vmem:[#allocation2 + $0x30] sm:$0xff] %vm1204, %v1199
    %1209 = vrot.lane.b32.xlu0 %v896, 120
    %v1210 = vpop.permute.xlu0 %1209
    %1211 = vrot.lane.b32.xlu0 %v897, 120
    %v1212 = vpop.permute.xlu0 %1211
    %1213 = vrot.lane.b32.xlu0 %v898, 120
    %v1214 = vpop.permute.xlu0 %1213
    %1215 = vrot.lane.b32.xlu0 %v899, 120
    %v1216 = vpop.permute.xlu0 %1215
    %vm1221 = vcmask 999368
    %1222 = vst.msk [vmem:[#allocation2] sm:$0xff] %vm1221, %v1210
    %1223 = vst.msk [vmem:[#allocation2 + $0x10] sm:$0xff] %vm1221, %v1212
    %1224 = vst.msk [vmem:[#allocation2 + $0x20] sm:$0xff] %vm1221, %v1214
    %1225 = vst.msk [vmem:[#allocation2 + $0x30] sm:$0xff] %vm1221, %v1216
    %1226 = vrot.lane.b32.xlu0 %v900, 122
    %v1227 = vpop.permute.xlu0 %1226
    %1228 = vrot.lane.b32.xlu0 %v901, 122
    %v1229 = vpop.permute.xlu0 %1228
    %1230 = vrot.lane.b32.xlu0 %v902, 122
    %v1231 = vpop.permute.xlu0 %1230
    %1232 = vrot.lane.b32.xlu0 %v903, 122
    %v1233 = vpop.permute.xlu0 %1232
    %vm1238 = vcmask 1015768
    %1239 = vst.msk [vmem:[#allocation2] sm:$0xff] %vm1238, %v1227
    %1240 = vst.msk [vmem:[#allocation2 + $0x10] sm:$0xff] %vm1238, %v1229
    %1241 = vst.msk [vmem:[#allocation2 + $0x20] sm:$0xff] %vm1238, %v1231
    %1242 = vst.msk [vmem:[#allocation2 + $0x30] sm:$0xff] %vm1238, %v1233
    %1243 = vrot.lane.b32.xlu0 %v904, 8
    %v1244 = vpop.permute.xlu0 %1243
    %1245 = vrot.lane.b32.xlu0 %v905, 8
    %v1246 = vpop.permute.xlu0 %1245
    %1247 = vrot.lane.b32.xlu0 %v906, 8
    %v1248 = vpop.permute.xlu0 %1247
    %1249 = vrot.lane.b32.xlu0 %v907, 8
    %v1250 = vpop.permute.xlu0 %1249
    %vm1255 = vcmask 80968
    %1256 = vst.msk [vmem:[#allocation2 + $0x8] sm:$0xff] %vm1255, %v1244
    %1257 = vst.msk [vmem:[#allocation2 + $0x18] sm:$0xff] %vm1255, %v1246
    %1258 = vst.msk [vmem:[#allocation2 + $0x28] sm:$0xff] %vm1255, %v1248
    %1259 = vst.msk [vmem:[#allocation2 + $0x38] sm:$0xff] %vm1255, %v1250
    %1260 = vrot.lane.b32.xlu0 %v908, 10
    %v1261 = vpop.permute.xlu0 %1260
    %1262 = vrot.lane.b32.xlu0 %v909, 10
    %v1263 = vpop.permute.xlu0 %1262
    %1264 = vrot.lane.b32.xlu0 %v910, 10
    %v1265 = vpop.permute.xlu0 %1264
    %1266 = vrot.lane.b32.xlu0 %v911, 10
    %v1267 = vpop.permute.xlu0 %1266
    %vm1272 = vcmask 97368
    %1273 = vst.msk [vmem:[#allocation2 + $0x8] sm:$0xff] %vm1272, %v1261
    %1274 = vst.msk [vmem:[#allocation2 + $0x18] sm:$0xff] %vm1272, %v1263
    %1275 = vst.msk [vmem:[#allocation2 + $0x28] sm:$0xff] %vm1272, %v1265
    %1276 = vst.msk [vmem:[#allocation2 + $0x38] sm:$0xff] %vm1272, %v1267
    %1277 = vrot.lane.b32.xlu0 %v912, 12
    %v1278 = vpop.permute.xlu0 %1277
    %1279 = vrot.lane.b32.xlu0 %v913, 12
    %v1280 = vpop.permute.xlu0 %1279
    %1281 = vrot.lane.b32.xlu0 %v914, 12
    %v1282 = vpop.permute.xlu0 %1281
    %1283 = vrot.lane.b32.xlu0 %v915, 12
    %v1284 = vpop.permute.xlu0 %1283
    %vm1289 = vcmask 113768
    %1290 = vst.msk [vmem:[#allocation2 + $0x8] sm:$0xff] %vm1289, %v1278
    %1291 = vst.msk [vmem:[#allocation2 + $0x18] sm:$0xff] %vm1289, %v1280
    %1292 = vst.msk [vmem:[#allocation2 + $0x28] sm:$0xff] %vm1289, %v1282
    %1293 = vst.msk [vmem:[#allocation2 + $0x38] sm:$0xff] %vm1289, %v1284
    %v1294 = vld [vmem:[#allocation2] sm:$0xff]
    %v1295 = vld [vmem:[#allocation2 + $0x8] sm:$0xff]
    %v1296 = vld [vmem:[#allocation2 + $0x10] sm:$0xff]
    %v1297 = vld [vmem:[#allocation2 + $0x18] sm:$0xff]
    %v1298 = vld [vmem:[#allocation2 + $0x20] sm:$0xff]
    %v1299 = vld [vmem:[#allocation2 + $0x28] sm:$0xff]
    %v1300 = vld [vmem:[#allocation2 + $0x30] sm:$0xff]
    %v1301 = vld [vmem:[#allocation2 + $0x38] sm:$0xff]
    %1302 = vst [vmem:[#allocation3] sm:$0xff] %v1294
    %1303 = vst.msk [vmem:[#allocation3 + $0x8] sm:$0xff] %vm929, %v1295
    %1304 = vst [vmem:[#allocation3 + $0x10] sm:$0xff] %v1296
    %1305 = vst.msk [vmem:[#allocation3 + $0x18] sm:$0xff] %vm929, %v1297
    %1306 = vst [vmem:[#allocation3 + $0x20] sm:$0xff] %v1298
    %1307 = vst.msk [vmem:[#allocation3 + $0x28] sm:$0xff] %vm929, %v1299
    %1308 = vst [vmem:[#allocation3 + $0x30] sm:$0xff] %v1300
    %1309 = vst.msk [vmem:[#allocation3 + $0x38] sm:$0xff] %vm929, %v1301
    %1318 = vrot.lane.b32.xlu0 %v1294, 127
    %v1319 = vpop.permute.xlu0 %1318
    %1320 = vrot.lane.b32.xlu0 %v1295, 127
    %v1321 = vpop.permute.xlu0 %1320
    %1322 = vrot.lane.b32.xlu0 %v1296, 127
    %v1323 = vpop.permute.xlu0 %1322
    %1324 = vrot.lane.b32.xlu0 %v1297, 127
    %v1325 = vpop.permute.xlu0 %1324
    %1326 = vrot.lane.b32.xlu0 %v1298, 127
    %v1327 = vpop.permute.xlu0 %1326
    %1328 = vrot.lane.b32.xlu0 %v1299, 127
    %v1329 = vpop.permute.xlu0 %1328
    %1330 = vrot.lane.b32.xlu0 %v1300, 127
    %v1331 = vpop.permute.xlu0 %1330
    %1332 = vrot.lane.b32.xlu0 %v1301, 127
    %v1333 = vpop.permute.xlu0 %1332
    %vm1334 = vcmask 1039360
    %v1335 = vsel %vm1334, %v1319, %v1321
    %v1336 = vsel %vm1334, %v1323, %v1325
    %v1337 = vsel %vm1334, %v1327, %v1329
    %v1338 = vsel %vm1334, %v1331, %v1333
    %1347 = vst [vmem:[#allocation3 + $0x40] sm:$0xff] %v1335
    %1348 = vst.msk [vmem:[#allocation3 + $0x48] sm:$0xff] %vm929, %v1321
    %1349 = vst [vmem:[#allocation3 + $0x50] sm:$0xff] %v1336
    %1350 = vst.msk [vmem:[#allocation3 + $0x58] sm:$0xff] %vm929, %v1325
    %1351 = vst [vmem:[#allocation3 + $0x60] sm:$0xff] %v1337
    %1352 = vst.msk [vmem:[#allocation3 + $0x68] sm:$0xff] %vm929, %v1329
    %1353 = vst [vmem:[#allocation3 + $0x70] sm:$0xff] %v1338
    %1354 = vst.msk [vmem:[#allocation3 + $0x78] sm:$0xff] %vm929, %v1333
    %1355 = vrot.lane.b32.xlu0 %v1294, 126
    %v1356 = vpop.permute.xlu0 %1355
    %1357 = vrot.lane.b32.xlu0 %v1295, 126
    %v1358 = vpop.permute.xlu0 %1357
    %1359 = vrot.lane.b32.xlu0 %v1296, 126
    %v1360 = vpop.permute.xlu0 %1359
    %1361 = vrot.lane.b32.xlu0 %v1297, 126
    %v1362 = vpop.permute.xlu0 %1361
    %1363 = vrot.lane.b32.xlu0 %v1298, 126
    %v1364 = vpop.permute.xlu0 %1363
    %1365 = vrot.lane.b32.xlu0 %v1299, 126
    %v1366 = vpop.permute.xlu0 %1365
    %1367 = vrot.lane.b32.xlu0 %v1300, 126
    %v1368 = vpop.permute.xlu0 %1367
    %1369 = vrot.lane.b32.xlu0 %v1301, 126
    %v1370 = vpop.permute.xlu0 %1369
    %vm1371 = vcmask 1031168
    %v1372 = vsel %vm1371, %v1356, %v1358
    %v1373 = vsel %vm1371, %v1360, %v1362
    %v1374 = vsel %vm1371, %v1364, %v1366
    %v1375 = vsel %vm1371, %v1368, %v1370
    %1384 = vst [vmem:[#allocation3 + $0x80] sm:$0xff] %v1372
    %1385 = vst.msk [vmem:[#allocation3 + $0x88] sm:$0xff] %vm929, %v1358
    %1386 = vst [vmem:[#allocation3 + $0x90] sm:$0xff] %v1373
    %1387 = vst.msk [vmem:[#allocation3 + $0x98] sm:$0xff] %vm929, %v1362
    %1388 = vst [vmem:[#allocation3 + $0xa0] sm:$0xff] %v1374
    %1389 = vst.msk [vmem:[#allocation3 + $0xa8] sm:$0xff] %vm929, %v1366
    %1390 = vst [vmem:[#allocation3 + $0xb0] sm:$0xff] %v1375
    %1391 = vst.msk [vmem:[#allocation3 + $0xb8] sm:$0xff] %vm929, %v1370
    %1392 = vrot.lane.b32.xlu0 %v1294, 119
    %v1393 = vpop.permute.xlu0 %1392
    %1394 = vrot.lane.b32.xlu0 %v1295, 119
    %v1395 = vpop.permute.xlu0 %1394
    %1396 = vrot.lane.b32.xlu0 %v1296, 119
    %v1397 = vpop.permute.xlu0 %1396
    %1398 = vrot.lane.b32.xlu0 %v1297, 119
    %v1399 = vpop.permute.xlu0 %1398
    %1400 = vrot.lane.b32.xlu0 %v1298, 119
    %v1401 = vpop.permute.xlu0 %1400
    %1402 = vrot.lane.b32.xlu0 %v1299, 119
    %v1403 = vpop.permute.xlu0 %1402
    %1404 = vrot.lane.b32.xlu0 %v1300, 119
    %v1405 = vpop.permute.xlu0 %1404
    %1406 = vrot.lane.b32.xlu0 %v1301, 119
    %v1407 = vpop.permute.xlu0 %1406
    %vm1408 = vcmask 973824
    %v1409 = vsel %vm1408, %v1393, %v1395
    %v1410 = vsel %vm1408, %v1397, %v1399
    %v1411 = vsel %vm1408, %v1401, %v1403
    %v1412 = vsel %vm1408, %v1405, %v1407
    %1421 = vst [vmem:[#allocation3 + $0xc0] sm:$0xff] %v1409
    %1422 = vst.msk [vmem:[#allocation3 + $0xc8] sm:$0xff] %vm929, %v1395
    %1423 = vst [vmem:[#allocation3 + $0xd0] sm:$0xff] %v1410
    %1424 = vst.msk [vmem:[#allocation3 + $0xd8] sm:$0xff] %vm929, %v1399
    %1425 = vst [vmem:[#allocation3 + $0xe0] sm:$0xff] %v1411
    %1426 = vst.msk [vmem:[#allocation3 + $0xe8] sm:$0xff] %vm929, %v1403
    %1427 = vst [vmem:[#allocation3 + $0xf0] sm:$0xff] %v1412
    %1428 = vst.msk [vmem:[#allocation3 + $0xf8] sm:$0xff] %vm929, %v1407
    %1429 = vrot.lane.b32.xlu0 %v1294, 118
    %v1430 = vpop.permute.xlu0 %1429
    %1431 = vrot.lane.b32.xlu0 %v1295, 118
    %v1432 = vpop.permute.xlu0 %1431
    %1433 = vrot.lane.b32.xlu0 %v1296, 118
    %v1434 = vpop.permute.xlu0 %1433
    %1435 = vrot.lane.b32.xlu0 %v1297, 118
    %v1436 = vpop.permute.xlu0 %1435
    %1437 = vrot.lane.b32.xlu0 %v1298, 118
    %v1438 = vpop.permute.xlu0 %1437
    %1439 = vrot.lane.b32.xlu0 %v1299, 118
    %v1440 = vpop.permute.xlu0 %1439
    %1441 = vrot.lane.b32.xlu0 %v1300, 118
    %v1442 = vpop.permute.xlu0 %1441
    %1443 = vrot.lane.b32.xlu0 %v1301, 118
    %v1444 = vpop.permute.xlu0 %1443
    %vm1445 = vcmask 965632
    %v1446 = vsel %vm1445, %v1430, %v1432
    %v1447 = vsel %vm1445, %v1434, %v1436
    %v1448 = vsel %vm1445, %v1438, %v1440
    %v1449 = vsel %vm1445, %v1442, %v1444
    %1458 = vst [vmem:[#allocation3 + $0x100] sm:$0xff] %v1446
    %1459 = vst.msk [vmem:[#allocation3 + $0x108] sm:$0xff] %vm929, %v1432
    %1460 = vst [vmem:[#allocation3 + $0x110] sm:$0xff] %v1447
    %1461 = vst.msk [vmem:[#allocation3 + $0x118] sm:$0xff] %vm929, %v1436
    %1462 = vst [vmem:[#allocation3 + $0x120] sm:$0xff] %v1448
    %1463 = vst.msk [vmem:[#allocation3 + $0x128] sm:$0xff] %vm929, %v1440
    %1464 = vst [vmem:[#allocation3 + $0x130] sm:$0xff] %v1449
    %1465 = vst.msk [vmem:[#allocation3 + $0x138] sm:$0xff] %vm929, %v1444
    %1466 = vrot.lane.b32.xlu0 %v1294, 117
    %v1467 = vpop.permute.xlu0 %1466
    %1468 = vrot.lane.b32.xlu0 %v1295, 117
    %v1469 = vpop.permute.xlu0 %1468
    %1470 = vrot.lane.b32.xlu0 %v1296, 117
    %v1471 = vpop.permute.xlu0 %1470
    %1472 = vrot.lane.b32.xlu0 %v1297, 117
    %v1473 = vpop.permute.xlu0 %1472
    %1474 = vrot.lane.b32.xlu0 %v1298, 117
    %v1475 = vpop.permute.xlu0 %1474
    %1476 = vrot.lane.b32.xlu0 %v1299, 117
    %v1477 = vpop.permute.xlu0 %1476
    %1478 = vrot.lane.b32.xlu0 %v1300, 117
    %v1479 = vpop.permute.xlu0 %1478
    %1480 = vrot.lane.b32.xlu0 %v1301, 117
    %v1481 = vpop.permute.xlu0 %1480
    %vm1482 = vcmask 957440
    %v1483 = vsel %vm1482, %v1467, %v1469
    %v1484 = vsel %vm1482, %v1471, %v1473
    %v1485 = vsel %vm1482, %v1475, %v1477
    %v1486 = vsel %vm1482, %v1479, %v1481
    %1495 = vst [vmem:[#allocation3 + $0x140] sm:$0xff] %v1483
    %1496 = vst.msk [vmem:[#allocation3 + $0x148] sm:$0xff] %vm929, %v1469
    %1497 = vst [vmem:[#allocation3 + $0x150] sm:$0xff] %v1484
    %1498 = vst.msk [vmem:[#allocation3 + $0x158] sm:$0xff] %vm929, %v1473
    %1499 = vst [vmem:[#allocation3 + $0x160] sm:$0xff] %v1485
    %1500 = vst.msk [vmem:[#allocation3 + $0x168] sm:$0xff] %vm929, %v1477
    %1501 = vst [vmem:[#allocation3 + $0x170] sm:$0xff] %v1486
    %1502 = vst.msk [vmem:[#allocation3 + $0x178] sm:$0xff] %vm929, %v1481
    %1503 = vrot.lane.b32.xlu0 %v1294, 110
    %v1504 = vpop.permute.xlu0 %1503
    %1505 = vrot.lane.b32.xlu0 %v1295, 110
    %v1506 = vpop.permute.xlu0 %1505
    %1507 = vrot.lane.b32.xlu0 %v1296, 110
    %v1508 = vpop.permute.xlu0 %1507
    %1509 = vrot.lane.b32.xlu0 %v1297, 110
    %v1510 = vpop.permute.xlu0 %1509
    %1511 = vrot.lane.b32.xlu0 %v1298, 110
    %v1512 = vpop.permute.xlu0 %1511
    %1513 = vrot.lane.b32.xlu0 %v1299, 110
    %v1514 = vpop.permute.xlu0 %1513
    %1515 = vrot.lane.b32.xlu0 %v1300, 110
    %v1516 = vpop.permute.xlu0 %1515
    %1517 = vrot.lane.b32.xlu0 %v1301, 110
    %v1518 = vpop.permute.xlu0 %1517
    %vm1519 = vcmask 900096
    %v1520 = vsel %vm1519, %v1504, %v1506
    %v1521 = vsel %vm1519, %v1508, %v1510
    %v1522 = vsel %vm1519, %v1512, %v1514
    %v1523 = vsel %vm1519, %v1516, %v1518
    %1532 = vst [vmem:[#allocation3 + $0x180] sm:$0xff] %v1520
    %1533 = vst.msk [vmem:[#allocation3 + $0x188] sm:$0xff] %vm929, %v1506
    %1534 = vst [vmem:[#allocation3 + $0x190] sm:$0xff] %v1521
    %1535 = vst.msk [vmem:[#allocation3 + $0x198] sm:$0xff] %vm929, %v1510
    %1536 = vst [vmem:[#allocation3 + $0x1a0] sm:$0xff] %v1522
    %1537 = vst.msk [vmem:[#allocation3 + $0x1a8] sm:$0xff] %vm929, %v1514
    %1538 = vst [vmem:[#allocation3 + $0x1b0] sm:$0xff] %v1523
    %1539 = vst.msk [vmem:[#allocation3 + $0x1b8] sm:$0xff] %vm929, %v1518
    %1540 = vrot.lane.b32.xlu0 %v1294, 109
    %v1541 = vpop.permute.xlu0 %1540
    %1542 = vrot.lane.b32.xlu0 %v1295, 109
    %v1543 = vpop.permute.xlu0 %1542
    %1544 = vrot.lane.b32.xlu0 %v1296, 109
    %v1545 = vpop.permute.xlu0 %1544
    %1546 = vrot.lane.b32.xlu0 %v1297, 109
    %v1547 = vpop.permute.xlu0 %1546
    %1548 = vrot.lane.b32.xlu0 %v1298, 109
    %v1549 = vpop.permute.xlu0 %1548
    %1550 = vrot.lane.b32.xlu0 %v1299, 109
    %v1551 = vpop.permute.xlu0 %1550
    %1552 = vrot.lane.b32.xlu0 %v1300, 109
    %v1553 = vpop.permute.xlu0 %1552
    %1554 = vrot.lane.b32.xlu0 %v1301, 109
    %v1555 = vpop.permute.xlu0 %1554
    %vm1556 = vcmask 891904
    %v1557 = vsel %vm1556, %v1541, %v1543
    %v1558 = vsel %vm1556, %v1545, %v1547
    %v1559 = vsel %vm1556, %v1549, %v1551
    %v1560 = vsel %vm1556, %v1553, %v1555
    %1569 = vst [vmem:[#allocation3 + $0x1c0] sm:$0xff] %v1557
    %1570 = vst.msk [vmem:[#allocation3 + $0x1c8] sm:$0xff] %vm929, %v1543
    %1571 = vst [vmem:[#allocation3 + $0x1d0] sm:$0xff] %v1558
    %1572 = vst.msk [vmem:[#allocation3 + $0x1d8] sm:$0xff] %vm929, %v1547
    %1573 = vst [vmem:[#allocation3 + $0x1e0] sm:$0xff] %v1559
    %1574 = vst.msk [vmem:[#allocation3 + $0x1e8] sm:$0xff] %vm929, %v1551
    %1575 = vst [vmem:[#allocation3 + $0x1f0] sm:$0xff] %v1560
    %1576 = vst.msk [vmem:[#allocation3 + $0x1f8] sm:$0xff] %vm929, %v1555
    %1577 = vrot.lane.b32.xlu0 %v1294, 108
    %v1578 = vpop.permute.xlu0 %1577
    %1579 = vrot.lane.b32.xlu0 %v1295, 108
    %v1580 = vpop.permute.xlu0 %1579
    %1581 = vrot.lane.b32.xlu0 %v1296, 108
    %v1582 = vpop.permute.xlu0 %1581
    %1583 = vrot.lane.b32.xlu0 %v1297, 108
    %v1584 = vpop.permute.xlu0 %1583
    %1585 = vrot.lane.b32.xlu0 %v1298, 108
    %v1586 = vpop.permute.xlu0 %1585
    %1587 = vrot.lane.b32.xlu0 %v1299, 108
    %v1588 = vpop.permute.xlu0 %1587
    %1589 = vrot.lane.b32.xlu0 %v1300, 108
    %v1590 = vpop.permute.xlu0 %1589
    %1591 = vrot.lane.b32.xlu0 %v1301, 108
    %v1592 = vpop.permute.xlu0 %1591
    %vm1593 = vcmask 883712
    %v1594 = vsel %vm1593, %v1578, %v1580
    %v1595 = vsel %vm1593, %v1582, %v1584
    %v1596 = vsel %vm1593, %v1586, %v1588
    %v1597 = vsel %vm1593, %v1590, %v1592
    %1606 = vst [vmem:[#allocation3 + $0x200] sm:$0xff] %v1594
    %1607 = vst.msk [vmem:[#allocation3 + $0x208] sm:$0xff] %vm929, %v1580
    %1608 = vst [vmem:[#allocation3 + $0x210] sm:$0xff] %v1595
    %1609 = vst.msk [vmem:[#allocation3 + $0x218] sm:$0xff] %vm929, %v1584
    %1610 = vst [vmem:[#allocation3 + $0x220] sm:$0xff] %v1596
    %1611 = vst.msk [vmem:[#allocation3 + $0x228] sm:$0xff] %vm929, %v1588
    %1612 = vst [vmem:[#allocation3 + $0x230] sm:$0xff] %v1597
    %1613 = vst.msk [vmem:[#allocation3 + $0x238] sm:$0xff] %vm929, %v1592
    %v1614 = vld [vmem:[%s5] sm:$0xff]
    %v1615 = vld [vmem:[%s5 + $0x8] sm:$0xff]
    %v1616 = vld [vmem:[%s5 + $0x10] sm:$0xff]
    %v1617 = vld [vmem:[%s5 + $0x18] sm:$0xff]
    %v1618 = vld [vmem:[%s5 + $0x20] sm:$0xff]
    %v1619 = vld [vmem:[%s5 + $0x28] sm:$0xff]
    %v1620 = vld [vmem:[#allocation3] sm:$0xff]
    %v1621 = vld [vmem:[#allocation3 + $0x8] sm:$0xff]
    %v1622 = vld [vmem:[#allocation3 + $0x10] sm:$0xff]
    %v1623 = vld [vmem:[#allocation3 + $0x18] sm:$0xff]
    %v1624 = vld [vmem:[#allocation3 + $0x20] sm:$0xff]
    %v1625 = vld [vmem:[#allocation3 + $0x28] sm:$0xff]
    %v1626 = vld [vmem:[#allocation3 + $0x30] sm:$0xff]
    %v1627 = vld [vmem:[#allocation3 + $0x38] sm:$0xff]
    %v1628 = vld [vmem:[#allocation3 + $0x40] sm:$0xff]
    %v1629 = vld [vmem:[#allocation3 + $0x48] sm:$0xff]
    %v1630 = vld [vmem:[#allocation3 + $0x50] sm:$0xff]
    %v1631 = vld [vmem:[#allocation3 + $0x58] sm:$0xff]
    %v1632 = vld [vmem:[#allocation3 + $0x60] sm:$0xff]
    %v1633 = vld [vmem:[#allocation3 + $0x68] sm:$0xff]
    %v1634 = vld [vmem:[#allocation3 + $0x70] sm:$0xff]
    %v1635 = vld [vmem:[#allocation3 + $0x78] sm:$0xff]
    %v1636 = vld [vmem:[#allocation3 + $0x80] sm:$0xff]
    %v1637 = vld [vmem:[#allocation3 + $0x88] sm:$0xff]
    %v1638 = vld [vmem:[#allocation3 + $0x90] sm:$0xff]
    %v1639 = vld [vmem:[#allocation3 + $0x98] sm:$0xff]
    %v1640 = vld [vmem:[#allocation3 + $0xa0] sm:$0xff]
    %v1641 = vld [vmem:[#allocation3 + $0xa8] sm:$0xff]
    %v1642 = vld [vmem:[#allocation3 + $0xb0] sm:$0xff]
    %v1643 = vld [vmem:[#allocation3 + $0xb8] sm:$0xff]
    %v1644 = vld [vmem:[#allocation3 + $0xc0] sm:$0xff]
    %v1645 = vld [vmem:[#allocation3 + $0xc8] sm:$0xff]
    %v1646 = vld [vmem:[#allocation3 + $0xd0] sm:$0xff]
    %v1647 = vld [vmem:[#allocation3 + $0xd8] sm:$0xff]
    %v1648 = vld [vmem:[#allocation3 + $0xe0] sm:$0xff]
    %v1649 = vld [vmem:[#allocation3 + $0xe8] sm:$0xff]
    %v1650 = vld [vmem:[#allocation3 + $0xf0] sm:$0xff]
    %v1651 = vld [vmem:[#allocation3 + $0xf8] sm:$0xff]
    %v1652 = vld [vmem:[#allocation3 + $0x100] sm:$0xff]
    %v1653 = vld [vmem:[#allocation3 + $0x108] sm:$0xff]
    %v1654 = vld [vmem:[#allocation3 + $0x110] sm:$0xff]
    %v1655 = vld [vmem:[#allocation3 + $0x118] sm:$0xff]
    %v1656 = vld [vmem:[#allocation3 + $0x120] sm:$0xff]
    %v1657 = vld [vmem:[#allocation3 + $0x128] sm:$0xff]
    %v1658 = vld [vmem:[#allocation3 + $0x130] sm:$0xff]
    %v1659 = vld [vmem:[#allocation3 + $0x138] sm:$0xff]
    %v1660 = vld [vmem:[#allocation3 + $0x140] sm:$0xff]
    %v1661 = vld [vmem:[#allocation3 + $0x148] sm:$0xff]
    %v1662 = vld [vmem:[#allocation3 + $0x150] sm:$0xff]
    %v1663 = vld [vmem:[#allocation3 + $0x158] sm:$0xff]
    %v1664 = vld [vmem:[#allocation3 + $0x160] sm:$0xff]
    %v1665 = vld [vmem:[#allocation3 + $0x168] sm:$0xff]
    %v1666 = vld [vmem:[#allocation3 + $0x170] sm:$0xff]
    %v1667 = vld [vmem:[#allocation3 + $0x178] sm:$0xff]
    %v1668 = vld [vmem:[#allocation3 + $0x180] sm:$0xff]
    %v1669 = vld [vmem:[#allocation3 + $0x188] sm:$0xff]
    %v1670 = vld [vmem:[#allocation3 + $0x190] sm:$0xff]
    %v1671 = vld [vmem:[#allocation3 + $0x198] sm:$0xff]
    %v1672 = vld [vmem:[#allocation3 + $0x1a0] sm:$0xff]
    %v1673 = vld [vmem:[#allocation3 + $0x1a8] sm:$0xff]
    %v1674 = vld [vmem:[#allocation3 + $0x1b0] sm:$0xff]
    %v1675 = vld [vmem:[#allocation3 + $0x1b8] sm:$0xff]
    %v1676 = vld [vmem:[#allocation3 + $0x1c0] sm:$0xff]
    %v1677 = vld [vmem:[#allocation3 + $0x1c8] sm:$0xff]
    %v1678 = vld [vmem:[#allocation3 + $0x1d0] sm:$0xff]
    %v1679 = vld [vmem:[#allocation3 + $0x1d8] sm:$0xff]
    %v1680 = vld [vmem:[#allocation3 + $0x1e0] sm:$0xff]
    %v1681 = vld [vmem:[#allocation3 + $0x1e8] sm:$0xff]
    %v1682 = vld [vmem:[#allocation3 + $0x1f0] sm:$0xff]
    %v1683 = vld [vmem:[#allocation3 + $0x1f8] sm:$0xff]
    %v1684 = vld [vmem:[#allocation3 + $0x200] sm:$0xff]
    %v1685 = vld [vmem:[#allocation3 + $0x208] sm:$0xff]
    %v1686 = vld [vmem:[#allocation3 + $0x210] sm:$0xff]
    %v1687 = vld [vmem:[#allocation3 + $0x218] sm:$0xff]
    %v1688 = vld [vmem:[#allocation3 + $0x220] sm:$0xff]
    %v1689 = vld [vmem:[#allocation3 + $0x228] sm:$0xff]
    %v1690 = vld [vmem:[#allocation3 + $0x230] sm:$0xff]
    %v1691 = vld [vmem:[#allocation3 + $0x238] sm:$0xff]
    %v1692 = vld [vmem:[%s6] sm:$0xff]
    %v1693 = vld [vmem:[%s6 + $0x8] sm:$0xff]
    %1695 = vset.pattern.permute.xlu0 0
    %1696 = vperm.xlu0 %1695, %v1692
    %v1697 = vpop.permute.xlu0 %1696
    %1700 = vset.pattern.permute.xlu0 0
    %1701 = vperm.xlu0 %1700, %v1693
    %v1702 = vpop.permute.xlu0 %1701
    %vm1704 = vcmask 261120
    %v1706 = vsel %vm1704, %v1616, 0
    %v1709 = vsel %vm1704, %v1619, 0
    %1711 = vmatprep.subr.mxu0 %v1621
    %1712 = vmatpush1.msra.mxu0 %v1620
    %1713 = vmatprep.subr.mxu0 %v1623
    %1714 = vmatpush1.msra.mxu0 %v1622
    %1715 = vmatprep.subr.mxu0 %v1625
    %1716 = vmatpush1.msra.mxu0 %v1624
    %1717 = vmatprep.subr.mxu0 %v1627
    %1718 = vmatpush1.msra.mxu0 %v1626
    %1719 = vmatprep.subr.mxu0 %v1629
    %1720 = vmatpush1.msra.mxu0 %v1628
    %1721 = vmatprep.subr.mxu0 %v1631
    %1722 = vmatpush1.msra.mxu0 %v1630
    %1723 = vmatprep.subr.mxu0 %v1633
    %1724 = vmatpush1.msra.mxu0 %v1632
    %1725 = vmatprep.subr.mxu0 %v1635
    %1726 = vmatpush1.msra.mxu0 %v1634
    %1727 = vmatprep.subr.mxu0 %v1637
    %1728 = vmatpush1.msra.mxu0 %v1636
    %1729 = vmatprep.subr.mxu0 %v1639
    %1730 = vmatpush1.msra.mxu0 %v1638
    %1731 = vmatprep.subr.mxu0 %v1641
    %1732 = vmatpush1.msra.mxu0 %v1640
    %1733 = vmatprep.subr.mxu0 %v1643
    %1734 = vmatpush1.msra.mxu0 %v1642
    %1735 = vmatprep.subr.mxu0 %v1645
    %1736 = vmatpush1.msra.mxu0 %v1644
    %1737 = vmatprep.subr.mxu0 %v1647
    %1738 = vmatpush1.msra.mxu0 %v1646
    %1739 = vmatprep.subr.mxu0 %v1649
    %1740 = vmatpush1.msra.mxu0 %v1648
    %1741 = vmatprep.subr.mxu0 %v1651
    %1742 = vmatpush1.msra.mxu0 %v1650
    %1743 = vmatprep.subr.mxu0 %v1653
    %1744 = vmatpush1.msra.mxu0 %v1652
    %1745 = vmatprep.subr.mxu0 %v1655
    %1746 = vmatpush1.msra.mxu0 %v1654
    %1747 = vmatprep.subr.mxu0 %v1657
    %1748 = vmatpush1.msra.mxu0 %v1656
    %1749 = vmatprep.subr.mxu0 %v1659
    %1750 = vmatpush1.msra.mxu0 %v1658
    %1751 = vmatprep.subr.mxu0 %v1661
    %1752 = vmatpush1.msra.mxu0 %v1660
    %1753 = vmatprep.subr.mxu0 %v1663
    %1754 = vmatpush1.msra.mxu0 %v1662
    %1755 = vmatprep.subr.mxu0 %v1665
    %1756 = vmatpush1.msra.mxu0 %v1664
    %1757 = vmatprep.subr.mxu0 %v1667
    %1758 = vmatpush1.msra.mxu0 %v1666
    %1759 = vmatprep.subr.mxu0 %v1669
    %1760 = vmatpush1.msra.mxu0 %v1668
    %1761 = vmatprep.subr.mxu0 %v1671
    %1762 = vmatpush1.msra.mxu0 %v1670
    %1763 = vmatprep.subr.mxu0 %v1673
    %1764 = vmatpush1.msra.mxu0 %v1672
    %1765 = vmatprep.subr.mxu0 %v1675
    %1766 = vmatpush1.msra.mxu0 %v1674
    %1767 = vmatprep.subr.mxu0 %v1677
    %1768 = vmatpush1.msra.mxu0 %v1676
    %1769 = vmatprep.subr.mxu0 %v1679
    %1770 = vmatpush1.msra.mxu0 %v1678
    %1771 = vmatprep.subr.mxu0 %v1681
    %1772 = vmatpush1.msra.mxu0 %v1680
    %1773 = vmatprep.subr.mxu0 %v1683
    %1774 = vmatpush1.msra.mxu0 %v1682
    %1775 = vmatprep.mubr.f32.mxu0 %v1615
    %1776 = vmatmul.mubr.f32.gmra.mrb[0].mxu0 %v1614
    %v1777 = vpop.f32.mrb[0].mxu0
    %v1778 = vadd.f32 %v1697, %v1777
    %v1779 = vpop.f32.mrb[0].mxu0
    %v1780 = vadd.f32 %v1697, %v1779
    %1781 = vmatprep.mubr.f32.mxu0 %v1618
    %1782 = vmatmul.mubr.f32.gmra.mrb[0].mxu0 %v1617
    %v1783 = vpop.f32.mrb[0].mxu0
    %v1784 = vadd.f32 %v1702, %v1783
    %v1785 = vpop.f32.mrb[0].mxu0
    %v1786 = vadd.f32 %v1702, %v1785
    %1787 = vdwg.mxu0
    %1788 = vmatprep.subr.mxu0 %v1685
    %1789 = vmatpush1.msra.mxu0 %v1684
    %1790 = vmatprep.subr.mxu0 %v1687
    %1791 = vmatpush1.msra.mxu0 %v1686
    %1792 = vmatprep.subr.mxu0 %v1689
    %1793 = vmatpush1.msra.mxu0 %v1688
    %1794 = vmatprep.subr.mxu0 %v1691
    %1795 = vmatpush1.msra.mxu0 %v1690
    %1796 = vmatprep.subr.mxu0 0.0
    %1797 = vmatpush1.msra.mxu0 0.0
    %1798 = vmatprep.subr.mxu0 0.0
    %1799 = vmatpush1.msra.mxu0 0.0
    %1800 = vmatprep.subr.mxu0 0.0
    %1801 = vmatpush1.msra.mxu0 0.0
    %1802 = vmatprep.subr.mxu0 0.0
    %1803 = vmatpush1.msra.mxu0 0.0
    %1804 = vmatprep.subr.mxu0 0.0
    %1805 = vmatpush1.msra.mxu0 0.0
    %1806 = vmatprep.subr.mxu0 0.0
    %1807 = vmatpush1.msra.mxu0 0.0
    %1808 = vmatprep.subr.mxu0 0.0
    %1809 = vmatpush1.msra.mxu0 0.0
    %1810 = vmatprep.subr.mxu0 0.0
    %1811 = vmatpush1.msra.mxu0 0.0
    %1812 = vmatprep.subr.mxu0 0.0
    %1813 = vmatpush1.msra.mxu0 0.0
    %1814 = vmatprep.subr.mxu0 0.0
    %1815 = vmatpush1.msra.mxu0 0.0
    %1816 = vmatprep.subr.mxu0 0.0
    %1817 = vmatpush1.msra.mxu0 0.0
    %1818 = vmatprep.subr.mxu0 0.0
    %1819 = vmatpush1.msra.mxu0 0.0
    %1820 = vmatprep.subr.mxu0 0.0
    %1821 = vmatpush1.msra.mxu0 0.0
    %1822 = vmatprep.subr.mxu0 0.0
    %1823 = vmatpush1.msra.mxu0 0.0
    %1824 = vmatprep.subr.mxu0 0.0
    %1825 = vmatpush1.msra.mxu0 0.0
    %1826 = vmatprep.subr.mxu0 0.0
    %1827 = vmatpush1.msra.mxu0 0.0
    %1828 = vmatprep.subr.mxu0 0.0
    %1829 = vmatpush1.msra.mxu0 0.0
    %1830 = vmatprep.subr.mxu0 0.0
    %1831 = vmatpush1.msra.mxu0 0.0
    %1832 = vmatprep.subr.mxu0 0.0
    %1833 = vmatpush1.msra.mxu0 0.0
    %1834 = vmatprep.subr.mxu0 0.0
    %1835 = vmatpush1.msra.mxu0 0.0
    %1836 = vmatprep.subr.mxu0 0.0
    %1837 = vmatpush1.msra.mxu0 0.0
    %1838 = vmatprep.subr.mxu0 0.0
    %1839 = vmatpush1.msra.mxu0 0.0
    %1840 = vmatprep.subr.mxu0 0.0
    %1841 = vmatpush1.msra.mxu0 0.0
    %1842 = vmatprep.subr.mxu0 0.0
    %1843 = vmatpush1.msra.mxu0 0.0
    %1844 = vmatprep.subr.mxu0 0.0
    %1845 = vmatpush1.msra.mxu0 0.0
    %1846 = vmatprep.subr.mxu0 0.0
    %1847 = vmatpush1.msra.mxu0 0.0
    %1848 = vmatprep.subr.mxu0 0.0
    %1849 = vmatpush1.msra.mxu0 0.0
    %1850 = vmatprep.subr.mxu0 0.0
    %1851 = vmatpush1.msra.mxu0 0.0
    %1852 = vmatprep.mubr.f32.mxu0 0.0
    %1853 = vmatmul.mubr.f32.gmra.mrb[0].mxu0 %v1706
    %v1854 = vpop.f32.mrb[0].mxu0
    %v1855 = vadd.f32 %v1778, %v1854
    %v1856 = vpop.f32.mrb[0].mxu0
    %v1857 = vadd.f32 %v1780, %v1856
    %1858 = vmatprep.mubr.f32.mxu0 0.0
    %1859 = vmatmul.mubr.f32.gmra.mrb[0].mxu0 %v1709
    %v1860 = vpop.f32.mrb[0].mxu0
    %v1861 = vadd.f32 %v1784, %v1860
    %v1862 = vpop.f32.mrb[0].mxu0
    %v1863 = vadd.f32 %v1786, %v1862
    %1864 = vdwg.mxu0
    %v1865 = vld [vmem:[%s9] sm:$0x3]
    %v1866 = vld [vmem:[%s7] sm:$0xff]
    %v1867 = vld [vmem:[%s7 + $0x8] sm:$0xff]
    %v1868 = vld [vmem:[%s8] sm:$0xff]
    %v1869 = vld [vmem:[%s8 + $0x8] sm:$0xff]
    %v1871 = vlaneseq
    %v1872 = vshrl.u32 %v1871, 7
    %v1873 = vsub.s32 0, %v1872
    %v1874 = vrot.slane %v1865, %v1873
    %v1875 = vlaneseq
    %v1876 = vshrl.u32 %v1875, 7
    %v1877 = vsub.s32 1, %v1876
    %v1878 = vrot.slane %v1865, %v1877
    %v1881 = vmul.f32 %v1855, %v1874
    %v1882 = vmul.f32 %v1857, %v1878
    %v1883 = vmul.f32 %v1861, %v1874
    %v1884 = vmul.f32 %v1863, %v1878
    %v1885 = vsel %vm929, %v1882, 0.0
    %v1886 = vadd.f32 %v1881, %v1885
    %1887 = vadd.xlane.f32.xlu0 %v1886
    %v1888 = vpop.xlane.xlu0 %1887
    %v1889 = vsel %vm929, %v1884, 0.0
    %v1890 = vadd.f32 %v1883, %v1889
    %1891 = vadd.xlane.f32.xlu0 %v1890
    %v1892 = vpop.xlane.xlu0 %1891
    %v1893 = vmul.f32 %v1888, 0.010204081
    %v1894 = vmul.f32 %v1892, 0.010204081
    %v1895 = vsub.f32 %v1855, %v1893
    %v1896 = vsub.f32 %v1857, %v1893
    %v1897 = vsub.f32 %v1861, %v1894
    %v1898 = vsub.f32 %v1863, %v1894
    %v1899 = vmul.f32 %v1895, %v1895
    %v1900 = vmul.f32 %v1896, %v1896
    %v1901 = vmul.f32 %v1897, %v1897
    %v1902 = vmul.f32 %v1898, %v1898
    %v1903 = vmul.f32 %v1899, %v1874
    %v1904 = vmul.f32 %v1900, %v1878
    %v1905 = vmul.f32 %v1901, %v1874
    %v1906 = vmul.f32 %v1902, %v1878
    %v1907 = vsel %vm929, %v1904, 0.0
    %v1908 = vadd.f32 %v1903, %v1907
    %1909 = vadd.xlane.f32.xlu0 %v1908
    %v1910 = vpop.xlane.xlu0 %1909
    %v1911 = vsel %vm929, %v1906, 0.0
    %v1912 = vadd.f32 %v1905, %v1911
    %1913 = vadd.xlane.f32.xlu0 %v1912
    %v1914 = vpop.xlane.xlu0 %1913
    %v1915 = vmul.f32 %v1910, 0.010204081
    %v1916 = vmul.f32 %v1914, 0.010204081
    %v1917 = vadd.f32 %v1915, 1e-05
    %v1918 = vadd.f32 %v1916, 1e-05
    %v1919 = vrsqrt.pop %v1917
    %v1920 = vrsqrt.pop %v1918
    %v1921 = vmul.f32 %v1919, %v1866
    %v1922 = vmul.f32 %v1920, %v1867
    %1924 = vset.pattern.permute.xlu0 0
    %1925 = vperm.xlu0 %1924, %v1921
    %v1926 = vpop.permute.xlu0 %1925
    %1929 = vset.pattern.permute.xlu0 0
    %1930 = vperm.xlu0 %1929, %v1922
    %v1931 = vpop.permute.xlu0 %1930
    %v1933 = vmul.f32 %v1895, %v1926
    %v1934 = vmul.f32 %v1896, %v1926
    %v1935 = vmul.f32 %v1897, %v1931
    %v1936 = vmul.f32 %v1898, %v1931
    %1938 = vset.pattern.permute.xlu0 0
    %1939 = vperm.xlu0 %1938, %v1868
    %v1940 = vpop.permute.xlu0 %1939
    %1943 = vset.pattern.permute.xlu0 0
    %1944 = vperm.xlu0 %1943, %v1869
    %v1945 = vpop.permute.xlu0 %1944
    %v1947 = vadd.f32 %v1933, %v1940
    %v1948 = vadd.f32 %v1934, %v1940
    %v1949 = vadd.f32 %v1935, %v1945
    %v1950 = vadd.f32 %v1936, %v1945
    %v1951 = vmax.f32 %v1947, 0.0
    %v1952 = vmax.f32 %v1948, 0.0
    %v1953 = vmax.f32 %v1949, 0.0
    %v1954 = vmax.f32 %v1950, 0.0
    %v1955 = vlaneseq
    %v1956 = vshrl.u32 %v1955, 7
    %v1957 = vlaneseq
    %v1958 = vand.u32 %v1957, 127
    %v1959 = vmul.u32 %v1956, 2
    %v1960 = vadd.s32 %v1959, 1
    %vm1961 = vcmp.eq.s32.totalorder %v1958, %v1960
    %v1962 = vsel %vm1961, 1, 0
    %v1963 = vcvt.s32.f32 %v1962
    %vm1964 = vcmask 56320
    %v1966 = vsel %vm1964, %v1951, 0
    %v1969 = vsel %vm1964, %v1953, 0
    %vm1971 = vcmask 1046528
    %v1973 = vsel %vm1971, %v1963, 0
    %1975 = vmatprep.subr.mxu0 0.0
    %1976 = vmatpush1.msra.mxu0 %v1973
    %1977 = vmatprep.subr.mxu0 0.0
    %1978 = vmatpush1.msra.mxu0 0.0
    %1979 = vmatprep.subr.mxu0 0.0
    %1980 = vmatpush1.msra.mxu0 0.0
    %1981 = vmatprep.subr.mxu0 0.0
    %1982 = vmatpush1.msra.mxu0 0.0
    %1983 = vmatprep.subr.mxu0 0.0
    %1984 = vmatpush1.msra.mxu0 0.0
    %1985 = vmatprep.subr.mxu0 0.0
    %1986 = vmatpush1.msra.mxu0 0.0
    %1987 = vmatprep.subr.mxu0 0.0
    %1988 = vmatpush1.msra.mxu0 0.0
    %1989 = vmatprep.subr.mxu0 0.0
    %1990 = vmatpush1.msra.mxu0 0.0
    %1991 = vmatprep.subr.mxu0 0.0
    %1992 = vmatpush1.msra.mxu0 0.0
    %1993 = vmatprep.subr.mxu0 0.0
    %1994 = vmatpush1.msra.mxu0 0.0
    %1995 = vmatprep.subr.mxu0 0.0
    %1996 = vmatpush1.msra.mxu0 0.0
    %1997 = vmatprep.subr.mxu0 0.0
    %1998 = vmatpush1.msra.mxu0 0.0
    %1999 = vmatprep.subr.mxu0 0.0
    %2000 = vmatpush1.msra.mxu0 0.0
    %2001 = vmatprep.subr.mxu0 0.0
    %2002 = vmatpush1.msra.mxu0 0.0
    %2003 = vmatprep.subr.mxu0 0.0
    %2004 = vmatpush1.msra.mxu0 0.0
    %2005 = vmatprep.subr.mxu0 0.0
    %2006 = vmatpush1.msra.mxu0 0.0
    %2007 = vmatprep.subr.mxu0 0.0
    %2008 = vmatpush1.msra.mxu0 0.0
    %2009 = vmatprep.subr.mxu0 0.0
    %2010 = vmatpush1.msra.mxu0 0.0
    %2011 = vmatprep.subr.mxu0 0.0
    %2012 = vmatpush1.msra.mxu0 0.0
    %2013 = vmatprep.subr.mxu0 0.0
    %2014 = vmatpush1.msra.mxu0 0.0
    %2015 = vmatprep.subr.mxu0 0.0
    %2016 = vmatpush1.msra.mxu0 0.0
    %2017 = vmatprep.subr.mxu0 0.0
    %2018 = vmatpush1.msra.mxu0 0.0
    %2019 = vmatprep.subr.mxu0 0.0
    %2020 = vmatpush1.msra.mxu0 0.0
    %2021 = vmatprep.subr.mxu0 0.0
    %2022 = vmatpush1.msra.mxu0 0.0
    %2023 = vmatprep.subr.mxu0 0.0
    %2024 = vmatpush1.msra.mxu0 0.0
    %2025 = vmatprep.subr.mxu0 0.0
    %2026 = vmatpush1.msra.mxu0 0.0
    %2027 = vmatprep.subr.mxu0 0.0
    %2028 = vmatpush1.msra.mxu0 0.0
    %2029 = vmatprep.subr.mxu0 0.0
    %2030 = vmatpush1.msra.mxu0 0.0
    %2031 = vmatprep.subr.mxu0 0.0
    %2032 = vmatpush1.msra.mxu0 0.0
    %2033 = vmatprep.subr.mxu0 0.0
    %2034 = vmatpush1.msra.mxu0 0.0
    %2035 = vmatprep.subr.mxu0 0.0
    %2036 = vmatpush1.msra.mxu0 0.0
    %2037 = vmatprep.subr.mxu0 0.0
    %2038 = vmatpush1.msra.mxu0 0.0
    %2039 = vmatprep.mubr.f32.mxu0 0.0
    %2040 = vmatmul.mubr.f32.gmra.mrb[0].mxu0 %v1966
    %v2041 = vpop.f32.mrb[0].mxu0
    %v2042 = vadd.f32 0.0, %v2041
    %v2043 = vpop.f32.mrb[0].mxu0
    %2044 = vmatprep.mubr.f32.mxu0 0.0
    %2045 = vmatmul.mubr.f32.gmra.mrb[0].mxu0 %v1969
    %v2046 = vpop.f32.mrb[0].mxu0
    %v2047 = vadd.f32 0.0, %v2046
    %v2048 = vpop.f32.mrb[0].mxu0
    %2049 = vdwg.mxu0
    %2052 = vrot.lane.b32.xlu0 %v2042, 16
    %v2053 = vpop.permute.xlu0 %2052
    %2054 = vrot.lane.b32.xlu0 %v2047, 16
    %v2055 = vpop.permute.xlu0 %2054
    %vm2058 = vcmask 261248
    %2059 = vst.msk [vmem:[#allocation4] sm:$0xff] %vm2058, %v2053
    %2060 = vst.msk [vmem:[#allocation4 + $0x28] sm:$0xff] %vm2058, %v2055
    %2061 = vrot.lane.b32.xlu0 %v1951, 119
    %v2062 = vpop.permute.xlu0 %2061
    %2063 = vrot.lane.b32.xlu0 %v1953, 119
    %v2064 = vpop.permute.xlu0 %2063
    %v2065 = vsel %vm1964, %v2062, 0
    %v2067 = vsel %vm1964, %v2064, 0
    %2069 = vmatprep.subr.mxu0 0.0
    %2070 = vmatpush1.msra.mxu0 %v1973
    %2071 = vmatprep.subr.mxu0 0.0
    %2072 = vmatpush1.msra.mxu0 0.0
    %2073 = vmatprep.subr.mxu0 0.0
    %2074 = vmatpush1.msra.mxu0 0.0
    %2075 = vmatprep.subr.mxu0 0.0
    %2076 = vmatpush1.msra.mxu0 0.0
    %2077 = vmatprep.subr.mxu0 0.0
    %2078 = vmatpush1.msra.mxu0 0.0
    %2079 = vmatprep.subr.mxu0 0.0
    %2080 = vmatpush1.msra.mxu0 0.0
    %2081 = vmatprep.subr.mxu0 0.0
    %2082 = vmatpush1.msra.mxu0 0.0
    %2083 = vmatprep.subr.mxu0 0.0
    %2084 = vmatpush1.msra.mxu0 0.0
    %2085 = vmatprep.subr.mxu0 0.0
    %2086 = vmatpush1.msra.mxu0 0.0
    %2087 = vmatprep.subr.mxu0 0.0
    %2088 = vmatpush1.msra.mxu0 0.0
    %2089 = vmatprep.subr.mxu0 0.0
    %2090 = vmatpush1.msra.mxu0 0.0
    %2091 = vmatprep.subr.mxu0 0.0
    %2092 = vmatpush1.msra.mxu0 0.0
    %2093 = vmatprep.subr.mxu0 0.0
    %2094 = vmatpush1.msra.mxu0 0.0
    %2095 = vmatprep.subr.mxu0 0.0
    %2096 = vmatpush1.msra.mxu0 0.0
    %2097 = vmatprep.subr.mxu0 0.0
    %2098 = vmatpush1.msra.mxu0 0.0
    %2099 = vmatprep.subr.mxu0 0.0
    %2100 = vmatpush1.msra.mxu0 0.0
    %2101 = vmatprep.subr.mxu0 0.0
    %2102 = vmatpush1.msra.mxu0 0.0
    %2103 = vmatprep.subr.mxu0 0.0
    %2104 = vmatpush1.msra.mxu0 0.0
    %2105 = vmatprep.subr.mxu0 0.0
    %2106 = vmatpush1.msra.mxu0 0.0
    %2107 = vmatprep.subr.mxu0 0.0
    %2108 = vmatpush1.msra.mxu0 0.0
    %2109 = vmatprep.subr.mxu0 0.0
    %2110 = vmatpush1.msra.mxu0 0.0
    %2111 = vmatprep.subr.mxu0 0.0
    %2112 = vmatpush1.msra.mxu0 0.0
    %2113 = vmatprep.subr.mxu0 0.0
    %2114 = vmatpush1.msra.mxu0 0.0
    %2115 = vmatprep.subr.mxu0 0.0
    %2116 = vmatpush1.msra.mxu0 0.0
    %2117 = vmatprep.subr.mxu0 0.0
    %2118 = vmatpush1.msra.mxu0 0.0
    %2119 = vmatprep.subr.mxu0 0.0
    %2120 = vmatpush1.msra.mxu0 0.0
    %2121 = vmatprep.subr.mxu0 0.0
    %2122 = vmatpush1.msra.mxu0 0.0
    %2123 = vmatprep.subr.mxu0 0.0
    %2124 = vmatpush1.msra.mxu0 0.0
    %2125 = vmatprep.subr.mxu0 0.0
    %2126 = vmatpush1.msra.mxu0 0.0
    %2127 = vmatprep.subr.mxu0 0.0
    %2128 = vmatpush1.msra.mxu0 0.0
    %2129 = vmatprep.subr.mxu0 0.0
    %2130 = vmatpush1.msra.mxu0 0.0
    %2131 = vmatprep.subr.mxu0 0.0
    %2132 = vmatpush1.msra.mxu0 0.0
    %2133 = vmatprep.mubr.f32.mxu0 0.0
    %2134 = vmatmul.mubr.f32.gmra.mrb[0].mxu0 %v2065
    %v2135 = vpop.f32.mrb[0].mxu0
    %v2136 = vadd.f32 0.0, %v2135
    %v2137 = vpop.f32.mrb[0].mxu0
    %2138 = vmatprep.mubr.f32.mxu0 0.0
    %2139 = vmatmul.mubr.f32.gmra.mrb[0].mxu0 %v2067
    %v2140 = vpop.f32.mrb[0].mxu0
    %v2141 = vadd.f32 0.0, %v2140
    %v2142 = vpop.f32.mrb[0].mxu0
    %2143 = vdwg.mxu0
    %2146 = vrot.lane.b32.xlu0 %v2136, 48
    %v2147 = vpop.permute.xlu0 %2146
    %2148 = vrot.lane.b32.xlu0 %v2141, 48
    %v2149 = vpop.permute.xlu0 %2148
    %vm2152 = vcmask 523648
    %2153 = vst.msk [vmem:[#allocation4] sm:$0xff] %vm2152, %v2147
    %2154 = vst.msk [vmem:[#allocation4 + $0x28] sm:$0xff] %vm2152, %v2149
    %2155 = vrot.lane.b32.xlu0 %v1951, 110
    %v2156 = vpop.permute.xlu0 %2155
    %2157 = vrot.lane.b32.xlu0 %v1953, 110
    %v2158 = vpop.permute.xlu0 %2157
    %v2159 = vsel %vm1964, %v2156, 0
    %v2161 = vsel %vm1964, %v2158, 0
    %2163 = vmatprep.subr.mxu0 0.0
    %2164 = vmatpush1.msra.mxu0 %v1973
    %2165 = vmatprep.subr.mxu0 0.0
    %2166 = vmatpush1.msra.mxu0 0.0
    %2167 = vmatprep.subr.mxu0 0.0
    %2168 = vmatpush1.msra.mxu0 0.0
    %2169 = vmatprep.subr.mxu0 0.0
    %2170 = vmatpush1.msra.mxu0 0.0
    %2171 = vmatprep.subr.mxu0 0.0
    %2172 = vmatpush1.msra.mxu0 0.0
    %2173 = vmatprep.subr.mxu0 0.0
    %2174 = vmatpush1.msra.mxu0 0.0
    %2175 = vmatprep.subr.mxu0 0.0
    %2176 = vmatpush1.msra.mxu0 0.0
    %2177 = vmatprep.subr.mxu0 0.0
    %2178 = vmatpush1.msra.mxu0 0.0
    %2179 = vmatprep.subr.mxu0 0.0
    %2180 = vmatpush1.msra.mxu0 0.0
    %2181 = vmatprep.subr.mxu0 0.0
    %2182 = vmatpush1.msra.mxu0 0.0
    %2183 = vmatprep.subr.mxu0 0.0
    %2184 = vmatpush1.msra.mxu0 0.0
    %2185 = vmatprep.subr.mxu0 0.0
    %2186 = vmatpush1.msra.mxu0 0.0
    %2187 = vmatprep.subr.mxu0 0.0
    %2188 = vmatpush1.msra.mxu0 0.0
    %2189 = vmatprep.subr.mxu0 0.0
    %2190 = vmatpush1.msra.mxu0 0.0
    %2191 = vmatprep.subr.mxu0 0.0
    %2192 = vmatpush1.msra.mxu0 0.0
    %2193 = vmatprep.subr.mxu0 0.0
    %2194 = vmatpush1.msra.mxu0 0.0
    %2195 = vmatprep.subr.mxu0 0.0
    %2196 = vmatpush1.msra.mxu0 0.0
    %2197 = vmatprep.subr.mxu0 0.0
    %2198 = vmatpush1.msra.mxu0 0.0
    %2199 = vmatprep.subr.mxu0 0.0
    %2200 = vmatpush1.msra.mxu0 0.0
    %2201 = vmatprep.subr.mxu0 0.0
    %2202 = vmatpush1.msra.mxu0 0.0
    %2203 = vmatprep.subr.mxu0 0.0
    %2204 = vmatpush1.msra.mxu0 0.0
    %2205 = vmatprep.subr.mxu0 0.0
    %2206 = vmatpush1.msra.mxu0 0.0
    %2207 = vmatprep.subr.mxu0 0.0
    %2208 = vmatpush1.msra.mxu0 0.0
    %2209 = vmatprep.subr.mxu0 0.0
    %2210 = vmatpush1.msra.mxu0 0.0
    %2211 = vmatprep.subr.mxu0 0.0
    %2212 = vmatpush1.msra.mxu0 0.0
    %2213 = vmatprep.subr.mxu0 0.0
    %2214 = vmatpush1.msra.mxu0 0.0
    %2215 = vmatprep.subr.mxu0 0.0
    %2216 = vmatpush1.msra.mxu0 0.0
    %2217 = vmatprep.subr.mxu0 0.0
    %2218 = vmatpush1.msra.mxu0 0.0
    %2219 = vmatprep.subr.mxu0 0.0
    %2220 = vmatpush1.msra.mxu0 0.0
    %2221 = vmatprep.subr.mxu0 0.0
    %2222 = vmatpush1.msra.mxu0 0.0
    %2223 = vmatprep.subr.mxu0 0.0
    %2224 = vmatpush1.msra.mxu0 0.0
    %2225 = vmatprep.subr.mxu0 0.0
    %2226 = vmatpush1.msra.mxu0 0.0
    %2227 = vmatprep.mubr.f32.mxu0 0.0
    %2228 = vmatmul.mubr.f32.gmra.mrb[0].mxu0 %v2159
    %v2229 = vpop.f32.mrb[0].mxu0
    %v2230 = vadd.f32 0.0, %v2229
    %v2231 = vpop.f32.mrb[0].mxu0
    %2232 = vmatprep.mubr.f32.mxu0 0.0
    %2233 = vmatmul.mubr.f32.gmra.mrb[0].mxu0 %v2161
    %v2234 = vpop.f32.mrb[0].mxu0
    %v2235 = vadd.f32 0.0, %v2234
    %v2236 = vpop.f32.mrb[0].mxu0
    %2237 = vdwg.mxu0
    %2240 = vrot.lane.b32.xlu0 %v2230, 80
    %v2241 = vpop.permute.xlu0 %2240
    %2242 = vrot.lane.b32.xlu0 %v2235, 80
    %v2243 = vpop.permute.xlu0 %2242
    %vm2246 = vcmask 786048
    %2247 = vst.msk [vmem:[#allocation4] sm:$0xff] %vm2246, %v2241
    %2248 = vst.msk [vmem:[#allocation4 + $0x28] sm:$0xff] %vm2246, %v2243
    %2249 = vrot.lane.b32.xlu0 %v1951, 101
    %v2250 = vpop.permute.xlu0 %2249
    %2251 = vrot.lane.b32.xlu0 %v1953, 101
    %v2252 = vpop.permute.xlu0 %2251
    %v2253 = vsel %vm1964, %v2250, 0
    %v2255 = vsel %vm1964, %v2252, 0
    %2257 = vmatprep.subr.mxu0 0.0
    %2258 = vmatpush1.msra.mxu0 %v1973
    %2259 = vmatprep.subr.mxu0 0.0
    %2260 = vmatpush1.msra.mxu0 0.0
    %2261 = vmatprep.subr.mxu0 0.0
    %2262 = vmatpush1.msra.mxu0 0.0
    %2263 = vmatprep.subr.mxu0 0.0
    %2264 = vmatpush1.msra.mxu0 0.0
    %2265 = vmatprep.subr.mxu0 0.0
    %2266 = vmatpush1.msra.mxu0 0.0
    %2267 = vmatprep.subr.mxu0 0.0
    %2268 = vmatpush1.msra.mxu0 0.0
    %2269 = vmatprep.subr.mxu0 0.0
    %2270 = vmatpush1.msra.mxu0 0.0
    %2271 = vmatprep.subr.mxu0 0.0
    %2272 = vmatpush1.msra.mxu0 0.0
    %2273 = vmatprep.subr.mxu0 0.0
    %2274 = vmatpush1.msra.mxu0 0.0
    %2275 = vmatprep.subr.mxu0 0.0
    %2276 = vmatpush1.msra.mxu0 0.0
    %2277 = vmatprep.subr.mxu0 0.0
    %2278 = vmatpush1.msra.mxu0 0.0
    %2279 = vmatprep.subr.mxu0 0.0
    %2280 = vmatpush1.msra.mxu0 0.0
    %2281 = vmatprep.subr.mxu0 0.0
    %2282 = vmatpush1.msra.mxu0 0.0
    %2283 = vmatprep.subr.mxu0 0.0
    %2284 = vmatpush1.msra.mxu0 0.0
    %2285 = vmatprep.subr.mxu0 0.0
    %2286 = vmatpush1.msra.mxu0 0.0
    %2287 = vmatprep.subr.mxu0 0.0
    %2288 = vmatpush1.msra.mxu0 0.0
    %2289 = vmatprep.subr.mxu0 0.0
    %2290 = vmatpush1.msra.mxu0 0.0
    %2291 = vmatprep.subr.mxu0 0.0
    %2292 = vmatpush1.msra.mxu0 0.0
    %2293 = vmatprep.subr.mxu0 0.0
    %2294 = vmatpush1.msra.mxu0 0.0
    %2295 = vmatprep.subr.mxu0 0.0
    %2296 = vmatpush1.msra.mxu0 0.0
    %2297 = vmatprep.subr.mxu0 0.0
    %2298 = vmatpush1.msra.mxu0 0.0
    %2299 = vmatprep.subr.mxu0 0.0
    %2300 = vmatpush1.msra.mxu0 0.0
    %2301 = vmatprep.subr.mxu0 0.0
    %2302 = vmatpush1.msra.mxu0 0.0
    %2303 = vmatprep.subr.mxu0 0.0
    %2304 = vmatpush1.msra.mxu0 0.0
    %2305 = vmatprep.subr.mxu0 0.0
    %2306 = vmatpush1.msra.mxu0 0.0
    %2307 = vmatprep.subr.mxu0 0.0
    %2308 = vmatpush1.msra.mxu0 0.0
    %2309 = vmatprep.subr.mxu0 0.0
    %2310 = vmatpush1.msra.mxu0 0.0
    %2311 = vmatprep.subr.mxu0 0.0
    %2312 = vmatpush1.msra.mxu0 0.0
    %2313 = vmatprep.subr.mxu0 0.0
    %2314 = vmatpush1.msra.mxu0 0.0
    %2315 = vmatprep.subr.mxu0 0.0
    %2316 = vmatpush1.msra.mxu0 0.0
    %2317 = vmatprep.subr.mxu0 0.0
    %2318 = vmatpush1.msra.mxu0 0.0
    %2319 = vmatprep.subr.mxu0 0.0
    %2320 = vmatpush1.msra.mxu0 0.0
    %2321 = vmatprep.mubr.f32.mxu0 0.0
    %2322 = vmatmul.mubr.f32.gmra.mrb[0].mxu0 %v2253
    %v2323 = vpop.f32.mrb[0].mxu0
    %v2324 = vadd.f32 0.0, %v2323
    %v2325 = vpop.f32.mrb[0].mxu0
    %2326 = vmatprep.mubr.f32.mxu0 0.0
    %2327 = vmatmul.mubr.f32.gmra.mrb[0].mxu0 %v2255
    %v2328 = vpop.f32.mrb[0].mxu0
    %v2329 = vadd.f32 0.0, %v2328
    %v2330 = vpop.f32.mrb[0].mxu0
    %2331 = vdwg.mxu0
    %2334 = vrot.lane.b32.xlu0 %v2324, 112
    %v2335 = vpop.permute.xlu0 %2334
    %2336 = vrot.lane.b32.xlu0 %v2329, 112
    %v2337 = vpop.permute.xlu0 %2336
    %vm2340 = vcmask 1048448
    %2341 = vst.msk [vmem:[#allocation4] sm:$0xff] %vm2340, %v2335
    %2342 = vst.msk [vmem:[#allocation4 + $0x28] sm:$0xff] %vm2340, %v2337
    %2343 = vrot.lane.b32.xlu0 %v1951, 92
    %v2344 = vpop.permute.xlu0 %2343
    %2345 = vrot.lane.b32.xlu0 %v1953, 92
    %v2346 = vpop.permute.xlu0 %2345
    %v2347 = vsel %vm1964, %v2344, 0
    %v2349 = vsel %vm1964, %v2346, 0
    %2351 = vmatprep.subr.mxu0 0.0
    %2352 = vmatpush1.msra.mxu0 %v1973
    %2353 = vmatprep.subr.mxu0 0.0
    %2354 = vmatpush1.msra.mxu0 0.0
    %2355 = vmatprep.subr.mxu0 0.0
    %2356 = vmatpush1.msra.mxu0 0.0
    %2357 = vmatprep.subr.mxu0 0.0
    %2358 = vmatpush1.msra.mxu0 0.0
    %2359 = vmatprep.subr.mxu0 0.0
    %2360 = vmatpush1.msra.mxu0 0.0
    %2361 = vmatprep.subr.mxu0 0.0
    %2362 = vmatpush1.msra.mxu0 0.0
    %2363 = vmatprep.subr.mxu0 0.0
    %2364 = vmatpush1.msra.mxu0 0.0
    %2365 = vmatprep.subr.mxu0 0.0
    %2366 = vmatpush1.msra.mxu0 0.0
    %2367 = vmatprep.subr.mxu0 0.0
    %2368 = vmatpush1.msra.mxu0 0.0
    %2369 = vmatprep.subr.mxu0 0.0
    %2370 = vmatpush1.msra.mxu0 0.0
    %2371 = vmatprep.subr.mxu0 0.0
    %2372 = vmatpush1.msra.mxu0 0.0
    %2373 = vmatprep.subr.mxu0 0.0
    %2374 = vmatpush1.msra.mxu0 0.0
    %2375 = vmatprep.subr.mxu0 0.0
    %2376 = vmatpush1.msra.mxu0 0.0
    %2377 = vmatprep.subr.mxu0 0.0
    %2378 = vmatpush1.msra.mxu0 0.0
    %2379 = vmatprep.subr.mxu0 0.0
    %2380 = vmatpush1.msra.mxu0 0.0
    %2381 = vmatprep.subr.mxu0 0.0
    %2382 = vmatpush1.msra.mxu0 0.0
    %2383 = vmatprep.subr.mxu0 0.0
    %2384 = vmatpush1.msra.mxu0 0.0
    %2385 = vmatprep.subr.mxu0 0.0
    %2386 = vmatpush1.msra.mxu0 0.0
    %2387 = vmatprep.subr.mxu0 0.0
    %2388 = vmatpush1.msra.mxu0 0.0
    %2389 = vmatprep.subr.mxu0 0.0
    %2390 = vmatpush1.msra.mxu0 0.0
    %2391 = vmatprep.subr.mxu0 0.0
    %2392 = vmatpush1.msra.mxu0 0.0
    %2393 = vmatprep.subr.mxu0 0.0
    %2394 = vmatpush1.msra.mxu0 0.0
    %2395 = vmatprep.subr.mxu0 0.0
    %2396 = vmatpush1.msra.mxu0 0.0
    %2397 = vmatprep.subr.mxu0 0.0
    %2398 = vmatpush1.msra.mxu0 0.0
    %2399 = vmatprep.subr.mxu0 0.0
    %2400 = vmatpush1.msra.mxu0 0.0
    %2401 = vmatprep.subr.mxu0 0.0
    %2402 = vmatpush1.msra.mxu0 0.0
    %2403 = vmatprep.subr.mxu0 0.0
    %2404 = vmatpush1.msra.mxu0 0.0
    %2405 = vmatprep.subr.mxu0 0.0
    %2406 = vmatpush1.msra.mxu0 0.0
    %2407 = vmatprep.subr.mxu0 0.0
    %2408 = vmatpush1.msra.mxu0 0.0
    %2409 = vmatprep.subr.mxu0 0.0
    %2410 = vmatpush1.msra.mxu0 0.0
    %2411 = vmatprep.subr.mxu0 0.0
    %2412 = vmatpush1.msra.mxu0 0.0
    %2413 = vmatprep.subr.mxu0 0.0
    %2414 = vmatpush1.msra.mxu0 0.0
    %2415 = vmatprep.mubr.f32.mxu0 0.0
    %2416 = vmatmul.mubr.f32.gmra.mrb[0].mxu0 %v2347
    %v2417 = vpop.f32.mrb[0].mxu0
    %v2418 = vadd.f32 0.0, %v2417
    %v2419 = vpop.f32.mrb[0].mxu0
    %2420 = vmatprep.mubr.f32.mxu0 0.0
    %2421 = vmatmul.mubr.f32.gmra.mrb[0].mxu0 %v2349
    %v2422 = vpop.f32.mrb[0].mxu0
    %v2423 = vadd.f32 0.0, %v2422
    %v2424 = vpop.f32.mrb[0].mxu0
    %2425 = vdwg.mxu0
    %2428 = vrot.lane.b32.xlu0 %v2418, 16
    %v2429 = vpop.permute.xlu0 %2428
    %2430 = vrot.lane.b32.xlu0 %v2423, 16
    %v2431 = vpop.permute.xlu0 %2430
    %2434 = vst.msk [vmem:[#allocation4 + $0x8] sm:$0xff] %vm2058, %v2429
    %2435 = vst.msk [vmem:[#allocation4 + $0x30] sm:$0xff] %vm2058, %v2431
    %2436 = vrot.lane.b32.xlu0 %v1951, 83
    %v2437 = vpop.permute.xlu0 %2436
    %2438 = vrot.lane.b32.xlu0 %v1953, 83
    %v2439 = vpop.permute.xlu0 %2438
    %v2440 = vsel %vm1964, %v2437, 0
    %v2442 = vsel %vm1964, %v2439, 0
    %2444 = vmatprep.subr.mxu0 0.0
    %2445 = vmatpush1.msra.mxu0 %v1973
    %2446 = vmatprep.subr.mxu0 0.0
    %2447 = vmatpush1.msra.mxu0 0.0
    %2448 = vmatprep.subr.mxu0 0.0
    %2449 = vmatpush1.msra.mxu0 0.0
    %2450 = vmatprep.subr.mxu0 0.0
    %2451 = vmatpush1.msra.mxu0 0.0
    %2452 = vmatprep.subr.mxu0 0.0
    %2453 = vmatpush1.msra.mxu0 0.0
    %2454 = vmatprep.subr.mxu0 0.0
    %2455 = vmatpush1.msra.mxu0 0.0
    %2456 = vmatprep.subr.mxu0 0.0
    %2457 = vmatpush1.msra.mxu0 0.0
    %2458 = vmatprep.subr.mxu0 0.0
    %2459 = vmatpush1.msra.mxu0 0.0
    %2460 = vmatprep.subr.mxu0 0.0
    %2461 = vmatpush1.msra.mxu0 0.0
    %2462 = vmatprep.subr.mxu0 0.0
    %2463 = vmatpush1.msra.mxu0 0.0
    %2464 = vmatprep.subr.mxu0 0.0
    %2465 = vmatpush1.msra.mxu0 0.0
    %2466 = vmatprep.subr.mxu0 0.0
    %2467 = vmatpush1.msra.mxu0 0.0
    %2468 = vmatprep.subr.mxu0 0.0
    %2469 = vmatpush1.msra.mxu0 0.0
    %2470 = vmatprep.subr.mxu0 0.0
    %2471 = vmatpush1.msra.mxu0 0.0
    %2472 = vmatprep.subr.mxu0 0.0
    %2473 = vmatpush1.msra.mxu0 0.0
    %2474 = vmatprep.subr.mxu0 0.0
    %2475 = vmatpush1.msra.mxu0 0.0
    %2476 = vmatprep.subr.mxu0 0.0
    %2477 = vmatpush1.msra.mxu0 0.0
    %2478 = vmatprep.subr.mxu0 0.0
    %2479 = vmatpush1.msra.mxu0 0.0
    %2480 = vmatprep.subr.mxu0 0.0
    %2481 = vmatpush1.msra.mxu0 0.0
    %2482 = vmatprep.subr.mxu0 0.0
    %2483 = vmatpush1.msra.mxu0 0.0
    %2484 = vmatprep.subr.mxu0 0.0
    %2485 = vmatpush1.msra.mxu0 0.0
    %2486 = vmatprep.subr.mxu0 0.0
    %2487 = vmatpush1.msra.mxu0 0.0
    %2488 = vmatprep.subr.mxu0 0.0
    %2489 = vmatpush1.msra.mxu0 0.0
    %2490 = vmatprep.subr.mxu0 0.0
    %2491 = vmatpush1.msra.mxu0 0.0
    %2492 = vmatprep.subr.mxu0 0.0
    %2493 = vmatpush1.msra.mxu0 0.0
    %2494 = vmatprep.subr.mxu0 0.0
    %2495 = vmatpush1.msra.mxu0 0.0
    %2496 = vmatprep.subr.mxu0 0.0
    %2497 = vmatpush1.msra.mxu0 0.0
    %2498 = vmatprep.subr.mxu0 0.0
    %2499 = vmatpush1.msra.mxu0 0.0
    %2500 = vmatprep.subr.mxu0 0.0
    %2501 = vmatpush1.msra.mxu0 0.0
    %2502 = vmatprep.subr.mxu0 0.0
    %2503 = vmatpush1.msra.mxu0 0.0
    %2504 = vmatprep.subr.mxu0 0.0
    %2505 = vmatpush1.msra.mxu0 0.0
    %2506 = vmatprep.subr.mxu0 0.0
    %2507 = vmatpush1.msra.mxu0 0.0
    %2508 = vmatprep.mubr.f32.mxu0 0.0
    %2509 = vmatmul.mubr.f32.gmra.mrb[0].mxu0 %v2440
    %v2510 = vpop.f32.mrb[0].mxu0
    %v2511 = vadd.f32 0.0, %v2510
    %v2512 = vpop.f32.mrb[0].mxu0
    %2513 = vmatprep.mubr.f32.mxu0 0.0
    %2514 = vmatmul.mubr.f32.gmra.mrb[0].mxu0 %v2442
    %v2515 = vpop.f32.mrb[0].mxu0
    %v2516 = vadd.f32 0.0, %v2515
    %v2517 = vpop.f32.mrb[0].mxu0
    %2518 = vdwg.mxu0
    %2521 = vrot.lane.b32.xlu0 %v2511, 48
    %v2522 = vpop.permute.xlu0 %2521
    %2523 = vrot.lane.b32.xlu0 %v2516, 48
    %v2524 = vpop.permute.xlu0 %2523
    %2527 = vst.msk [vmem:[#allocation4 + $0x8] sm:$0xff] %vm2152, %v2522
    %2528 = vst.msk [vmem:[#allocation4 + $0x30] sm:$0xff] %vm2152, %v2524
    %2529 = vrot.lane.b32.xlu0 %v1951, 74
    %v2530 = vpop.permute.xlu0 %2529
    %2531 = vrot.lane.b32.xlu0 %v1953, 74
    %v2532 = vpop.permute.xlu0 %2531
    %v2533 = vsel %vm1964, %v2530, 0
    %v2535 = vsel %vm1964, %v2532, 0
    %2537 = vmatprep.subr.mxu0 0.0
    %2538 = vmatpush1.msra.mxu0 %v1973
    %2539 = vmatprep.subr.mxu0 0.0
    %2540 = vmatpush1.msra.mxu0 0.0
    %2541 = vmatprep.subr.mxu0 0.0
    %2542 = vmatpush1.msra.mxu0 0.0
    %2543 = vmatprep.subr.mxu0 0.0
    %2544 = vmatpush1.msra.mxu0 0.0
    %2545 = vmatprep.subr.mxu0 0.0
    %2546 = vmatpush1.msra.mxu0 0.0
    %2547 = vmatprep.subr.mxu0 0.0
    %2548 = vmatpush1.msra.mxu0 0.0
    %2549 = vmatprep.subr.mxu0 0.0
    %2550 = vmatpush1.msra.mxu0 0.0
    %2551 = vmatprep.subr.mxu0 0.0
    %2552 = vmatpush1.msra.mxu0 0.0
    %2553 = vmatprep.subr.mxu0 0.0
    %2554 = vmatpush1.msra.mxu0 0.0
    %2555 = vmatprep.subr.mxu0 0.0
    %2556 = vmatpush1.msra.mxu0 0.0
    %2557 = vmatprep.subr.mxu0 0.0
    %2558 = vmatpush1.msra.mxu0 0.0
    %2559 = vmatprep.subr.mxu0 0.0
    %2560 = vmatpush1.msra.mxu0 0.0
    %2561 = vmatprep.subr.mxu0 0.0
    %2562 = vmatpush1.msra.mxu0 0.0
    %2563 = vmatprep.subr.mxu0 0.0
    %2564 = vmatpush1.msra.mxu0 0.0
    %2565 = vmatprep.subr.mxu0 0.0
    %2566 = vmatpush1.msra.mxu0 0.0
    %2567 = vmatprep.subr.mxu0 0.0
    %2568 = vmatpush1.msra.mxu0 0.0
    %2569 = vmatprep.subr.mxu0 0.0
    %2570 = vmatpush1.msra.mxu0 0.0
    %2571 = vmatprep.subr.mxu0 0.0
    %2572 = vmatpush1.msra.mxu0 0.0
    %2573 = vmatprep.subr.mxu0 0.0
    %2574 = vmatpush1.msra.mxu0 0.0
    %2575 = vmatprep.subr.mxu0 0.0
    %2576 = vmatpush1.msra.mxu0 0.0
    %2577 = vmatprep.subr.mxu0 0.0
    %2578 = vmatpush1.msra.mxu0 0.0
    %2579 = vmatprep.subr.mxu0 0.0
    %2580 = vmatpush1.msra.mxu0 0.0
    %2581 = vmatprep.subr.mxu0 0.0
    %2582 = vmatpush1.msra.mxu0 0.0
    %2583 = vmatprep.subr.mxu0 0.0
    %2584 = vmatpush1.msra.mxu0 0.0
    %2585 = vmatprep.subr.mxu0 0.0
    %2586 = vmatpush1.msra.mxu0 0.0
    %2587 = vmatprep.subr.mxu0 0.0
    %2588 = vmatpush1.msra.mxu0 0.0
    %2589 = vmatprep.subr.mxu0 0.0
    %2590 = vmatpush1.msra.mxu0 0.0
    %2591 = vmatprep.subr.mxu0 0.0
    %2592 = vmatpush1.msra.mxu0 0.0
    %2593 = vmatprep.subr.mxu0 0.0
    %2594 = vmatpush1.msra.mxu0 0.0
    %2595 = vmatprep.subr.mxu0 0.0
    %2596 = vmatpush1.msra.mxu0 0.0
    %2597 = vmatprep.subr.mxu0 0.0
    %2598 = vmatpush1.msra.mxu0 0.0
    %2599 = vmatprep.subr.mxu0 0.0
    %2600 = vmatpush1.msra.mxu0 0.0
    %2601 = vmatprep.mubr.f32.mxu0 0.0
    %2602 = vmatmul.mubr.f32.gmra.mrb[0].mxu0 %v2533
    %v2603 = vpop.f32.mrb[0].mxu0
    %v2604 = vadd.f32 0.0, %v2603
    %v2605 = vpop.f32.mrb[0].mxu0
    %2606 = vmatprep.mubr.f32.mxu0 0.0
    %2607 = vmatmul.mubr.f32.gmra.mrb[0].mxu0 %v2535
    %v2608 = vpop.f32.mrb[0].mxu0
    %v2609 = vadd.f32 0.0, %v2608
    %v2610 = vpop.f32.mrb[0].mxu0
    %2611 = vdwg.mxu0
    %2614 = vrot.lane.b32.xlu0 %v2604, 80
    %v2615 = vpop.permute.xlu0 %2614
    %2616 = vrot.lane.b32.xlu0 %v2609, 80
    %v2617 = vpop.permute.xlu0 %2616
    %2620 = vst.msk [vmem:[#allocation4 + $0x8] sm:$0xff] %vm2246, %v2615
    %2621 = vst.msk [vmem:[#allocation4 + $0x30] sm:$0xff] %vm2246, %v2617
    %2622 = vrot.lane.b32.xlu0 %v1951, 47
    %v2623 = vpop.permute.xlu0 %2622
    %2624 = vrot.lane.b32.xlu0 %v1953, 47
    %v2625 = vpop.permute.xlu0 %2624
    %v2626 = vsel %vm1964, %v2623, 0
    %v2628 = vsel %vm1964, %v2625, 0
    %2630 = vmatprep.subr.mxu0 0.0
    %2631 = vmatpush1.msra.mxu0 %v1973
    %2632 = vmatprep.subr.mxu0 0.0
    %2633 = vmatpush1.msra.mxu0 0.0
    %2634 = vmatprep.subr.mxu0 0.0
    %2635 = vmatpush1.msra.mxu0 0.0
    %2636 = vmatprep.subr.mxu0 0.0
    %2637 = vmatpush1.msra.mxu0 0.0
    %2638 = vmatprep.subr.mxu0 0.0
    %2639 = vmatpush1.msra.mxu0 0.0
    %2640 = vmatprep.subr.mxu0 0.0
    %2641 = vmatpush1.msra.mxu0 0.0
    %2642 = vmatprep.subr.mxu0 0.0
    %2643 = vmatpush1.msra.mxu0 0.0
    %2644 = vmatprep.subr.mxu0 0.0
    %2645 = vmatpush1.msra.mxu0 0.0
    %2646 = vmatprep.subr.mxu0 0.0
    %2647 = vmatpush1.msra.mxu0 0.0
    %2648 = vmatprep.subr.mxu0 0.0
    %2649 = vmatpush1.msra.mxu0 0.0
    %2650 = vmatprep.subr.mxu0 0.0
    %2651 = vmatpush1.msra.mxu0 0.0
    %2652 = vmatprep.subr.mxu0 0.0
    %2653 = vmatpush1.msra.mxu0 0.0
    %2654 = vmatprep.subr.mxu0 0.0
    %2655 = vmatpush1.msra.mxu0 0.0
    %2656 = vmatprep.subr.mxu0 0.0
    %2657 = vmatpush1.msra.mxu0 0.0
    %2658 = vmatprep.subr.mxu0 0.0
    %2659 = vmatpush1.msra.mxu0 0.0
    %2660 = vmatprep.subr.mxu0 0.0
    %2661 = vmatpush1.msra.mxu0 0.0
    %2662 = vmatprep.subr.mxu0 0.0
    %2663 = vmatpush1.msra.mxu0 0.0
    %2664 = vmatprep.subr.mxu0 0.0
    %2665 = vmatpush1.msra.mxu0 0.0
    %2666 = vmatprep.subr.mxu0 0.0
    %2667 = vmatpush1.msra.mxu0 0.0
    %2668 = vmatprep.subr.mxu0 0.0
    %2669 = vmatpush1.msra.mxu0 0.0
    %2670 = vmatprep.subr.mxu0 0.0
    %2671 = vmatpush1.msra.mxu0 0.0
    %2672 = vmatprep.subr.mxu0 0.0
    %2673 = vmatpush1.msra.mxu0 0.0
    %2674 = vmatprep.subr.mxu0 0.0
    %2675 = vmatpush1.msra.mxu0 0.0
    %2676 = vmatprep.subr.mxu0 0.0
    %2677 = vmatpush1.msra.mxu0 0.0
    %2678 = vmatprep.subr.mxu0 0.0
    %2679 = vmatpush1.msra.mxu0 0.0
    %2680 = vmatprep.subr.mxu0 0.0
    %2681 = vmatpush1.msra.mxu0 0.0
    %2682 = vmatprep.subr.mxu0 0.0
    %2683 = vmatpush1.msra.mxu0 0.0
    %2684 = vmatprep.subr.mxu0 0.0
    %2685 = vmatpush1.msra.mxu0 0.0
    %2686 = vmatprep.subr.mxu0 0.0
    %2687 = vmatpush1.msra.mxu0 0.0
    %2688 = vmatprep.subr.mxu0 0.0
    %2689 = vmatpush1.msra.mxu0 0.0
    %2690 = vmatprep.subr.mxu0 0.0
    %2691 = vmatpush1.msra.mxu0 0.0
    %2692 = vmatprep.subr.mxu0 0.0
    %2693 = vmatpush1.msra.mxu0 0.0
    %2694 = vmatprep.mubr.f32.mxu0 0.0
    %2695 = vmatmul.mubr.f32.gmra.mrb[0].mxu0 %v2626
    %v2696 = vpop.f32.mrb[0].mxu0
    %v2697 = vadd.f32 0.0, %v2696
    %v2698 = vpop.f32.mrb[0].mxu0
    %2699 = vmatprep.mubr.f32.mxu0 0.0
    %2700 = vmatmul.mubr.f32.gmra.mrb[0].mxu0 %v2628
    %v2701 = vpop.f32.mrb[0].mxu0
    %v2702 = vadd.f32 0.0, %v2701
    %v2703 = vpop.f32.mrb[0].mxu0
    %2704 = vdwg.mxu0
    %2707 = vrot.lane.b32.xlu0 %v2697, 16
    %v2708 = vpop.permute.xlu0 %2707
    %2709 = vrot.lane.b32.xlu0 %v2702, 16
    %v2710 = vpop.permute.xlu0 %2709
    %2713 = vst.msk [vmem:[#allocation4 + $0x10] sm:$0xff] %vm2058, %v2708
    %2714 = vst.msk [vmem:[#allocation4 + $0x38] sm:$0xff] %vm2058, %v2710
    %2715 = vrot.lane.b32.xlu0 %v1951, 38
    %v2716 = vpop.permute.xlu0 %2715
    %2717 = vrot.lane.b32.xlu0 %v1953, 38
    %v2718 = vpop.permute.xlu0 %2717
    %v2719 = vsel %vm1964, %v2716, 0
    %v2721 = vsel %vm1964, %v2718, 0
    %2723 = vmatprep.subr.mxu0 0.0
    %2724 = vmatpush1.msra.mxu0 %v1973
    %2725 = vmatprep.subr.mxu0 0.0
    %2726 = vmatpush1.msra.mxu0 0.0
    %2727 = vmatprep.subr.mxu0 0.0
    %2728 = vmatpush1.msra.mxu0 0.0
    %2729 = vmatprep.subr.mxu0 0.0
    %2730 = vmatpush1.msra.mxu0 0.0
    %2731 = vmatprep.subr.mxu0 0.0
    %2732 = vmatpush1.msra.mxu0 0.0
    %2733 = vmatprep.subr.mxu0 0.0
    %2734 = vmatpush1.msra.mxu0 0.0
    %2735 = vmatprep.subr.mxu0 0.0
    %2736 = vmatpush1.msra.mxu0 0.0
    %2737 = vmatprep.subr.mxu0 0.0
    %2738 = vmatpush1.msra.mxu0 0.0
    %2739 = vmatprep.subr.mxu0 0.0
    %2740 = vmatpush1.msra.mxu0 0.0
    %2741 = vmatprep.subr.mxu0 0.0
    %2742 = vmatpush1.msra.mxu0 0.0
    %2743 = vmatprep.subr.mxu0 0.0
    %2744 = vmatpush1.msra.mxu0 0.0
    %2745 = vmatprep.subr.mxu0 0.0
    %2746 = vmatpush1.msra.mxu0 0.0
    %2747 = vmatprep.subr.mxu0 0.0
    %2748 = vmatpush1.msra.mxu0 0.0
    %2749 = vmatprep.subr.mxu0 0.0
    %2750 = vmatpush1.msra.mxu0 0.0
    %2751 = vmatprep.subr.mxu0 0.0
    %2752 = vmatpush1.msra.mxu0 0.0
    %2753 = vmatprep.subr.mxu0 0.0
    %2754 = vmatpush1.msra.mxu0 0.0
    %2755 = vmatprep.subr.mxu0 0.0
    %2756 = vmatpush1.msra.mxu0 0.0
    %2757 = vmatprep.subr.mxu0 0.0
    %2758 = vmatpush1.msra.mxu0 0.0
    %2759 = vmatprep.subr.mxu0 0.0
    %2760 = vmatpush1.msra.mxu0 0.0
    %2761 = vmatprep.subr.mxu0 0.0
    %2762 = vmatpush1.msra.mxu0 0.0
    %2763 = vmatprep.subr.mxu0 0.0
    %2764 = vmatpush1.msra.mxu0 0.0
    %2765 = vmatprep.subr.mxu0 0.0
    %2766 = vmatpush1.msra.mxu0 0.0
    %2767 = vmatprep.subr.mxu0 0.0
    %2768 = vmatpush1.msra.mxu0 0.0
    %2769 = vmatprep.subr.mxu0 0.0
    %2770 = vmatpush1.msra.mxu0 0.0
    %2771 = vmatprep.subr.mxu0 0.0
    %2772 = vmatpush1.msra.mxu0 0.0
    %2773 = vmatprep.subr.mxu0 0.0
    %2774 = vmatpush1.msra.mxu0 0.0
    %2775 = vmatprep.subr.mxu0 0.0
    %2776 = vmatpush1.msra.mxu0 0.0
    %2777 = vmatprep.subr.mxu0 0.0
    %2778 = vmatpush1.msra.mxu0 0.0
    %2779 = vmatprep.subr.mxu0 0.0
    %2780 = vmatpush1.msra.mxu0 0.0
    %2781 = vmatprep.subr.mxu0 0.0
    %2782 = vmatpush1.msra.mxu0 0.0
    %2783 = vmatprep.subr.mxu0 0.0
    %2784 = vmatpush1.msra.mxu0 0.0
    %2785 = vmatprep.subr.mxu0 0.0
    %2786 = vmatpush1.msra.mxu0 0.0
    %2787 = vmatprep.mubr.f32.mxu0 0.0
    %2788 = vmatmul.mubr.f32.gmra.mrb[0].mxu0 %v2719
    %v2789 = vpop.f32.mrb[0].mxu0
    %v2790 = vadd.f32 0.0, %v2789
    %v2791 = vpop.f32.mrb[0].mxu0
    %2792 = vmatprep.mubr.f32.mxu0 0.0
    %2793 = vmatmul.mubr.f32.gmra.mrb[0].mxu0 %v2721
    %v2794 = vpop.f32.mrb[0].mxu0
    %v2795 = vadd.f32 0.0, %v2794
    %v2796 = vpop.f32.mrb[0].mxu0
    %2797 = vdwg.mxu0
    %2800 = vrot.lane.b32.xlu0 %v2790, 48
    %v2801 = vpop.permute.xlu0 %2800
    %2802 = vrot.lane.b32.xlu0 %v2795, 48
    %v2803 = vpop.permute.xlu0 %2802
    %2806 = vst.msk [vmem:[#allocation4 + $0x10] sm:$0xff] %vm2152, %v2801
    %2807 = vst.msk [vmem:[#allocation4 + $0x38] sm:$0xff] %vm2152, %v2803
    %2808 = vrot.lane.b32.xlu0 %v1951, 29
    %v2809 = vpop.permute.xlu0 %2808
    %2810 = vrot.lane.b32.xlu0 %v1953, 29
    %v2811 = vpop.permute.xlu0 %2810
    %v2812 = vsel %vm1964, %v2809, 0
    %v2814 = vsel %vm1964, %v2811, 0
    %2816 = vmatprep.subr.mxu0 0.0
    %2817 = vmatpush1.msra.mxu0 %v1973
    %2818 = vmatprep.subr.mxu0 0.0
    %2819 = vmatpush1.msra.mxu0 0.0
    %2820 = vmatprep.subr.mxu0 0.0
    %2821 = vmatpush1.msra.mxu0 0.0
    %2822 = vmatprep.subr.mxu0 0.0
    %2823 = vmatpush1.msra.mxu0 0.0
    %2824 = vmatprep.subr.mxu0 0.0
    %2825 = vmatpush1.msra.mxu0 0.0
    %2826 = vmatprep.subr.mxu0 0.0
    %2827 = vmatpush1.msra.mxu0 0.0
    %2828 = vmatprep.subr.mxu0 0.0
    %2829 = vmatpush1.msra.mxu0 0.0
    %2830 = vmatprep.subr.mxu0 0.0
    %2831 = vmatpush1.msra.mxu0 0.0
    %2832 = vmatprep.subr.mxu0 0.0
    %2833 = vmatpush1.msra.mxu0 0.0
    %2834 = vmatprep.subr.mxu0 0.0
    %2835 = vmatpush1.msra.mxu0 0.0
    %2836 = vmatprep.subr.mxu0 0.0
    %2837 = vmatpush1.msra.mxu0 0.0
    %2838 = vmatprep.subr.mxu0 0.0
    %2839 = vmatpush1.msra.mxu0 0.0
    %2840 = vmatprep.subr.mxu0 0.0
    %2841 = vmatpush1.msra.mxu0 0.0
    %2842 = vmatprep.subr.mxu0 0.0
    %2843 = vmatpush1.msra.mxu0 0.0
    %2844 = vmatprep.subr.mxu0 0.0
    %2845 = vmatpush1.msra.mxu0 0.0
    %2846 = vmatprep.subr.mxu0 0.0
    %2847 = vmatpush1.msra.mxu0 0.0
    %2848 = vmatprep.subr.mxu0 0.0
    %2849 = vmatpush1.msra.mxu0 0.0
    %2850 = vmatprep.subr.mxu0 0.0
    %2851 = vmatpush1.msra.mxu0 0.0
    %2852 = vmatprep.subr.mxu0 0.0
    %2853 = vmatpush1.msra.mxu0 0.0
    %2854 = vmatprep.subr.mxu0 0.0
    %2855 = vmatpush1.msra.mxu0 0.0
    %2856 = vmatprep.subr.mxu0 0.0
    %2857 = vmatpush1.msra.mxu0 0.0
    %2858 = vmatprep.subr.mxu0 0.0
    %2859 = vmatpush1.msra.mxu0 0.0
    %2860 = vmatprep.subr.mxu0 0.0
    %2861 = vmatpush1.msra.mxu0 0.0
    %2862 = vmatprep.subr.mxu0 0.0
    %2863 = vmatpush1.msra.mxu0 0.0
    %2864 = vmatprep.subr.mxu0 0.0
    %2865 = vmatpush1.msra.mxu0 0.0
    %2866 = vmatprep.subr.mxu0 0.0
    %2867 = vmatpush1.msra.mxu0 0.0
    %2868 = vmatprep.subr.mxu0 0.0
    %2869 = vmatpush1.msra.mxu0 0.0
    %2870 = vmatprep.subr.mxu0 0.0
    %2871 = vmatpush1.msra.mxu0 0.0
    %2872 = vmatprep.subr.mxu0 0.0
    %2873 = vmatpush1.msra.mxu0 0.0
    %2874 = vmatprep.subr.mxu0 0.0
    %2875 = vmatpush1.msra.mxu0 0.0
    %2876 = vmatprep.subr.mxu0 0.0
    %2877 = vmatpush1.msra.mxu0 0.0
    %2878 = vmatprep.subr.mxu0 0.0
    %2879 = vmatpush1.msra.mxu0 0.0
    %2880 = vmatprep.mubr.f32.mxu0 0.0
    %2881 = vmatmul.mubr.f32.gmra.mrb[0].mxu0 %v2812
    %v2882 = vpop.f32.mrb[0].mxu0
    %v2883 = vadd.f32 0.0, %v2882
    %v2884 = vpop.f32.mrb[0].mxu0
    %2885 = vmatprep.mubr.f32.mxu0 0.0
    %2886 = vmatmul.mubr.f32.gmra.mrb[0].mxu0 %v2814
    %v2887 = vpop.f32.mrb[0].mxu0
    %v2888 = vadd.f32 0.0, %v2887
    %v2889 = vpop.f32.mrb[0].mxu0
    %2890 = vdwg.mxu0
    %2893 = vrot.lane.b32.xlu0 %v2883, 80
    %v2894 = vpop.permute.xlu0 %2893
    %2895 = vrot.lane.b32.xlu0 %v2888, 80
    %v2896 = vpop.permute.xlu0 %2895
    %2899 = vst.msk [vmem:[#allocation4 + $0x10] sm:$0xff] %vm2246, %v2894
    %2900 = vst.msk [vmem:[#allocation4 + $0x38] sm:$0xff] %vm2246, %v2896
    %2901 = vrot.lane.b32.xlu0 %v1951, 20
    %v2902 = vpop.permute.xlu0 %2901
    %2903 = vrot.lane.b32.xlu0 %v1953, 20
    %v2904 = vpop.permute.xlu0 %2903
    %v2905 = vsel %vm1964, %v2902, 0
    %v2907 = vsel %vm1964, %v2904, 0
    %2909 = vmatprep.subr.mxu0 0.0
    %2910 = vmatpush1.msra.mxu0 %v1973
    %2911 = vmatprep.subr.mxu0 0.0
    %2912 = vmatpush1.msra.mxu0 0.0
    %2913 = vmatprep.subr.mxu0 0.0
    %2914 = vmatpush1.msra.mxu0 0.0
    %2915 = vmatprep.subr.mxu0 0.0
    %2916 = vmatpush1.msra.mxu0 0.0
    %2917 = vmatprep.subr.mxu0 0.0
    %2918 = vmatpush1.msra.mxu0 0.0
    %2919 = vmatprep.subr.mxu0 0.0
    %2920 = vmatpush1.msra.mxu0 0.0
    %2921 = vmatprep.subr.mxu0 0.0
    %2922 = vmatpush1.msra.mxu0 0.0
    %2923 = vmatprep.subr.mxu0 0.0
    %2924 = vmatpush1.msra.mxu0 0.0
    %2925 = vmatprep.subr.mxu0 0.0
    %2926 = vmatpush1.msra.mxu0 0.0
    %2927 = vmatprep.subr.mxu0 0.0
    %2928 = vmatpush1.msra.mxu0 0.0
    %2929 = vmatprep.subr.mxu0 0.0
    %2930 = vmatpush1.msra.mxu0 0.0
    %2931 = vmatprep.subr.mxu0 0.0
    %2932 = vmatpush1.msra.mxu0 0.0
    %2933 = vmatprep.subr.mxu0 0.0
    %2934 = vmatpush1.msra.mxu0 0.0
    %2935 = vmatprep.subr.mxu0 0.0
    %2936 = vmatpush1.msra.mxu0 0.0
    %2937 = vmatprep.subr.mxu0 0.0
    %2938 = vmatpush1.msra.mxu0 0.0
    %2939 = vmatprep.subr.mxu0 0.0
    %2940 = vmatpush1.msra.mxu0 0.0
    %2941 = vmatprep.subr.mxu0 0.0
    %2942 = vmatpush1.msra.mxu0 0.0
    %2943 = vmatprep.subr.mxu0 0.0
    %2944 = vmatpush1.msra.mxu0 0.0
    %2945 = vmatprep.subr.mxu0 0.0
    %2946 = vmatpush1.msra.mxu0 0.0
    %2947 = vmatprep.subr.mxu0 0.0
    %2948 = vmatpush1.msra.mxu0 0.0
    %2949 = vmatprep.subr.mxu0 0.0
    %2950 = vmatpush1.msra.mxu0 0.0
    %2951 = vmatprep.subr.mxu0 0.0
    %2952 = vmatpush1.msra.mxu0 0.0
    %2953 = vmatprep.subr.mxu0 0.0
    %2954 = vmatpush1.msra.mxu0 0.0
    %2955 = vmatprep.subr.mxu0 0.0
    %2956 = vmatpush1.msra.mxu0 0.0
    %2957 = vmatprep.subr.mxu0 0.0
    %2958 = vmatpush1.msra.mxu0 0.0
    %2959 = vmatprep.subr.mxu0 0.0
    %2960 = vmatpush1.msra.mxu0 0.0
    %2961 = vmatprep.subr.mxu0 0.0
    %2962 = vmatpush1.msra.mxu0 0.0
    %2963 = vmatprep.subr.mxu0 0.0
    %2964 = vmatpush1.msra.mxu0 0.0
    %2965 = vmatprep.subr.mxu0 0.0
    %2966 = vmatpush1.msra.mxu0 0.0
    %2967 = vmatprep.subr.mxu0 0.0
    %2968 = vmatpush1.msra.mxu0 0.0
    %2969 = vmatprep.subr.mxu0 0.0
    %2970 = vmatpush1.msra.mxu0 0.0
    %2971 = vmatprep.subr.mxu0 0.0
    %2972 = vmatpush1.msra.mxu0 0.0
    %2973 = vmatprep.mubr.f32.mxu0 0.0
    %2974 = vmatmul.mubr.f32.gmra.mrb[0].mxu0 %v2905
    %v2975 = vpop.f32.mrb[0].mxu0
    %v2976 = vadd.f32 0.0, %v2975
    %v2977 = vpop.f32.mrb[0].mxu0
    %2978 = vmatprep.mubr.f32.mxu0 0.0
    %2979 = vmatmul.mubr.f32.gmra.mrb[0].mxu0 %v2907
    %v2980 = vpop.f32.mrb[0].mxu0
    %v2981 = vadd.f32 0.0, %v2980
    %v2982 = vpop.f32.mrb[0].mxu0
    %2983 = vdwg.mxu0
    %2986 = vrot.lane.b32.xlu0 %v2976, 112
    %v2987 = vpop.permute.xlu0 %2986
    %2988 = vrot.lane.b32.xlu0 %v2981, 112
    %v2989 = vpop.permute.xlu0 %2988
    %2992 = vst.msk [vmem:[#allocation4 + $0x10] sm:$0xff] %vm2340, %v2987
    %2993 = vst.msk [vmem:[#allocation4 + $0x38] sm:$0xff] %vm2340, %v2989
    %2994 = vrot.lane.b32.xlu0 %v1951, 11
    %v2995 = vpop.permute.xlu0 %2994
    %2996 = vrot.lane.b32.xlu0 %v1953, 11
    %v2997 = vpop.permute.xlu0 %2996
    %v2998 = vsel %vm1964, %v2995, 0
    %v3000 = vsel %vm1964, %v2997, 0
    %3002 = vmatprep.subr.mxu0 0.0
    %3003 = vmatpush1.msra.mxu0 %v1973
    %3004 = vmatprep.subr.mxu0 0.0
    %3005 = vmatpush1.msra.mxu0 0.0
    %3006 = vmatprep.subr.mxu0 0.0
    %3007 = vmatpush1.msra.mxu0 0.0
    %3008 = vmatprep.subr.mxu0 0.0
    %3009 = vmatpush1.msra.mxu0 0.0
    %3010 = vmatprep.subr.mxu0 0.0
    %3011 = vmatpush1.msra.mxu0 0.0
    %3012 = vmatprep.subr.mxu0 0.0
    %3013 = vmatpush1.msra.mxu0 0.0
    %3014 = vmatprep.subr.mxu0 0.0
    %3015 = vmatpush1.msra.mxu0 0.0
    %3016 = vmatprep.subr.mxu0 0.0
    %3017 = vmatpush1.msra.mxu0 0.0
    %3018 = vmatprep.subr.mxu0 0.0
    %3019 = vmatpush1.msra.mxu0 0.0
    %3020 = vmatprep.subr.mxu0 0.0
    %3021 = vmatpush1.msra.mxu0 0.0
    %3022 = vmatprep.subr.mxu0 0.0
    %3023 = vmatpush1.msra.mxu0 0.0
    %3024 = vmatprep.subr.mxu0 0.0
    %3025 = vmatpush1.msra.mxu0 0.0
    %3026 = vmatprep.subr.mxu0 0.0
    %3027 = vmatpush1.msra.mxu0 0.0
    %3028 = vmatprep.subr.mxu0 0.0
    %3029 = vmatpush1.msra.mxu0 0.0
    %3030 = vmatprep.subr.mxu0 0.0
    %3031 = vmatpush1.msra.mxu0 0.0
    %3032 = vmatprep.subr.mxu0 0.0
    %3033 = vmatpush1.msra.mxu0 0.0
    %3034 = vmatprep.subr.mxu0 0.0
    %3035 = vmatpush1.msra.mxu0 0.0
    %3036 = vmatprep.subr.mxu0 0.0
    %3037 = vmatpush1.msra.mxu0 0.0
    %3038 = vmatprep.subr.mxu0 0.0
    %3039 = vmatpush1.msra.mxu0 0.0
    %3040 = vmatprep.subr.mxu0 0.0
    %3041 = vmatpush1.msra.mxu0 0.0
    %3042 = vmatprep.subr.mxu0 0.0
    %3043 = vmatpush1.msra.mxu0 0.0
    %3044 = vmatprep.subr.mxu0 0.0
    %3045 = vmatpush1.msra.mxu0 0.0
    %3046 = vmatprep.subr.mxu0 0.0
    %3047 = vmatpush1.msra.mxu0 0.0
    %3048 = vmatprep.subr.mxu0 0.0
    %3049 = vmatpush1.msra.mxu0 0.0
    %3050 = vmatprep.subr.mxu0 0.0
    %3051 = vmatpush1.msra.mxu0 0.0
    %3052 = vmatprep.subr.mxu0 0.0
    %3053 = vmatpush1.msra.mxu0 0.0
    %3054 = vmatprep.subr.mxu0 0.0
    %3055 = vmatpush1.msra.mxu0 0.0
    %3056 = vmatprep.subr.mxu0 0.0
    %3057 = vmatpush1.msra.mxu0 0.0
    %3058 = vmatprep.subr.mxu0 0.0
    %3059 = vmatpush1.msra.mxu0 0.0
    %3060 = vmatprep.subr.mxu0 0.0
    %3061 = vmatpush1.msra.mxu0 0.0
    %3062 = vmatprep.subr.mxu0 0.0
    %3063 = vmatpush1.msra.mxu0 0.0
    %3064 = vmatprep.subr.mxu0 0.0
    %3065 = vmatpush1.msra.mxu0 0.0
    %3066 = vmatprep.mubr.f32.mxu0 0.0
    %3067 = vmatmul.mubr.f32.gmra.mrb[0].mxu0 %v2998
    %v3068 = vpop.f32.mrb[0].mxu0
    %v3069 = vadd.f32 0.0, %v3068
    %v3070 = vpop.f32.mrb[0].mxu0
    %3071 = vmatprep.mubr.f32.mxu0 0.0
    %3072 = vmatmul.mubr.f32.gmra.mrb[0].mxu0 %v3000
    %v3073 = vpop.f32.mrb[0].mxu0
    %v3074 = vadd.f32 0.0, %v3073
    %v3075 = vpop.f32.mrb[0].mxu0
    %3076 = vdwg.mxu0
    %3079 = vrot.lane.b32.xlu0 %v3069, 16
    %v3080 = vpop.permute.xlu0 %3079
    %3081 = vrot.lane.b32.xlu0 %v3074, 16
    %v3082 = vpop.permute.xlu0 %3081
    %3085 = vst.msk [vmem:[#allocation4 + $0x18] sm:$0xff] %vm2058, %v3080
    %3086 = vst.msk [vmem:[#allocation4 + $0x40] sm:$0xff] %vm2058, %v3082
    %3089 = vrot.lane.b32.xlu0 %v1951, 2
    %v3090 = vpop.permute.xlu0 %3089
    %3091 = vrot.lane.b32.xlu0 %v1952, 2
    %v3092 = vpop.permute.xlu0 %3091
    %3093 = vrot.lane.b32.xlu0 %v1953, 2
    %v3094 = vpop.permute.xlu0 %3093
    %3095 = vrot.lane.b32.xlu0 %v1954, 2
    %v3096 = vpop.permute.xlu0 %3095
    %vm3097 = vcmask 15360
    %v3098 = vsel %vm3097, %v3090, %v3092
    %v3099 = vsel %vm3097, %v3094, %v3096
    %v3100 = vsel %vm1964, %v3098, 0
    %v3102 = vsel %vm1964, %v3099, 0
    %3104 = vmatprep.subr.mxu0 0.0
    %3105 = vmatpush1.msra.mxu0 %v1973
    %3106 = vmatprep.subr.mxu0 0.0
    %3107 = vmatpush1.msra.mxu0 0.0
    %3108 = vmatprep.subr.mxu0 0.0
    %3109 = vmatpush1.msra.mxu0 0.0
    %3110 = vmatprep.subr.mxu0 0.0
    %3111 = vmatpush1.msra.mxu0 0.0
    %3112 = vmatprep.subr.mxu0 0.0
    %3113 = vmatpush1.msra.mxu0 0.0
    %3114 = vmatprep.subr.mxu0 0.0
    %3115 = vmatpush1.msra.mxu0 0.0
    %3116 = vmatprep.subr.mxu0 0.0
    %3117 = vmatpush1.msra.mxu0 0.0
    %3118 = vmatprep.subr.mxu0 0.0
    %3119 = vmatpush1.msra.mxu0 0.0
    %3120 = vmatprep.subr.mxu0 0.0
    %3121 = vmatpush1.msra.mxu0 0.0
    %3122 = vmatprep.subr.mxu0 0.0
    %3123 = vmatpush1.msra.mxu0 0.0
    %3124 = vmatprep.subr.mxu0 0.0
    %3125 = vmatpush1.msra.mxu0 0.0
    %3126 = vmatprep.subr.mxu0 0.0
    %3127 = vmatpush1.msra.mxu0 0.0
    %3128 = vmatprep.subr.mxu0 0.0
    %3129 = vmatpush1.msra.mxu0 0.0
    %3130 = vmatprep.subr.mxu0 0.0
    %3131 = vmatpush1.msra.mxu0 0.0
    %3132 = vmatprep.subr.mxu0 0.0
    %3133 = vmatpush1.msra.mxu0 0.0
    %3134 = vmatprep.subr.mxu0 0.0
    %3135 = vmatpush1.msra.mxu0 0.0
    %3136 = vmatprep.subr.mxu0 0.0
    %3137 = vmatpush1.msra.mxu0 0.0
    %3138 = vmatprep.subr.mxu0 0.0
    %3139 = vmatpush1.msra.mxu0 0.0
    %3140 = vmatprep.subr.mxu0 0.0
    %3141 = vmatpush1.msra.mxu0 0.0
    %3142 = vmatprep.subr.mxu0 0.0
    %3143 = vmatpush1.msra.mxu0 0.0
    %3144 = vmatprep.subr.mxu0 0.0
    %3145 = vmatpush1.msra.mxu0 0.0
    %3146 = vmatprep.subr.mxu0 0.0
    %3147 = vmatpush1.msra.mxu0 0.0
    %3148 = vmatprep.subr.mxu0 0.0
    %3149 = vmatpush1.msra.mxu0 0.0
    %3150 = vmatprep.subr.mxu0 0.0
    %3151 = vmatpush1.msra.mxu0 0.0
    %3152 = vmatprep.subr.mxu0 0.0
    %3153 = vmatpush1.msra.mxu0 0.0
    %3154 = vmatprep.subr.mxu0 0.0
    %3155 = vmatpush1.msra.mxu0 0.0
    %3156 = vmatprep.subr.mxu0 0.0
    %3157 = vmatpush1.msra.mxu0 0.0
    %3158 = vmatprep.subr.mxu0 0.0
    %3159 = vmatpush1.msra.mxu0 0.0
    %3160 = vmatprep.subr.mxu0 0.0
    %3161 = vmatpush1.msra.mxu0 0.0
    %3162 = vmatprep.subr.mxu0 0.0
    %3163 = vmatpush1.msra.mxu0 0.0
    %3164 = vmatprep.subr.mxu0 0.0
    %3165 = vmatpush1.msra.mxu0 0.0
    %3166 = vmatprep.subr.mxu0 0.0
    %3167 = vmatpush1.msra.mxu0 0.0
    %3168 = vmatprep.mubr.f32.mxu0 0.0
    %3169 = vmatmul.mubr.f32.gmra.mrb[0].mxu0 %v3100
    %v3170 = vpop.f32.mrb[0].mxu0
    %v3171 = vadd.f32 0.0, %v3170
    %v3172 = vpop.f32.mrb[0].mxu0
    %3173 = vmatprep.mubr.f32.mxu0 0.0
    %3174 = vmatmul.mubr.f32.gmra.mrb[0].mxu0 %v3102
    %v3175 = vpop.f32.mrb[0].mxu0
    %v3176 = vadd.f32 0.0, %v3175
    %v3177 = vpop.f32.mrb[0].mxu0
    %3178 = vdwg.mxu0
    %3181 = vrot.lane.b32.xlu0 %v3171, 48
    %v3182 = vpop.permute.xlu0 %3181
    %3183 = vrot.lane.b32.xlu0 %v3176, 48
    %v3184 = vpop.permute.xlu0 %3183
    %3187 = vst.msk [vmem:[#allocation4 + $0x18] sm:$0xff] %vm2152, %v3182
    %3188 = vst.msk [vmem:[#allocation4 + $0x40] sm:$0xff] %vm2152, %v3184
    %3189 = vrot.lane.b32.xlu0 %v1952, 121
    %v3190 = vpop.permute.xlu0 %3189
    %3191 = vrot.lane.b32.xlu0 %v1954, 121
    %v3192 = vpop.permute.xlu0 %3191
    %v3193 = vsel %vm1964, %v3190, 0
    %v3195 = vsel %vm1964, %v3192, 0
    %3197 = vmatprep.subr.mxu0 0.0
    %3198 = vmatpush1.msra.mxu0 %v1973
    %3199 = vmatprep.subr.mxu0 0.0
    %3200 = vmatpush1.msra.mxu0 0.0
    %3201 = vmatprep.subr.mxu0 0.0
    %3202 = vmatpush1.msra.mxu0 0.0
    %3203 = vmatprep.subr.mxu0 0.0
    %3204 = vmatpush1.msra.mxu0 0.0
    %3205 = vmatprep.subr.mxu0 0.0
    %3206 = vmatpush1.msra.mxu0 0.0
    %3207 = vmatprep.subr.mxu0 0.0
    %3208 = vmatpush1.msra.mxu0 0.0
    %3209 = vmatprep.subr.mxu0 0.0
    %3210 = vmatpush1.msra.mxu0 0.0
    %3211 = vmatprep.subr.mxu0 0.0
    %3212 = vmatpush1.msra.mxu0 0.0
    %3213 = vmatprep.subr.mxu0 0.0
    %3214 = vmatpush1.msra.mxu0 0.0
    %3215 = vmatprep.subr.mxu0 0.0
    %3216 = vmatpush1.msra.mxu0 0.0
    %3217 = vmatprep.subr.mxu0 0.0
    %3218 = vmatpush1.msra.mxu0 0.0
    %3219 = vmatprep.subr.mxu0 0.0
    %3220 = vmatpush1.msra.mxu0 0.0
    %3221 = vmatprep.subr.mxu0 0.0
    %3222 = vmatpush1.msra.mxu0 0.0
    %3223 = vmatprep.subr.mxu0 0.0
    %3224 = vmatpush1.msra.mxu0 0.0
    %3225 = vmatprep.subr.mxu0 0.0
    %3226 = vmatpush1.msra.mxu0 0.0
    %3227 = vmatprep.subr.mxu0 0.0
    %3228 = vmatpush1.msra.mxu0 0.0
    %3229 = vmatprep.subr.mxu0 0.0
    %3230 = vmatpush1.msra.mxu0 0.0
    %3231 = vmatprep.subr.mxu0 0.0
    %3232 = vmatpush1.msra.mxu0 0.0
    %3233 = vmatprep.subr.mxu0 0.0
    %3234 = vmatpush1.msra.mxu0 0.0
    %3235 = vmatprep.subr.mxu0 0.0
    %3236 = vmatpush1.msra.mxu0 0.0
    %3237 = vmatprep.subr.mxu0 0.0
    %3238 = vmatpush1.msra.mxu0 0.0
    %3239 = vmatprep.subr.mxu0 0.0
    %3240 = vmatpush1.msra.mxu0 0.0
    %3241 = vmatprep.subr.mxu0 0.0
    %3242 = vmatpush1.msra.mxu0 0.0
    %3243 = vmatprep.subr.mxu0 0.0
    %3244 = vmatpush1.msra.mxu0 0.0
    %3245 = vmatprep.subr.mxu0 0.0
    %3246 = vmatpush1.msra.mxu0 0.0
    %3247 = vmatprep.subr.mxu0 0.0
    %3248 = vmatpush1.msra.mxu0 0.0
    %3249 = vmatprep.subr.mxu0 0.0
    %3250 = vmatpush1.msra.mxu0 0.0
    %3251 = vmatprep.subr.mxu0 0.0
    %3252 = vmatpush1.msra.mxu0 0.0
    %3253 = vmatprep.subr.mxu0 0.0
    %3254 = vmatpush1.msra.mxu0 0.0
    %3255 = vmatprep.subr.mxu0 0.0
    %3256 = vmatpush1.msra.mxu0 0.0
    %3257 = vmatprep.subr.mxu0 0.0
    %3258 = vmatpush1.msra.mxu0 0.0
    %3259 = vmatprep.subr.mxu0 0.0
    %3260 = vmatpush1.msra.mxu0 0.0
    %3261 = vmatprep.mubr.f32.mxu0 0.0
    %3262 = vmatmul.mubr.f32.gmra.mrb[0].mxu0 %v3193
    %v3263 = vpop.f32.mrb[0].mxu0
    %v3264 = vadd.f32 0.0, %v3263
    %v3265 = vpop.f32.mrb[0].mxu0
    %3266 = vmatprep.mubr.f32.mxu0 0.0
    %3267 = vmatmul.mubr.f32.gmra.mrb[0].mxu0 %v3195
    %v3268 = vpop.f32.mrb[0].mxu0
    %v3269 = vadd.f32 0.0, %v3268
    %v3270 = vpop.f32.mrb[0].mxu0
    %3271 = vdwg.mxu0
    %3274 = vrot.lane.b32.xlu0 %v3264, 80
    %v3275 = vpop.permute.xlu0 %3274
    %3276 = vrot.lane.b32.xlu0 %v3269, 80
    %v3277 = vpop.permute.xlu0 %3276
    %3280 = vst.msk [vmem:[#allocation4 + $0x18] sm:$0xff] %vm2246, %v3275
    %3281 = vst.msk [vmem:[#allocation4 + $0x40] sm:$0xff] %vm2246, %v3277
    %v3282 = vld [vmem:[#allocation4] sm:$0xff]
    %v3283 = vld [vmem:[#allocation4 + $0x8] sm:$0xff]
    %v3284 = vld [vmem:[#allocation4 + $0x10] sm:$0xff]
    %v3285 = vld [vmem:[#allocation4 + $0x18] sm:$0xff]
    %v3286 = vld [vmem:[#allocation4 + $0x20] sm:$0xff]
    %v3287 = vld [vmem:[#allocation4 + $0x28] sm:$0xff]
    %v3288 = vld [vmem:[#allocation4 + $0x30] sm:$0xff]
    %v3289 = vld [vmem:[#allocation4 + $0x38] sm:$0xff]
    %v3290 = vld [vmem:[#allocation4 + $0x40] sm:$0xff]
    %v3291 = vld [vmem:[#allocation4 + $0x48] sm:$0xff]
    %3292 = vst [vmem:[#allocation5] sm:$0xff] %v3282
    %3293 = vst [vmem:[#allocation5 + $0x8] sm:$0xff] %v3283
    %3294 = vst [vmem:[#allocation5 + $0x10] sm:$0xff] %v3284
    %3295 = vst [vmem:[#allocation5 + $0x18] sm:$0xff] %v3285
    %3296 = vst [vmem:[#allocation5 + $0x20] sm:$0xff] %v3287
    %3297 = vst [vmem:[#allocation5 + $0x28] sm:$0xff] %v3288
    %3298 = vst [vmem:[#allocation5 + $0x30] sm:$0xff] %v3289
    %3299 = vst [vmem:[#allocation5 + $0x38] sm:$0xff] %v3290
    %3310 = vrot.lane.b32.xlu0 %v3282, 127
    %v3311 = vpop.permute.xlu0 %3310
    %3312 = vrot.lane.b32.xlu0 %v3283, 127
    %v3313 = vpop.permute.xlu0 %3312
    %3314 = vrot.lane.b32.xlu0 %v3284, 127
    %v3315 = vpop.permute.xlu0 %3314
    %3316 = vrot.lane.b32.xlu0 %v3285, 127
    %v3317 = vpop.permute.xlu0 %3316
    %3318 = vrot.lane.b32.xlu0 %v3286, 127
    %v3319 = vpop.permute.xlu0 %3318
    %3320 = vrot.lane.b32.xlu0 %v3287, 127
    %v3321 = vpop.permute.xlu0 %3320
    %3322 = vrot.lane.b32.xlu0 %v3288, 127
    %v3323 = vpop.permute.xlu0 %3322
    %3324 = vrot.lane.b32.xlu0 %v3289, 127
    %v3325 = vpop.permute.xlu0 %3324
    %3326 = vrot.lane.b32.xlu0 %v3290, 127
    %v3327 = vpop.permute.xlu0 %3326
    %3328 = vrot.lane.b32.xlu0 %v3291, 127
    %v3329 = vpop.permute.xlu0 %3328
    %v3330 = vsel %vm1334, %v3311, %v3313
    %v3331 = vsel %vm1334, %v3313, %v3315
    %v3332 = vsel %vm1334, %v3315, %v3317
    %v3333 = vsel %vm1334, %v3317, %v3319
    %v3334 = vsel %vm1334, %v3321, %v3323
    %v3335 = vsel %vm1334, %v3323, %v3325
    %v3336 = vsel %vm1334, %v3325, %v3327
    %v3337 = vsel %vm1334, %v3327, %v3329
    %3346 = vst [vmem:[#allocation5 + $0x40] sm:$0xff] %v3330
    %3347 = vst [vmem:[#allocation5 + $0x48] sm:$0xff] %v3331
    %3348 = vst [vmem:[#allocation5 + $0x50] sm:$0xff] %v3332
    %3349 = vst [vmem:[#allocation5 + $0x58] sm:$0xff] %v3333
    %3350 = vst [vmem:[#allocation5 + $0x60] sm:$0xff] %v3334
    %3351 = vst [vmem:[#allocation5 + $0x68] sm:$0xff] %v3335
    %3352 = vst [vmem:[#allocation5 + $0x70] sm:$0xff] %v3336
    %3353 = vst [vmem:[#allocation5 + $0x78] sm:$0xff] %v3337
    %3354 = vrot.lane.b32.xlu0 %v3282, 126
    %v3355 = vpop.permute.xlu0 %3354
    %3356 = vrot.lane.b32.xlu0 %v3283, 126
    %v3357 = vpop.permute.xlu0 %3356
    %3358 = vrot.lane.b32.xlu0 %v3284, 126
    %v3359 = vpop.permute.xlu0 %3358
    %3360 = vrot.lane.b32.xlu0 %v3285, 126
    %v3361 = vpop.permute.xlu0 %3360
    %3362 = vrot.lane.b32.xlu0 %v3286, 126
    %v3363 = vpop.permute.xlu0 %3362
    %3364 = vrot.lane.b32.xlu0 %v3287, 126
    %v3365 = vpop.permute.xlu0 %3364
    %3366 = vrot.lane.b32.xlu0 %v3288, 126
    %v3367 = vpop.permute.xlu0 %3366
    %3368 = vrot.lane.b32.xlu0 %v3289, 126
    %v3369 = vpop.permute.xlu0 %3368
    %3370 = vrot.lane.b32.xlu0 %v3290, 126
    %v3371 = vpop.permute.xlu0 %3370
    %3372 = vrot.lane.b32.xlu0 %v3291, 126
    %v3373 = vpop.permute.xlu0 %3372
    %v3374 = vsel %vm1371, %v3355, %v3357
    %v3375 = vsel %vm1371, %v3357, %v3359
    %v3376 = vsel %vm1371, %v3359, %v3361
    %v3377 = vsel %vm1371, %v3361, %v3363
    %v3378 = vsel %vm1371, %v3365, %v3367
    %v3379 = vsel %vm1371, %v3367, %v3369
    %v3380 = vsel %vm1371, %v3369, %v3371
    %v3381 = vsel %vm1371, %v3371, %v3373
    %3390 = vst [vmem:[#allocation5 + $0x80] sm:$0xff] %v3374
    %3391 = vst [vmem:[#allocation5 + $0x88] sm:$0xff] %v3375
    %3392 = vst [vmem:[#allocation5 + $0x90] sm:$0xff] %v3376
    %3393 = vst [vmem:[#allocation5 + $0x98] sm:$0xff] %v3377
    %3394 = vst [vmem:[#allocation5 + $0xa0] sm:$0xff] %v3378
    %3395 = vst [vmem:[#allocation5 + $0xa8] sm:$0xff] %v3379
    %3396 = vst [vmem:[#allocation5 + $0xb0] sm:$0xff] %v3380
    %3397 = vst [vmem:[#allocation5 + $0xb8] sm:$0xff] %v3381
    %3398 = vrot.lane.b32.xlu0 %v3282, 112
    %v3399 = vpop.permute.xlu0 %3398
    %3400 = vrot.lane.b32.xlu0 %v3283, 112
    %v3401 = vpop.permute.xlu0 %3400
    %3402 = vrot.lane.b32.xlu0 %v3284, 112
    %v3403 = vpop.permute.xlu0 %3402
    %3404 = vrot.lane.b32.xlu0 %v3285, 112
    %v3405 = vpop.permute.xlu0 %3404
    %3406 = vrot.lane.b32.xlu0 %v3286, 112
    %v3407 = vpop.permute.xlu0 %3406
    %3408 = vrot.lane.b32.xlu0 %v3287, 112
    %v3409 = vpop.permute.xlu0 %3408
    %3410 = vrot.lane.b32.xlu0 %v3288, 112
    %v3411 = vpop.permute.xlu0 %3410
    %3412 = vrot.lane.b32.xlu0 %v3289, 112
    %v3413 = vpop.permute.xlu0 %3412
    %3414 = vrot.lane.b32.xlu0 %v3290, 112
    %v3415 = vpop.permute.xlu0 %3414
    %3416 = vrot.lane.b32.xlu0 %v3291, 112
    %v3417 = vpop.permute.xlu0 %3416
    %vm3418 = vcmask 916480
    %v3419 = vsel %vm3418, %v3399, %v3401
    %v3420 = vsel %vm3418, %v3401, %v3403
    %v3421 = vsel %vm3418, %v3403, %v3405
    %v3422 = vsel %vm3418, %v3405, %v3407
    %v3423 = vsel %vm3418, %v3409, %v3411
    %v3424 = vsel %vm3418, %v3411, %v3413
    %v3425 = vsel %vm3418, %v3413, %v3415
    %v3426 = vsel %vm3418, %v3415, %v3417
    %3435 = vst [vmem:[#allocation5 + $0xc0] sm:$0xff] %v3419
    %3436 = vst [vmem:[#allocation5 + $0xc8] sm:$0xff] %v3420
    %3437 = vst [vmem:[#allocation5 + $0xd0] sm:$0xff] %v3421
    %3438 = vst [vmem:[#allocation5 + $0xd8] sm:$0xff] %v3422
    %3439 = vst [vmem:[#allocation5 + $0xe0] sm:$0xff] %v3423
    %3440 = vst [vmem:[#allocation5 + $0xe8] sm:$0xff] %v3424
    %3441 = vst [vmem:[#allocation5 + $0xf0] sm:$0xff] %v3425
    %3442 = vst [vmem:[#allocation5 + $0xf8] sm:$0xff] %v3426
    %3443 = vrot.lane.b32.xlu0 %v3282, 111
    %v3444 = vpop.permute.xlu0 %3443
    %3445 = vrot.lane.b32.xlu0 %v3283, 111
    %v3446 = vpop.permute.xlu0 %3445
    %3447 = vrot.lane.b32.xlu0 %v3284, 111
    %v3448 = vpop.permute.xlu0 %3447
    %3449 = vrot.lane.b32.xlu0 %v3285, 111
    %v3450 = vpop.permute.xlu0 %3449
    %3451 = vrot.lane.b32.xlu0 %v3286, 111
    %v3452 = vpop.permute.xlu0 %3451
    %3453 = vrot.lane.b32.xlu0 %v3287, 111
    %v3454 = vpop.permute.xlu0 %3453
    %3455 = vrot.lane.b32.xlu0 %v3288, 111
    %v3456 = vpop.permute.xlu0 %3455
    %3457 = vrot.lane.b32.xlu0 %v3289, 111
    %v3458 = vpop.permute.xlu0 %3457
    %3459 = vrot.lane.b32.xlu0 %v3290, 111
    %v3460 = vpop.permute.xlu0 %3459
    %3461 = vrot.lane.b32.xlu0 %v3291, 111
    %v3462 = vpop.permute.xlu0 %3461
    %vm3463 = vcmask 908288
    %v3464 = vsel %vm3463, %v3444, %v3446
    %v3465 = vsel %vm3463, %v3446, %v3448
    %v3466 = vsel %vm3463, %v3448, %v3450
    %v3467 = vsel %vm3463, %v3450, %v3452
    %v3468 = vsel %vm3463, %v3454, %v3456
    %v3469 = vsel %vm3463, %v3456, %v3458
    %v3470 = vsel %vm3463, %v3458, %v3460
    %v3471 = vsel %vm3463, %v3460, %v3462
    %3480 = vst [vmem:[#allocation5 + $0x100] sm:$0xff] %v3464
    %3481 = vst [vmem:[#allocation5 + $0x108] sm:$0xff] %v3465
    %3482 = vst [vmem:[#allocation5 + $0x110] sm:$0xff] %v3466
    %3483 = vst [vmem:[#allocation5 + $0x118] sm:$0xff] %v3467
    %3484 = vst [vmem:[#allocation5 + $0x120] sm:$0xff] %v3468
    %3485 = vst [vmem:[#allocation5 + $0x128] sm:$0xff] %v3469
    %3486 = vst [vmem:[#allocation5 + $0x130] sm:$0xff] %v3470
    %3487 = vst [vmem:[#allocation5 + $0x138] sm:$0xff] %v3471
    %3488 = vrot.lane.b32.xlu0 %v3282, 110
    %v3489 = vpop.permute.xlu0 %3488
    %3490 = vrot.lane.b32.xlu0 %v3283, 110
    %v3491 = vpop.permute.xlu0 %3490
    %3492 = vrot.lane.b32.xlu0 %v3284, 110
    %v3493 = vpop.permute.xlu0 %3492
    %3494 = vrot.lane.b32.xlu0 %v3285, 110
    %v3495 = vpop.permute.xlu0 %3494
    %3496 = vrot.lane.b32.xlu0 %v3286, 110
    %v3497 = vpop.permute.xlu0 %3496
    %3498 = vrot.lane.b32.xlu0 %v3287, 110
    %v3499 = vpop.permute.xlu0 %3498
    %3500 = vrot.lane.b32.xlu0 %v3288, 110
    %v3501 = vpop.permute.xlu0 %3500
    %3502 = vrot.lane.b32.xlu0 %v3289, 110
    %v3503 = vpop.permute.xlu0 %3502
    %3504 = vrot.lane.b32.xlu0 %v3290, 110
    %v3505 = vpop.permute.xlu0 %3504
    %3506 = vrot.lane.b32.xlu0 %v3291, 110
    %v3507 = vpop.permute.xlu0 %3506
    %v3508 = vsel %vm1519, %v3489, %v3491
    %v3509 = vsel %vm1519, %v3491, %v3493
    %v3510 = vsel %vm1519, %v3493, %v3495
    %v3511 = vsel %vm1519, %v3495, %v3497
    %v3512 = vsel %vm1519, %v3499, %v3501
    %v3513 = vsel %vm1519, %v3501, %v3503
    %v3514 = vsel %vm1519, %v3503, %v3505
    %v3515 = vsel %vm1519, %v3505, %v3507
    %3524 = vst [vmem:[#allocation5 + $0x140] sm:$0xff] %v3508
    %3525 = vst [vmem:[#allocation5 + $0x148] sm:$0xff] %v3509
    %3526 = vst [vmem:[#allocation5 + $0x150] sm:$0xff] %v3510
    %3527 = vst [vmem:[#allocation5 + $0x158] sm:$0xff] %v3511
    %3528 = vst [vmem:[#allocation5 + $0x160] sm:$0xff] %v3512
    %3529 = vst [vmem:[#allocation5 + $0x168] sm:$0xff] %v3513
    %3530 = vst [vmem:[#allocation5 + $0x170] sm:$0xff] %v3514
    %3531 = vst [vmem:[#allocation5 + $0x178] sm:$0xff] %v3515
    %3532 = vrot.lane.b32.xlu0 %v3282, 96
    %v3533 = vpop.permute.xlu0 %3532
    %3534 = vrot.lane.b32.xlu0 %v3283, 96
    %v3535 = vpop.permute.xlu0 %3534
    %3536 = vrot.lane.b32.xlu0 %v3284, 96
    %v3537 = vpop.permute.xlu0 %3536
    %3538 = vrot.lane.b32.xlu0 %v3285, 96
    %v3539 = vpop.permute.xlu0 %3538
    %3540 = vrot.lane.b32.xlu0 %v3286, 96
    %v3541 = vpop.permute.xlu0 %3540
    %3542 = vrot.lane.b32.xlu0 %v3287, 96
    %v3543 = vpop.permute.xlu0 %3542
    %3544 = vrot.lane.b32.xlu0 %v3288, 96
    %v3545 = vpop.permute.xlu0 %3544
    %3546 = vrot.lane.b32.xlu0 %v3289, 96
    %v3547 = vpop.permute.xlu0 %3546
    %3548 = vrot.lane.b32.xlu0 %v3290, 96
    %v3549 = vpop.permute.xlu0 %3548
    %3550 = vrot.lane.b32.xlu0 %v3291, 96
    %v3551 = vpop.permute.xlu0 %3550
    %vm3552 = vcmask 785408
    %v3553 = vsel %vm3552, %v3533, %v3535
    %v3554 = vsel %vm3552, %v3535, %v3537
    %v3555 = vsel %vm3552, %v3537, %v3539
    %v3556 = vsel %vm3552, %v3539, %v3541
    %v3557 = vsel %vm3552, %v3543, %v3545
    %v3558 = vsel %vm3552, %v3545, %v3547
    %v3559 = vsel %vm3552, %v3547, %v3549
    %v3560 = vsel %vm3552, %v3549, %v3551
    %3569 = vst [vmem:[#allocation5 + $0x180] sm:$0xff] %v3553
    %3570 = vst [vmem:[#allocation5 + $0x188] sm:$0xff] %v3554
    %3571 = vst [vmem:[#allocation5 + $0x190] sm:$0xff] %v3555
    %3572 = vst [vmem:[#allocation5 + $0x198] sm:$0xff] %v3556
    %3573 = vst [vmem:[#allocation5 + $0x1a0] sm:$0xff] %v3557
    %3574 = vst [vmem:[#allocation5 + $0x1a8] sm:$0xff] %v3558
    %3575 = vst [vmem:[#allocation5 + $0x1b0] sm:$0xff] %v3559
    %3576 = vst [vmem:[#allocation5 + $0x1b8] sm:$0xff] %v3560
    %3577 = vrot.lane.b32.xlu0 %v3282, 95
    %v3578 = vpop.permute.xlu0 %3577
    %3579 = vrot.lane.b32.xlu0 %v3283, 95
    %v3580 = vpop.permute.xlu0 %3579
    %3581 = vrot.lane.b32.xlu0 %v3284, 95
    %v3582 = vpop.permute.xlu0 %3581
    %3583 = vrot.lane.b32.xlu0 %v3285, 95
    %v3584 = vpop.permute.xlu0 %3583
    %3585 = vrot.lane.b32.xlu0 %v3286, 95
    %v3586 = vpop.permute.xlu0 %3585
    %3587 = vrot.lane.b32.xlu0 %v3287, 95
    %v3588 = vpop.permute.xlu0 %3587
    %3589 = vrot.lane.b32.xlu0 %v3288, 95
    %v3590 = vpop.permute.xlu0 %3589
    %3591 = vrot.lane.b32.xlu0 %v3289, 95
    %v3592 = vpop.permute.xlu0 %3591
    %3593 = vrot.lane.b32.xlu0 %v3290, 95
    %v3594 = vpop.permute.xlu0 %3593
    %3595 = vrot.lane.b32.xlu0 %v3291, 95
    %v3596 = vpop.permute.xlu0 %3595
    %vm3597 = vcmask 777216
    %v3598 = vsel %vm3597, %v3578, %v3580
    %v3599 = vsel %vm3597, %v3580, %v3582
    %v3600 = vsel %vm3597, %v3582, %v3584
    %v3601 = vsel %vm3597, %v3584, %v3586
    %v3602 = vsel %vm3597, %v3588, %v3590
    %v3603 = vsel %vm3597, %v3590, %v3592
    %v3604 = vsel %vm3597, %v3592, %v3594
    %v3605 = vsel %vm3597, %v3594, %v3596
    %3614 = vst [vmem:[#allocation5 + $0x1c0] sm:$0xff] %v3598
    %3615 = vst [vmem:[#allocation5 + $0x1c8] sm:$0xff] %v3599
    %3616 = vst [vmem:[#allocation5 + $0x1d0] sm:$0xff] %v3600
    %3617 = vst [vmem:[#allocation5 + $0x1d8] sm:$0xff] %v3601
    %3618 = vst [vmem:[#allocation5 + $0x1e0] sm:$0xff] %v3602
    %3619 = vst [vmem:[#allocation5 + $0x1e8] sm:$0xff] %v3603
    %3620 = vst [vmem:[#allocation5 + $0x1f0] sm:$0xff] %v3604
    %3621 = vst [vmem:[#allocation5 + $0x1f8] sm:$0xff] %v3605
    %3622 = vrot.lane.b32.xlu0 %v3282, 94
    %v3623 = vpop.permute.xlu0 %3622
    %3624 = vrot.lane.b32.xlu0 %v3283, 94
    %v3625 = vpop.permute.xlu0 %3624
    %3626 = vrot.lane.b32.xlu0 %v3284, 94
    %v3627 = vpop.permute.xlu0 %3626
    %3628 = vrot.lane.b32.xlu0 %v3285, 94
    %v3629 = vpop.permute.xlu0 %3628
    %3630 = vrot.lane.b32.xlu0 %v3286, 94
    %v3631 = vpop.permute.xlu0 %3630
    %3632 = vrot.lane.b32.xlu0 %v3287, 94
    %v3633 = vpop.permute.xlu0 %3632
    %3634 = vrot.lane.b32.xlu0 %v3288, 94
    %v3635 = vpop.permute.xlu0 %3634
    %3636 = vrot.lane.b32.xlu0 %v3289, 94
    %v3637 = vpop.permute.xlu0 %3636
    %3638 = vrot.lane.b32.xlu0 %v3290, 94
    %v3639 = vpop.permute.xlu0 %3638
    %3640 = vrot.lane.b32.xlu0 %v3291, 94
    %v3641 = vpop.permute.xlu0 %3640
    %vm3642 = vcmask 769024
    %v3643 = vsel %vm3642, %v3623, %v3625
    %v3644 = vsel %vm3642, %v3625, %v3627
    %v3645 = vsel %vm3642, %v3627, %v3629
    %v3646 = vsel %vm3642, %v3629, %v3631
    %v3647 = vsel %vm3642, %v3633, %v3635
    %v3648 = vsel %vm3642, %v3635, %v3637
    %v3649 = vsel %vm3642, %v3637, %v3639
    %v3650 = vsel %vm3642, %v3639, %v3641
    %3659 = vst [vmem:[#allocation5 + $0x200] sm:$0xff] %v3643
    %3660 = vst [vmem:[#allocation5 + $0x208] sm:$0xff] %v3644
    %3661 = vst [vmem:[#allocation5 + $0x210] sm:$0xff] %v3645
    %3662 = vst [vmem:[#allocation5 + $0x218] sm:$0xff] %v3646
    %3663 = vst [vmem:[#allocation5 + $0x220] sm:$0xff] %v3647
    %3664 = vst [vmem:[#allocation5 + $0x228] sm:$0xff] %v3648
    %3665 = vst [vmem:[#allocation5 + $0x230] sm:$0xff] %v3649
    %3666 = vst [vmem:[#allocation5 + $0x238] sm:$0xff] %v3650
    %v3667 = vld [vmem:[%s10] sm:$0xff]
    %v3668 = vld [vmem:[%s10 + $0x8] sm:$0xff]
    %v3669 = vld [vmem:[#allocation5] sm:$0xff]
    %v3670 = vld [vmem:[#allocation5 + $0x8] sm:$0xff]
    %v3671 = vld [vmem:[#allocation5 + $0x10] sm:$0xff]
    %v3672 = vld [vmem:[#allocation5 + $0x18] sm:$0xff]
    %v3673 = vld [vmem:[#allocation5 + $0x20] sm:$0xff]
    %v3674 = vld [vmem:[#allocation5 + $0x28] sm:$0xff]
    %v3675 = vld [vmem:[#allocation5 + $0x30] sm:$0xff]
    %v3676 = vld [vmem:[#allocation5 + $0x38] sm:$0xff]
    %v3677 = vld [vmem:[#allocation5 + $0x40] sm:$0xff]
    %v3678 = vld [vmem:[#allocation5 + $0x48] sm:$0xff]
    %v3679 = vld [vmem:[#allocation5 + $0x50] sm:$0xff]
    %v3680 = vld [vmem:[#allocation5 + $0x58] sm:$0xff]
    %v3681 = vld [vmem:[#allocation5 + $0x60] sm:$0xff]
    %v3682 = vld [vmem:[#allocation5 + $0x68] sm:$0xff]
    %v3683 = vld [vmem:[#allocation5 + $0x70] sm:$0xff]
    %v3684 = vld [vmem:[#allocation5 + $0x78] sm:$0xff]
    %v3685 = vld [vmem:[#allocation5 + $0x80] sm:$0xff]
    %v3686 = vld [vmem:[#allocation5 + $0x88] sm:$0xff]
    %v3687 = vld [vmem:[#allocation5 + $0x90] sm:$0xff]
    %v3688 = vld [vmem:[#allocation5 + $0x98] sm:$0xff]
    %v3689 = vld [vmem:[#allocation5 + $0xa0] sm:$0xff]
    %v3690 = vld [vmem:[#allocation5 + $0xa8] sm:$0xff]
    %v3691 = vld [vmem:[#allocation5 + $0xb0] sm:$0xff]
    %v3692 = vld [vmem:[#allocation5 + $0xb8] sm:$0xff]
    %v3693 = vld [vmem:[#allocation5 + $0xc0] sm:$0xff]
    %v3694 = vld [vmem:[#allocation5 + $0xc8] sm:$0xff]
    %v3695 = vld [vmem:[#allocation5 + $0xd0] sm:$0xff]
    %v3696 = vld [vmem:[#allocation5 + $0xd8] sm:$0xff]
    %v3697 = vld [vmem:[#allocation5 + $0xe0] sm:$0xff]
    %v3698 = vld [vmem:[#allocation5 + $0xe8] sm:$0xff]
    %v3699 = vld [vmem:[#allocation5 + $0xf0] sm:$0xff]
    %v3700 = vld [vmem:[#allocation5 + $0xf8] sm:$0xff]
    %v3701 = vld [vmem:[#allocation5 + $0x100] sm:$0xff]
    %v3702 = vld [vmem:[#allocation5 + $0x108] sm:$0xff]
    %v3703 = vld [vmem:[#allocation5 + $0x110] sm:$0xff]
    %v3704 = vld [vmem:[#allocation5 + $0x118] sm:$0xff]
    %v3705 = vld [vmem:[#allocation5 + $0x120] sm:$0xff]
    %v3706 = vld [vmem:[#allocation5 + $0x128] sm:$0xff]
    %v3707 = vld [vmem:[#allocation5 + $0x130] sm:$0xff]
    %v3708 = vld [vmem:[#allocation5 + $0x138] sm:$0xff]
    %v3709 = vld [vmem:[#allocation5 + $0x140] sm:$0xff]
    %v3710 = vld [vmem:[#allocation5 + $0x148] sm:$0xff]
    %v3711 = vld [vmem:[#allocation5 + $0x150] sm:$0xff]
    %v3712 = vld [vmem:[#allocation5 + $0x158] sm:$0xff]
    %v3713 = vld [vmem:[#allocation5 + $0x160] sm:$0xff]
    %v3714 = vld [vmem:[#allocation5 + $0x168] sm:$0xff]
    %v3715 = vld [vmem:[#allocation5 + $0x170] sm:$0xff]
    %v3716 = vld [vmem:[#allocation5 + $0x178] sm:$0xff]
    %v3717 = vld [vmem:[#allocation5 + $0x180] sm:$0xff]
    %v3718 = vld [vmem:[#allocation5 + $0x188] sm:$0xff]
    %v3719 = vld [vmem:[#allocation5 + $0x190] sm:$0xff]
    %v3720 = vld [vmem:[#allocation5 + $0x198] sm:$0xff]
    %v3721 = vld [vmem:[#allocation5 + $0x1a0] sm:$0xff]
    %v3722 = vld [vmem:[#allocation5 + $0x1a8] sm:$0xff]
    %v3723 = vld [vmem:[#allocation5 + $0x1b0] sm:$0xff]
    %v3724 = vld [vmem:[#allocation5 + $0x1b8] sm:$0xff]
    %v3725 = vld [vmem:[#allocation5 + $0x1c0] sm:$0xff]
    %v3726 = vld [vmem:[#allocation5 + $0x1c8] sm:$0xff]
    %v3727 = vld [vmem:[#allocation5 + $0x1d0] sm:$0xff]
    %v3728 = vld [vmem:[#allocation5 + $0x1d8] sm:$0xff]
    %v3729 = vld [vmem:[#allocation5 + $0x1e0] sm:$0xff]
    %v3730 = vld [vmem:[#allocation5 + $0x1e8] sm:$0xff]
    %v3731 = vld [vmem:[#allocation5 + $0x1f0] sm:$0xff]
    %v3732 = vld [vmem:[#allocation5 + $0x1f8] sm:$0xff]
    %v3733 = vld [vmem:[#allocation5 + $0x200] sm:$0xff]
    %v3734 = vld [vmem:[#allocation5 + $0x208] sm:$0xff]
    %v3735 = vld [vmem:[#allocation5 + $0x210] sm:$0xff]
    %v3736 = vld [vmem:[#allocation5 + $0x218] sm:$0xff]
    %v3737 = vld [vmem:[#allocation5 + $0x220] sm:$0xff]
    %v3738 = vld [vmem:[#allocation5 + $0x228] sm:$0xff]
    %v3739 = vld [vmem:[#allocation5 + $0x230] sm:$0xff]
    %v3740 = vld [vmem:[#allocation5 + $0x238] sm:$0xff]
    %v3741 = vld [vmem:[%s11] sm:$0xff]
    %3743 = vset.pattern.permute.xlu0 0
    %3744 = vperm.xlu0 %3743, %v3741
    %v3745 = vpop.permute.xlu0 %3744
    %vm3747 = vcmask 130048
    %v3749 = vsel %vm3747, %v3668, 0
    %3751 = vmatprep.subr.mxu0 %v3670
    %3752 = vmatpush1.msra.mxu0 %v3669
    %3753 = vmatprep.subr.mxu0 %v3674
    %3754 = vmatpush1.msra.mxu0 %v3673
    %3755 = vmatprep.subr.mxu0 %v3678
    %3756 = vmatpush1.msra.mxu0 %v3677
    %3757 = vmatprep.subr.mxu0 %v3682
    %3758 = vmatpush1.msra.mxu0 %v3681
    %3759 = vmatprep.subr.mxu0 %v3686
    %3760 = vmatpush1.msra.mxu0 %v3685
    %3761 = vmatprep.subr.mxu0 %v3690
    %3762 = vmatpush1.msra.mxu0 %v3689
    %3763 = vmatprep.subr.mxu0 %v3694
    %3764 = vmatpush1.msra.mxu0 %v3693
    %3765 = vmatprep.subr.mxu0 %v3698
    %3766 = vmatpush1.msra.mxu0 %v3697
    %3767 = vmatprep.subr.mxu0 %v3702
    %3768 = vmatpush1.msra.mxu0 %v3701
    %3769 = vmatprep.subr.mxu0 %v3706
    %3770 = vmatpush1.msra.mxu0 %v3705
    %3771 = vmatprep.subr.mxu0 %v3710
    %3772 = vmatpush1.msra.mxu0 %v3709
    %3773 = vmatprep.subr.mxu0 %v3714
    %3774 = vmatpush1.msra.mxu0 %v3713
    %3775 = vmatprep.subr.mxu0 %v3718
    %3776 = vmatpush1.msra.mxu0 %v3717
    %3777 = vmatprep.subr.mxu0 %v3722
    %3778 = vmatpush1.msra.mxu0 %v3721
    %3779 = vmatprep.subr.mxu0 %v3726
    %3780 = vmatpush1.msra.mxu0 %v3725
    %3781 = vmatprep.subr.mxu0 %v3730
    %3782 = vmatpush1.msra.mxu0 %v3729
    %3783 = vmatprep.subr.mxu0 %v3734
    %3784 = vmatpush1.msra.mxu0 %v3733
    %3785 = vmatprep.subr.mxu0 %v3738
    %3786 = vmatpush1.msra.mxu0 %v3737
    %3787 = vmatprep.subr.mxu0 0.0
    %3788 = vmatpush1.msra.mxu0 0.0
    %3789 = vmatprep.subr.mxu0 0.0
    %3790 = vmatpush1.msra.mxu0 0.0
    %3791 = vmatprep.subr.mxu0 0.0
    %3792 = vmatpush1.msra.mxu0 0.0
    %3793 = vmatprep.subr.mxu0 0.0
    %3794 = vmatpush1.msra.mxu0 0.0
    %3795 = vmatprep.subr.mxu0 0.0
    %3796 = vmatpush1.msra.mxu0 0.0
    %3797 = vmatprep.subr.mxu0 0.0
    %3798 = vmatpush1.msra.mxu0 0.0
    %3799 = vmatprep.subr.mxu0 0.0
    %3800 = vmatpush1.msra.mxu0 0.0
    %3801 = vmatprep.subr.mxu0 0.0
    %3802 = vmatpush1.msra.mxu0 0.0
    %3803 = vmatprep.subr.mxu0 0.0
    %3804 = vmatpush1.msra.mxu0 0.0
    %3805 = vmatprep.subr.mxu0 0.0
    %3806 = vmatpush1.msra.mxu0 0.0
    %3807 = vmatprep.subr.mxu0 0.0
    %3808 = vmatpush1.msra.mxu0 0.0
    %3809 = vmatprep.subr.mxu0 0.0
    %3810 = vmatpush1.msra.mxu0 0.0
    %3811 = vmatprep.subr.mxu0 0.0
    %3812 = vmatpush1.msra.mxu0 0.0
    %3813 = vmatprep.subr.mxu0 0.0
    %3814 = vmatpush1.msra.mxu0 0.0
    %3815 = vmatprep.mubr.f32.mxu0 %v3749
    %3816 = vmatmul.mubr.f32.gmra.mrb[0].mxu0 %v3667
    %v3817 = vpop.f32.mrb[0].mxu0
    %v3818 = vadd.f32 %v3745, %v3817
    %v3819 = vpop.f32.mrb[0].mxu0
    %v3820 = vadd.f32 %v3745, %v3819
    %3821 = vdwg.mxu0
    %3822 = vmatprep.subr.mxu0 %v3672
    %3823 = vmatpush1.msra.mxu0 %v3671
    %3824 = vmatprep.subr.mxu0 %v3676
    %3825 = vmatpush1.msra.mxu0 %v3675
    %3826 = vmatprep.subr.mxu0 %v3680
    %3827 = vmatpush1.msra.mxu0 %v3679
    %3828 = vmatprep.subr.mxu0 %v3684
    %3829 = vmatpush1.msra.mxu0 %v3683
    %3830 = vmatprep.subr.mxu0 %v3688
    %3831 = vmatpush1.msra.mxu0 %v3687
    %3832 = vmatprep.subr.mxu0 %v3692
    %3833 = vmatpush1.msra.mxu0 %v3691
    %3834 = vmatprep.subr.mxu0 %v3696
    %3835 = vmatpush1.msra.mxu0 %v3695
    %3836 = vmatprep.subr.mxu0 %v3700
    %3837 = vmatpush1.msra.mxu0 %v3699
    %3838 = vmatprep.subr.mxu0 %v3704
    %3839 = vmatpush1.msra.mxu0 %v3703
    %3840 = vmatprep.subr.mxu0 %v3708
    %3841 = vmatpush1.msra.mxu0 %v3707
    %3842 = vmatprep.subr.mxu0 %v3712
    %3843 = vmatpush1.msra.mxu0 %v3711
    %3844 = vmatprep.subr.mxu0 %v3716
    %3845 = vmatpush1.msra.mxu0 %v3715
    %3846 = vmatprep.subr.mxu0 %v3720
    %3847 = vmatpush1.msra.mxu0 %v3719
    %3848 = vmatprep.subr.mxu0 %v3724
    %3849 = vmatpush1.msra.mxu0 %v3723
    %3850 = vmatprep.subr.mxu0 %v3728
    %3851 = vmatpush1.msra.mxu0 %v3727
    %3852 = vmatprep.subr.mxu0 %v3732
    %3853 = vmatpush1.msra.mxu0 %v3731
    %3854 = vmatprep.subr.mxu0 %v3736
    %3855 = vmatpush1.msra.mxu0 %v3735
    %3856 = vmatprep.subr.mxu0 %v3740
    %3857 = vmatpush1.msra.mxu0 %v3739
    %3858 = vmatprep.subr.mxu0 0.0
    %3859 = vmatpush1.msra.mxu0 0.0
    %3860 = vmatprep.subr.mxu0 0.0
    %3861 = vmatpush1.msra.mxu0 0.0
    %3862 = vmatprep.subr.mxu0 0.0
    %3863 = vmatpush1.msra.mxu0 0.0
    %3864 = vmatprep.subr.mxu0 0.0
    %3865 = vmatpush1.msra.mxu0 0.0
    %3866 = vmatprep.subr.mxu0 0.0
    %3867 = vmatpush1.msra.mxu0 0.0
    %3868 = vmatprep.subr.mxu0 0.0
    %3869 = vmatpush1.msra.mxu0 0.0
    %3870 = vmatprep.subr.mxu0 0.0
    %3871 = vmatpush1.msra.mxu0 0.0
    %3872 = vmatprep.subr.mxu0 0.0
    %3873 = vmatpush1.msra.mxu0 0.0
    %3874 = vmatprep.subr.mxu0 0.0
    %3875 = vmatpush1.msra.mxu0 0.0
    %3876 = vmatprep.subr.mxu0 0.0
    %3877 = vmatpush1.msra.mxu0 0.0
    %3878 = vmatprep.subr.mxu0 0.0
    %3879 = vmatpush1.msra.mxu0 0.0
    %3880 = vmatprep.subr.mxu0 0.0
    %3881 = vmatpush1.msra.mxu0 0.0
    %3882 = vmatprep.subr.mxu0 0.0
    %3883 = vmatpush1.msra.mxu0 0.0
    %3884 = vmatprep.subr.mxu0 0.0
    %3885 = vmatpush1.msra.mxu0 0.0
    %3886 = vmatprep.mubr.f32.mxu0 %v3749
    %3887 = vmatmul.mubr.f32.gmra.mrb[0].mxu0 %v3667
    %v3888 = vpop.f32.mrb[0].mxu0
    %v3889 = vadd.f32 %v3745, %v3888
    %v3890 = vpop.f32.mrb[0].mxu0
    %v3891 = vadd.f32 %v3745, %v3890
    %3892 = vdwg.mxu0
    %v3893 = vld [vmem:[%s14] sm:$0xf]
    %v3894 = vld [vmem:[%s12] sm:$0xff]
    %v3895 = vld [vmem:[%s13] sm:$0xff]
    %v3897 = vlaneseq
    %v3898 = vshrl.u32 %v3897, 7
    %v3899 = vsub.s32 0, %v3898
    %v3900 = vrot.slane %v3893, %v3899
    %v3901 = vlaneseq
    %v3902 = vshrl.u32 %v3901, 7
    %v3903 = vsub.s32 1, %v3902
    %v3904 = vrot.slane %v3893, %v3903
    %v3905 = vlaneseq
    %v3906 = vshrl.u32 %v3905, 7
    %v3907 = vsub.s32 2, %v3906
    %v3908 = vrot.slane %v3893, %v3907
    %v3909 = vlaneseq
    %v3910 = vshrl.u32 %v3909, 7
    %v3911 = vsub.s32 3, %v3910
    %v3912 = vrot.slane %v3893, %v3911
    %v3917 = vmul.f32 %v3818, %v3900
    %v3918 = vmul.f32 %v3820, %v3904
    %v3919 = vmul.f32 %v3889, %v3908
    %v3920 = vmul.f32 %v3891, %v3912
    %v3921 = vadd.f32 %v3917, %v3918
    %v3922 = vadd.f32 %v3921, %v3919
    %v3923 = vadd.f32 %v3922, %v3920
    %3924 = vadd.xlane.f32.xlu0 %v3923
    %v3925 = vpop.xlane.xlu0 %3924
    %v3926 = vmul.f32 %v3925, 0.0025510204
    %v3927 = vsub.f32 %v3818, %v3926
    %v3928 = vsub.f32 %v3820, %v3926
    %v3929 = vsub.f32 %v3889, %v3926
    %v3930 = vsub.f32 %v3891, %v3926
    %v3931 = vmul.f32 %v3927, %v3927
    %v3932 = vmul.f32 %v3928, %v3928
    %v3933 = vmul.f32 %v3929, %v3929
    %v3934 = vmul.f32 %v3930, %v3930
    %v3935 = vmul.f32 %v3931, %v3900
    %v3936 = vmul.f32 %v3932, %v3904
    %v3937 = vmul.f32 %v3933, %v3908
    %v3938 = vmul.f32 %v3934, %v3912
    %v3939 = vadd.f32 %v3935, %v3936
    %v3940 = vadd.f32 %v3939, %v3937
    %v3941 = vadd.f32 %v3940, %v3938
    %3942 = vadd.xlane.f32.xlu0 %v3941
    %v3943 = vpop.xlane.xlu0 %3942
    %v3944 = vmul.f32 %v3943, 0.0025510204
    %v3945 = vadd.f32 %v3944, 1e-05
    %v3946 = vrsqrt.pop %v3945
    %v3947 = vmul.f32 %v3946, %v3894
    %3949 = vset.pattern.permute.xlu0 0
    %3950 = vperm.xlu0 %3949, %v3947
    %v3951 = vpop.permute.xlu0 %3950
    %v3953 = vmul.f32 %v3927, %v3951
    %v3954 = vmul.f32 %v3928, %v3951
    %v3955 = vmul.f32 %v3929, %v3951
    %v3956 = vmul.f32 %v3930, %v3951
    %3958 = vset.pattern.permute.xlu0 0
    %3959 = vperm.xlu0 %3958, %v3895
    %v3960 = vpop.permute.xlu0 %3959
    %v3962 = vadd.f32 %v3953, %v3960
    %v3963 = vadd.f32 %v3954, %v3960
    %v3964 = vadd.f32 %v3955, %v3960
    %v3965 = vadd.f32 %v3956, %v3960
    %v3966 = vmax.f32 %v3962, 0.0
    %v3967 = vmax.f32 %v3963, 0.0
    %v3968 = vmax.f32 %v3964, 0.0
    %v3969 = vmax.f32 %v3965, 0.0
    %v3970 = vadd.s32 %v1956, 8
    %v3971 = vmul.u32 %v3970, 2
    %v3972 = vadd.s32 %v3971, 1
    %vm3973 = vcmp.eq.s32.totalorder %v1958, %v3972
    %v3974 = vsel %vm3973, 1, 0
    %v3975 = vcvt.s32.f32 %v3974
    %vm3976 = vcmask 113664
    %v3978 = vsel %vm3976, %v3966, 0
    %vm3980 = vcmask 1045504
    %v3982 = vsel %vm3980, %v3975, 0
    %3984 = vmatprep.subr.mxu0 0.0
    %3985 = vmatpush1.msra.mxu0 %v1963
    %3986 = vmatprep.subr.mxu0 0.0
    %3987 = vmatpush1.msra.mxu0 %v3982
    %3988 = vmatprep.subr.mxu0 0.0
    %3989 = vmatpush1.msra.mxu0 0.0
    %3990 = vmatprep.subr.mxu0 0.0
    %3991 = vmatpush1.msra.mxu0 0.0
    %3992 = vmatprep.subr.mxu0 0.0
    %3993 = vmatpush1.msra.mxu0 0.0
    %3994 = vmatprep.subr.mxu0 0.0
    %3995 = vmatpush1.msra.mxu0 0.0
    %3996 = vmatprep.subr.mxu0 0.0
    %3997 = vmatpush1.msra.mxu0 0.0
    %3998 = vmatprep.subr.mxu0 0.0
    %3999 = vmatpush1.msra.mxu0 0.0
    %4000 = vmatprep.subr.mxu0 0.0
    %4001 = vmatpush1.msra.mxu0 0.0
    %4002 = vmatprep.subr.mxu0 0.0
    %4003 = vmatpush1.msra.mxu0 0.0
    %4004 = vmatprep.subr.mxu0 0.0
    %4005 = vmatpush1.msra.mxu0 0.0
    %4006 = vmatprep.subr.mxu0 0.0
    %4007 = vmatpush1.msra.mxu0 0.0
    %4008 = vmatprep.subr.mxu0 0.0
    %4009 = vmatpush1.msra.mxu0 0.0
    %4010 = vmatprep.subr.mxu0 0.0
    %4011 = vmatpush1.msra.mxu0 0.0
    %4012 = vmatprep.subr.mxu0 0.0
    %4013 = vmatpush1.msra.mxu0 0.0
    %4014 = vmatprep.subr.mxu0 0.0
    %4015 = vmatpush1.msra.mxu0 0.0
    %4016 = vmatprep.subr.mxu0 0.0
    %4017 = vmatpush1.msra.mxu0 0.0
    %4018 = vmatprep.subr.mxu0 0.0
    %4019 = vmatpush1.msra.mxu0 0.0
    %4020 = vmatprep.subr.mxu0 0.0
    %4021 = vmatpush1.msra.mxu0 0.0
    %4022 = vmatprep.subr.mxu0 0.0
    %4023 = vmatpush1.msra.mxu0 0.0
    %4024 = vmatprep.subr.mxu0 0.0
    %4025 = vmatpush1.msra.mxu0 0.0
    %4026 = vmatprep.subr.mxu0 0.0
    %4027 = vmatpush1.msra.mxu0 0.0
    %4028 = vmatprep.subr.mxu0 0.0
    %4029 = vmatpush1.msra.mxu0 0.0
    %4030 = vmatprep.subr.mxu0 0.0
    %4031 = vmatpush1.msra.mxu0 0.0
    %4032 = vmatprep.subr.mxu0 0.0
    %4033 = vmatpush1.msra.mxu0 0.0
    %4034 = vmatprep.subr.mxu0 0.0
    %4035 = vmatpush1.msra.mxu0 0.0
    %4036 = vmatprep.subr.mxu0 0.0
    %4037 = vmatpush1.msra.mxu0 0.0
    %4038 = vmatprep.subr.mxu0 0.0
    %4039 = vmatpush1.msra.mxu0 0.0
    %4040 = vmatprep.subr.mxu0 0.0
    %4041 = vmatpush1.msra.mxu0 0.0
    %4042 = vmatprep.subr.mxu0 0.0
    %4043 = vmatpush1.msra.mxu0 0.0
    %4044 = vmatprep.subr.mxu0 0.0
    %4045 = vmatpush1.msra.mxu0 0.0
    %4046 = vmatprep.subr.mxu0 0.0
    %4047 = vmatpush1.msra.mxu0 0.0
    %4048 = vmatprep.mubr.f32.mxu0 0.0
    %4049 = vmatmul.mubr.f32.gmra.mrb[0].mxu0 %v3978
    %v4050 = vpop.f32.mrb[0].mxu0
    %v4051 = vadd.f32 0.0, %v4050
    %v4052 = vpop.f32.mrb[0].mxu0
    %4053 = vdwg.mxu0
    %4055 = vrot.lane.b32.xlu0 %v4051, 30
    %v4056 = vpop.permute.xlu0 %4055
    %vm4058 = vcmask 490736
    %4059 = vst.msk [vmem:[#allocation6] sm:$0xff] %vm4058, %v4056
    %4060 = vrot.lane.b32.xlu0 %v3966, 112
    %v4061 = vpop.permute.xlu0 %4060
    %v4062 = vsel %vm3976, %v4061, 0
    %4064 = vmatprep.subr.mxu0 0.0
    %4065 = vmatpush1.msra.mxu0 %v1963
    %4066 = vmatprep.subr.mxu0 0.0
    %4067 = vmatpush1.msra.mxu0 %v3982
    %4068 = vmatprep.subr.mxu0 0.0
    %4069 = vmatpush1.msra.mxu0 0.0
    %4070 = vmatprep.subr.mxu0 0.0
    %4071 = vmatpush1.msra.mxu0 0.0
    %4072 = vmatprep.subr.mxu0 0.0
    %4073 = vmatpush1.msra.mxu0 0.0
    %4074 = vmatprep.subr.mxu0 0.0
    %4075 = vmatpush1.msra.mxu0 0.0
    %4076 = vmatprep.subr.mxu0 0.0
    %4077 = vmatpush1.msra.mxu0 0.0
    %4078 = vmatprep.subr.mxu0 0.0
    %4079 = vmatpush1.msra.mxu0 0.0
    %4080 = vmatprep.subr.mxu0 0.0
    %4081 = vmatpush1.msra.mxu0 0.0
    %4082 = vmatprep.subr.mxu0 0.0
    %4083 = vmatpush1.msra.mxu0 0.0
    %4084 = vmatprep.subr.mxu0 0.0
    %4085 = vmatpush1.msra.mxu0 0.0
    %4086 = vmatprep.subr.mxu0 0.0
    %4087 = vmatpush1.msra.mxu0 0.0
    %4088 = vmatprep.subr.mxu0 0.0
    %4089 = vmatpush1.msra.mxu0 0.0
    %4090 = vmatprep.subr.mxu0 0.0
    %4091 = vmatpush1.msra.mxu0 0.0
    %4092 = vmatprep.subr.mxu0 0.0
    %4093 = vmatpush1.msra.mxu0 0.0
    %4094 = vmatprep.subr.mxu0 0.0
    %4095 = vmatpush1.msra.mxu0 0.0
    %4096 = vmatprep.subr.mxu0 0.0
    %4097 = vmatpush1.msra.mxu0 0.0
    %4098 = vmatprep.subr.mxu0 0.0
    %4099 = vmatpush1.msra.mxu0 0.0
    %4100 = vmatprep.subr.mxu0 0.0
    %4101 = vmatpush1.msra.mxu0 0.0
    %4102 = vmatprep.subr.mxu0 0.0
    %4103 = vmatpush1.msra.mxu0 0.0
    %4104 = vmatprep.subr.mxu0 0.0
    %4105 = vmatpush1.msra.mxu0 0.0
    %4106 = vmatprep.subr.mxu0 0.0
    %4107 = vmatpush1.msra.mxu0 0.0
    %4108 = vmatprep.subr.mxu0 0.0
    %4109 = vmatpush1.msra.mxu0 0.0
    %4110 = vmatprep.subr.mxu0 0.0
    %4111 = vmatpush1.msra.mxu0 0.0
    %4112 = vmatprep.subr.mxu0 0.0
    %4113 = vmatpush1.msra.mxu0 0.0
    %4114 = vmatprep.subr.mxu0 0.0
    %4115 = vmatpush1.msra.mxu0 0.0
    %4116 = vmatprep.subr.mxu0 0.0
    %4117 = vmatpush1.msra.mxu0 0.0
    %4118 = vmatprep.subr.mxu0 0.0
    %4119 = vmatpush1.msra.mxu0 0.0
    %4120 = vmatprep.subr.mxu0 0.0
    %4121 = vmatpush1.msra.mxu0 0.0
    %4122 = vmatprep.subr.mxu0 0.0
    %4123 = vmatpush1.msra.mxu0 0.0
    %4124 = vmatprep.subr.mxu0 0.0
    %4125 = vmatpush1.msra.mxu0 0.0
    %4126 = vmatprep.subr.mxu0 0.0
    %4127 = vmatpush1.msra.mxu0 0.0
    %4128 = vmatprep.mubr.f32.mxu0 0.0
    %4129 = vmatmul.mubr.f32.gmra.mrb[0].mxu0 %v4062
    %v4130 = vpop.f32.mrb[0].mxu0
    %v4131 = vadd.f32 0.0, %v4130
    %v4132 = vpop.f32.mrb[0].mxu0
    %4133 = vdwg.mxu0
    %4135 = vrot.lane.b32.xlu0 %v4131, 90
    %v4136 = vpop.permute.xlu0 %4135
    %vm4138 = vcmask 982736
    %4139 = vst.msk [vmem:[#allocation6] sm:$0xff] %vm4138, %v4136
    %4140 = vrot.lane.b32.xlu0 %v3966, 96
    %v4141 = vpop.permute.xlu0 %4140
    %v4142 = vsel %vm3976, %v4141, 0
    %4144 = vmatprep.subr.mxu0 0.0
    %4145 = vmatpush1.msra.mxu0 %v1963
    %4146 = vmatprep.subr.mxu0 0.0
    %4147 = vmatpush1.msra.mxu0 %v3982
    %4148 = vmatprep.subr.mxu0 0.0
    %4149 = vmatpush1.msra.mxu0 0.0
    %4150 = vmatprep.subr.mxu0 0.0
    %4151 = vmatpush1.msra.mxu0 0.0
    %4152 = vmatprep.subr.mxu0 0.0
    %4153 = vmatpush1.msra.mxu0 0.0
    %4154 = vmatprep.subr.mxu0 0.0
    %4155 = vmatpush1.msra.mxu0 0.0
    %4156 = vmatprep.subr.mxu0 0.0
    %4157 = vmatpush1.msra.mxu0 0.0
    %4158 = vmatprep.subr.mxu0 0.0
    %4159 = vmatpush1.msra.mxu0 0.0
    %4160 = vmatprep.subr.mxu0 0.0
    %4161 = vmatpush1.msra.mxu0 0.0
    %4162 = vmatprep.subr.mxu0 0.0
    %4163 = vmatpush1.msra.mxu0 0.0
    %4164 = vmatprep.subr.mxu0 0.0
    %4165 = vmatpush1.msra.mxu0 0.0
    %4166 = vmatprep.subr.mxu0 0.0
    %4167 = vmatpush1.msra.mxu0 0.0
    %4168 = vmatprep.subr.mxu0 0.0
    %4169 = vmatpush1.msra.mxu0 0.0
    %4170 = vmatprep.subr.mxu0 0.0
    %4171 = vmatpush1.msra.mxu0 0.0
    %4172 = vmatprep.subr.mxu0 0.0
    %4173 = vmatpush1.msra.mxu0 0.0
    %4174 = vmatprep.subr.mxu0 0.0
    %4175 = vmatpush1.msra.mxu0 0.0
    %4176 = vmatprep.subr.mxu0 0.0
    %4177 = vmatpush1.msra.mxu0 0.0
    %4178 = vmatprep.subr.mxu0 0.0
    %4179 = vmatpush1.msra.mxu0 0.0
    %4180 = vmatprep.subr.mxu0 0.0
    %4181 = vmatpush1.msra.mxu0 0.0
    %4182 = vmatprep.subr.mxu0 0.0
    %4183 = vmatpush1.msra.mxu0 0.0
    %4184 = vmatprep.subr.mxu0 0.0
    %4185 = vmatpush1.msra.mxu0 0.0
    %4186 = vmatprep.subr.mxu0 0.0
    %4187 = vmatpush1.msra.mxu0 0.0
    %4188 = vmatprep.subr.mxu0 0.0
    %4189 = vmatpush1.msra.mxu0 0.0
    %4190 = vmatprep.subr.mxu0 0.0
    %4191 = vmatpush1.msra.mxu0 0.0
    %4192 = vmatprep.subr.mxu0 0.0
    %4193 = vmatpush1.msra.mxu0 0.0
    %4194 = vmatprep.subr.mxu0 0.0
    %4195 = vmatpush1.msra.mxu0 0.0
    %4196 = vmatprep.subr.mxu0 0.0
    %4197 = vmatpush1.msra.mxu0 0.0
    %4198 = vmatprep.subr.mxu0 0.0
    %4199 = vmatpush1.msra.mxu0 0.0
    %4200 = vmatprep.subr.mxu0 0.0
    %4201 = vmatpush1.msra.mxu0 0.0
    %4202 = vmatprep.subr.mxu0 0.0
    %4203 = vmatpush1.msra.mxu0 0.0
    %4204 = vmatprep.subr.mxu0 0.0
    %4205 = vmatpush1.msra.mxu0 0.0
    %4206 = vmatprep.subr.mxu0 0.0
    %4207 = vmatpush1.msra.mxu0 0.0
    %4208 = vmatprep.mubr.f32.mxu0 0.0
    %4209 = vmatmul.mubr.f32.gmra.mrb[0].mxu0 %v4142
    %v4210 = vpop.f32.mrb[0].mxu0
    %v4211 = vadd.f32 0.0, %v4210
    %v4212 = vpop.f32.mrb[0].mxu0
    %4213 = vdwg.mxu0
    %4215 = vrot.lane.b32.xlu0 %v4211, 22
    %v4216 = vpop.permute.xlu0 %4215
    %vm4218 = vcmask 425136
    %4219 = vst.msk [vmem:[#allocation6 + $0x8] sm:$0xff] %vm4218, %v4216
    %4220 = vrot.lane.b32.xlu0 %v3966, 80
    %v4221 = vpop.permute.xlu0 %4220
    %v4222 = vsel %vm3976, %v4221, 0
    %4224 = vmatprep.subr.mxu0 0.0
    %4225 = vmatpush1.msra.mxu0 %v1963
    %4226 = vmatprep.subr.mxu0 0.0
    %4227 = vmatpush1.msra.mxu0 %v3982
    %4228 = vmatprep.subr.mxu0 0.0
    %4229 = vmatpush1.msra.mxu0 0.0
    %4230 = vmatprep.subr.mxu0 0.0
    %4231 = vmatpush1.msra.mxu0 0.0
    %4232 = vmatprep.subr.mxu0 0.0
    %4233 = vmatpush1.msra.mxu0 0.0
    %4234 = vmatprep.subr.mxu0 0.0
    %4235 = vmatpush1.msra.mxu0 0.0
    %4236 = vmatprep.subr.mxu0 0.0
    %4237 = vmatpush1.msra.mxu0 0.0
    %4238 = vmatprep.subr.mxu0 0.0
    %4239 = vmatpush1.msra.mxu0 0.0
    %4240 = vmatprep.subr.mxu0 0.0
    %4241 = vmatpush1.msra.mxu0 0.0
    %4242 = vmatprep.subr.mxu0 0.0
    %4243 = vmatpush1.msra.mxu0 0.0
    %4244 = vmatprep.subr.mxu0 0.0
    %4245 = vmatpush1.msra.mxu0 0.0
    %4246 = vmatprep.subr.mxu0 0.0
    %4247 = vmatpush1.msra.mxu0 0.0
    %4248 = vmatprep.subr.mxu0 0.0
    %4249 = vmatpush1.msra.mxu0 0.0
    %4250 = vmatprep.subr.mxu0 0.0
    %4251 = vmatpush1.msra.mxu0 0.0
    %4252 = vmatprep.subr.mxu0 0.0
    %4253 = vmatpush1.msra.mxu0 0.0
    %4254 = vmatprep.subr.mxu0 0.0
    %4255 = vmatpush1.msra.mxu0 0.0
    %4256 = vmatprep.subr.mxu0 0.0
    %4257 = vmatpush1.msra.mxu0 0.0
    %4258 = vmatprep.subr.mxu0 0.0
    %4259 = vmatpush1.msra.mxu0 0.0
    %4260 = vmatprep.subr.mxu0 0.0
    %4261 = vmatpush1.msra.mxu0 0.0
    %4262 = vmatprep.subr.mxu0 0.0
    %4263 = vmatpush1.msra.mxu0 0.0
    %4264 = vmatprep.subr.mxu0 0.0
    %4265 = vmatpush1.msra.mxu0 0.0
    %4266 = vmatprep.subr.mxu0 0.0
    %4267 = vmatpush1.msra.mxu0 0.0
    %4268 = vmatprep.subr.mxu0 0.0
    %4269 = vmatpush1.msra.mxu0 0.0
    %4270 = vmatprep.subr.mxu0 0.0
    %4271 = vmatpush1.msra.mxu0 0.0
    %4272 = vmatprep.subr.mxu0 0.0
    %4273 = vmatpush1.msra.mxu0 0.0
    %4274 = vmatprep.subr.mxu0 0.0
    %4275 = vmatpush1.msra.mxu0 0.0
    %4276 = vmatprep.subr.mxu0 0.0
    %4277 = vmatpush1.msra.mxu0 0.0
    %4278 = vmatprep.subr.mxu0 0.0
    %4279 = vmatpush1.msra.mxu0 0.0
    %4280 = vmatprep.subr.mxu0 0.0
    %4281 = vmatpush1.msra.mxu0 0.0
    %4282 = vmatprep.subr.mxu0 0.0
    %4283 = vmatpush1.msra.mxu0 0.0
    %4284 = vmatprep.subr.mxu0 0.0
    %4285 = vmatpush1.msra.mxu0 0.0
    %4286 = vmatprep.subr.mxu0 0.0
    %4287 = vmatpush1.msra.mxu0 0.0
    %4288 = vmatprep.mubr.f32.mxu0 0.0
    %4289 = vmatmul.mubr.f32.gmra.mrb[0].mxu0 %v4222
    %v4290 = vpop.f32.mrb[0].mxu0
    %v4291 = vadd.f32 0.0, %v4290
    %v4292 = vpop.f32.mrb[0].mxu0
    %4293 = vdwg.mxu0
    %4295 = vrot.lane.b32.xlu0 %v4291, 82
    %v4296 = vpop.permute.xlu0 %4295
    %vm4298 = vcmask 917136
    %4299 = vst.msk [vmem:[#allocation6 + $0x8] sm:$0xff] %vm4298, %v4296
    %4300 = vrot.lane.b32.xlu0 %v3966, 64
    %v4301 = vpop.permute.xlu0 %4300
    %v4302 = vsel %vm3976, %v4301, 0
    %4304 = vmatprep.subr.mxu0 0.0
    %4305 = vmatpush1.msra.mxu0 %v1963
    %4306 = vmatprep.subr.mxu0 0.0
    %4307 = vmatpush1.msra.mxu0 %v3982
    %4308 = vmatprep.subr.mxu0 0.0
    %4309 = vmatpush1.msra.mxu0 0.0
    %4310 = vmatprep.subr.mxu0 0.0
    %4311 = vmatpush1.msra.mxu0 0.0
    %4312 = vmatprep.subr.mxu0 0.0
    %4313 = vmatpush1.msra.mxu0 0.0
    %4314 = vmatprep.subr.mxu0 0.0
    %4315 = vmatpush1.msra.mxu0 0.0
    %4316 = vmatprep.subr.mxu0 0.0
    %4317 = vmatpush1.msra.mxu0 0.0
    %4318 = vmatprep.subr.mxu0 0.0
    %4319 = vmatpush1.msra.mxu0 0.0
    %4320 = vmatprep.subr.mxu0 0.0
    %4321 = vmatpush1.msra.mxu0 0.0
    %4322 = vmatprep.subr.mxu0 0.0
    %4323 = vmatpush1.msra.mxu0 0.0
    %4324 = vmatprep.subr.mxu0 0.0
    %4325 = vmatpush1.msra.mxu0 0.0
    %4326 = vmatprep.subr.mxu0 0.0
    %4327 = vmatpush1.msra.mxu0 0.0
    %4328 = vmatprep.subr.mxu0 0.0
    %4329 = vmatpush1.msra.mxu0 0.0
    %4330 = vmatprep.subr.mxu0 0.0
    %4331 = vmatpush1.msra.mxu0 0.0
    %4332 = vmatprep.subr.mxu0 0.0
    %4333 = vmatpush1.msra.mxu0 0.0
    %4334 = vmatprep.subr.mxu0 0.0
    %4335 = vmatpush1.msra.mxu0 0.0
    %4336 = vmatprep.subr.mxu0 0.0
    %4337 = vmatpush1.msra.mxu0 0.0
    %4338 = vmatprep.subr.mxu0 0.0
    %4339 = vmatpush1.msra.mxu0 0.0
    %4340 = vmatprep.subr.mxu0 0.0
    %4341 = vmatpush1.msra.mxu0 0.0
    %4342 = vmatprep.subr.mxu0 0.0
    %4343 = vmatpush1.msra.mxu0 0.0
    %4344 = vmatprep.subr.mxu0 0.0
    %4345 = vmatpush1.msra.mxu0 0.0
    %4346 = vmatprep.subr.mxu0 0.0
    %4347 = vmatpush1.msra.mxu0 0.0
    %4348 = vmatprep.subr.mxu0 0.0
    %4349 = vmatpush1.msra.mxu0 0.0
    %4350 = vmatprep.subr.mxu0 0.0
    %4351 = vmatpush1.msra.mxu0 0.0
    %4352 = vmatprep.subr.mxu0 0.0
    %4353 = vmatpush1.msra.mxu0 0.0
    %4354 = vmatprep.subr.mxu0 0.0
    %4355 = vmatpush1.msra.mxu0 0.0
    %4356 = vmatprep.subr.mxu0 0.0
    %4357 = vmatpush1.msra.mxu0 0.0
    %4358 = vmatprep.subr.mxu0 0.0
    %4359 = vmatpush1.msra.mxu0 0.0
    %4360 = vmatprep.subr.mxu0 0.0
    %4361 = vmatpush1.msra.mxu0 0.0
    %4362 = vmatprep.subr.mxu0 0.0
    %4363 = vmatpush1.msra.mxu0 0.0
    %4364 = vmatprep.subr.mxu0 0.0
    %4365 = vmatpush1.msra.mxu0 0.0
    %4366 = vmatprep.subr.mxu0 0.0
    %4367 = vmatpush1.msra.mxu0 0.0
    %4368 = vmatprep.mubr.f32.mxu0 0.0
    %4369 = vmatmul.mubr.f32.gmra.mrb[0].mxu0 %v4302
    %v4370 = vpop.f32.mrb[0].mxu0
    %v4371 = vadd.f32 0.0, %v4370
    %v4372 = vpop.f32.mrb[0].mxu0
    %4373 = vdwg.mxu0
    %4375 = vrot.lane.b32.xlu0 %v4371, 14
    %v4376 = vpop.permute.xlu0 %4375
    %vm4378 = vcmask 359536
    %4379 = vst.msk [vmem:[#allocation6 + $0x10] sm:$0xff] %vm4378, %v4376
    %4380 = vrot.lane.b32.xlu0 %v3966, 48
    %v4381 = vpop.permute.xlu0 %4380
    %v4382 = vsel %vm3976, %v4381, 0
    %4384 = vmatprep.subr.mxu0 0.0
    %4385 = vmatpush1.msra.mxu0 %v1963
    %4386 = vmatprep.subr.mxu0 0.0
    %4387 = vmatpush1.msra.mxu0 %v3982
    %4388 = vmatprep.subr.mxu0 0.0
    %4389 = vmatpush1.msra.mxu0 0.0
    %4390 = vmatprep.subr.mxu0 0.0
    %4391 = vmatpush1.msra.mxu0 0.0
    %4392 = vmatprep.subr.mxu0 0.0
    %4393 = vmatpush1.msra.mxu0 0.0
    %4394 = vmatprep.subr.mxu0 0.0
    %4395 = vmatpush1.msra.mxu0 0.0
    %4396 = vmatprep.subr.mxu0 0.0
    %4397 = vmatpush1.msra.mxu0 0.0
    %4398 = vmatprep.subr.mxu0 0.0
    %4399 = vmatpush1.msra.mxu0 0.0
    %4400 = vmatprep.subr.mxu0 0.0
    %4401 = vmatpush1.msra.mxu0 0.0
    %4402 = vmatprep.subr.mxu0 0.0
    %4403 = vmatpush1.msra.mxu0 0.0
    %4404 = vmatprep.subr.mxu0 0.0
    %4405 = vmatpush1.msra.mxu0 0.0
    %4406 = vmatprep.subr.mxu0 0.0
    %4407 = vmatpush1.msra.mxu0 0.0
    %4408 = vmatprep.subr.mxu0 0.0
    %4409 = vmatpush1.msra.mxu0 0.0
    %4410 = vmatprep.subr.mxu0 0.0
    %4411 = vmatpush1.msra.mxu0 0.0
    %4412 = vmatprep.subr.mxu0 0.0
    %4413 = vmatpush1.msra.mxu0 0.0
    %4414 = vmatprep.subr.mxu0 0.0
    %4415 = vmatpush1.msra.mxu0 0.0
    %4416 = vmatprep.subr.mxu0 0.0
    %4417 = vmatpush1.msra.mxu0 0.0
    %4418 = vmatprep.subr.mxu0 0.0
    %4419 = vmatpush1.msra.mxu0 0.0
    %4420 = vmatprep.subr.mxu0 0.0
    %4421 = vmatpush1.msra.mxu0 0.0
    %4422 = vmatprep.subr.mxu0 0.0
    %4423 = vmatpush1.msra.mxu0 0.0
    %4424 = vmatprep.subr.mxu0 0.0
    %4425 = vmatpush1.msra.mxu0 0.0
    %4426 = vmatprep.subr.mxu0 0.0
    %4427 = vmatpush1.msra.mxu0 0.0
    %4428 = vmatprep.subr.mxu0 0.0
    %4429 = vmatpush1.msra.mxu0 0.0
    %4430 = vmatprep.subr.mxu0 0.0
    %4431 = vmatpush1.msra.mxu0 0.0
    %4432 = vmatprep.subr.mxu0 0.0
    %4433 = vmatpush1.msra.mxu0 0.0
    %4434 = vmatprep.subr.mxu0 0.0
    %4435 = vmatpush1.msra.mxu0 0.0
    %4436 = vmatprep.subr.mxu0 0.0
    %4437 = vmatpush1.msra.mxu0 0.0
    %4438 = vmatprep.subr.mxu0 0.0
    %4439 = vmatpush1.msra.mxu0 0.0
    %4440 = vmatprep.subr.mxu0 0.0
    %4441 = vmatpush1.msra.mxu0 0.0
    %4442 = vmatprep.subr.mxu0 0.0
    %4443 = vmatpush1.msra.mxu0 0.0
    %4444 = vmatprep.subr.mxu0 0.0
    %4445 = vmatpush1.msra.mxu0 0.0
    %4446 = vmatprep.subr.mxu0 0.0
    %4447 = vmatpush1.msra.mxu0 0.0
    %4448 = vmatprep.mubr.f32.mxu0 0.0
    %4449 = vmatmul.mubr.f32.gmra.mrb[0].mxu0 %v4382
    %v4450 = vpop.f32.mrb[0].mxu0
    %v4451 = vadd.f32 0.0, %v4450
    %v4452 = vpop.f32.mrb[0].mxu0
    %4453 = vdwg.mxu0
    %4455 = vrot.lane.b32.xlu0 %v4451, 74
    %v4456 = vpop.permute.xlu0 %4455
    %vm4458 = vcmask 851536
    %4459 = vst.msk [vmem:[#allocation6 + $0x10] sm:$0xff] %vm4458, %v4456
    %4460 = vrot.lane.b32.xlu0 %v3966, 32
    %v4461 = vpop.permute.xlu0 %4460
    %v4462 = vsel %vm3976, %v4461, 0
    %4464 = vmatprep.subr.mxu0 0.0
    %4465 = vmatpush1.msra.mxu0 %v1963
    %4466 = vmatprep.subr.mxu0 0.0
    %4467 = vmatpush1.msra.mxu0 %v3982
    %4468 = vmatprep.subr.mxu0 0.0
    %4469 = vmatpush1.msra.mxu0 0.0
    %4470 = vmatprep.subr.mxu0 0.0
    %4471 = vmatpush1.msra.mxu0 0.0
    %4472 = vmatprep.subr.mxu0 0.0
    %4473 = vmatpush1.msra.mxu0 0.0
    %4474 = vmatprep.subr.mxu0 0.0
    %4475 = vmatpush1.msra.mxu0 0.0
    %4476 = vmatprep.subr.mxu0 0.0
    %4477 = vmatpush1.msra.mxu0 0.0
    %4478 = vmatprep.subr.mxu0 0.0
    %4479 = vmatpush1.msra.mxu0 0.0
    %4480 = vmatprep.subr.mxu0 0.0
    %4481 = vmatpush1.msra.mxu0 0.0
    %4482 = vmatprep.subr.mxu0 0.0
    %4483 = vmatpush1.msra.mxu0 0.0
    %4484 = vmatprep.subr.mxu0 0.0
    %4485 = vmatpush1.msra.mxu0 0.0
    %4486 = vmatprep.subr.mxu0 0.0
    %4487 = vmatpush1.msra.mxu0 0.0
    %4488 = vmatprep.subr.mxu0 0.0
    %4489 = vmatpush1.msra.mxu0 0.0
    %4490 = vmatprep.subr.mxu0 0.0
    %4491 = vmatpush1.msra.mxu0 0.0
    %4492 = vmatprep.subr.mxu0 0.0
    %4493 = vmatpush1.msra.mxu0 0.0
    %4494 = vmatprep.subr.mxu0 0.0
    %4495 = vmatpush1.msra.mxu0 0.0
    %4496 = vmatprep.subr.mxu0 0.0
    %4497 = vmatpush1.msra.mxu0 0.0
    %4498 = vmatprep.subr.mxu0 0.0
    %4499 = vmatpush1.msra.mxu0 0.0
    %4500 = vmatprep.subr.mxu0 0.0
    %4501 = vmatpush1.msra.mxu0 0.0
    %4502 = vmatprep.subr.mxu0 0.0
    %4503 = vmatpush1.msra.mxu0 0.0
    %4504 = vmatprep.subr.mxu0 0.0
    %4505 = vmatpush1.msra.mxu0 0.0
    %4506 = vmatprep.subr.mxu0 0.0
    %4507 = vmatpush1.msra.mxu0 0.0
    %4508 = vmatprep.subr.mxu0 0.0
    %4509 = vmatpush1.msra.mxu0 0.0
    %4510 = vmatprep.subr.mxu0 0.0
    %4511 = vmatpush1.msra.mxu0 0.0
    %4512 = vmatprep.subr.mxu0 0.0
    %4513 = vmatpush1.msra.mxu0 0.0
    %4514 = vmatprep.subr.mxu0 0.0
    %4515 = vmatpush1.msra.mxu0 0.0
    %4516 = vmatprep.subr.mxu0 0.0
    %4517 = vmatpush1.msra.mxu0 0.0
    %4518 = vmatprep.subr.mxu0 0.0
    %4519 = vmatpush1.msra.mxu0 0.0
    %4520 = vmatprep.subr.mxu0 0.0
    %4521 = vmatpush1.msra.mxu0 0.0
    %4522 = vmatprep.subr.mxu0 0.0
    %4523 = vmatpush1.msra.mxu0 0.0
    %4524 = vmatprep.subr.mxu0 0.0
    %4525 = vmatpush1.msra.mxu0 0.0
    %4526 = vmatprep.subr.mxu0 0.0
    %4527 = vmatpush1.msra.mxu0 0.0
    %4528 = vmatprep.mubr.f32.mxu0 0.0
    %4529 = vmatmul.mubr.f32.gmra.mrb[0].mxu0 %v4462
    %v4530 = vpop.f32.mrb[0].mxu0
    %v4531 = vadd.f32 0.0, %v4530
    %v4532 = vpop.f32.mrb[0].mxu0
    %4533 = vdwg.mxu0
    %4535 = vrot.lane.b32.xlu0 %v4531, 6
    %v4536 = vpop.permute.xlu0 %4535
    %vm4538 = vcmask 293936
    %4539 = vst.msk [vmem:[#allocation6 + $0x18] sm:$0xff] %vm4538, %v4536
    %4540 = vrot.lane.b32.xlu0 %v3966, 16
    %v4541 = vpop.permute.xlu0 %4540
    %v4542 = vsel %vm3976, %v4541, 0
    %4544 = vmatprep.subr.mxu0 0.0
    %4545 = vmatpush1.msra.mxu0 %v1963
    %4546 = vmatprep.subr.mxu0 0.0
    %4547 = vmatpush1.msra.mxu0 %v3982
    %4548 = vmatprep.subr.mxu0 0.0
    %4549 = vmatpush1.msra.mxu0 0.0
    %4550 = vmatprep.subr.mxu0 0.0
    %4551 = vmatpush1.msra.mxu0 0.0
    %4552 = vmatprep.subr.mxu0 0.0
    %4553 = vmatpush1.msra.mxu0 0.0
    %4554 = vmatprep.subr.mxu0 0.0
    %4555 = vmatpush1.msra.mxu0 0.0
    %4556 = vmatprep.subr.mxu0 0.0
    %4557 = vmatpush1.msra.mxu0 0.0
    %4558 = vmatprep.subr.mxu0 0.0
    %4559 = vmatpush1.msra.mxu0 0.0
    %4560 = vmatprep.subr.mxu0 0.0
    %4561 = vmatpush1.msra.mxu0 0.0
    %4562 = vmatprep.subr.mxu0 0.0
    %4563 = vmatpush1.msra.mxu0 0.0
    %4564 = vmatprep.subr.mxu0 0.0
    %4565 = vmatpush1.msra.mxu0 0.0
    %4566 = vmatprep.subr.mxu0 0.0
    %4567 = vmatpush1.msra.mxu0 0.0
    %4568 = vmatprep.subr.mxu0 0.0
    %4569 = vmatpush1.msra.mxu0 0.0
    %4570 = vmatprep.subr.mxu0 0.0
    %4571 = vmatpush1.msra.mxu0 0.0
    %4572 = vmatprep.subr.mxu0 0.0
    %4573 = vmatpush1.msra.mxu0 0.0
    %4574 = vmatprep.subr.mxu0 0.0
    %4575 = vmatpush1.msra.mxu0 0.0
    %4576 = vmatprep.subr.mxu0 0.0
    %4577 = vmatpush1.msra.mxu0 0.0
    %4578 = vmatprep.subr.mxu0 0.0
    %4579 = vmatpush1.msra.mxu0 0.0
    %4580 = vmatprep.subr.mxu0 0.0
    %4581 = vmatpush1.msra.mxu0 0.0
    %4582 = vmatprep.subr.mxu0 0.0
    %4583 = vmatpush1.msra.mxu0 0.0
    %4584 = vmatprep.subr.mxu0 0.0
    %4585 = vmatpush1.msra.mxu0 0.0
    %4586 = vmatprep.subr.mxu0 0.0
    %4587 = vmatpush1.msra.mxu0 0.0
    %4588 = vmatprep.subr.mxu0 0.0
    %4589 = vmatpush1.msra.mxu0 0.0
    %4590 = vmatprep.subr.mxu0 0.0
    %4591 = vmatpush1.msra.mxu0 0.0
    %4592 = vmatprep.subr.mxu0 0.0
    %4593 = vmatpush1.msra.mxu0 0.0
    %4594 = vmatprep.subr.mxu0 0.0
    %4595 = vmatpush1.msra.mxu0 0.0
    %4596 = vmatprep.subr.mxu0 0.0
    %4597 = vmatpush1.msra.mxu0 0.0
    %4598 = vmatprep.subr.mxu0 0.0
    %4599 = vmatpush1.msra.mxu0 0.0
    %4600 = vmatprep.subr.mxu0 0.0
    %4601 = vmatpush1.msra.mxu0 0.0
    %4602 = vmatprep.subr.mxu0 0.0
    %4603 = vmatpush1.msra.mxu0 0.0
    %4604 = vmatprep.subr.mxu0 0.0
    %4605 = vmatpush1.msra.mxu0 0.0
    %4606 = vmatprep.subr.mxu0 0.0
    %4607 = vmatpush1.msra.mxu0 0.0
    %4608 = vmatprep.mubr.f32.mxu0 0.0
    %4609 = vmatmul.mubr.f32.gmra.mrb[0].mxu0 %v4542
    %v4610 = vpop.f32.mrb[0].mxu0
    %v4611 = vadd.f32 0.0, %v4610
    %v4612 = vpop.f32.mrb[0].mxu0
    %4613 = vdwg.mxu0
    %4615 = vrot.lane.b32.xlu0 %v4611, 66
    %v4616 = vpop.permute.xlu0 %4615
    %vm4618 = vcmask 785936
    %4619 = vst.msk [vmem:[#allocation6 + $0x18] sm:$0xff] %vm4618, %v4616
    %v4621 = vsel %vm3976, %v3967, 0
    %4623 = vmatprep.subr.mxu0 0.0
    %4624 = vmatpush1.msra.mxu0 %v1963
    %4625 = vmatprep.subr.mxu0 0.0
    %4626 = vmatpush1.msra.mxu0 %v3982
    %4627 = vmatprep.subr.mxu0 0.0
    %4628 = vmatpush1.msra.mxu0 0.0
    %4629 = vmatprep.subr.mxu0 0.0
    %4630 = vmatpush1.msra.mxu0 0.0
    %4631 = vmatprep.subr.mxu0 0.0
    %4632 = vmatpush1.msra.mxu0 0.0
    %4633 = vmatprep.subr.mxu0 0.0
    %4634 = vmatpush1.msra.mxu0 0.0
    %4635 = vmatprep.subr.mxu0 0.0
    %4636 = vmatpush1.msra.mxu0 0.0
    %4637 = vmatprep.subr.mxu0 0.0
    %4638 = vmatpush1.msra.mxu0 0.0
    %4639 = vmatprep.subr.mxu0 0.0
    %4640 = vmatpush1.msra.mxu0 0.0
    %4641 = vmatprep.subr.mxu0 0.0
    %4642 = vmatpush1.msra.mxu0 0.0
    %4643 = vmatprep.subr.mxu0 0.0
    %4644 = vmatpush1.msra.mxu0 0.0
    %4645 = vmatprep.subr.mxu0 0.0
    %4646 = vmatpush1.msra.mxu0 0.0
    %4647 = vmatprep.subr.mxu0 0.0
    %4648 = vmatpush1.msra.mxu0 0.0
    %4649 = vmatprep.subr.mxu0 0.0
    %4650 = vmatpush1.msra.mxu0 0.0
    %4651 = vmatprep.subr.mxu0 0.0
    %4652 = vmatpush1.msra.mxu0 0.0
    %4653 = vmatprep.subr.mxu0 0.0
    %4654 = vmatpush1.msra.mxu0 0.0
    %4655 = vmatprep.subr.mxu0 0.0
    %4656 = vmatpush1.msra.mxu0 0.0
    %4657 = vmatprep.subr.mxu0 0.0
    %4658 = vmatpush1.msra.mxu0 0.0
    %4659 = vmatprep.subr.mxu0 0.0
    %4660 = vmatpush1.msra.mxu0 0.0
    %4661 = vmatprep.subr.mxu0 0.0
    %4662 = vmatpush1.msra.mxu0 0.0
    %4663 = vmatprep.subr.mxu0 0.0
    %4664 = vmatpush1.msra.mxu0 0.0
    %4665 = vmatprep.subr.mxu0 0.0
    %4666 = vmatpush1.msra.mxu0 0.0
    %4667 = vmatprep.subr.mxu0 0.0
    %4668 = vmatpush1.msra.mxu0 0.0
    %4669 = vmatprep.subr.mxu0 0.0
    %4670 = vmatpush1.msra.mxu0 0.0
    %4671 = vmatprep.subr.mxu0 0.0
    %4672 = vmatpush1.msra.mxu0 0.0
    %4673 = vmatprep.subr.mxu0 0.0
    %4674 = vmatpush1.msra.mxu0 0.0
    %4675 = vmatprep.subr.mxu0 0.0
    %4676 = vmatpush1.msra.mxu0 0.0
    %4677 = vmatprep.subr.mxu0 0.0
    %4678 = vmatpush1.msra.mxu0 0.0
    %4679 = vmatprep.subr.mxu0 0.0
    %4680 = vmatpush1.msra.mxu0 0.0
    %4681 = vmatprep.subr.mxu0 0.0
    %4682 = vmatpush1.msra.mxu0 0.0
    %4683 = vmatprep.subr.mxu0 0.0
    %4684 = vmatpush1.msra.mxu0 0.0
    %4685 = vmatprep.subr.mxu0 0.0
    %4686 = vmatpush1.msra.mxu0 0.0
    %4687 = vmatprep.mubr.f32.mxu0 0.0
    %4688 = vmatmul.mubr.f32.gmra.mrb[0].mxu0 %v4621
    %v4689 = vpop.f32.mrb[0].mxu0
    %v4690 = vadd.f32 0.0, %v4689
    %v4691 = vpop.f32.mrb[0].mxu0
    %4692 = vdwg.mxu0
    %4694 = vrot.lane.b32.xlu0 %v4690, 126
    %v4695 = vpop.permute.xlu0 %4694
    %vm4697 = vcmask 1048560
    %4698 = vst.msk [vmem:[#allocation6 + $0x18] sm:$0xff] %vm4697, %v4695
    %vm4699 = vcmask 228352
    %4700 = vst.msk [vmem:[#allocation6 + $0x20] sm:$0xff] %vm4699, %v4695
    %4701 = vrot.lane.b32.xlu0 %v3967, 112
    %v4702 = vpop.permute.xlu0 %4701
    %v4703 = vsel %vm3976, %v4702, 0
    %4705 = vmatprep.subr.mxu0 0.0
    %4706 = vmatpush1.msra.mxu0 %v1963
    %4707 = vmatprep.subr.mxu0 0.0
    %4708 = vmatpush1.msra.mxu0 %v3982
    %4709 = vmatprep.subr.mxu0 0.0
    %4710 = vmatpush1.msra.mxu0 0.0
    %4711 = vmatprep.subr.mxu0 0.0
    %4712 = vmatpush1.msra.mxu0 0.0
    %4713 = vmatprep.subr.mxu0 0.0
    %4714 = vmatpush1.msra.mxu0 0.0
    %4715 = vmatprep.subr.mxu0 0.0
    %4716 = vmatpush1.msra.mxu0 0.0
    %4717 = vmatprep.subr.mxu0 0.0
    %4718 = vmatpush1.msra.mxu0 0.0
    %4719 = vmatprep.subr.mxu0 0.0
    %4720 = vmatpush1.msra.mxu0 0.0
    %4721 = vmatprep.subr.mxu0 0.0
    %4722 = vmatpush1.msra.mxu0 0.0
    %4723 = vmatprep.subr.mxu0 0.0
    %4724 = vmatpush1.msra.mxu0 0.0
    %4725 = vmatprep.subr.mxu0 0.0
    %4726 = vmatpush1.msra.mxu0 0.0
    %4727 = vmatprep.subr.mxu0 0.0
    %4728 = vmatpush1.msra.mxu0 0.0
    %4729 = vmatprep.subr.mxu0 0.0
    %4730 = vmatpush1.msra.mxu0 0.0
    %4731 = vmatprep.subr.mxu0 0.0
    %4732 = vmatpush1.msra.mxu0 0.0
    %4733 = vmatprep.subr.mxu0 0.0
    %4734 = vmatpush1.msra.mxu0 0.0
    %4735 = vmatprep.subr.mxu0 0.0
    %4736 = vmatpush1.msra.mxu0 0.0
    %4737 = vmatprep.subr.mxu0 0.0
    %4738 = vmatpush1.msra.mxu0 0.0
    %4739 = vmatprep.subr.mxu0 0.0
    %4740 = vmatpush1.msra.mxu0 0.0
    %4741 = vmatprep.subr.mxu0 0.0
    %4742 = vmatpush1.msra.mxu0 0.0
    %4743 = vmatprep.subr.mxu0 0.0
    %4744 = vmatpush1.msra.mxu0 0.0
    %4745 = vmatprep.subr.mxu0 0.0
    %4746 = vmatpush1.msra.mxu0 0.0
    %4747 = vmatprep.subr.mxu0 0.0
    %4748 = vmatpush1.msra.mxu0 0.0
    %4749 = vmatprep.subr.mxu0 0.0
    %4750 = vmatpush1.msra.mxu0 0.0
    %4751 = vmatprep.subr.mxu0 0.0
    %4752 = vmatpush1.msra.mxu0 0.0
    %4753 = vmatprep.subr.mxu0 0.0
    %4754 = vmatpush1.msra.mxu0 0.0
    %4755 = vmatprep.subr.mxu0 0.0
    %4756 = vmatpush1.msra.mxu0 0.0
    %4757 = vmatprep.subr.mxu0 0.0
    %4758 = vmatpush1.msra.mxu0 0.0
    %4759 = vmatprep.subr.mxu0 0.0
    %4760 = vmatpush1.msra.mxu0 0.0
    %4761 = vmatprep.subr.mxu0 0.0
    %4762 = vmatpush1.msra.mxu0 0.0
    %4763 = vmatprep.subr.mxu0 0.0
    %4764 = vmatpush1.msra.mxu0 0.0
    %4765 = vmatprep.subr.mxu0 0.0
    %4766 = vmatpush1.msra.mxu0 0.0
    %4767 = vmatprep.subr.mxu0 0.0
    %4768 = vmatpush1.msra.mxu0 0.0
    %4769 = vmatprep.mubr.f32.mxu0 0.0
    %4770 = vmatmul.mubr.f32.gmra.mrb[0].mxu0 %v4703
    %v4771 = vpop.f32.mrb[0].mxu0
    %v4772 = vadd.f32 0.0, %v4771
    %v4773 = vpop.f32.mrb[0].mxu0
    %4774 = vdwg.mxu0
    %4776 = vrot.lane.b32.xlu0 %v4772, 58
    %v4777 = vpop.permute.xlu0 %4776
    %vm4779 = vcmask 720336
    %4780 = vst.msk [vmem:[#allocation6 + $0x20] sm:$0xff] %vm4779, %v4777
    %4781 = vrot.lane.b32.xlu0 %v3967, 96
    %v4782 = vpop.permute.xlu0 %4781
    %v4783 = vsel %vm3976, %v4782, 0
    %4785 = vmatprep.subr.mxu0 0.0
    %4786 = vmatpush1.msra.mxu0 %v1963
    %4787 = vmatprep.subr.mxu0 0.0
    %4788 = vmatpush1.msra.mxu0 %v3982
    %4789 = vmatprep.subr.mxu0 0.0
    %4790 = vmatpush1.msra.mxu0 0.0
    %4791 = vmatprep.subr.mxu0 0.0
    %4792 = vmatpush1.msra.mxu0 0.0
    %4793 = vmatprep.subr.mxu0 0.0
    %4794 = vmatpush1.msra.mxu0 0.0
    %4795 = vmatprep.subr.mxu0 0.0
    %4796 = vmatpush1.msra.mxu0 0.0
    %4797 = vmatprep.subr.mxu0 0.0
    %4798 = vmatpush1.msra.mxu0 0.0
    %4799 = vmatprep.subr.mxu0 0.0
    %4800 = vmatpush1.msra.mxu0 0.0
    %4801 = vmatprep.subr.mxu0 0.0
    %4802 = vmatpush1.msra.mxu0 0.0
    %4803 = vmatprep.subr.mxu0 0.0
    %4804 = vmatpush1.msra.mxu0 0.0
    %4805 = vmatprep.subr.mxu0 0.0
    %4806 = vmatpush1.msra.mxu0 0.0
    %4807 = vmatprep.subr.mxu0 0.0
    %4808 = vmatpush1.msra.mxu0 0.0
    %4809 = vmatprep.subr.mxu0 0.0
    %4810 = vmatpush1.msra.mxu0 0.0
    %4811 = vmatprep.subr.mxu0 0.0
    %4812 = vmatpush1.msra.mxu0 0.0
    %4813 = vmatprep.subr.mxu0 0.0
    %4814 = vmatpush1.msra.mxu0 0.0
    %4815 = vmatprep.subr.mxu0 0.0
    %4816 = vmatpush1.msra.mxu0 0.0
    %4817 = vmatprep.subr.mxu0 0.0
    %4818 = vmatpush1.msra.mxu0 0.0
    %4819 = vmatprep.subr.mxu0 0.0
    %4820 = vmatpush1.msra.mxu0 0.0
    %4821 = vmatprep.subr.mxu0 0.0
    %4822 = vmatpush1.msra.mxu0 0.0
    %4823 = vmatprep.subr.mxu0 0.0
    %4824 = vmatpush1.msra.mxu0 0.0
    %4825 = vmatprep.subr.mxu0 0.0
    %4826 = vmatpush1.msra.mxu0 0.0
    %4827 = vmatprep.subr.mxu0 0.0
    %4828 = vmatpush1.msra.mxu0 0.0
    %4829 = vmatprep.subr.mxu0 0.0
    %4830 = vmatpush1.msra.mxu0 0.0
    %4831 = vmatprep.subr.mxu0 0.0
    %4832 = vmatpush1.msra.mxu0 0.0
    %4833 = vmatprep.subr.mxu0 0.0
    %4834 = vmatpush1.msra.mxu0 0.0
    %4835 = vmatprep.subr.mxu0 0.0
    %4836 = vmatpush1.msra.mxu0 0.0
    %4837 = vmatprep.subr.mxu0 0.0
    %4838 = vmatpush1.msra.mxu0 0.0
    %4839 = vmatprep.subr.mxu0 0.0
    %4840 = vmatpush1.msra.mxu0 0.0
    %4841 = vmatprep.subr.mxu0 0.0
    %4842 = vmatpush1.msra.mxu0 0.0
    %4843 = vmatprep.subr.mxu0 0.0
    %4844 = vmatpush1.msra.mxu0 0.0
    %4845 = vmatprep.subr.mxu0 0.0
    %4846 = vmatpush1.msra.mxu0 0.0
    %4847 = vmatprep.subr.mxu0 0.0
    %4848 = vmatpush1.msra.mxu0 0.0
    %4849 = vmatprep.mubr.f32.mxu0 0.0
    %4850 = vmatmul.mubr.f32.gmra.mrb[0].mxu0 %v4783
    %v4851 = vpop.f32.mrb[0].mxu0
    %v4852 = vadd.f32 0.0, %v4851
    %v4853 = vpop.f32.mrb[0].mxu0
    %4854 = vdwg.mxu0
    %4856 = vrot.lane.b32.xlu0 %v4852, 118
    %v4857 = vpop.permute.xlu0 %4856
    %vm4859 = vcmask 1048496
    %4860 = vst.msk [vmem:[#allocation6 + $0x20] sm:$0xff] %vm4859, %v4857
    %vm4861 = vcmask 162816
    %4862 = vst.msk [vmem:[#allocation6 + $0x28] sm:$0xff] %vm4861, %v4857
    %4863 = vrot.lane.b32.xlu0 %v3967, 80
    %v4864 = vpop.permute.xlu0 %4863
    %v4865 = vsel %vm3976, %v4864, 0
    %4867 = vmatprep.subr.mxu0 0.0
    %4868 = vmatpush1.msra.mxu0 %v1963
    %4869 = vmatprep.subr.mxu0 0.0
    %4870 = vmatpush1.msra.mxu0 %v3982
    %4871 = vmatprep.subr.mxu0 0.0
    %4872 = vmatpush1.msra.mxu0 0.0
    %4873 = vmatprep.subr.mxu0 0.0
    %4874 = vmatpush1.msra.mxu0 0.0
    %4875 = vmatprep.subr.mxu0 0.0
    %4876 = vmatpush1.msra.mxu0 0.0
    %4877 = vmatprep.subr.mxu0 0.0
    %4878 = vmatpush1.msra.mxu0 0.0
    %4879 = vmatprep.subr.mxu0 0.0
    %4880 = vmatpush1.msra.mxu0 0.0
    %4881 = vmatprep.subr.mxu0 0.0
    %4882 = vmatpush1.msra.mxu0 0.0
    %4883 = vmatprep.subr.mxu0 0.0
    %4884 = vmatpush1.msra.mxu0 0.0
    %4885 = vmatprep.subr.mxu0 0.0
    %4886 = vmatpush1.msra.mxu0 0.0
    %4887 = vmatprep.subr.mxu0 0.0
    %4888 = vmatpush1.msra.mxu0 0.0
    %4889 = vmatprep.subr.mxu0 0.0
    %4890 = vmatpush1.msra.mxu0 0.0
    %4891 = vmatprep.subr.mxu0 0.0
    %4892 = vmatpush1.msra.mxu0 0.0
    %4893 = vmatprep.subr.mxu0 0.0
    %4894 = vmatpush1.msra.mxu0 0.0
    %4895 = vmatprep.subr.mxu0 0.0
    %4896 = vmatpush1.msra.mxu0 0.0
    %4897 = vmatprep.subr.mxu0 0.0
    %4898 = vmatpush1.msra.mxu0 0.0
    %4899 = vmatprep.subr.mxu0 0.0
    %4900 = vmatpush1.msra.mxu0 0.0
    %4901 = vmatprep.subr.mxu0 0.0
    %4902 = vmatpush1.msra.mxu0 0.0
    %4903 = vmatprep.subr.mxu0 0.0
    %4904 = vmatpush1.msra.mxu0 0.0
    %4905 = vmatprep.subr.mxu0 0.0
    %4906 = vmatpush1.msra.mxu0 0.0
    %4907 = vmatprep.subr.mxu0 0.0
    %4908 = vmatpush1.msra.mxu0 0.0
    %4909 = vmatprep.subr.mxu0 0.0
    %4910 = vmatpush1.msra.mxu0 0.0
    %4911 = vmatprep.subr.mxu0 0.0
    %4912 = vmatpush1.msra.mxu0 0.0
    %4913 = vmatprep.subr.mxu0 0.0
    %4914 = vmatpush1.msra.mxu0 0.0
    %4915 = vmatprep.subr.mxu0 0.0
    %4916 = vmatpush1.msra.mxu0 0.0
    %4917 = vmatprep.subr.mxu0 0.0
    %4918 = vmatpush1.msra.mxu0 0.0
    %4919 = vmatprep.subr.mxu0 0.0
    %4920 = vmatpush1.msra.mxu0 0.0
    %4921 = vmatprep.subr.mxu0 0.0
    %4922 = vmatpush1.msra.mxu0 0.0
    %4923 = vmatprep.subr.mxu0 0.0
    %4924 = vmatpush1.msra.mxu0 0.0
    %4925 = vmatprep.subr.mxu0 0.0
    %4926 = vmatpush1.msra.mxu0 0.0
    %4927 = vmatprep.subr.mxu0 0.0
    %4928 = vmatpush1.msra.mxu0 0.0
    %4929 = vmatprep.subr.mxu0 0.0
    %4930 = vmatpush1.msra.mxu0 0.0
    %4931 = vmatprep.mubr.f32.mxu0 0.0
    %4932 = vmatmul.mubr.f32.gmra.mrb[0].mxu0 %v4865
    %v4933 = vpop.f32.mrb[0].mxu0
    %v4934 = vadd.f32 0.0, %v4933
    %v4935 = vpop.f32.mrb[0].mxu0
    %4936 = vdwg.mxu0
    %4938 = vrot.lane.b32.xlu0 %v4934, 50
    %v4939 = vpop.permute.xlu0 %4938
    %vm4941 = vcmask 654736
    %4942 = vst.msk [vmem:[#allocation6 + $0x28] sm:$0xff] %vm4941, %v4939
    %4943 = vrot.lane.b32.xlu0 %v3967, 64
    %v4944 = vpop.permute.xlu0 %4943
    %v4945 = vsel %vm3976, %v4944, 0
    %4947 = vmatprep.subr.mxu0 0.0
    %4948 = vmatpush1.msra.mxu0 %v1963
    %4949 = vmatprep.subr.mxu0 0.0
    %4950 = vmatpush1.msra.mxu0 %v3982
    %4951 = vmatprep.subr.mxu0 0.0
    %4952 = vmatpush1.msra.mxu0 0.0
    %4953 = vmatprep.subr.mxu0 0.0
    %4954 = vmatpush1.msra.mxu0 0.0
    %4955 = vmatprep.subr.mxu0 0.0
    %4956 = vmatpush1.msra.mxu0 0.0
    %4957 = vmatprep.subr.mxu0 0.0
    %4958 = vmatpush1.msra.mxu0 0.0
    %4959 = vmatprep.subr.mxu0 0.0
    %4960 = vmatpush1.msra.mxu0 0.0
    %4961 = vmatprep.subr.mxu0 0.0
    %4962 = vmatpush1.msra.mxu0 0.0
    %4963 = vmatprep.subr.mxu0 0.0
    %4964 = vmatpush1.msra.mxu0 0.0
    %4965 = vmatprep.subr.mxu0 0.0
    %4966 = vmatpush1.msra.mxu0 0.0
    %4967 = vmatprep.subr.mxu0 0.0
    %4968 = vmatpush1.msra.mxu0 0.0
    %4969 = vmatprep.subr.mxu0 0.0
    %4970 = vmatpush1.msra.mxu0 0.0
    %4971 = vmatprep.subr.mxu0 0.0
    %4972 = vmatpush1.msra.mxu0 0.0
    %4973 = vmatprep.subr.mxu0 0.0
    %4974 = vmatpush1.msra.mxu0 0.0
    %4975 = vmatprep.subr.mxu0 0.0
    %4976 = vmatpush1.msra.mxu0 0.0
    %4977 = vmatprep.subr.mxu0 0.0
    %4978 = vmatpush1.msra.mxu0 0.0
    %4979 = vmatprep.subr.mxu0 0.0
    %4980 = vmatpush1.msra.mxu0 0.0
    %4981 = vmatprep.subr.mxu0 0.0
    %4982 = vmatpush1.msra.mxu0 0.0
    %4983 = vmatprep.subr.mxu0 0.0
    %4984 = vmatpush1.msra.mxu0 0.0
    %4985 = vmatprep.subr.mxu0 0.0
    %4986 = vmatpush1.msra.mxu0 0.0
    %4987 = vmatprep.subr.mxu0 0.0
    %4988 = vmatpush1.msra.mxu0 0.0
    %4989 = vmatprep.subr.mxu0 0.0
    %4990 = vmatpush1.msra.mxu0 0.0
    %4991 = vmatprep.subr.mxu0 0.0
    %4992 = vmatpush1.msra.mxu0 0.0
    %4993 = vmatprep.subr.mxu0 0.0
    %4994 = vmatpush1.msra.mxu0 0.0
    %4995 = vmatprep.subr.mxu0 0.0
    %4996 = vmatpush1.msra.mxu0 0.0
    %4997 = vmatprep.subr.mxu0 0.0
    %4998 = vmatpush1.msra.mxu0 0.0
    %4999 = vmatprep.subr.mxu0 0.0
    %5000 = vmatpush1.msra.mxu0 0.0
    %5001 = vmatprep.subr.mxu0 0.0
    %5002 = vmatpush1.msra.mxu0 0.0
    %5003 = vmatprep.subr.mxu0 0.0
    %5004 = vmatpush1.msra.mxu0 0.0
    %5005 = vmatprep.subr.mxu0 0.0
    %5006 = vmatpush1.msra.mxu0 0.0
    %5007 = vmatprep.subr.mxu0 0.0
    %5008 = vmatpush1.msra.mxu0 0.0
    %5009 = vmatprep.subr.mxu0 0.0
    %5010 = vmatpush1.msra.mxu0 0.0
    %5011 = vmatprep.mubr.f32.mxu0 0.0
    %5012 = vmatmul.mubr.f32.gmra.mrb[0].mxu0 %v4945
    %v5013 = vpop.f32.mrb[0].mxu0
    %v5014 = vadd.f32 0.0, %v5013
    %v5015 = vpop.f32.mrb[0].mxu0
    %5016 = vdwg.mxu0
    %5018 = vrot.lane.b32.xlu0 %v5014, 110
    %v5019 = vpop.permute.xlu0 %5018
    %vm5021 = vcmask 1048432
    %5022 = vst.msk [vmem:[#allocation6 + $0x28] sm:$0xff] %vm5021, %v5019
    %vm5023 = vcmask 97280
    %5024 = vst.msk [vmem:[#allocation6 + $0x30] sm:$0xff] %vm5023, %v5019
    %5025 = vrot.lane.b32.xlu0 %v3967, 48
    %v5026 = vpop.permute.xlu0 %5025
    %v5027 = vsel %vm3976, %v5026, 0
    %5029 = vmatprep.subr.mxu0 0.0
    %5030 = vmatpush1.msra.mxu0 %v1963
    %5031 = vmatprep.subr.mxu0 0.0
    %5032 = vmatpush1.msra.mxu0 %v3982
    %5033 = vmatprep.subr.mxu0 0.0
    %5034 = vmatpush1.msra.mxu0 0.0
    %5035 = vmatprep.subr.mxu0 0.0
    %5036 = vmatpush1.msra.mxu0 0.0
    %5037 = vmatprep.subr.mxu0 0.0
    %5038 = vmatpush1.msra.mxu0 0.0
    %5039 = vmatprep.subr.mxu0 0.0
    %5040 = vmatpush1.msra.mxu0 0.0
    %5041 = vmatprep.subr.mxu0 0.0
    %5042 = vmatpush1.msra.mxu0 0.0
    %5043 = vmatprep.subr.mxu0 0.0
    %5044 = vmatpush1.msra.mxu0 0.0
    %5045 = vmatprep.subr.mxu0 0.0
    %5046 = vmatpush1.msra.mxu0 0.0
    %5047 = vmatprep.subr.mxu0 0.0
    %5048 = vmatpush1.msra.mxu0 0.0
    %5049 = vmatprep.subr.mxu0 0.0
    %5050 = vmatpush1.msra.mxu0 0.0
    %5051 = vmatprep.subr.mxu0 0.0
    %5052 = vmatpush1.msra.mxu0 0.0
    %5053 = vmatprep.subr.mxu0 0.0
    %5054 = vmatpush1.msra.mxu0 0.0
    %5055 = vmatprep.subr.mxu0 0.0
    %5056 = vmatpush1.msra.mxu0 0.0
    %5057 = vmatprep.subr.mxu0 0.0
    %5058 = vmatpush1.msra.mxu0 0.0
    %5059 = vmatprep.subr.mxu0 0.0
    %5060 = vmatpush1.msra.mxu0 0.0
    %5061 = vmatprep.subr.mxu0 0.0
    %5062 = vmatpush1.msra.mxu0 0.0
    %5063 = vmatprep.subr.mxu0 0.0
    %5064 = vmatpush1.msra.mxu0 0.0
    %5065 = vmatprep.subr.mxu0 0.0
    %5066 = vmatpush1.msra.mxu0 0.0
    %5067 = vmatprep.subr.mxu0 0.0
    %5068 = vmatpush1.msra.mxu0 0.0
    %5069 = vmatprep.subr.mxu0 0.0
    %5070 = vmatpush1.msra.mxu0 0.0
    %5071 = vmatprep.subr.mxu0 0.0
    %5072 = vmatpush1.msra.mxu0 0.0
    %5073 = vmatprep.subr.mxu0 0.0
    %5074 = vmatpush1.msra.mxu0 0.0
    %5075 = vmatprep.subr.mxu0 0.0
    %5076 = vmatpush1.msra.mxu0 0.0
    %5077 = vmatprep.subr.mxu0 0.0
    %5078 = vmatpush1.msra.mxu0 0.0
    %5079 = vmatprep.subr.mxu0 0.0
    %5080 = vmatpush1.msra.mxu0 0.0
    %5081 = vmatprep.subr.mxu0 0.0
    %5082 = vmatpush1.msra.mxu0 0.0
    %5083 = vmatprep.subr.mxu0 0.0
    %5084 = vmatpush1.msra.mxu0 0.0
    %5085 = vmatprep.subr.mxu0 0.0
    %5086 = vmatpush1.msra.mxu0 0.0
    %5087 = vmatprep.subr.mxu0 0.0
    %5088 = vmatpush1.msra.mxu0 0.0
    %5089 = vmatprep.subr.mxu0 0.0
    %5090 = vmatpush1.msra.mxu0 0.0
    %5091 = vmatprep.subr.mxu0 0.0
    %5092 = vmatpush1.msra.mxu0 0.0
    %5093 = vmatprep.mubr.f32.mxu0 0.0
    %5094 = vmatmul.mubr.f32.gmra.mrb[0].mxu0 %v5027
    %v5095 = vpop.f32.mrb[0].mxu0
    %v5096 = vadd.f32 0.0, %v5095
    %v5097 = vpop.f32.mrb[0].mxu0
    %5098 = vdwg.mxu0
    %5100 = vrot.lane.b32.xlu0 %v5096, 42
    %v5101 = vpop.permute.xlu0 %5100
    %vm5103 = vcmask 589136
    %5104 = vst.msk [vmem:[#allocation6 + $0x30] sm:$0xff] %vm5103, %v5101
    %v5106 = vsel %vm3976, %v3968, 0
    %5108 = vmatprep.subr.mxu0 0.0
    %5109 = vmatpush1.msra.mxu0 %v1963
    %5110 = vmatprep.subr.mxu0 0.0
    %5111 = vmatpush1.msra.mxu0 %v3982
    %5112 = vmatprep.subr.mxu0 0.0
    %5113 = vmatpush1.msra.mxu0 0.0
    %5114 = vmatprep.subr.mxu0 0.0
    %5115 = vmatpush1.msra.mxu0 0.0
    %5116 = vmatprep.subr.mxu0 0.0
    %5117 = vmatpush1.msra.mxu0 0.0
    %5118 = vmatprep.subr.mxu0 0.0
    %5119 = vmatpush1.msra.mxu0 0.0
    %5120 = vmatprep.subr.mxu0 0.0
    %5121 = vmatpush1.msra.mxu0 0.0
    %5122 = vmatprep.subr.mxu0 0.0
    %5123 = vmatpush1.msra.mxu0 0.0
    %5124 = vmatprep.subr.mxu0 0.0
    %5125 = vmatpush1.msra.mxu0 0.0
    %5126 = vmatprep.subr.mxu0 0.0
    %5127 = vmatpush1.msra.mxu0 0.0
    %5128 = vmatprep.subr.mxu0 0.0
    %5129 = vmatpush1.msra.mxu0 0.0
    %5130 = vmatprep.subr.mxu0 0.0
    %5131 = vmatpush1.msra.mxu0 0.0
    %5132 = vmatprep.subr.mxu0 0.0
    %5133 = vmatpush1.msra.mxu0 0.0
    %5134 = vmatprep.subr.mxu0 0.0
    %5135 = vmatpush1.msra.mxu0 0.0
    %5136 = vmatprep.subr.mxu0 0.0
    %5137 = vmatpush1.msra.mxu0 0.0
    %5138 = vmatprep.subr.mxu0 0.0
    %5139 = vmatpush1.msra.mxu0 0.0
    %5140 = vmatprep.subr.mxu0 0.0
    %5141 = vmatpush1.msra.mxu0 0.0
    %5142 = vmatprep.subr.mxu0 0.0
    %5143 = vmatpush1.msra.mxu0 0.0
    %5144 = vmatprep.subr.mxu0 0.0
    %5145 = vmatpush1.msra.mxu0 0.0
    %5146 = vmatprep.subr.mxu0 0.0
    %5147 = vmatpush1.msra.mxu0 0.0
    %5148 = vmatprep.subr.mxu0 0.0
    %5149 = vmatpush1.msra.mxu0 0.0
    %5150 = vmatprep.subr.mxu0 0.0
    %5151 = vmatpush1.msra.mxu0 0.0
    %5152 = vmatprep.subr.mxu0 0.0
    %5153 = vmatpush1.msra.mxu0 0.0
    %5154 = vmatprep.subr.mxu0 0.0
    %5155 = vmatpush1.msra.mxu0 0.0
    %5156 = vmatprep.subr.mxu0 0.0
    %5157 = vmatpush1.msra.mxu0 0.0
    %5158 = vmatprep.subr.mxu0 0.0
    %5159 = vmatpush1.msra.mxu0 0.0
    %5160 = vmatprep.subr.mxu0 0.0
    %5161 = vmatpush1.msra.mxu0 0.0
    %5162 = vmatprep.subr.mxu0 0.0
    %5163 = vmatpush1.msra.mxu0 0.0
    %5164 = vmatprep.subr.mxu0 0.0
    %5165 = vmatpush1.msra.mxu0 0.0
    %5166 = vmatprep.subr.mxu0 0.0
    %5167 = vmatpush1.msra.mxu0 0.0
    %5168 = vmatprep.subr.mxu0 0.0
    %5169 = vmatpush1.msra.mxu0 0.0
    %5170 = vmatprep.subr.mxu0 0.0
    %5171 = vmatpush1.msra.mxu0 0.0
    %5172 = vmatprep.mubr.f32.mxu0 0.0
    %5173 = vmatmul.mubr.f32.gmra.mrb[0].mxu0 %v5106
    %v5174 = vpop.f32.mrb[0].mxu0
    %v5175 = vadd.f32 0.0, %v5174
    %v5176 = vpop.f32.mrb[0].mxu0
    %5177 = vdwg.mxu0
    %5179 = vrot.lane.b32.xlu0 %v5175, 34
    %v5180 = vpop.permute.xlu0 %5179
    %vm5182 = vcmask 523536
    %5183 = vst.msk [vmem:[#allocation6 + $0x38] sm:$0xff] %vm5182, %v5180
    %5184 = vrot.lane.b32.xlu0 %v3968, 112
    %v5185 = vpop.permute.xlu0 %5184
    %v5186 = vsel %vm3976, %v5185, 0
    %5188 = vmatprep.subr.mxu0 0.0
    %5189 = vmatpush1.msra.mxu0 %v1963
    %5190 = vmatprep.subr.mxu0 0.0
    %5191 = vmatpush1.msra.mxu0 %v3982
    %5192 = vmatprep.subr.mxu0 0.0
    %5193 = vmatpush1.msra.mxu0 0.0
    %5194 = vmatprep.subr.mxu0 0.0
    %5195 = vmatpush1.msra.mxu0 0.0
    %5196 = vmatprep.subr.mxu0 0.0
    %5197 = vmatpush1.msra.mxu0 0.0
    %5198 = vmatprep.subr.mxu0 0.0
    %5199 = vmatpush1.msra.mxu0 0.0
    %5200 = vmatprep.subr.mxu0 0.0
    %5201 = vmatpush1.msra.mxu0 0.0
    %5202 = vmatprep.subr.mxu0 0.0
    %5203 = vmatpush1.msra.mxu0 0.0
    %5204 = vmatprep.subr.mxu0 0.0
    %5205 = vmatpush1.msra.mxu0 0.0
    %5206 = vmatprep.subr.mxu0 0.0
    %5207 = vmatpush1.msra.mxu0 0.0
    %5208 = vmatprep.subr.mxu0 0.0
    %5209 = vmatpush1.msra.mxu0 0.0
    %5210 = vmatprep.subr.mxu0 0.0
    %5211 = vmatpush1.msra.mxu0 0.0
    %5212 = vmatprep.subr.mxu0 0.0
    %5213 = vmatpush1.msra.mxu0 0.0
    %5214 = vmatprep.subr.mxu0 0.0
    %5215 = vmatpush1.msra.mxu0 0.0
    %5216 = vmatprep.subr.mxu0 0.0
    %5217 = vmatpush1.msra.mxu0 0.0
    %5218 = vmatprep.subr.mxu0 0.0
    %5219 = vmatpush1.msra.mxu0 0.0
    %5220 = vmatprep.subr.mxu0 0.0
    %5221 = vmatpush1.msra.mxu0 0.0
    %5222 = vmatprep.subr.mxu0 0.0
    %5223 = vmatpush1.msra.mxu0 0.0
    %5224 = vmatprep.subr.mxu0 0.0
    %5225 = vmatpush1.msra.mxu0 0.0
    %5226 = vmatprep.subr.mxu0 0.0
    %5227 = vmatpush1.msra.mxu0 0.0
    %5228 = vmatprep.subr.mxu0 0.0
    %5229 = vmatpush1.msra.mxu0 0.0
    %5230 = vmatprep.subr.mxu0 0.0
    %5231 = vmatpush1.msra.mxu0 0.0
    %5232 = vmatprep.subr.mxu0 0.0
    %5233 = vmatpush1.msra.mxu0 0.0
    %5234 = vmatprep.subr.mxu0 0.0
    %5235 = vmatpush1.msra.mxu0 0.0
    %5236 = vmatprep.subr.mxu0 0.0
    %5237 = vmatpush1.msra.mxu0 0.0
    %5238 = vmatprep.subr.mxu0 0.0
    %5239 = vmatpush1.msra.mxu0 0.0
    %5240 = vmatprep.subr.mxu0 0.0
    %5241 = vmatpush1.msra.mxu0 0.0
    %5242 = vmatprep.subr.mxu0 0.0
    %5243 = vmatpush1.msra.mxu0 0.0
    %5244 = vmatprep.subr.mxu0 0.0
    %5245 = vmatpush1.msra.mxu0 0.0
    %5246 = vmatprep.subr.mxu0 0.0
    %5247 = vmatpush1.msra.mxu0 0.0
    %5248 = vmatprep.subr.mxu0 0.0
    %5249 = vmatpush1.msra.mxu0 0.0
    %5250 = vmatprep.subr.mxu0 0.0
    %5251 = vmatpush1.msra.mxu0 0.0
    %5252 = vmatprep.mubr.f32.mxu0 0.0
    %5253 = vmatmul.mubr.f32.gmra.mrb[0].mxu0 %v5186
    %v5254 = vpop.f32.mrb[0].mxu0
    %v5255 = vadd.f32 0.0, %v5254
    %v5256 = vpop.f32.mrb[0].mxu0
    %5257 = vdwg.mxu0
    %5259 = vrot.lane.b32.xlu0 %v5255, 94
    %v5260 = vpop.permute.xlu0 %5259
    %vm5262 = vcmask 1015536
    %5263 = vst.msk [vmem:[#allocation6 + $0x38] sm:$0xff] %vm5262, %v5260
    %5264 = vrot.lane.b32.xlu0 %v3968, 96
    %v5265 = vpop.permute.xlu0 %5264
    %v5266 = vsel %vm3976, %v5265, 0
    %5268 = vmatprep.subr.mxu0 0.0
    %5269 = vmatpush1.msra.mxu0 %v1963
    %5270 = vmatprep.subr.mxu0 0.0
    %5271 = vmatpush1.msra.mxu0 %v3982
    %5272 = vmatprep.subr.mxu0 0.0
    %5273 = vmatpush1.msra.mxu0 0.0
    %5274 = vmatprep.subr.mxu0 0.0
    %5275 = vmatpush1.msra.mxu0 0.0
    %5276 = vmatprep.subr.mxu0 0.0
    %5277 = vmatpush1.msra.mxu0 0.0
    %5278 = vmatprep.subr.mxu0 0.0
    %5279 = vmatpush1.msra.mxu0 0.0
    %5280 = vmatprep.subr.mxu0 0.0
    %5281 = vmatpush1.msra.mxu0 0.0
    %5282 = vmatprep.subr.mxu0 0.0
    %5283 = vmatpush1.msra.mxu0 0.0
    %5284 = vmatprep.subr.mxu0 0.0
    %5285 = vmatpush1.msra.mxu0 0.0
    %5286 = vmatprep.subr.mxu0 0.0
    %5287 = vmatpush1.msra.mxu0 0.0
    %5288 = vmatprep.subr.mxu0 0.0
    %5289 = vmatpush1.msra.mxu0 0.0
    %5290 = vmatprep.subr.mxu0 0.0
    %5291 = vmatpush1.msra.mxu0 0.0
    %5292 = vmatprep.subr.mxu0 0.0
    %5293 = vmatpush1.msra.mxu0 0.0
    %5294 = vmatprep.subr.mxu0 0.0
    %5295 = vmatpush1.msra.mxu0 0.0
    %5296 = vmatprep.subr.mxu0 0.0
    %5297 = vmatpush1.msra.mxu0 0.0
    %5298 = vmatprep.subr.mxu0 0.0
    %5299 = vmatpush1.msra.mxu0 0.0
    %5300 = vmatprep.subr.mxu0 0.0
    %5301 = vmatpush1.msra.mxu0 0.0
    %5302 = vmatprep.subr.mxu0 0.0
    %5303 = vmatpush1.msra.mxu0 0.0
    %5304 = vmatprep.subr.mxu0 0.0
    %5305 = vmatpush1.msra.mxu0 0.0
    %5306 = vmatprep.subr.mxu0 0.0
    %5307 = vmatpush1.msra.mxu0 0.0
    %5308 = vmatprep.subr.mxu0 0.0
    %5309 = vmatpush1.msra.mxu0 0.0
    %5310 = vmatprep.subr.mxu0 0.0
    %5311 = vmatpush1.msra.mxu0 0.0
    %5312 = vmatprep.subr.mxu0 0.0
    %5313 = vmatpush1.msra.mxu0 0.0
    %5314 = vmatprep.subr.mxu0 0.0
    %5315 = vmatpush1.msra.mxu0 0.0
    %5316 = vmatprep.subr.mxu0 0.0
    %5317 = vmatpush1.msra.mxu0 0.0
    %5318 = vmatprep.subr.mxu0 0.0
    %5319 = vmatpush1.msra.mxu0 0.0
    %5320 = vmatprep.subr.mxu0 0.0
    %5321 = vmatpush1.msra.mxu0 0.0
    %5322 = vmatprep.subr.mxu0 0.0
    %5323 = vmatpush1.msra.mxu0 0.0
    %5324 = vmatprep.subr.mxu0 0.0
    %5325 = vmatpush1.msra.mxu0 0.0
    %5326 = vmatprep.subr.mxu0 0.0
    %5327 = vmatpush1.msra.mxu0 0.0
    %5328 = vmatprep.subr.mxu0 0.0
    %5329 = vmatpush1.msra.mxu0 0.0
    %5330 = vmatprep.subr.mxu0 0.0
    %5331 = vmatpush1.msra.mxu0 0.0
    %5332 = vmatprep.mubr.f32.mxu0 0.0
    %5333 = vmatmul.mubr.f32.gmra.mrb[0].mxu0 %v5266
    %v5334 = vpop.f32.mrb[0].mxu0
    %v5335 = vadd.f32 0.0, %v5334
    %v5336 = vpop.f32.mrb[0].mxu0
    %5337 = vdwg.mxu0
    %5339 = vrot.lane.b32.xlu0 %v5335, 26
    %v5340 = vpop.permute.xlu0 %5339
    %vm5342 = vcmask 457936
    %5343 = vst.msk [vmem:[#allocation6 + $0x40] sm:$0xff] %vm5342, %v5340
    %5344 = vrot.lane.b32.xlu0 %v3968, 80
    %v5345 = vpop.permute.xlu0 %5344
    %v5346 = vsel %vm3976, %v5345, 0
    %5348 = vmatprep.subr.mxu0 0.0
    %5349 = vmatpush1.msra.mxu0 %v1963
    %5350 = vmatprep.subr.mxu0 0.0
    %5351 = vmatpush1.msra.mxu0 %v3982
    %5352 = vmatprep.subr.mxu0 0.0
    %5353 = vmatpush1.msra.mxu0 0.0
    %5354 = vmatprep.subr.mxu0 0.0
    %5355 = vmatpush1.msra.mxu0 0.0
    %5356 = vmatprep.subr.mxu0 0.0
    %5357 = vmatpush1.msra.mxu0 0.0
    %5358 = vmatprep.subr.mxu0 0.0
    %5359 = vmatpush1.msra.mxu0 0.0
    %5360 = vmatprep.subr.mxu0 0.0
    %5361 = vmatpush1.msra.mxu0 0.0
    %5362 = vmatprep.subr.mxu0 0.0
    %5363 = vmatpush1.msra.mxu0 0.0
    %5364 = vmatprep.subr.mxu0 0.0
    %5365 = vmatpush1.msra.mxu0 0.0
    %5366 = vmatprep.subr.mxu0 0.0
    %5367 = vmatpush1.msra.mxu0 0.0
    %5368 = vmatprep.subr.mxu0 0.0
    %5369 = vmatpush1.msra.mxu0 0.0
    %5370 = vmatprep.subr.mxu0 0.0
    %5371 = vmatpush1.msra.mxu0 0.0
    %5372 = vmatprep.subr.mxu0 0.0
    %5373 = vmatpush1.msra.mxu0 0.0
    %5374 = vmatprep.subr.mxu0 0.0
    %5375 = vmatpush1.msra.mxu0 0.0
    %5376 = vmatprep.subr.mxu0 0.0
    %5377 = vmatpush1.msra.mxu0 0.0
    %5378 = vmatprep.subr.mxu0 0.0
    %5379 = vmatpush1.msra.mxu0 0.0
    %5380 = vmatprep.subr.mxu0 0.0
    %5381 = vmatpush1.msra.mxu0 0.0
    %5382 = vmatprep.subr.mxu0 0.0
    %5383 = vmatpush1.msra.mxu0 0.0
    %5384 = vmatprep.subr.mxu0 0.0
    %5385 = vmatpush1.msra.mxu0 0.0
    %5386 = vmatprep.subr.mxu0 0.0
    %5387 = vmatpush1.msra.mxu0 0.0
    %5388 = vmatprep.subr.mxu0 0.0
    %5389 = vmatpush1.msra.mxu0 0.0
    %5390 = vmatprep.subr.mxu0 0.0
    %5391 = vmatpush1.msra.mxu0 0.0
    %5392 = vmatprep.subr.mxu0 0.0
    %5393 = vmatpush1.msra.mxu0 0.0
    %5394 = vmatprep.subr.mxu0 0.0
    %5395 = vmatpush1.msra.mxu0 0.0
    %5396 = vmatprep.subr.mxu0 0.0
    %5397 = vmatpush1.msra.mxu0 0.0
    %5398 = vmatprep.subr.mxu0 0.0
    %5399 = vmatpush1.msra.mxu0 0.0
    %5400 = vmatprep.subr.mxu0 0.0
    %5401 = vmatpush1.msra.mxu0 0.0
    %5402 = vmatprep.subr.mxu0 0.0
    %5403 = vmatpush1.msra.mxu0 0.0
    %5404 = vmatprep.subr.mxu0 0.0
    %5405 = vmatpush1.msra.mxu0 0.0
    %5406 = vmatprep.subr.mxu0 0.0
    %5407 = vmatpush1.msra.mxu0 0.0
    %5408 = vmatprep.subr.mxu0 0.0
    %5409 = vmatpush1.msra.mxu0 0.0
    %5410 = vmatprep.subr.mxu0 0.0
    %5411 = vmatpush1.msra.mxu0 0.0
    %5412 = vmatprep.mubr.f32.mxu0 0.0
    %5413 = vmatmul.mubr.f32.gmra.mrb[0].mxu0 %v5346
    %v5414 = vpop.f32.mrb[0].mxu0
    %v5415 = vadd.f32 0.0, %v5414
    %v5416 = vpop.f32.mrb[0].mxu0
    %5417 = vdwg.mxu0
    %5419 = vrot.lane.b32.xlu0 %v5415, 86
    %v5420 = vpop.permute.xlu0 %5419
    %vm5422 = vcmask 949936
    %5423 = vst.msk [vmem:[#allocation6 + $0x40] sm:$0xff] %vm5422, %v5420
    %5424 = vrot.lane.b32.xlu0 %v3968, 64
    %v5425 = vpop.permute.xlu0 %5424
    %v5426 = vsel %vm3976, %v5425, 0
    %5428 = vmatprep.subr.mxu0 0.0
    %5429 = vmatpush1.msra.mxu0 %v1963
    %5430 = vmatprep.subr.mxu0 0.0
    %5431 = vmatpush1.msra.mxu0 %v3982
    %5432 = vmatprep.subr.mxu0 0.0
    %5433 = vmatpush1.msra.mxu0 0.0
    %5434 = vmatprep.subr.mxu0 0.0
    %5435 = vmatpush1.msra.mxu0 0.0
    %5436 = vmatprep.subr.mxu0 0.0
    %5437 = vmatpush1.msra.mxu0 0.0
    %5438 = vmatprep.subr.mxu0 0.0
    %5439 = vmatpush1.msra.mxu0 0.0
    %5440 = vmatprep.subr.mxu0 0.0
    %5441 = vmatpush1.msra.mxu0 0.0
    %5442 = vmatprep.subr.mxu0 0.0
    %5443 = vmatpush1.msra.mxu0 0.0
    %5444 = vmatprep.subr.mxu0 0.0
    %5445 = vmatpush1.msra.mxu0 0.0
    %5446 = vmatprep.subr.mxu0 0.0
    %5447 = vmatpush1.msra.mxu0 0.0
    %5448 = vmatprep.subr.mxu0 0.0
    %5449 = vmatpush1.msra.mxu0 0.0
    %5450 = vmatprep.subr.mxu0 0.0
    %5451 = vmatpush1.msra.mxu0 0.0
    %5452 = vmatprep.subr.mxu0 0.0
    %5453 = vmatpush1.msra.mxu0 0.0
    %5454 = vmatprep.subr.mxu0 0.0
    %5455 = vmatpush1.msra.mxu0 0.0
    %5456 = vmatprep.subr.mxu0 0.0
    %5457 = vmatpush1.msra.mxu0 0.0
    %5458 = vmatprep.subr.mxu0 0.0
    %5459 = vmatpush1.msra.mxu0 0.0
    %5460 = vmatprep.subr.mxu0 0.0
    %5461 = vmatpush1.msra.mxu0 0.0
    %5462 = vmatprep.subr.mxu0 0.0
    %5463 = vmatpush1.msra.mxu0 0.0
    %5464 = vmatprep.subr.mxu0 0.0
    %5465 = vmatpush1.msra.mxu0 0.0
    %5466 = vmatprep.subr.mxu0 0.0
    %5467 = vmatpush1.msra.mxu0 0.0
    %5468 = vmatprep.subr.mxu0 0.0
    %5469 = vmatpush1.msra.mxu0 0.0
    %5470 = vmatprep.subr.mxu0 0.0
    %5471 = vmatpush1.msra.mxu0 0.0
    %5472 = vmatprep.subr.mxu0 0.0
    %5473 = vmatpush1.msra.mxu0 0.0
    %5474 = vmatprep.subr.mxu0 0.0
    %5475 = vmatpush1.msra.mxu0 0.0
    %5476 = vmatprep.subr.mxu0 0.0
    %5477 = vmatpush1.msra.mxu0 0.0
    %5478 = vmatprep.subr.mxu0 0.0
    %5479 = vmatpush1.msra.mxu0 0.0
    %5480 = vmatprep.subr.mxu0 0.0
    %5481 = vmatpush1.msra.mxu0 0.0
    %5482 = vmatprep.subr.mxu0 0.0
    %5483 = vmatpush1.msra.mxu0 0.0
    %5484 = vmatprep.subr.mxu0 0.0
    %5485 = vmatpush1.msra.mxu0 0.0
    %5486 = vmatprep.subr.mxu0 0.0
    %5487 = vmatpush1.msra.mxu0 0.0
    %5488 = vmatprep.subr.mxu0 0.0
    %5489 = vmatpush1.msra.mxu0 0.0
    %5490 = vmatprep.subr.mxu0 0.0
    %5491 = vmatpush1.msra.mxu0 0.0
    %5492 = vmatprep.mubr.f32.mxu0 0.0
    %5493 = vmatmul.mubr.f32.gmra.mrb[0].mxu0 %v5426
    %v5494 = vpop.f32.mrb[0].mxu0
    %v5495 = vadd.f32 0.0, %v5494
    %v5496 = vpop.f32.mrb[0].mxu0
    %5497 = vdwg.mxu0
    %5499 = vrot.lane.b32.xlu0 %v5495, 18
    %v5500 = vpop.permute.xlu0 %5499
    %vm5502 = vcmask 392336
    %5503 = vst.msk [vmem:[#allocation6 + $0x48] sm:$0xff] %vm5502, %v5500
    %5504 = vrot.lane.b32.xlu0 %v3968, 48
    %v5505 = vpop.permute.xlu0 %5504
    %v5506 = vsel %vm3976, %v5505, 0
    %5508 = vmatprep.subr.mxu0 0.0
    %5509 = vmatpush1.msra.mxu0 %v1963
    %5510 = vmatprep.subr.mxu0 0.0
    %5511 = vmatpush1.msra.mxu0 %v3982
    %5512 = vmatprep.subr.mxu0 0.0
    %5513 = vmatpush1.msra.mxu0 0.0
    %5514 = vmatprep.subr.mxu0 0.0
    %5515 = vmatpush1.msra.mxu0 0.0
    %5516 = vmatprep.subr.mxu0 0.0
    %5517 = vmatpush1.msra.mxu0 0.0
    %5518 = vmatprep.subr.mxu0 0.0
    %5519 = vmatpush1.msra.mxu0 0.0
    %5520 = vmatprep.subr.mxu0 0.0
    %5521 = vmatpush1.msra.mxu0 0.0
    %5522 = vmatprep.subr.mxu0 0.0
    %5523 = vmatpush1.msra.mxu0 0.0
    %5524 = vmatprep.subr.mxu0 0.0
    %5525 = vmatpush1.msra.mxu0 0.0
    %5526 = vmatprep.subr.mxu0 0.0
    %5527 = vmatpush1.msra.mxu0 0.0
    %5528 = vmatprep.subr.mxu0 0.0
    %5529 = vmatpush1.msra.mxu0 0.0
    %5530 = vmatprep.subr.mxu0 0.0
    %5531 = vmatpush1.msra.mxu0 0.0
    %5532 = vmatprep.subr.mxu0 0.0
    %5533 = vmatpush1.msra.mxu0 0.0
    %5534 = vmatprep.subr.mxu0 0.0
    %5535 = vmatpush1.msra.mxu0 0.0
    %5536 = vmatprep.subr.mxu0 0.0
    %5537 = vmatpush1.msra.mxu0 0.0
    %5538 = vmatprep.subr.mxu0 0.0
    %5539 = vmatpush1.msra.mxu0 0.0
    %5540 = vmatprep.subr.mxu0 0.0
    %5541 = vmatpush1.msra.mxu0 0.0
    %5542 = vmatprep.subr.mxu0 0.0
    %5543 = vmatpush1.msra.mxu0 0.0
    %5544 = vmatprep.subr.mxu0 0.0
    %5545 = vmatpush1.msra.mxu0 0.0
    %5546 = vmatprep.subr.mxu0 0.0
    %5547 = vmatpush1.msra.mxu0 0.0
    %5548 = vmatprep.subr.mxu0 0.0
    %5549 = vmatpush1.msra.mxu0 0.0
    %5550 = vmatprep.subr.mxu0 0.0
    %5551 = vmatpush1.msra.mxu0 0.0
    %5552 = vmatprep.subr.mxu0 0.0
    %5553 = vmatpush1.msra.mxu0 0.0
    %5554 = vmatprep.subr.mxu0 0.0
    %5555 = vmatpush1.msra.mxu0 0.0
    %5556 = vmatprep.subr.mxu0 0.0
    %5557 = vmatpush1.msra.mxu0 0.0
    %5558 = vmatprep.subr.mxu0 0.0
    %5559 = vmatpush1.msra.mxu0 0.0
    %5560 = vmatprep.subr.mxu0 0.0
    %5561 = vmatpush1.msra.mxu0 0.0
    %5562 = vmatprep.subr.mxu0 0.0
    %5563 = vmatpush1.msra.mxu0 0.0
    %5564 = vmatprep.subr.mxu0 0.0
    %5565 = vmatpush1.msra.mxu0 0.0
    %5566 = vmatprep.subr.mxu0 0.0
    %5567 = vmatpush1.msra.mxu0 0.0
    %5568 = vmatprep.subr.mxu0 0.0
    %5569 = vmatpush1.msra.mxu0 0.0
    %5570 = vmatprep.subr.mxu0 0.0
    %5571 = vmatpush1.msra.mxu0 0.0
    %5572 = vmatprep.mubr.f32.mxu0 0.0
    %5573 = vmatmul.mubr.f32.gmra.mrb[0].mxu0 %v5506
    %v5574 = vpop.f32.mrb[0].mxu0
    %v5575 = vadd.f32 0.0, %v5574
    %v5576 = vpop.f32.mrb[0].mxu0
    %5577 = vdwg.mxu0
    %5579 = vrot.lane.b32.xlu0 %v5575, 78
    %v5580 = vpop.permute.xlu0 %5579
    %vm5582 = vcmask 884336
    %5583 = vst.msk [vmem:[#allocation6 + $0x48] sm:$0xff] %vm5582, %v5580
    %5584 = vrot.lane.b32.xlu0 %v3968, 32
    %v5585 = vpop.permute.xlu0 %5584
    %v5586 = vsel %vm3976, %v5585, 0
    %5588 = vmatprep.subr.mxu0 0.0
    %5589 = vmatpush1.msra.mxu0 %v1963
    %5590 = vmatprep.subr.mxu0 0.0
    %5591 = vmatpush1.msra.mxu0 %v3982
    %5592 = vmatprep.subr.mxu0 0.0
    %5593 = vmatpush1.msra.mxu0 0.0
    %5594 = vmatprep.subr.mxu0 0.0
    %5595 = vmatpush1.msra.mxu0 0.0
    %5596 = vmatprep.subr.mxu0 0.0
    %5597 = vmatpush1.msra.mxu0 0.0
    %5598 = vmatprep.subr.mxu0 0.0
    %5599 = vmatpush1.msra.mxu0 0.0
    %5600 = vmatprep.subr.mxu0 0.0
    %5601 = vmatpush1.msra.mxu0 0.0
    %5602 = vmatprep.subr.mxu0 0.0
    %5603 = vmatpush1.msra.mxu0 0.0
    %5604 = vmatprep.subr.mxu0 0.0
    %5605 = vmatpush1.msra.mxu0 0.0
    %5606 = vmatprep.subr.mxu0 0.0
    %5607 = vmatpush1.msra.mxu0 0.0
    %5608 = vmatprep.subr.mxu0 0.0
    %5609 = vmatpush1.msra.mxu0 0.0
    %5610 = vmatprep.subr.mxu0 0.0
    %5611 = vmatpush1.msra.mxu0 0.0
    %5612 = vmatprep.subr.mxu0 0.0
    %5613 = vmatpush1.msra.mxu0 0.0
    %5614 = vmatprep.subr.mxu0 0.0
    %5615 = vmatpush1.msra.mxu0 0.0
    %5616 = vmatprep.subr.mxu0 0.0
    %5617 = vmatpush1.msra.mxu0 0.0
    %5618 = vmatprep.subr.mxu0 0.0
    %5619 = vmatpush1.msra.mxu0 0.0
    %5620 = vmatprep.subr.mxu0 0.0
    %5621 = vmatpush1.msra.mxu0 0.0
    %5622 = vmatprep.subr.mxu0 0.0
    %5623 = vmatpush1.msra.mxu0 0.0
    %5624 = vmatprep.subr.mxu0 0.0
    %5625 = vmatpush1.msra.mxu0 0.0
    %5626 = vmatprep.subr.mxu0 0.0
    %5627 = vmatpush1.msra.mxu0 0.0
    %5628 = vmatprep.subr.mxu0 0.0
    %5629 = vmatpush1.msra.mxu0 0.0
    %5630 = vmatprep.subr.mxu0 0.0
    %5631 = vmatpush1.msra.mxu0 0.0
    %5632 = vmatprep.subr.mxu0 0.0
    %5633 = vmatpush1.msra.mxu0 0.0
    %5634 = vmatprep.subr.mxu0 0.0
    %5635 = vmatpush1.msra.mxu0 0.0
    %5636 = vmatprep.subr.mxu0 0.0
    %5637 = vmatpush1.msra.mxu0 0.0
    %5638 = vmatprep.subr.mxu0 0.0
    %5639 = vmatpush1.msra.mxu0 0.0
    %5640 = vmatprep.subr.mxu0 0.0
    %5641 = vmatpush1.msra.mxu0 0.0
    %5642 = vmatprep.subr.mxu0 0.0
    %5643 = vmatpush1.msra.mxu0 0.0
    %5644 = vmatprep.subr.mxu0 0.0
    %5645 = vmatpush1.msra.mxu0 0.0
    %5646 = vmatprep.subr.mxu0 0.0
    %5647 = vmatpush1.msra.mxu0 0.0
    %5648 = vmatprep.subr.mxu0 0.0
    %5649 = vmatpush1.msra.mxu0 0.0
    %5650 = vmatprep.subr.mxu0 0.0
    %5651 = vmatpush1.msra.mxu0 0.0
    %5652 = vmatprep.mubr.f32.mxu0 0.0
    %5653 = vmatmul.mubr.f32.gmra.mrb[0].mxu0 %v5586
    %v5654 = vpop.f32.mrb[0].mxu0
    %v5655 = vadd.f32 0.0, %v5654
    %v5656 = vpop.f32.mrb[0].mxu0
    %5657 = vdwg.mxu0
    %5659 = vrot.lane.b32.xlu0 %v5655, 10
    %v5660 = vpop.permute.xlu0 %5659
    %vm5662 = vcmask 326736
    %5663 = vst.msk [vmem:[#allocation6 + $0x50] sm:$0xff] %vm5662, %v5660
    %5664 = vrot.lane.b32.xlu0 %v3968, 16
    %v5665 = vpop.permute.xlu0 %5664
    %v5666 = vsel %vm3976, %v5665, 0
    %5668 = vmatprep.subr.mxu0 0.0
    %5669 = vmatpush1.msra.mxu0 %v1963
    %5670 = vmatprep.subr.mxu0 0.0
    %5671 = vmatpush1.msra.mxu0 %v3982
    %5672 = vmatprep.subr.mxu0 0.0
    %5673 = vmatpush1.msra.mxu0 0.0
    %5674 = vmatprep.subr.mxu0 0.0
    %5675 = vmatpush1.msra.mxu0 0.0
    %5676 = vmatprep.subr.mxu0 0.0
    %5677 = vmatpush1.msra.mxu0 0.0
    %5678 = vmatprep.subr.mxu0 0.0
    %5679 = vmatpush1.msra.mxu0 0.0
    %5680 = vmatprep.subr.mxu0 0.0
    %5681 = vmatpush1.msra.mxu0 0.0
    %5682 = vmatprep.subr.mxu0 0.0
    %5683 = vmatpush1.msra.mxu0 0.0
    %5684 = vmatprep.subr.mxu0 0.0
    %5685 = vmatpush1.msra.mxu0 0.0
    %5686 = vmatprep.subr.mxu0 0.0
    %5687 = vmatpush1.msra.mxu0 0.0
    %5688 = vmatprep.subr.mxu0 0.0
    %5689 = vmatpush1.msra.mxu0 0.0
    %5690 = vmatprep.subr.mxu0 0.0
    %5691 = vmatpush1.msra.mxu0 0.0
    %5692 = vmatprep.subr.mxu0 0.0
    %5693 = vmatpush1.msra.mxu0 0.0
    %5694 = vmatprep.subr.mxu0 0.0
    %5695 = vmatpush1.msra.mxu0 0.0
    %5696 = vmatprep.subr.mxu0 0.0
    %5697 = vmatpush1.msra.mxu0 0.0
    %5698 = vmatprep.subr.mxu0 0.0
    %5699 = vmatpush1.msra.mxu0 0.0
    %5700 = vmatprep.subr.mxu0 0.0
    %5701 = vmatpush1.msra.mxu0 0.0
    %5702 = vmatprep.subr.mxu0 0.0
    %5703 = vmatpush1.msra.mxu0 0.0
    %5704 = vmatprep.subr.mxu0 0.0
    %5705 = vmatpush1.msra.mxu0 0.0
    %5706 = vmatprep.subr.mxu0 0.0
    %5707 = vmatpush1.msra.mxu0 0.0
    %5708 = vmatprep.subr.mxu0 0.0
    %5709 = vmatpush1.msra.mxu0 0.0
    %5710 = vmatprep.subr.mxu0 0.0
    %5711 = vmatpush1.msra.mxu0 0.0
    %5712 = vmatprep.subr.mxu0 0.0
    %5713 = vmatpush1.msra.mxu0 0.0
    %5714 = vmatprep.subr.mxu0 0.0
    %5715 = vmatpush1.msra.mxu0 0.0
    %5716 = vmatprep.subr.mxu0 0.0
    %5717 = vmatpush1.msra.mxu0 0.0
    %5718 = vmatprep.subr.mxu0 0.0
    %5719 = vmatpush1.msra.mxu0 0.0
    %5720 = vmatprep.subr.mxu0 0.0
    %5721 = vmatpush1.msra.mxu0 0.0
    %5722 = vmatprep.subr.mxu0 0.0
    %5723 = vmatpush1.msra.mxu0 0.0
    %5724 = vmatprep.subr.mxu0 0.0
    %5725 = vmatpush1.msra.mxu0 0.0
    %5726 = vmatprep.subr.mxu0 0.0
    %5727 = vmatpush1.msra.mxu0 0.0
    %5728 = vmatprep.subr.mxu0 0.0
    %5729 = vmatpush1.msra.mxu0 0.0
    %5730 = vmatprep.subr.mxu0 0.0
    %5731 = vmatpush1.msra.mxu0 0.0
    %5732 = vmatprep.mubr.f32.mxu0 0.0
    %5733 = vmatmul.mubr.f32.gmra.mrb[0].mxu0 %v5666
    %v5734 = vpop.f32.mrb[0].mxu0
    %v5735 = vadd.f32 0.0, %v5734
    %v5736 = vpop.f32.mrb[0].mxu0
    %5737 = vdwg.mxu0
    %5739 = vrot.lane.b32.xlu0 %v5735, 70
    %v5740 = vpop.permute.xlu0 %5739
    %vm5742 = vcmask 818736
    %5743 = vst.msk [vmem:[#allocation6 + $0x50] sm:$0xff] %vm5742, %v5740
    %v5745 = vsel %vm3976, %v3969, 0
    %5747 = vmatprep.subr.mxu0 0.0
    %5748 = vmatpush1.msra.mxu0 %v1963
    %5749 = vmatprep.subr.mxu0 0.0
    %5750 = vmatpush1.msra.mxu0 %v3982
    %5751 = vmatprep.subr.mxu0 0.0
    %5752 = vmatpush1.msra.mxu0 0.0
    %5753 = vmatprep.subr.mxu0 0.0
    %5754 = vmatpush1.msra.mxu0 0.0
    %5755 = vmatprep.subr.mxu0 0.0
    %5756 = vmatpush1.msra.mxu0 0.0
    %5757 = vmatprep.subr.mxu0 0.0
    %5758 = vmatpush1.msra.mxu0 0.0
    %5759 = vmatprep.subr.mxu0 0.0
    %5760 = vmatpush1.msra.mxu0 0.0
    %5761 = vmatprep.subr.mxu0 0.0
    %5762 = vmatpush1.msra.mxu0 0.0
    %5763 = vmatprep.subr.mxu0 0.0
    %5764 = vmatpush1.msra.mxu0 0.0
    %5765 = vmatprep.subr.mxu0 0.0
    %5766 = vmatpush1.msra.mxu0 0.0
    %5767 = vmatprep.subr.mxu0 0.0
    %5768 = vmatpush1.msra.mxu0 0.0
    %5769 = vmatprep.subr.mxu0 0.0
    %5770 = vmatpush1.msra.mxu0 0.0
    %5771 = vmatprep.subr.mxu0 0.0
    %5772 = vmatpush1.msra.mxu0 0.0
    %5773 = vmatprep.subr.mxu0 0.0
    %5774 = vmatpush1.msra.mxu0 0.0
    %5775 = vmatprep.subr.mxu0 0.0
    %5776 = vmatpush1.msra.mxu0 0.0
    %5777 = vmatprep.subr.mxu0 0.0
    %5778 = vmatpush1.msra.mxu0 0.0
    %5779 = vmatprep.subr.mxu0 0.0
    %5780 = vmatpush1.msra.mxu0 0.0
    %5781 = vmatprep.subr.mxu0 0.0
    %5782 = vmatpush1.msra.mxu0 0.0
    %5783 = vmatprep.subr.mxu0 0.0
    %5784 = vmatpush1.msra.mxu0 0.0
    %5785 = vmatprep.subr.mxu0 0.0
    %5786 = vmatpush1.msra.mxu0 0.0
    %5787 = vmatprep.subr.mxu0 0.0
    %5788 = vmatpush1.msra.mxu0 0.0
    %5789 = vmatprep.subr.mxu0 0.0
    %5790 = vmatpush1.msra.mxu0 0.0
    %5791 = vmatprep.subr.mxu0 0.0
    %5792 = vmatpush1.msra.mxu0 0.0
    %5793 = vmatprep.subr.mxu0 0.0
    %5794 = vmatpush1.msra.mxu0 0.0
    %5795 = vmatprep.subr.mxu0 0.0
    %5796 = vmatpush1.msra.mxu0 0.0
    %5797 = vmatprep.subr.mxu0 0.0
    %5798 = vmatpush1.msra.mxu0 0.0
    %5799 = vmatprep.subr.mxu0 0.0
    %5800 = vmatpush1.msra.mxu0 0.0
    %5801 = vmatprep.subr.mxu0 0.0
    %5802 = vmatpush1.msra.mxu0 0.0
    %5803 = vmatprep.subr.mxu0 0.0
    %5804 = vmatpush1.msra.mxu0 0.0
    %5805 = vmatprep.subr.mxu0 0.0
    %5806 = vmatpush1.msra.mxu0 0.0
    %5807 = vmatprep.subr.mxu0 0.0
    %5808 = vmatpush1.msra.mxu0 0.0
    %5809 = vmatprep.subr.mxu0 0.0
    %5810 = vmatpush1.msra.mxu0 0.0
    %5811 = vmatprep.mubr.f32.mxu0 0.0
    %5812 = vmatmul.mubr.f32.gmra.mrb[0].mxu0 %v5745
    %v5813 = vpop.f32.mrb[0].mxu0
    %v5814 = vadd.f32 0.0, %v5813
    %v5815 = vpop.f32.mrb[0].mxu0
    %5816 = vdwg.mxu0
    %5818 = vrot.lane.b32.xlu0 %v5814, 2
    %v5819 = vpop.permute.xlu0 %5818
    %vm5821 = vcmask 261136
    %5822 = vst.msk [vmem:[#allocation6 + $0x58] sm:$0xff] %vm5821, %v5819
    %5823 = vrot.lane.b32.xlu0 %v3969, 112
    %v5824 = vpop.permute.xlu0 %5823
    %v5825 = vsel %vm3976, %v5824, 0
    %5827 = vmatprep.subr.mxu0 0.0
    %5828 = vmatpush1.msra.mxu0 %v1963
    %5829 = vmatprep.subr.mxu0 0.0
    %5830 = vmatpush1.msra.mxu0 %v3982
    %5831 = vmatprep.subr.mxu0 0.0
    %5832 = vmatpush1.msra.mxu0 0.0
    %5833 = vmatprep.subr.mxu0 0.0
    %5834 = vmatpush1.msra.mxu0 0.0
    %5835 = vmatprep.subr.mxu0 0.0
    %5836 = vmatpush1.msra.mxu0 0.0
    %5837 = vmatprep.subr.mxu0 0.0
    %5838 = vmatpush1.msra.mxu0 0.0
    %5839 = vmatprep.subr.mxu0 0.0
    %5840 = vmatpush1.msra.mxu0 0.0
    %5841 = vmatprep.subr.mxu0 0.0
    %5842 = vmatpush1.msra.mxu0 0.0
    %5843 = vmatprep.subr.mxu0 0.0
    %5844 = vmatpush1.msra.mxu0 0.0
    %5845 = vmatprep.subr.mxu0 0.0
    %5846 = vmatpush1.msra.mxu0 0.0
    %5847 = vmatprep.subr.mxu0 0.0
    %5848 = vmatpush1.msra.mxu0 0.0
    %5849 = vmatprep.subr.mxu0 0.0
    %5850 = vmatpush1.msra.mxu0 0.0
    %5851 = vmatprep.subr.mxu0 0.0
    %5852 = vmatpush1.msra.mxu0 0.0
    %5853 = vmatprep.subr.mxu0 0.0
    %5854 = vmatpush1.msra.mxu0 0.0
    %5855 = vmatprep.subr.mxu0 0.0
    %5856 = vmatpush1.msra.mxu0 0.0
    %5857 = vmatprep.subr.mxu0 0.0
    %5858 = vmatpush1.msra.mxu0 0.0
    %5859 = vmatprep.subr.mxu0 0.0
    %5860 = vmatpush1.msra.mxu0 0.0
    %5861 = vmatprep.subr.mxu0 0.0
    %5862 = vmatpush1.msra.mxu0 0.0
    %5863 = vmatprep.subr.mxu0 0.0
    %5864 = vmatpush1.msra.mxu0 0.0
    %5865 = vmatprep.subr.mxu0 0.0
    %5866 = vmatpush1.msra.mxu0 0.0
    %5867 = vmatprep.subr.mxu0 0.0
    %5868 = vmatpush1.msra.mxu0 0.0
    %5869 = vmatprep.subr.mxu0 0.0
    %5870 = vmatpush1.msra.mxu0 0.0
    %5871 = vmatprep.subr.mxu0 0.0
    %5872 = vmatpush1.msra.mxu0 0.0
    %5873 = vmatprep.subr.mxu0 0.0
    %5874 = vmatpush1.msra.mxu0 0.0
    %5875 = vmatprep.subr.mxu0 0.0
    %5876 = vmatpush1.msra.mxu0 0.0
    %5877 = vmatprep.subr.mxu0 0.0
    %5878 = vmatpush1.msra.mxu0 0.0
    %5879 = vmatprep.subr.mxu0 0.0
    %5880 = vmatpush1.msra.mxu0 0.0
    %5881 = vmatprep.subr.mxu0 0.0
    %5882 = vmatpush1.msra.mxu0 0.0
    %5883 = vmatprep.subr.mxu0 0.0
    %5884 = vmatpush1.msra.mxu0 0.0
    %5885 = vmatprep.subr.mxu0 0.0
    %5886 = vmatpush1.msra.mxu0 0.0
    %5887 = vmatprep.subr.mxu0 0.0
    %5888 = vmatpush1.msra.mxu0 0.0
    %5889 = vmatprep.subr.mxu0 0.0
    %5890 = vmatpush1.msra.mxu0 0.0
    %5891 = vmatprep.mubr.f32.mxu0 0.0
    %5892 = vmatmul.mubr.f32.gmra.mrb[0].mxu0 %v5825
    %v5893 = vpop.f32.mrb[0].mxu0
    %v5894 = vadd.f32 0.0, %v5893
    %v5895 = vpop.f32.mrb[0].mxu0
    %5896 = vdwg.mxu0
    %5898 = vrot.lane.b32.xlu0 %v5894, 62
    %v5899 = vpop.permute.xlu0 %5898
    %vm5901 = vcmask 753136
    %5902 = vst.msk [vmem:[#allocation6 + $0x58] sm:$0xff] %vm5901, %v5899
    %5903 = vrot.lane.b32.xlu0 %v3969, 96
    %v5904 = vpop.permute.xlu0 %5903
    %v5905 = vsel %vm3976, %v5904, 0
    %5907 = vmatprep.subr.mxu0 0.0
    %5908 = vmatpush1.msra.mxu0 %v1963
    %5909 = vmatprep.subr.mxu0 0.0
    %5910 = vmatpush1.msra.mxu0 %v3982
    %5911 = vmatprep.subr.mxu0 0.0
    %5912 = vmatpush1.msra.mxu0 0.0
    %5913 = vmatprep.subr.mxu0 0.0
    %5914 = vmatpush1.msra.mxu0 0.0
    %5915 = vmatprep.subr.mxu0 0.0
    %5916 = vmatpush1.msra.mxu0 0.0
    %5917 = vmatprep.subr.mxu0 0.0
    %5918 = vmatpush1.msra.mxu0 0.0
    %5919 = vmatprep.subr.mxu0 0.0
    %5920 = vmatpush1.msra.mxu0 0.0
    %5921 = vmatprep.subr.mxu0 0.0
    %5922 = vmatpush1.msra.mxu0 0.0
    %5923 = vmatprep.subr.mxu0 0.0
    %5924 = vmatpush1.msra.mxu0 0.0
    %5925 = vmatprep.subr.mxu0 0.0
    %5926 = vmatpush1.msra.mxu0 0.0
    %5927 = vmatprep.subr.mxu0 0.0
    %5928 = vmatpush1.msra.mxu0 0.0
    %5929 = vmatprep.subr.mxu0 0.0
    %5930 = vmatpush1.msra.mxu0 0.0
    %5931 = vmatprep.subr.mxu0 0.0
    %5932 = vmatpush1.msra.mxu0 0.0
    %5933 = vmatprep.subr.mxu0 0.0
    %5934 = vmatpush1.msra.mxu0 0.0
    %5935 = vmatprep.subr.mxu0 0.0
    %5936 = vmatpush1.msra.mxu0 0.0
    %5937 = vmatprep.subr.mxu0 0.0
    %5938 = vmatpush1.msra.mxu0 0.0
    %5939 = vmatprep.subr.mxu0 0.0
    %5940 = vmatpush1.msra.mxu0 0.0
    %5941 = vmatprep.subr.mxu0 0.0
    %5942 = vmatpush1.msra.mxu0 0.0
    %5943 = vmatprep.subr.mxu0 0.0
    %5944 = vmatpush1.msra.mxu0 0.0
    %5945 = vmatprep.subr.mxu0 0.0
    %5946 = vmatpush1.msra.mxu0 0.0
    %5947 = vmatprep.subr.mxu0 0.0
    %5948 = vmatpush1.msra.mxu0 0.0
    %5949 = vmatprep.subr.mxu0 0.0
    %5950 = vmatpush1.msra.mxu0 0.0
    %5951 = vmatprep.subr.mxu0 0.0
    %5952 = vmatpush1.msra.mxu0 0.0
    %5953 = vmatprep.subr.mxu0 0.0
    %5954 = vmatpush1.msra.mxu0 0.0
    %5955 = vmatprep.subr.mxu0 0.0
    %5956 = vmatpush1.msra.mxu0 0.0
    %5957 = vmatprep.subr.mxu0 0.0
    %5958 = vmatpush1.msra.mxu0 0.0
    %5959 = vmatprep.subr.mxu0 0.0
    %5960 = vmatpush1.msra.mxu0 0.0
    %5961 = vmatprep.subr.mxu0 0.0
    %5962 = vmatpush1.msra.mxu0 0.0
    %5963 = vmatprep.subr.mxu0 0.0
    %5964 = vmatpush1.msra.mxu0 0.0
    %5965 = vmatprep.subr.mxu0 0.0
    %5966 = vmatpush1.msra.mxu0 0.0
    %5967 = vmatprep.subr.mxu0 0.0
    %5968 = vmatpush1.msra.mxu0 0.0
    %5969 = vmatprep.subr.mxu0 0.0
    %5970 = vmatpush1.msra.mxu0 0.0
    %5971 = vmatprep.mubr.f32.mxu0 0.0
    %5972 = vmatmul.mubr.f32.gmra.mrb[0].mxu0 %v5905
    %v5973 = vpop.f32.mrb[0].mxu0
    %v5974 = vadd.f32 0.0, %v5973
    %v5975 = vpop.f32.mrb[0].mxu0
    %5976 = vdwg.mxu0
    %5978 = vrot.lane.b32.xlu0 %v5974, 122
    %v5979 = vpop.permute.xlu0 %5978
    %vm5981 = vcmask 1048528
    %5982 = vst.msk [vmem:[#allocation6 + $0x58] sm:$0xff] %vm5981, %v5979
    %vm5983 = vcmask 195584
    %5984 = vst.msk [vmem:[#allocation6 + $0x60] sm:$0xff] %vm5983, %v5979
    %5985 = vrot.lane.b32.xlu0 %v3969, 80
    %v5986 = vpop.permute.xlu0 %5985
    %v5987 = vsel %vm3976, %v5986, 0
    %5989 = vmatprep.subr.mxu0 0.0
    %5990 = vmatpush1.msra.mxu0 %v1963
    %5991 = vmatprep.subr.mxu0 0.0
    %5992 = vmatpush1.msra.mxu0 %v3982
    %5993 = vmatprep.subr.mxu0 0.0
    %5994 = vmatpush1.msra.mxu0 0.0
    %5995 = vmatprep.subr.mxu0 0.0
    %5996 = vmatpush1.msra.mxu0 0.0
    %5997 = vmatprep.subr.mxu0 0.0
    %5998 = vmatpush1.msra.mxu0 0.0
    %5999 = vmatprep.subr.mxu0 0.0
    %6000 = vmatpush1.msra.mxu0 0.0
    %6001 = vmatprep.subr.mxu0 0.0
    %6002 = vmatpush1.msra.mxu0 0.0
    %6003 = vmatprep.subr.mxu0 0.0
    %6004 = vmatpush1.msra.mxu0 0.0
    %6005 = vmatprep.subr.mxu0 0.0
    %6006 = vmatpush1.msra.mxu0 0.0
    %6007 = vmatprep.subr.mxu0 0.0
    %6008 = vmatpush1.msra.mxu0 0.0
    %6009 = vmatprep.subr.mxu0 0.0
    %6010 = vmatpush1.msra.mxu0 0.0
    %6011 = vmatprep.subr.mxu0 0.0
    %6012 = vmatpush1.msra.mxu0 0.0
    %6013 = vmatprep.subr.mxu0 0.0
    %6014 = vmatpush1.msra.mxu0 0.0
    %6015 = vmatprep.subr.mxu0 0.0
    %6016 = vmatpush1.msra.mxu0 0.0
    %6017 = vmatprep.subr.mxu0 0.0
    %6018 = vmatpush1.msra.mxu0 0.0
    %6019 = vmatprep.subr.mxu0 0.0
    %6020 = vmatpush1.msra.mxu0 0.0
    %6021 = vmatprep.subr.mxu0 0.0
    %6022 = vmatpush1.msra.mxu0 0.0
    %6023 = vmatprep.subr.mxu0 0.0
    %6024 = vmatpush1.msra.mxu0 0.0
    %6025 = vmatprep.subr.mxu0 0.0
    %6026 = vmatpush1.msra.mxu0 0.0
    %6027 = vmatprep.subr.mxu0 0.0
    %6028 = vmatpush1.msra.mxu0 0.0
    %6029 = vmatprep.subr.mxu0 0.0
    %6030 = vmatpush1.msra.mxu0 0.0
    %6031 = vmatprep.subr.mxu0 0.0
    %6032 = vmatpush1.msra.mxu0 0.0
    %6033 = vmatprep.subr.mxu0 0.0
    %6034 = vmatpush1.msra.mxu0 0.0
    %6035 = vmatprep.subr.mxu0 0.0
    %6036 = vmatpush1.msra.mxu0 0.0
    %6037 = vmatprep.subr.mxu0 0.0
    %6038 = vmatpush1.msra.mxu0 0.0
    %6039 = vmatprep.subr.mxu0 0.0
    %6040 = vmatpush1.msra.mxu0 0.0
    %6041 = vmatprep.subr.mxu0 0.0
    %6042 = vmatpush1.msra.mxu0 0.0
    %6043 = vmatprep.subr.mxu0 0.0
    %6044 = vmatpush1.msra.mxu0 0.0
    %6045 = vmatprep.subr.mxu0 0.0
    %6046 = vmatpush1.msra.mxu0 0.0
    %6047 = vmatprep.subr.mxu0 0.0
    %6048 = vmatpush1.msra.mxu0 0.0
    %6049 = vmatprep.subr.mxu0 0.0
    %6050 = vmatpush1.msra.mxu0 0.0
    %6051 = vmatprep.subr.mxu0 0.0
    %6052 = vmatpush1.msra.mxu0 0.0
    %6053 = vmatprep.mubr.f32.mxu0 0.0
    %6054 = vmatmul.mubr.f32.gmra.mrb[0].mxu0 %v5987
    %v6055 = vpop.f32.mrb[0].mxu0
    %v6056 = vadd.f32 0.0, %v6055
    %v6057 = vpop.f32.mrb[0].mxu0
    %6058 = vdwg.mxu0
    %6060 = vrot.lane.b32.xlu0 %v6056, 54
    %v6061 = vpop.permute.xlu0 %6060
    %vm6063 = vcmask 687536
    %6064 = vst.msk [vmem:[#allocation6 + $0x60] sm:$0xff] %vm6063, %v6061
    %6065 = vrot.lane.b32.xlu0 %v3969, 64
    %v6066 = vpop.permute.xlu0 %6065
    %v6067 = vsel %vm3976, %v6066, 0
    %6069 = vmatprep.subr.mxu0 0.0
    %6070 = vmatpush1.msra.mxu0 %v1963
    %6071 = vmatprep.subr.mxu0 0.0
    %6072 = vmatpush1.msra.mxu0 %v3982
    %6073 = vmatprep.subr.mxu0 0.0
    %6074 = vmatpush1.msra.mxu0 0.0
    %6075 = vmatprep.subr.mxu0 0.0
    %6076 = vmatpush1.msra.mxu0 0.0
    %6077 = vmatprep.subr.mxu0 0.0
    %6078 = vmatpush1.msra.mxu0 0.0
    %6079 = vmatprep.subr.mxu0 0.0
    %6080 = vmatpush1.msra.mxu0 0.0
    %6081 = vmatprep.subr.mxu0 0.0
    %6082 = vmatpush1.msra.mxu0 0.0
    %6083 = vmatprep.subr.mxu0 0.0
    %6084 = vmatpush1.msra.mxu0 0.0
    %6085 = vmatprep.subr.mxu0 0.0
    %6086 = vmatpush1.msra.mxu0 0.0
    %6087 = vmatprep.subr.mxu0 0.0
    %6088 = vmatpush1.msra.mxu0 0.0
    %6089 = vmatprep.subr.mxu0 0.0
    %6090 = vmatpush1.msra.mxu0 0.0
    %6091 = vmatprep.subr.mxu0 0.0
    %6092 = vmatpush1.msra.mxu0 0.0
    %6093 = vmatprep.subr.mxu0 0.0
    %6094 = vmatpush1.msra.mxu0 0.0
    %6095 = vmatprep.subr.mxu0 0.0
    %6096 = vmatpush1.msra.mxu0 0.0
    %6097 = vmatprep.subr.mxu0 0.0
    %6098 = vmatpush1.msra.mxu0 0.0
    %6099 = vmatprep.subr.mxu0 0.0
    %6100 = vmatpush1.msra.mxu0 0.0
    %6101 = vmatprep.subr.mxu0 0.0
    %6102 = vmatpush1.msra.mxu0 0.0
    %6103 = vmatprep.subr.mxu0 0.0
    %6104 = vmatpush1.msra.mxu0 0.0
    %6105 = vmatprep.subr.mxu0 0.0
    %6106 = vmatpush1.msra.mxu0 0.0
    %6107 = vmatprep.subr.mxu0 0.0
    %6108 = vmatpush1.msra.mxu0 0.0
    %6109 = vmatprep.subr.mxu0 0.0
    %6110 = vmatpush1.msra.mxu0 0.0
    %6111 = vmatprep.subr.mxu0 0.0
    %6112 = vmatpush1.msra.mxu0 0.0
    %6113 = vmatprep.subr.mxu0 0.0
    %6114 = vmatpush1.msra.mxu0 0.0
    %6115 = vmatprep.subr.mxu0 0.0
    %6116 = vmatpush1.msra.mxu0 0.0
    %6117 = vmatprep.subr.mxu0 0.0
    %6118 = vmatpush1.msra.mxu0 0.0
    %6119 = vmatprep.subr.mxu0 0.0
    %6120 = vmatpush1.msra.mxu0 0.0
    %6121 = vmatprep.subr.mxu0 0.0
    %6122 = vmatpush1.msra.mxu0 0.0
    %6123 = vmatprep.subr.mxu0 0.0
    %6124 = vmatpush1.msra.mxu0 0.0
    %6125 = vmatprep.subr.mxu0 0.0
    %6126 = vmatpush1.msra.mxu0 0.0
    %6127 = vmatprep.subr.mxu0 0.0
    %6128 = vmatpush1.msra.mxu0 0.0
    %6129 = vmatprep.subr.mxu0 0.0
    %6130 = vmatpush1.msra.mxu0 0.0
    %6131 = vmatprep.subr.mxu0 0.0
    %6132 = vmatpush1.msra.mxu0 0.0
    %6133 = vmatprep.mubr.f32.mxu0 0.0
    %6134 = vmatmul.mubr.f32.gmra.mrb[0].mxu0 %v6067
    %v6135 = vpop.f32.mrb[0].mxu0
    %v6136 = vadd.f32 0.0, %v6135
    %v6137 = vpop.f32.mrb[0].mxu0
    %6138 = vdwg.mxu0
    %6140 = vrot.lane.b32.xlu0 %v6136, 114
    %v6141 = vpop.permute.xlu0 %6140
    %vm6143 = vcmask 1048464
    %6144 = vst.msk [vmem:[#allocation6 + $0x60] sm:$0xff] %vm6143, %v6141
    %6145 = vst.msk [vmem:[#allocation6 + $0x68] sm:$0xff] %vm3747, %v6141
    %6146 = vrot.lane.b32.xlu0 %v3969, 48
    %v6147 = vpop.permute.xlu0 %6146
    %v6148 = vsel %vm3976, %v6147, 0
    %6150 = vmatprep.subr.mxu0 0.0
    %6151 = vmatpush1.msra.mxu0 %v1963
    %6152 = vmatprep.subr.mxu0 0.0
    %6153 = vmatpush1.msra.mxu0 %v3982
    %6154 = vmatprep.subr.mxu0 0.0
    %6155 = vmatpush1.msra.mxu0 0.0
    %6156 = vmatprep.subr.mxu0 0.0
    %6157 = vmatpush1.msra.mxu0 0.0
    %6158 = vmatprep.subr.mxu0 0.0
    %6159 = vmatpush1.msra.mxu0 0.0
    %6160 = vmatprep.subr.mxu0 0.0
    %6161 = vmatpush1.msra.mxu0 0.0
    %6162 = vmatprep.subr.mxu0 0.0
    %6163 = vmatpush1.msra.mxu0 0.0
    %6164 = vmatprep.subr.mxu0 0.0
    %6165 = vmatpush1.msra.mxu0 0.0
    %6166 = vmatprep.subr.mxu0 0.0
    %6167 = vmatpush1.msra.mxu0 0.0
    %6168 = vmatprep.subr.mxu0 0.0
    %6169 = vmatpush1.msra.mxu0 0.0
    %6170 = vmatprep.subr.mxu0 0.0
    %6171 = vmatpush1.msra.mxu0 0.0
    %6172 = vmatprep.subr.mxu0 0.0
    %6173 = vmatpush1.msra.mxu0 0.0
    %6174 = vmatprep.subr.mxu0 0.0
    %6175 = vmatpush1.msra.mxu0 0.0
    %6176 = vmatprep.subr.mxu0 0.0
    %6177 = vmatpush1.msra.mxu0 0.0
    %6178 = vmatprep.subr.mxu0 0.0
    %6179 = vmatpush1.msra.mxu0 0.0
    %6180 = vmatprep.subr.mxu0 0.0
    %6181 = vmatpush1.msra.mxu0 0.0
    %6182 = vmatprep.subr.mxu0 0.0
    %6183 = vmatpush1.msra.mxu0 0.0
    %6184 = vmatprep.subr.mxu0 0.0
    %6185 = vmatpush1.msra.mxu0 0.0
    %6186 = vmatprep.subr.mxu0 0.0
    %6187 = vmatpush1.msra.mxu0 0.0
    %6188 = vmatprep.subr.mxu0 0.0
    %6189 = vmatpush1.msra.mxu0 0.0
    %6190 = vmatprep.subr.mxu0 0.0
    %6191 = vmatpush1.msra.mxu0 0.0
    %6192 = vmatprep.subr.mxu0 0.0
    %6193 = vmatpush1.msra.mxu0 0.0
    %6194 = vmatprep.subr.mxu0 0.0
    %6195 = vmatpush1.msra.mxu0 0.0
    %6196 = vmatprep.subr.mxu0 0.0
    %6197 = vmatpush1.msra.mxu0 0.0
    %6198 = vmatprep.subr.mxu0 0.0
    %6199 = vmatpush1.msra.mxu0 0.0
    %6200 = vmatprep.subr.mxu0 0.0
    %6201 = vmatpush1.msra.mxu0 0.0
    %6202 = vmatprep.subr.mxu0 0.0
    %6203 = vmatpush1.msra.mxu0 0.0
    %6204 = vmatprep.subr.mxu0 0.0
    %6205 = vmatpush1.msra.mxu0 0.0
    %6206 = vmatprep.subr.mxu0 0.0
    %6207 = vmatpush1.msra.mxu0 0.0
    %6208 = vmatprep.subr.mxu0 0.0
    %6209 = vmatpush1.msra.mxu0 0.0
    %6210 = vmatprep.subr.mxu0 0.0
    %6211 = vmatpush1.msra.mxu0 0.0
    %6212 = vmatprep.subr.mxu0 0.0
    %6213 = vmatpush1.msra.mxu0 0.0
    %6214 = vmatprep.mubr.f32.mxu0 0.0
    %6215 = vmatmul.mubr.f32.gmra.mrb[0].mxu0 %v6148
    %v6216 = vpop.f32.mrb[0].mxu0
    %v6217 = vadd.f32 0.0, %v6216
    %v6218 = vpop.f32.mrb[0].mxu0
    %6219 = vdwg.mxu0
    %6221 = vrot.lane.b32.xlu0 %v6217, 46
    %v6222 = vpop.permute.xlu0 %6221
    %vm6224 = vcmask 621936
    %6225 = vst.msk [vmem:[#allocation6 + $0x68] sm:$0xff] %vm6224, %v6222
    %v6226 = vld [vmem:[#allocation6] sm:$0xff]
    %v6227 = vld [vmem:[#allocation6 + $0x8] sm:$0xff]
    %v6228 = vld [vmem:[#allocation6 + $0x10] sm:$0xff]
    %v6229 = vld [vmem:[#allocation6 + $0x18] sm:$0xff]
    %v6230 = vld [vmem:[#allocation6 + $0x20] sm:$0xff]
    %v6231 = vld [vmem:[#allocation6 + $0x28] sm:$0xff]
    %v6232 = vld [vmem:[#allocation6 + $0x30] sm:$0xff]
    %v6233 = vld [vmem:[#allocation6 + $0x38] sm:$0xff]
    %v6234 = vld [vmem:[#allocation6 + $0x40] sm:$0xff]
    %v6235 = vld [vmem:[#allocation6 + $0x48] sm:$0xff]
    %v6236 = vld [vmem:[#allocation6 + $0x50] sm:$0xff]
    %v6237 = vld [vmem:[#allocation6 + $0x58] sm:$0xff]
    %v6238 = vld [vmem:[#allocation6 + $0x60] sm:$0xff]
    %v6239 = vld [vmem:[#allocation6 + $0x68] sm:$0xff]
    %v6240 = vld [vmem:[#allocation6 + $0x70] sm:$0xff]
    %6241 = vst [vmem:[#allocation7] sm:$0xff] %v6226
    %6242 = vst [vmem:[#allocation7 + $0x8] sm:$0xff] %v6227
    %6243 = vst [vmem:[#allocation7 + $0x10] sm:$0xff] %v6228
    %6244 = vst [vmem:[#allocation7 + $0x18] sm:$0xff] %v6229
    %6245 = vst [vmem:[#allocation7 + $0x20] sm:$0xff] %v6230
    %6246 = vst [vmem:[#allocation7 + $0x28] sm:$0xff] %v6231
    %6247 = vst [vmem:[#allocation7 + $0x30] sm:$0xff] %v6232
    %6248 = vst [vmem:[#allocation7 + $0x38] sm:$0xff] %v6233
    %6249 = vst [vmem:[#allocation7 + $0x40] sm:$0xff] %v6234
    %6250 = vst [vmem:[#allocation7 + $0x48] sm:$0xff] %v6235
    %6251 = vst [vmem:[#allocation7 + $0x50] sm:$0xff] %v6236
    %6252 = vst [vmem:[#allocation7 + $0x58] sm:$0xff] %v6237
    %6253 = vst [vmem:[#allocation7 + $0x60] sm:$0xff] %v6238
    %6254 = vst [vmem:[#allocation7 + $0x68] sm:$0xff] %v6239
    %vm6255 = vcmask 64512
    %6256 = vst.msk [vmem:[#allocation7 + $0x70] sm:$0xff] %vm6255, %v6240
    %6272 = vrot.lane.b32.xlu0 %v6226, 127
    %v6273 = vpop.permute.xlu0 %6272
    %6274 = vrot.lane.b32.xlu0 %v6227, 127
    %v6275 = vpop.permute.xlu0 %6274
    %6276 = vrot.lane.b32.xlu0 %v6228, 127
    %v6277 = vpop.permute.xlu0 %6276
    %6278 = vrot.lane.b32.xlu0 %v6229, 127
    %v6279 = vpop.permute.xlu0 %6278
    %6280 = vrot.lane.b32.xlu0 %v6230, 127
    %v6281 = vpop.permute.xlu0 %6280
    %6282 = vrot.lane.b32.xlu0 %v6231, 127
    %v6283 = vpop.permute.xlu0 %6282
    %6284 = vrot.lane.b32.xlu0 %v6232, 127
    %v6285 = vpop.permute.xlu0 %6284
    %6286 = vrot.lane.b32.xlu0 %v6233, 127
    %v6287 = vpop.permute.xlu0 %6286
    %6288 = vrot.lane.b32.xlu0 %v6234, 127
    %v6289 = vpop.permute.xlu0 %6288
    %6290 = vrot.lane.b32.xlu0 %v6235, 127
    %v6291 = vpop.permute.xlu0 %6290
    %6292 = vrot.lane.b32.xlu0 %v6236, 127
    %v6293 = vpop.permute.xlu0 %6292
    %6294 = vrot.lane.b32.xlu0 %v6237, 127
    %v6295 = vpop.permute.xlu0 %6294
    %6296 = vrot.lane.b32.xlu0 %v6238, 127
    %v6297 = vpop.permute.xlu0 %6296
    %6298 = vrot.lane.b32.xlu0 %v6239, 127
    %v6299 = vpop.permute.xlu0 %6298
    %6300 = vrot.lane.b32.xlu0 %v6240, 127
    %v6301 = vpop.permute.xlu0 %6300
    %v6302 = vsel %vm1334, %v6273, %v6275
    %v6303 = vsel %vm1334, %v6275, %v6277
    %v6304 = vsel %vm1334, %v6277, %v6279
    %v6305 = vsel %vm1334, %v6279, %v6281
    %v6306 = vsel %vm1334, %v6281, %v6283
    %v6307 = vsel %vm1334, %v6283, %v6285
    %v6308 = vsel %vm1334, %v6285, %v6287
    %v6309 = vsel %vm1334, %v6287, %v6289
    %v6310 = vsel %vm1334, %v6289, %v6291
    %v6311 = vsel %vm1334, %v6291, %v6293
    %v6312 = vsel %vm1334, %v6293, %v6295
    %v6313 = vsel %vm1334, %v6295, %v6297
    %v6314 = vsel %vm1334, %v6297, %v6299
    %v6315 = vsel %vm1334, %v6299, %v6301
    %6331 = vst [vmem:[#allocation7 + $0x78] sm:$0xff] %v6302
    %6332 = vst [vmem:[#allocation7 + $0x80] sm:$0xff] %v6303
    %6333 = vst [vmem:[#allocation7 + $0x88] sm:$0xff] %v6304
    %6334 = vst [vmem:[#allocation7 + $0x90] sm:$0xff] %v6305
    %6335 = vst [vmem:[#allocation7 + $0x98] sm:$0xff] %v6306
    %6336 = vst [vmem:[#allocation7 + $0xa0] sm:$0xff] %v6307
    %6337 = vst [vmem:[#allocation7 + $0xa8] sm:$0xff] %v6308
    %6338 = vst [vmem:[#allocation7 + $0xb0] sm:$0xff] %v6309
    %6339 = vst [vmem:[#allocation7 + $0xb8] sm:$0xff] %v6310
    %6340 = vst [vmem:[#allocation7 + $0xc0] sm:$0xff] %v6311
    %6341 = vst [vmem:[#allocation7 + $0xc8] sm:$0xff] %v6312
    %6342 = vst [vmem:[#allocation7 + $0xd0] sm:$0xff] %v6313
    %6343 = vst [vmem:[#allocation7 + $0xd8] sm:$0xff] %v6314
    %6344 = vst [vmem:[#allocation7 + $0xe0] sm:$0xff] %v6315
    %6345 = vst.msk [vmem:[#allocation7 + $0xe8] sm:$0xff] %vm6255, %v6301
    %6346 = vrot.lane.b32.xlu0 %v6226, 126
    %v6347 = vpop.permute.xlu0 %6346
    %6348 = vrot.lane.b32.xlu0 %v6227, 126
    %v6349 = vpop.permute.xlu0 %6348
    %6350 = vrot.lane.b32.xlu0 %v6228, 126
    %v6351 = vpop.permute.xlu0 %6350
    %6352 = vrot.lane.b32.xlu0 %v6229, 126
    %v6353 = vpop.permute.xlu0 %6352
    %6354 = vrot.lane.b32.xlu0 %v6230, 126
    %v6355 = vpop.permute.xlu0 %6354
    %6356 = vrot.lane.b32.xlu0 %v6231, 126
    %v6357 = vpop.permute.xlu0 %6356
    %6358 = vrot.lane.b32.xlu0 %v6232, 126
    %v6359 = vpop.permute.xlu0 %6358
    %6360 = vrot.lane.b32.xlu0 %v6233, 126
    %v6361 = vpop.permute.xlu0 %6360
    %6362 = vrot.lane.b32.xlu0 %v6234, 126
    %v6363 = vpop.permute.xlu0 %6362
    %6364 = vrot.lane.b32.xlu0 %v6235, 126
    %v6365 = vpop.permute.xlu0 %6364
    %6366 = vrot.lane.b32.xlu0 %v6236, 126
    %v6367 = vpop.permute.xlu0 %6366
    %6368 = vrot.lane.b32.xlu0 %v6237, 126
    %v6369 = vpop.permute.xlu0 %6368
    %6370 = vrot.lane.b32.xlu0 %v6238, 126
    %v6371 = vpop.permute.xlu0 %6370
    %6372 = vrot.lane.b32.xlu0 %v6239, 126
    %v6373 = vpop.permute.xlu0 %6372
    %6374 = vrot.lane.b32.xlu0 %v6240, 126
    %v6375 = vpop.permute.xlu0 %6374
    %v6376 = vsel %vm1371, %v6347, %v6349
    %v6377 = vsel %vm1371, %v6349, %v6351
    %v6378 = vsel %vm1371, %v6351, %v6353
    %v6379 = vsel %vm1371, %v6353, %v6355
    %v6380 = vsel %vm1371, %v6355, %v6357
    %v6381 = vsel %vm1371, %v6357, %v6359
    %v6382 = vsel %vm1371, %v6359, %v6361
    %v6383 = vsel %vm1371, %v6361, %v6363
    %v6384 = vsel %vm1371, %v6363, %v6365
    %v6385 = vsel %vm1371, %v6365, %v6367
    %v6386 = vsel %vm1371, %v6367, %v6369
    %v6387 = vsel %vm1371, %v6369, %v6371
    %v6388 = vsel %vm1371, %v6371, %v6373
    %v6389 = vsel %vm1371, %v6373, %v6375
    %6405 = vst [vmem:[#allocation7 + $0xf0] sm:$0xff] %v6376
    %6406 = vst [vmem:[#allocation7 + $0xf8] sm:$0xff] %v6377
    %6407 = vst [vmem:[#allocation7 + $0x100] sm:$0xff] %v6378
    %6408 = vst [vmem:[#allocation7 + $0x108] sm:$0xff] %v6379
    %6409 = vst [vmem:[#allocation7 + $0x110] sm:$0xff] %v6380
    %6410 = vst [vmem:[#allocation7 + $0x118] sm:$0xff] %v6381
    %6411 = vst [vmem:[#allocation7 + $0x120] sm:$0xff] %v6382
    %6412 = vst [vmem:[#allocation7 + $0x128] sm:$0xff] %v6383
    %6413 = vst [vmem:[#allocation7 + $0x130] sm:$0xff] %v6384
    %6414 = vst [vmem:[#allocation7 + $0x138] sm:$0xff] %v6385
    %6415 = vst [vmem:[#allocation7 + $0x140] sm:$0xff] %v6386
    %6416 = vst [vmem:[#allocation7 + $0x148] sm:$0xff] %v6387
    %6417 = vst [vmem:[#allocation7 + $0x150] sm:$0xff] %v6388
    %6418 = vst [vmem:[#allocation7 + $0x158] sm:$0xff] %v6389
    %6419 = vst.msk [vmem:[#allocation7 + $0x160] sm:$0xff] %vm6255, %v6375
    %6420 = vrot.lane.b32.xlu0 %v6226, 98
    %v6421 = vpop.permute.xlu0 %6420
    %6422 = vrot.lane.b32.xlu0 %v6227, 98
    %v6423 = vpop.permute.xlu0 %6422
    %6424 = vrot.lane.b32.xlu0 %v6228, 98
    %v6425 = vpop.permute.xlu0 %6424
    %6426 = vrot.lane.b32.xlu0 %v6229, 98
    %v6427 = vpop.permute.xlu0 %6426
    %6428 = vrot.lane.b32.xlu0 %v6230, 98
    %v6429 = vpop.permute.xlu0 %6428
    %6430 = vrot.lane.b32.xlu0 %v6231, 98
    %v6431 = vpop.permute.xlu0 %6430
    %6432 = vrot.lane.b32.xlu0 %v6232, 98
    %v6433 = vpop.permute.xlu0 %6432
    %6434 = vrot.lane.b32.xlu0 %v6233, 98
    %v6435 = vpop.permute.xlu0 %6434
    %6436 = vrot.lane.b32.xlu0 %v6234, 98
    %v6437 = vpop.permute.xlu0 %6436
    %6438 = vrot.lane.b32.xlu0 %v6235, 98
    %v6439 = vpop.permute.xlu0 %6438
    %6440 = vrot.lane.b32.xlu0 %v6236, 98
    %v6441 = vpop.permute.xlu0 %6440
    %6442 = vrot.lane.b32.xlu0 %v6237, 98
    %v6443 = vpop.permute.xlu0 %6442
    %6444 = vrot.lane.b32.xlu0 %v6238, 98
    %v6445 = vpop.permute.xlu0 %6444
    %6446 = vrot.lane.b32.xlu0 %v6239, 98
    %v6447 = vpop.permute.xlu0 %6446
    %6448 = vrot.lane.b32.xlu0 %v6240, 98
    %v6449 = vpop.permute.xlu0 %6448
    %vm6450 = vcmask 801792
    %v6451 = vsel %vm6450, %v6421, %v6423
    %v6452 = vsel %vm6450, %v6423, %v6425
    %v6453 = vsel %vm6450, %v6425, %v6427
    %v6454 = vsel %vm6450, %v6427, %v6429
    %v6455 = vsel %vm6450, %v6429, %v6431
    %v6456 = vsel %vm6450, %v6431, %v6433
    %v6457 = vsel %vm6450, %v6433, %v6435
    %v6458 = vsel %vm6450, %v6435, %v6437
    %v6459 = vsel %vm6450, %v6437, %v6439
    %v6460 = vsel %vm6450, %v6439, %v6441
    %v6461 = vsel %vm6450, %v6441, %v6443
    %v6462 = vsel %vm6450, %v6443, %v6445
    %v6463 = vsel %vm6450, %v6445, %v6447
    %v6464 = vsel %vm6450, %v6447, %v6449
    %6480 = vst [vmem:[#allocation7 + $0x168] sm:$0xff] %v6451
    %6481 = vst [vmem:[#allocation7 + $0x170] sm:$0xff] %v6452
    %6482 = vst [vmem:[#allocation7 + $0x178] sm:$0xff] %v6453
    %6483 = vst [vmem:[#allocation7 + $0x180] sm:$0xff] %v6454
    %6484 = vst [vmem:[#allocation7 + $0x188] sm:$0xff] %v6455
    %6485 = vst [vmem:[#allocation7 + $0x190] sm:$0xff] %v6456
    %6486 = vst [vmem:[#allocation7 + $0x198] sm:$0xff] %v6457
    %6487 = vst [vmem:[#allocation7 + $0x1a0] sm:$0xff] %v6458
    %6488 = vst [vmem:[#allocation7 + $0x1a8] sm:$0xff] %v6459
    %6489 = vst [vmem:[#allocation7 + $0x1b0] sm:$0xff] %v6460
    %6490 = vst [vmem:[#allocation7 + $0x1b8] sm:$0xff] %v6461
    %6491 = vst [vmem:[#allocation7 + $0x1c0] sm:$0xff] %v6462
    %6492 = vst [vmem:[#allocation7 + $0x1c8] sm:$0xff] %v6463
    %6493 = vst [vmem:[#allocation7 + $0x1d0] sm:$0xff] %v6464
    %6494 = vst.msk [vmem:[#allocation7 + $0x1d8] sm:$0xff] %vm6255, %v6449
    %6495 = vrot.lane.b32.xlu0 %v6226, 97
    %v6496 = vpop.permute.xlu0 %6495
    %6497 = vrot.lane.b32.xlu0 %v6227, 97
    %v6498 = vpop.permute.xlu0 %6497
    %6499 = vrot.lane.b32.xlu0 %v6228, 97
    %v6500 = vpop.permute.xlu0 %6499
    %6501 = vrot.lane.b32.xlu0 %v6229, 97
    %v6502 = vpop.permute.xlu0 %6501
    %6503 = vrot.lane.b32.xlu0 %v6230, 97
    %v6504 = vpop.permute.xlu0 %6503
    %6505 = vrot.lane.b32.xlu0 %v6231, 97
    %v6506 = vpop.permute.xlu0 %6505
    %6507 = vrot.lane.b32.xlu0 %v6232, 97
    %v6508 = vpop.permute.xlu0 %6507
    %6509 = vrot.lane.b32.xlu0 %v6233, 97
    %v6510 = vpop.permute.xlu0 %6509
    %6511 = vrot.lane.b32.xlu0 %v6234, 97
    %v6512 = vpop.permute.xlu0 %6511
    %6513 = vrot.lane.b32.xlu0 %v6235, 97
    %v6514 = vpop.permute.xlu0 %6513
    %6515 = vrot.lane.b32.xlu0 %v6236, 97
    %v6516 = vpop.permute.xlu0 %6515
    %6517 = vrot.lane.b32.xlu0 %v6237, 97
    %v6518 = vpop.permute.xlu0 %6517
    %6519 = vrot.lane.b32.xlu0 %v6238, 97
    %v6520 = vpop.permute.xlu0 %6519
    %6521 = vrot.lane.b32.xlu0 %v6239, 97
    %v6522 = vpop.permute.xlu0 %6521
    %6523 = vrot.lane.b32.xlu0 %v6240, 97
    %v6524 = vpop.permute.xlu0 %6523
    %vm6525 = vcmask 793600
    %v6526 = vsel %vm6525, %v6496, %v6498
    %v6527 = vsel %vm6525, %v6498, %v6500
    %v6528 = vsel %vm6525, %v6500, %v6502
    %v6529 = vsel %vm6525, %v6502, %v6504
    %v6530 = vsel %vm6525, %v6504, %v6506
    %v6531 = vsel %vm6525, %v6506, %v6508
    %v6532 = vsel %vm6525, %v6508, %v6510
    %v6533 = vsel %vm6525, %v6510, %v6512
    %v6534 = vsel %vm6525, %v6512, %v6514
    %v6535 = vsel %vm6525, %v6514, %v6516
    %v6536 = vsel %vm6525, %v6516, %v6518
    %v6537 = vsel %vm6525, %v6518, %v6520
    %v6538 = vsel %vm6525, %v6520, %v6522
    %v6539 = vsel %vm6525, %v6522, %v6524
    %6555 = vst [vmem:[#allocation7 + $0x1e0] sm:$0xff] %v6526
    %6556 = vst [vmem:[#allocation7 + $0x1e8] sm:$0xff] %v6527
    %6557 = vst [vmem:[#allocation7 + $0x1f0] sm:$0xff] %v6528
    %6558 = vst [vmem:[#allocation7 + $0x1f8] sm:$0xff] %v6529
    %6559 = vst [vmem:[#allocation7 + $0x200] sm:$0xff] %v6530
    %6560 = vst [vmem:[#allocation7 + $0x208] sm:$0xff] %v6531
    %6561 = vst [vmem:[#allocation7 + $0x210] sm:$0xff] %v6532
    %6562 = vst [vmem:[#allocation7 + $0x218] sm:$0xff] %v6533
    %6563 = vst [vmem:[#allocation7 + $0x220] sm:$0xff] %v6534
    %6564 = vst [vmem:[#allocation7 + $0x228] sm:$0xff] %v6535
    %6565 = vst [vmem:[#allocation7 + $0x230] sm:$0xff] %v6536
    %6566 = vst [vmem:[#allocation7 + $0x238] sm:$0xff] %v6537
    %6567 = vst [vmem:[#allocation7 + $0x240] sm:$0xff] %v6538
    %6568 = vst [vmem:[#allocation7 + $0x248] sm:$0xff] %v6539
    %6569 = vst.msk [vmem:[#allocation7 + $0x250] sm:$0xff] %vm6255, %v6524
    %6570 = vrot.lane.b32.xlu0 %v6226, 96
    %v6571 = vpop.permute.xlu0 %6570
    %6572 = vrot.lane.b32.xlu0 %v6227, 96
    %v6573 = vpop.permute.xlu0 %6572
    %6574 = vrot.lane.b32.xlu0 %v6228, 96
    %v6575 = vpop.permute.xlu0 %6574
    %6576 = vrot.lane.b32.xlu0 %v6229, 96
    %v6577 = vpop.permute.xlu0 %6576
    %6578 = vrot.lane.b32.xlu0 %v6230, 96
    %v6579 = vpop.permute.xlu0 %6578
    %6580 = vrot.lane.b32.xlu0 %v6231, 96
    %v6581 = vpop.permute.xlu0 %6580
    %6582 = vrot.lane.b32.xlu0 %v6232, 96
    %v6583 = vpop.permute.xlu0 %6582
    %6584 = vrot.lane.b32.xlu0 %v6233, 96
    %v6585 = vpop.permute.xlu0 %6584
    %6586 = vrot.lane.b32.xlu0 %v6234, 96
    %v6587 = vpop.permute.xlu0 %6586
    %6588 = vrot.lane.b32.xlu0 %v6235, 96
    %v6589 = vpop.permute.xlu0 %6588
    %6590 = vrot.lane.b32.xlu0 %v6236, 96
    %v6591 = vpop.permute.xlu0 %6590
    %6592 = vrot.lane.b32.xlu0 %v6237, 96
    %v6593 = vpop.permute.xlu0 %6592
    %6594 = vrot.lane.b32.xlu0 %v6238, 96
    %v6595 = vpop.permute.xlu0 %6594
    %6596 = vrot.lane.b32.xlu0 %v6239, 96
    %v6597 = vpop.permute.xlu0 %6596
    %6598 = vrot.lane.b32.xlu0 %v6240, 96
    %v6599 = vpop.permute.xlu0 %6598
    %v6600 = vsel %vm3552, %v6571, %v6573
    %v6601 = vsel %vm3552, %v6573, %v6575
    %v6602 = vsel %vm3552, %v6575, %v6577
    %v6603 = vsel %vm3552, %v6577, %v6579
    %v6604 = vsel %vm3552, %v6579, %v6581
    %v6605 = vsel %vm3552, %v6581, %v6583
    %v6606 = vsel %vm3552, %v6583, %v6585
    %v6607 = vsel %vm3552, %v6585, %v6587
    %v6608 = vsel %vm3552, %v6587, %v6589
    %v6609 = vsel %vm3552, %v6589, %v6591
    %v6610 = vsel %vm3552, %v6591, %v6593
    %v6611 = vsel %vm3552, %v6593, %v6595
    %v6612 = vsel %vm3552, %v6595, %v6597
    %v6613 = vsel %vm3552, %v6597, %v6599
    %6629 = vst [vmem:[#allocation7 + $0x258] sm:$0xff] %v6600
    %6630 = vst [vmem:[#allocation7 + $0x260] sm:$0xff] %v6601
    %6631 = vst [vmem:[#allocation7 + $0x268] sm:$0xff] %v6602
    %6632 = vst [vmem:[#allocation7 + $0x270] sm:$0xff] %v6603
    %6633 = vst [vmem:[#allocation7 + $0x278] sm:$0xff] %v6604
    %6634 = vst [vmem:[#allocation7 + $0x280] sm:$0xff] %v6605
    %6635 = vst [vmem:[#allocation7 + $0x288] sm:$0xff] %v6606
    %6636 = vst [vmem:[#allocation7 + $0x290] sm:$0xff] %v6607
    %6637 = vst [vmem:[#allocation7 + $0x298] sm:$0xff] %v6608
    %6638 = vst [vmem:[#allocation7 + $0x2a0] sm:$0xff] %v6609
    %6639 = vst [vmem:[#allocation7 + $0x2a8] sm:$0xff] %v6610
    %6640 = vst [vmem:[#allocation7 + $0x2b0] sm:$0xff] %v6611
    %6641 = vst [vmem:[#allocation7 + $0x2b8] sm:$0xff] %v6612
    %6642 = vst [vmem:[#allocation7 + $0x2c0] sm:$0xff] %v6613
    %6643 = vst.msk [vmem:[#allocation7 + $0x2c8] sm:$0xff] %vm6255, %v6599
    %6644 = vrot.lane.b32.xlu0 %v6226, 68
    %v6645 = vpop.permute.xlu0 %6644
    %6646 = vrot.lane.b32.xlu0 %v6227, 68
    %v6647 = vpop.permute.xlu0 %6646
    %6648 = vrot.lane.b32.xlu0 %v6228, 68
    %v6649 = vpop.permute.xlu0 %6648
    %6650 = vrot.lane.b32.xlu0 %v6229, 68
    %v6651 = vpop.permute.xlu0 %6650
    %6652 = vrot.lane.b32.xlu0 %v6230, 68
    %v6653 = vpop.permute.xlu0 %6652
    %6654 = vrot.lane.b32.xlu0 %v6231, 68
    %v6655 = vpop.permute.xlu0 %6654
    %6656 = vrot.lane.b32.xlu0 %v6232, 68
    %v6657 = vpop.permute.xlu0 %6656
    %6658 = vrot.lane.b32.xlu0 %v6233, 68
    %v6659 = vpop.permute.xlu0 %6658
    %6660 = vrot.lane.b32.xlu0 %v6234, 68
    %v6661 = vpop.permute.xlu0 %6660
    %6662 = vrot.lane.b32.xlu0 %v6235, 68
    %v6663 = vpop.permute.xlu0 %6662
    %6664 = vrot.lane.b32.xlu0 %v6236, 68
    %v6665 = vpop.permute.xlu0 %6664
    %6666 = vrot.lane.b32.xlu0 %v6237, 68
    %v6667 = vpop.permute.xlu0 %6666
    %6668 = vrot.lane.b32.xlu0 %v6238, 68
    %v6669 = vpop.permute.xlu0 %6668
    %6670 = vrot.lane.b32.xlu0 %v6239, 68
    %v6671 = vpop.permute.xlu0 %6670
    %6672 = vrot.lane.b32.xlu0 %v6240, 68
    %v6673 = vpop.permute.xlu0 %6672
    %vm6674 = vcmask 556032
    %v6675 = vsel %vm6674, %v6645, %v6647
    %v6676 = vsel %vm6674, %v6647, %v6649
    %v6677 = vsel %vm6674, %v6649, %v6651
    %v6678 = vsel %vm6674, %v6651, %v6653
    %v6679 = vsel %vm6674, %v6653, %v6655
    %v6680 = vsel %vm6674, %v6655, %v6657
    %v6681 = vsel %vm6674, %v6657, %v6659
    %v6682 = vsel %vm6674, %v6659, %v6661
    %v6683 = vsel %vm6674, %v6661, %v6663
    %v6684 = vsel %vm6674, %v6663, %v6665
    %v6685 = vsel %vm6674, %v6665, %v6667
    %v6686 = vsel %vm6674, %v6667, %v6669
    %v6687 = vsel %vm6674, %v6669, %v6671
    %v6688 = vsel %vm6674, %v6671, %v6673
    %6704 = vst [vmem:[#allocation7 + $0x2d0] sm:$0xff] %v6675
    %6705 = vst [vmem:[#allocation7 + $0x2d8] sm:$0xff] %v6676
    %6706 = vst [vmem:[#allocation7 + $0x2e0] sm:$0xff] %v6677
    %6707 = vst [vmem:[#allocation7 + $0x2e8] sm:$0xff] %v6678
    %6708 = vst [vmem:[#allocation7 + $0x2f0] sm:$0xff] %v6679
    %6709 = vst [vmem:[#allocation7 + $0x2f8] sm:$0xff] %v6680
    %6710 = vst [vmem:[#allocation7 + $0x300] sm:$0xff] %v6681
    %6711 = vst [vmem:[#allocation7 + $0x308] sm:$0xff] %v6682
    %6712 = vst [vmem:[#allocation7 + $0x310] sm:$0xff] %v6683
    %6713 = vst [vmem:[#allocation7 + $0x318] sm:$0xff] %v6684
    %6714 = vst [vmem:[#allocation7 + $0x320] sm:$0xff] %v6685
    %6715 = vst [vmem:[#allocation7 + $0x328] sm:$0xff] %v6686
    %6716 = vst [vmem:[#allocation7 + $0x330] sm:$0xff] %v6687
    %6717 = vst [vmem:[#allocation7 + $0x338] sm:$0xff] %v6688
    %6718 = vst.msk [vmem:[#allocation7 + $0x340] sm:$0xff] %vm6255, %v6673
    %6719 = vrot.lane.b32.xlu0 %v6226, 67
    %v6720 = vpop.permute.xlu0 %6719
    %6721 = vrot.lane.b32.xlu0 %v6227, 67
    %v6722 = vpop.permute.xlu0 %6721
    %6723 = vrot.lane.b32.xlu0 %v6228, 67
    %v6724 = vpop.permute.xlu0 %6723
    %6725 = vrot.lane.b32.xlu0 %v6229, 67
    %v6726 = vpop.permute.xlu0 %6725
    %6727 = vrot.lane.b32.xlu0 %v6230, 67
    %v6728 = vpop.permute.xlu0 %6727
    %6729 = vrot.lane.b32.xlu0 %v6231, 67
    %v6730 = vpop.permute.xlu0 %6729
    %6731 = vrot.lane.b32.xlu0 %v6232, 67
    %v6732 = vpop.permute.xlu0 %6731
    %6733 = vrot.lane.b32.xlu0 %v6233, 67
    %v6734 = vpop.permute.xlu0 %6733
    %6735 = vrot.lane.b32.xlu0 %v6234, 67
    %v6736 = vpop.permute.xlu0 %6735
    %6737 = vrot.lane.b32.xlu0 %v6235, 67
    %v6738 = vpop.permute.xlu0 %6737
    %6739 = vrot.lane.b32.xlu0 %v6236, 67
    %v6740 = vpop.permute.xlu0 %6739
    %6741 = vrot.lane.b32.xlu0 %v6237, 67
    %v6742 = vpop.permute.xlu0 %6741
    %6743 = vrot.lane.b32.xlu0 %v6238, 67
    %v6744 = vpop.permute.xlu0 %6743
    %6745 = vrot.lane.b32.xlu0 %v6239, 67
    %v6746 = vpop.permute.xlu0 %6745
    %6747 = vrot.lane.b32.xlu0 %v6240, 67
    %v6748 = vpop.permute.xlu0 %6747
    %vm6749 = vcmask 547840
    %v6750 = vsel %vm6749, %v6720, %v6722
    %v6751 = vsel %vm6749, %v6722, %v6724
    %v6752 = vsel %vm6749, %v6724, %v6726
    %v6753 = vsel %vm6749, %v6726, %v6728
    %v6754 = vsel %vm6749, %v6728, %v6730
    %v6755 = vsel %vm6749, %v6730, %v6732
    %v6756 = vsel %vm6749, %v6732, %v6734
    %v6757 = vsel %vm6749, %v6734, %v6736
    %v6758 = vsel %vm6749, %v6736, %v6738
    %v6759 = vsel %vm6749, %v6738, %v6740
    %v6760 = vsel %vm6749, %v6740, %v6742
    %v6761 = vsel %vm6749, %v6742, %v6744
    %v6762 = vsel %vm6749, %v6744, %v6746
    %v6763 = vsel %vm6749, %v6746, %v6748
    %6779 = vst [vmem:[#allocation7 + $0x348] sm:$0xff] %v6750
    %6780 = vst [vmem:[#allocation7 + $0x350] sm:$0xff] %v6751
    %6781 = vst [vmem:[#allocation7 + $0x358] sm:$0xff] %v6752
    %6782 = vst [vmem:[#allocation7 + $0x360] sm:$0xff] %v6753
    %6783 = vst [vmem:[#allocation7 + $0x368] sm:$0xff] %v6754
    %6784 = vst [vmem:[#allocation7 + $0x370] sm:$0xff] %v6755
    %6785 = vst [vmem:[#allocation7 + $0x378] sm:$0xff] %v6756
    %6786 = vst [vmem:[#allocation7 + $0x380] sm:$0xff] %v6757
    %6787 = vst [vmem:[#allocation7 + $0x388] sm:$0xff] %v6758
    %6788 = vst [vmem:[#allocation7 + $0x390] sm:$0xff] %v6759
    %6789 = vst [vmem:[#allocation7 + $0x398] sm:$0xff] %v6760
    %6790 = vst [vmem:[#allocation7 + $0x3a0] sm:$0xff] %v6761
    %6791 = vst [vmem:[#allocation7 + $0x3a8] sm:$0xff] %v6762
    %6792 = vst [vmem:[#allocation7 + $0x3b0] sm:$0xff] %v6763
    %6793 = vst.msk [vmem:[#allocation7 + $0x3b8] sm:$0xff] %vm6255, %v6748
    %6794 = vrot.lane.b32.xlu0 %v6226, 66
    %v6795 = vpop.permute.xlu0 %6794
    %6796 = vrot.lane.b32.xlu0 %v6227, 66
    %v6797 = vpop.permute.xlu0 %6796
    %6798 = vrot.lane.b32.xlu0 %v6228, 66
    %v6799 = vpop.permute.xlu0 %6798
    %6800 = vrot.lane.b32.xlu0 %v6229, 66
    %v6801 = vpop.permute.xlu0 %6800
    %6802 = vrot.lane.b32.xlu0 %v6230, 66
    %v6803 = vpop.permute.xlu0 %6802
    %6804 = vrot.lane.b32.xlu0 %v6231, 66
    %v6805 = vpop.permute.xlu0 %6804
    %6806 = vrot.lane.b32.xlu0 %v6232, 66
    %v6807 = vpop.permute.xlu0 %6806
    %6808 = vrot.lane.b32.xlu0 %v6233, 66
    %v6809 = vpop.permute.xlu0 %6808
    %6810 = vrot.lane.b32.xlu0 %v6234, 66
    %v6811 = vpop.permute.xlu0 %6810
    %6812 = vrot.lane.b32.xlu0 %v6235, 66
    %v6813 = vpop.permute.xlu0 %6812
    %6814 = vrot.lane.b32.xlu0 %v6236, 66
    %v6815 = vpop.permute.xlu0 %6814
    %6816 = vrot.lane.b32.xlu0 %v6237, 66
    %v6817 = vpop.permute.xlu0 %6816
    %6818 = vrot.lane.b32.xlu0 %v6238, 66
    %v6819 = vpop.permute.xlu0 %6818
    %6820 = vrot.lane.b32.xlu0 %v6239, 66
    %v6821 = vpop.permute.xlu0 %6820
    %6822 = vrot.lane.b32.xlu0 %v6240, 66
    %v6823 = vpop.permute.xlu0 %6822
    %vm6824 = vcmask 539648
    %v6825 = vsel %vm6824, %v6795, %v6797
    %v6826 = vsel %vm6824, %v6797, %v6799
    %v6827 = vsel %vm6824, %v6799, %v6801
    %v6828 = vsel %vm6824, %v6801, %v6803
    %v6829 = vsel %vm6824, %v6803, %v6805
    %v6830 = vsel %vm6824, %v6805, %v6807
    %v6831 = vsel %vm6824, %v6807, %v6809
    %v6832 = vsel %vm6824, %v6809, %v6811
    %v6833 = vsel %vm6824, %v6811, %v6813
    %v6834 = vsel %vm6824, %v6813, %v6815
    %v6835 = vsel %vm6824, %v6815, %v6817
    %v6836 = vsel %vm6824, %v6817, %v6819
    %v6837 = vsel %vm6824, %v6819, %v6821
    %v6838 = vsel %vm6824, %v6821, %v6823
    %6854 = vst [vmem:[#allocation7 + $0x3c0] sm:$0xff] %v6825
    %6855 = vst [vmem:[#allocation7 + $0x3c8] sm:$0xff] %v6826
    %6856 = vst [vmem:[#allocation7 + $0x3d0] sm:$0xff] %v6827
    %6857 = vst [vmem:[#allocation7 + $0x3d8] sm:$0xff] %v6828
    %6858 = vst [vmem:[#allocation7 + $0x3e0] sm:$0xff] %v6829
    %6859 = vst [vmem:[#allocation7 + $0x3e8] sm:$0xff] %v6830
    %6860 = vst [vmem:[#allocation7 + $0x3f0] sm:$0xff] %v6831
    %6861 = vst [vmem:[#allocation7 + $0x3f8] sm:$0xff] %v6832
    %6862 = vst [vmem:[#allocation7 + $0x400] sm:$0xff] %v6833
    %6863 = vst [vmem:[#allocation7 + $0x408] sm:$0xff] %v6834
    %6864 = vst [vmem:[#allocation7 + $0x410] sm:$0xff] %v6835
    %6865 = vst [vmem:[#allocation7 + $0x418] sm:$0xff] %v6836
    %6866 = vst [vmem:[#allocation7 + $0x420] sm:$0xff] %v6837
    %6867 = vst [vmem:[#allocation7 + $0x428] sm:$0xff] %v6838
    %6868 = vst.msk [vmem:[#allocation7 + $0x430] sm:$0xff] %vm6255, %v6823
    %v6869 = vld [vmem:[%s15] sm:$0xff]
    %v6870 = vld [vmem:[#allocation7] sm:$0xff]
    %v6871 = vld [vmem:[#allocation7 + $0x8] sm:$0xff]
    %v6872 = vld [vmem:[#allocation7 + $0x10] sm:$0xff]
    %v6873 = vld [vmem:[#allocation7 + $0x18] sm:$0xff]
    %v6874 = vld [vmem:[#allocation7 + $0x20] sm:$0xff]
    %v6875 = vld [vmem:[#allocation7 + $0x28] sm:$0xff]
    %v6876 = vld [vmem:[#allocation7 + $0x30] sm:$0xff]
    %v6877 = vld [vmem:[#allocation7 + $0x38] sm:$0xff]
    %v6878 = vld [vmem:[#allocation7 + $0x40] sm:$0xff]
    %v6879 = vld [vmem:[#allocation7 + $0x48] sm:$0xff]
    %v6880 = vld [vmem:[#allocation7 + $0x50] sm:$0xff]
    %v6881 = vld [vmem:[#allocation7 + $0x58] sm:$0xff]
    %v6882 = vld [vmem:[#allocation7 + $0x60] sm:$0xff]
    %v6883 = vld [vmem:[#allocation7 + $0x68] sm:$0xff]
    %v6884 = vld [vmem:[#allocation7 + $0x78] sm:$0xff]
    %v6885 = vld [vmem:[#allocation7 + $0x80] sm:$0xff]
    %v6886 = vld [vmem:[#allocation7 + $0x88] sm:$0xff]
    %v6887 = vld [vmem:[#allocation7 + $0x90] sm:$0xff]
    %v6888 = vld [vmem:[#allocation7 + $0x98] sm:$0xff]
    %v6889 = vld [vmem:[#allocation7 + $0xa0] sm:$0xff]
    %v6890 = vld [vmem:[#allocation7 + $0xa8] sm:$0xff]
    %v6891 = vld [vmem:[#allocation7 + $0xb0] sm:$0xff]
    %v6892 = vld [vmem:[#allocation7 + $0xb8] sm:$0xff]
    %v6893 = vld [vmem:[#allocation7 + $0xc0] sm:$0xff]
    %v6894 = vld [vmem:[#allocation7 + $0xc8] sm:$0xff]
    %v6895 = vld [vmem:[#allocation7 + $0xd0] sm:$0xff]
    %v6896 = vld [vmem:[#allocation7 + $0xd8] sm:$0xff]
    %v6897 = vld [vmem:[#allocation7 + $0xe0] sm:$0xff]
    %v6898 = vld [vmem:[#allocation7 + $0xf0] sm:$0xff]
    %v6899 = vld [vmem:[#allocation7 + $0xf8] sm:$0xff]
    %v6900 = vld [vmem:[#allocation7 + $0x100] sm:$0xff]
    %v6901 = vld [vmem:[#allocation7 + $0x108] sm:$0xff]
    %v6902 = vld [vmem:[#allocation7 + $0x110] sm:$0xff]
    %v6903 = vld [vmem:[#allocation7 + $0x118] sm:$0xff]
    %v6904 = vld [vmem:[#allocation7 + $0x120] sm:$0xff]
    %v6905 = vld [vmem:[#allocation7 + $0x128] sm:$0xff]
    %v6906 = vld [vmem:[#allocation7 + $0x130] sm:$0xff]
    %v6907 = vld [vmem:[#allocation7 + $0x138] sm:$0xff]
    %v6908 = vld [vmem:[#allocation7 + $0x140] sm:$0xff]
    %v6909 = vld [vmem:[#allocation7 + $0x148] sm:$0xff]
    %v6910 = vld [vmem:[#allocation7 + $0x150] sm:$0xff]
    %v6911 = vld [vmem:[#allocation7 + $0x158] sm:$0xff]
    %v6912 = vld [vmem:[#allocation7 + $0x168] sm:$0xff]
    %v6913 = vld [vmem:[#allocation7 + $0x170] sm:$0xff]
    %v6914 = vld [vmem:[#allocation7 + $0x178] sm:$0xff]
    %v6915 = vld [vmem:[#allocation7 + $0x180] sm:$0xff]
    %v6916 = vld [vmem:[#allocation7 + $0x188] sm:$0xff]
    %v6917 = vld [vmem:[#allocation7 + $0x190] sm:$0xff]
    %v6918 = vld [vmem:[#allocation7 + $0x198] sm:$0xff]
    %v6919 = vld [vmem:[#allocation7 + $0x1a0] sm:$0xff]
    %v6920 = vld [vmem:[#allocation7 + $0x1a8] sm:$0xff]
    %v6921 = vld [vmem:[#allocation7 + $0x1b0] sm:$0xff]
    %v6922 = vld [vmem:[#allocation7 + $0x1b8] sm:$0xff]
    %v6923 = vld [vmem:[#allocation7 + $0x1c0] sm:$0xff]
    %v6924 = vld [vmem:[#allocation7 + $0x1c8] sm:$0xff]
    %v6925 = vld [vmem:[#allocation7 + $0x1d0] sm:$0xff]
    %v6926 = vld [vmem:[#allocation7 + $0x1e0] sm:$0xff]
    %v6927 = vld [vmem:[#allocation7 + $0x1e8] sm:$0xff]
    %v6928 = vld [vmem:[#allocation7 + $0x1f0] sm:$0xff]
    %v6929 = vld [vmem:[#allocation7 + $0x1f8] sm:$0xff]
    %v6930 = vld [vmem:[#allocation7 + $0x200] sm:$0xff]
    %v6931 = vld [vmem:[#allocation7 + $0x208] sm:$0xff]
    %v6932 = vld [vmem:[#allocation7 + $0x210] sm:$0xff]
    %v6933 = vld [vmem:[#allocation7 + $0x218] sm:$0xff]
    %v6934 = vld [vmem:[#allocation7 + $0x220] sm:$0xff]
    %v6935 = vld [vmem:[#allocation7 + $0x228] sm:$0xff]
    %v6936 = vld [vmem:[#allocation7 + $0x230] sm:$0xff]
    %v6937 = vld [vmem:[#allocation7 + $0x238] sm:$0xff]
    %v6938 = vld [vmem:[#allocation7 + $0x240] sm:$0xff]
    %v6939 = vld [vmem:[#allocation7 + $0x248] sm:$0xff]
    %v6940 = vld [vmem:[#allocation7 + $0x258] sm:$0xff]
    %v6941 = vld [vmem:[#allocation7 + $0x260] sm:$0xff]
    %v6942 = vld [vmem:[#allocation7 + $0x268] sm:$0xff]
    %v6943 = vld [vmem:[#allocation7 + $0x270] sm:$0xff]
    %v6944 = vld [vmem:[#allocation7 + $0x278] sm:$0xff]
    %v6945 = vld [vmem:[#allocation7 + $0x280] sm:$0xff]
    %v6946 = vld [vmem:[#allocation7 + $0x288] sm:$0xff]
    %v6947 = vld [vmem:[#allocation7 + $0x290] sm:$0xff]
    %v6948 = vld [vmem:[#allocation7 + $0x298] sm:$0xff]
    %v6949 = vld [vmem:[#allocation7 + $0x2a0] sm:$0xff]
    %v6950 = vld [vmem:[#allocation7 + $0x2a8] sm:$0xff]
    %v6951 = vld [vmem:[#allocation7 + $0x2b0] sm:$0xff]
    %v6952 = vld [vmem:[#allocation7 + $0x2b8] sm:$0xff]
    %v6953 = vld [vmem:[#allocation7 + $0x2c0] sm:$0xff]
    %v6954 = vld [vmem:[#allocation7 + $0x2d0] sm:$0xff]
    %v6955 = vld [vmem:[#allocation7 + $0x2d8] sm:$0xff]
    %v6956 = vld [vmem:[#allocation7 + $0x2e0] sm:$0xff]
    %v6957 = vld [vmem:[#allocation7 + $0x2e8] sm:$0xff]
    %v6958 = vld [vmem:[#allocation7 + $0x2f0] sm:$0xff]
    %v6959 = vld [vmem:[#allocation7 + $0x2f8] sm:$0xff]
    %v6960 = vld [vmem:[#allocation7 + $0x300] sm:$0xff]
    %v6961 = vld [vmem:[#allocation7 + $0x308] sm:$0xff]
    %v6962 = vld [vmem:[#allocation7 + $0x310] sm:$0xff]
    %v6963 = vld [vmem:[#allocation7 + $0x318] sm:$0xff]
    %v6964 = vld [vmem:[#allocation7 + $0x320] sm:$0xff]
    %v6965 = vld [vmem:[#allocation7 + $0x328] sm:$0xff]
    %v6966 = vld [vmem:[#allocation7 + $0x330] sm:$0xff]
    %v6967 = vld [vmem:[#allocation7 + $0x338] sm:$0xff]
    %v6968 = vld [vmem:[#allocation7 + $0x348] sm:$0xff]
    %v6969 = vld [vmem:[#allocation7 + $0x350] sm:$0xff]
    %v6970 = vld [vmem:[#allocation7 + $0x358] sm:$0xff]
    %v6971 = vld [vmem:[#allocation7 + $0x360] sm:$0xff]
    %v6972 = vld [vmem:[#allocation7 + $0x368] sm:$0xff]
    %v6973 = vld [vmem:[#allocation7 + $0x370] sm:$0xff]
    %v6974 = vld [vmem:[#allocation7 + $0x378] sm:$0xff]
    %v6975 = vld [vmem:[#allocation7 + $0x380] sm:$0xff]
    %v6976 = vld [vmem:[#allocation7 + $0x388] sm:$0xff]
    %v6977 = vld [vmem:[#allocation7 + $0x390] sm:$0xff]
    %v6978 = vld [vmem:[#allocation7 + $0x398] sm:$0xff]
    %v6979 = vld [vmem:[#allocation7 + $0x3a0] sm:$0xff]
    %v6980 = vld [vmem:[#allocation7 + $0x3a8] sm:$0xff]
    %v6981 = vld [vmem:[#allocation7 + $0x3b0] sm:$0xff]
    %v6982 = vld [vmem:[#allocation7 + $0x3c0] sm:$0xff]
    %v6983 = vld [vmem:[#allocation7 + $0x3c8] sm:$0xff]
    %v6984 = vld [vmem:[#allocation7 + $0x3d0] sm:$0xff]
    %v6985 = vld [vmem:[#allocation7 + $0x3d8] sm:$0xff]
    %v6986 = vld [vmem:[#allocation7 + $0x3e0] sm:$0xff]
    %v6987 = vld [vmem:[#allocation7 + $0x3e8] sm:$0xff]
    %v6988 = vld [vmem:[#allocation7 + $0x3f0] sm:$0xff]
    %v6989 = vld [vmem:[#allocation7 + $0x3f8] sm:$0xff]
    %v6990 = vld [vmem:[#allocation7 + $0x400] sm:$0xff]
    %v6991 = vld [vmem:[#allocation7 + $0x408] sm:$0xff]
    %v6992 = vld [vmem:[#allocation7 + $0x410] sm:$0xff]
    %v6993 = vld [vmem:[#allocation7 + $0x418] sm:$0xff]
    %v6994 = vld [vmem:[#allocation7 + $0x420] sm:$0xff]
    %v6995 = vld [vmem:[#allocation7 + $0x428] sm:$0xff]
    %v6996 = vld [vmem:[%s16] sm:$0xff]
    %6998 = vset.pattern.permute.xlu0 0
    %6999 = vperm.xlu0 %6998, %v6996
    %v7000 = vpop.permute.xlu0 %6999
    %vm7002 = vcmask 588800
    %v7004 = vsel %vm7002, %v6869, 0
    %7006 = vmatprep.subr.mxu0 %v6871
    %7007 = vmatpush1.msra.mxu0 %v6870
    %7008 = vmatprep.subr.mxu0 %v6885
    %7009 = vmatpush1.msra.mxu0 %v6884
    %7010 = vmatprep.subr.mxu0 %v6899
    %7011 = vmatpush1.msra.mxu0 %v6898
    %7012 = vmatprep.subr.mxu0 %v6913
    %7013 = vmatpush1.msra.mxu0 %v6912
    %7014 = vmatprep.subr.mxu0 %v6927
    %7015 = vmatpush1.msra.mxu0 %v6926
    %7016 = vmatprep.subr.mxu0 %v6941
    %7017 = vmatpush1.msra.mxu0 %v6940
    %7018 = vmatprep.subr.mxu0 %v6955
    %7019 = vmatpush1.msra.mxu0 %v6954
    %7020 = vmatprep.subr.mxu0 %v6969
    %7021 = vmatpush1.msra.mxu0 %v6968
    %7022 = vmatprep.subr.mxu0 %v6983
    %7023 = vmatpush1.msra.mxu0 %v6982
    %7024 = vmatprep.subr.mxu0 0.0
    %7025 = vmatpush1.msra.mxu0 0.0
    %7026 = vmatprep.subr.mxu0 0.0
    %7027 = vmatpush1.msra.mxu0 0.0
    %7028 = vmatprep.subr.mxu0 0.0
    %7029 = vmatpush1.msra.mxu0 0.0
    %7030 = vmatprep.subr.mxu0 0.0
    %7031 = vmatpush1.msra.mxu0 0.0
    %7032 = vmatprep.subr.mxu0 0.0
    %7033 = vmatpush1.msra.mxu0 0.0
    %7034 = vmatprep.subr.mxu0 0.0
    %7035 = vmatpush1.msra.mxu0 0.0
    %7036 = vmatprep.subr.mxu0 0.0
    %7037 = vmatpush1.msra.mxu0 0.0
    %7038 = vmatprep.subr.mxu0 0.0
    %7039 = vmatpush1.msra.mxu0 0.0
    %7040 = vmatprep.subr.mxu0 0.0
    %7041 = vmatpush1.msra.mxu0 0.0
    %7042 = vmatprep.subr.mxu0 0.0
    %7043 = vmatpush1.msra.mxu0 0.0
    %7044 = vmatprep.subr.mxu0 0.0
    %7045 = vmatpush1.msra.mxu0 0.0
    %7046 = vmatprep.subr.mxu0 0.0
    %7047 = vmatpush1.msra.mxu0 0.0
    %7048 = vmatprep.subr.mxu0 0.0
    %7049 = vmatpush1.msra.mxu0 0.0
    %7050 = vmatprep.subr.mxu0 0.0
    %7051 = vmatpush1.msra.mxu0 0.0
    %7052 = vmatprep.subr.mxu0 0.0
    %7053 = vmatpush1.msra.mxu0 0.0
    %7054 = vmatprep.subr.mxu0 0.0
    %7055 = vmatpush1.msra.mxu0 0.0
    %7056 = vmatprep.subr.mxu0 0.0
    %7057 = vmatpush1.msra.mxu0 0.0
    %7058 = vmatprep.subr.mxu0 0.0
    %7059 = vmatpush1.msra.mxu0 0.0
    %7060 = vmatprep.subr.mxu0 0.0
    %7061 = vmatpush1.msra.mxu0 0.0
    %7062 = vmatprep.subr.mxu0 0.0
    %7063 = vmatpush1.msra.mxu0 0.0
    %7064 = vmatprep.subr.mxu0 0.0
    %7065 = vmatpush1.msra.mxu0 0.0
    %7066 = vmatprep.subr.mxu0 0.0
    %7067 = vmatpush1.msra.mxu0 0.0
    %7068 = vmatprep.subr.mxu0 0.0
    %7069 = vmatpush1.msra.mxu0 0.0
    %7070 = vmatprep.mubr.f32.mxu0 0.0
    %7071 = vmatmul.mubr.f32.gmra.mrb[0].mxu0 %v7004
    %v7072 = vpop.f32.mrb[0].mxu0
    %v7073 = vadd.f32 %v7000, %v7072
    %v7074 = vpop.f32.mrb[0].mxu0
    %v7075 = vadd.f32 %v7000, %v7074
    %7076 = vdwg.mxu0
    %7077 = vmatprep.subr.mxu0 %v6873
    %7078 = vmatpush1.msra.mxu0 %v6872
    %7079 = vmatprep.subr.mxu0 %v6887
    %7080 = vmatpush1.msra.mxu0 %v6886
    %7081 = vmatprep.subr.mxu0 %v6901
    %7082 = vmatpush1.msra.mxu0 %v6900
    %7083 = vmatprep.subr.mxu0 %v6915
    %7084 = vmatpush1.msra.mxu0 %v6914
    %7085 = vmatprep.subr.mxu0 %v6929
    %7086 = vmatpush1.msra.mxu0 %v6928
    %7087 = vmatprep.subr.mxu0 %v6943
    %7088 = vmatpush1.msra.mxu0 %v6942
    %7089 = vmatprep.subr.mxu0 %v6957
    %7090 = vmatpush1.msra.mxu0 %v6956
    %7091 = vmatprep.subr.mxu0 %v6971
    %7092 = vmatpush1.msra.mxu0 %v6970
    %7093 = vmatprep.subr.mxu0 %v6985
    %7094 = vmatpush1.msra.mxu0 %v6984
    %7095 = vmatprep.subr.mxu0 0.0
    %7096 = vmatpush1.msra.mxu0 0.0
    %7097 = vmatprep.subr.mxu0 0.0
    %7098 = vmatpush1.msra.mxu0 0.0
    %7099 = vmatprep.subr.mxu0 0.0
    %7100 = vmatpush1.msra.mxu0 0.0
    %7101 = vmatprep.subr.mxu0 0.0
    %7102 = vmatpush1.msra.mxu0 0.0
    %7103 = vmatprep.subr.mxu0 0.0
    %7104 = vmatpush1.msra.mxu0 0.0
    %7105 = vmatprep.subr.mxu0 0.0
    %7106 = vmatpush1.msra.mxu0 0.0
    %7107 = vmatprep.subr.mxu0 0.0
    %7108 = vmatpush1.msra.mxu0 0.0
    %7109 = vmatprep.subr.mxu0 0.0
    %7110 = vmatpush1.msra.mxu0 0.0
    %7111 = vmatprep.subr.mxu0 0.0
    %7112 = vmatpush1.msra.mxu0 0.0
    %7113 = vmatprep.subr.mxu0 0.0
    %7114 = vmatpush1.msra.mxu0 0.0
    %7115 = vmatprep.subr.mxu0 0.0
    %7116 = vmatpush1.msra.mxu0 0.0
    %7117 = vmatprep.subr.mxu0 0.0
    %7118 = vmatpush1.msra.mxu0 0.0
    %7119 = vmatprep.subr.mxu0 0.0
    %7120 = vmatpush1.msra.mxu0 0.0
    %7121 = vmatprep.subr.mxu0 0.0
    %7122 = vmatpush1.msra.mxu0 0.0
    %7123 = vmatprep.subr.mxu0 0.0
    %7124 = vmatpush1.msra.mxu0 0.0
    %7125 = vmatprep.subr.mxu0 0.0
    %7126 = vmatpush1.msra.mxu0 0.0
    %7127 = vmatprep.subr.mxu0 0.0
    %7128 = vmatpush1.msra.mxu0 0.0
    %7129 = vmatprep.subr.mxu0 0.0
    %7130 = vmatpush1.msra.mxu0 0.0
    %7131 = vmatprep.subr.mxu0 0.0
    %7132 = vmatpush1.msra.mxu0 0.0
    %7133 = vmatprep.subr.mxu0 0.0
    %7134 = vmatpush1.msra.mxu0 0.0
    %7135 = vmatprep.subr.mxu0 0.0
    %7136 = vmatpush1.msra.mxu0 0.0
    %7137 = vmatprep.subr.mxu0 0.0
    %7138 = vmatpush1.msra.mxu0 0.0
    %7139 = vmatprep.subr.mxu0 0.0
    %7140 = vmatpush1.msra.mxu0 0.0
    %7141 = vmatprep.mubr.f32.mxu0 0.0
    %7142 = vmatmul.mubr.f32.gmra.mrb[0].mxu0 %v7004
    %v7143 = vpop.f32.mrb[0].mxu0
    %v7144 = vadd.f32 %v7000, %v7143
    %v7145 = vpop.f32.mrb[0].mxu0
    %v7146 = vadd.f32 %v7000, %v7145
    %7147 = vdwg.mxu0
    %7148 = vmatprep.subr.mxu0 %v6875
    %7149 = vmatpush1.msra.mxu0 %v6874
    %7150 = vmatprep.subr.mxu0 %v6889
    %7151 = vmatpush1.msra.mxu0 %v6888
    %7152 = vmatprep.subr.mxu0 %v6903
    %7153 = vmatpush1.msra.mxu0 %v6902
    %7154 = vmatprep.subr.mxu0 %v6917
    %7155 = vmatpush1.msra.mxu0 %v6916
    %7156 = vmatprep.subr.mxu0 %v6931
    %7157 = vmatpush1.msra.mxu0 %v6930
    %7158 = vmatprep.subr.mxu0 %v6945
    %7159 = vmatpush1.msra.mxu0 %v6944
    %7160 = vmatprep.subr.mxu0 %v6959
    %7161 = vmatpush1.msra.mxu0 %v6958
    %7162 = vmatprep.subr.mxu0 %v6973
    %7163 = vmatpush1.msra.mxu0 %v6972
    %7164 = vmatprep.subr.mxu0 %v6987
    %7165 = vmatpush1.msra.mxu0 %v6986
    %7166 = vmatprep.subr.mxu0 0.0
    %7167 = vmatpush1.msra.mxu0 0.0
    %7168 = vmatprep.subr.mxu0 0.0
    %7169 = vmatpush1.msra.mxu0 0.0
    %7170 = vmatprep.subr.mxu0 0.0
    %7171 = vmatpush1.msra.mxu0 0.0
    %7172 = vmatprep.subr.mxu0 0.0
    %7173 = vmatpush1.msra.mxu0 0.0
    %7174 = vmatprep.subr.mxu0 0.0
    %7175 = vmatpush1.msra.mxu0 0.0
    %7176 = vmatprep.subr.mxu0 0.0
    %7177 = vmatpush1.msra.mxu0 0.0
    %7178 = vmatprep.subr.mxu0 0.0
    %7179 = vmatpush1.msra.mxu0 0.0
    %7180 = vmatprep.subr.mxu0 0.0
    %7181 = vmatpush1.msra.mxu0 0.0
    %7182 = vmatprep.subr.mxu0 0.0
    %7183 = vmatpush1.msra.mxu0 0.0
    %7184 = vmatprep.subr.mxu0 0.0
    %7185 = vmatpush1.msra.mxu0 0.0
    %7186 = vmatprep.subr.mxu0 0.0
    %7187 = vmatpush1.msra.mxu0 0.0
    %7188 = vmatprep.subr.mxu0 0.0
    %7189 = vmatpush1.msra.mxu0 0.0
    %7190 = vmatprep.subr.mxu0 0.0
    %7191 = vmatpush1.msra.mxu0 0.0
    %7192 = vmatprep.subr.mxu0 0.0
    %7193 = vmatpush1.msra.mxu0 0.0
    %7194 = vmatprep.subr.mxu0 0.0
    %7195 = vmatpush1.msra.mxu0 0.0
    %7196 = vmatprep.subr.mxu0 0.0
    %7197 = vmatpush1.msra.mxu0 0.0
    %7198 = vmatprep.subr.mxu0 0.0
    %7199 = vmatpush1.msra.mxu0 0.0
    %7200 = vmatprep.subr.mxu0 0.0
    %7201 = vmatpush1.msra.mxu0 0.0
    %7202 = vmatprep.subr.mxu0 0.0
    %7203 = vmatpush1.msra.mxu0 0.0
    %7204 = vmatprep.subr.mxu0 0.0
    %7205 = vmatpush1.msra.mxu0 0.0
    %7206 = vmatprep.subr.mxu0 0.0
    %7207 = vmatpush1.msra.mxu0 0.0
    %7208 = vmatprep.subr.mxu0 0.0
    %7209 = vmatpush1.msra.mxu0 0.0
    %7210 = vmatprep.subr.mxu0 0.0
    %7211 = vmatpush1.msra.mxu0 0.0
    %7212 = vmatprep.mubr.f32.mxu0 0.0
    %7213 = vmatmul.mubr.f32.gmra.mrb[0].mxu0 %v7004
    %v7214 = vpop.f32.mrb[0].mxu0
    %v7215 = vadd.f32 %v7000, %v7214
    %v7216 = vpop.f32.mrb[0].mxu0
    %v7217 = vadd.f32 %v7000, %v7216
    %7218 = vdwg.mxu0
    %7219 = vmatprep.subr.mxu0 %v6877
    %7220 = vmatpush1.msra.mxu0 %v6876
    %7221 = vmatprep.subr.mxu0 %v6891
    %7222 = vmatpush1.msra.mxu0 %v6890
    %7223 = vmatprep.subr.mxu0 %v6905
    %7224 = vmatpush1.msra.mxu0 %v6904
    %7225 = vmatprep.subr.mxu0 %v6919
    %7226 = vmatpush1.msra.mxu0 %v6918
    %7227 = vmatprep.subr.mxu0 %v6933
    %7228 = vmatpush1.msra.mxu0 %v6932
    %7229 = vmatprep.subr.mxu0 %v6947
    %7230 = vmatpush1.msra.mxu0 %v6946
    %7231 = vmatprep.subr.mxu0 %v6961
    %7232 = vmatpush1.msra.mxu0 %v6960
    %7233 = vmatprep.subr.mxu0 %v6975
    %7234 = vmatpush1.msra.mxu0 %v6974
    %7235 = vmatprep.subr.mxu0 %v6989
    %7236 = vmatpush1.msra.mxu0 %v6988
    %7237 = vmatprep.subr.mxu0 0.0
    %7238 = vmatpush1.msra.mxu0 0.0
    %7239 = vmatprep.subr.mxu0 0.0
    %7240 = vmatpush1.msra.mxu0 0.0
    %7241 = vmatprep.subr.mxu0 0.0
    %7242 = vmatpush1.msra.mxu0 0.0
    %7243 = vmatprep.subr.mxu0 0.0
    %7244 = vmatpush1.msra.mxu0 0.0
    %7245 = vmatprep.subr.mxu0 0.0
    %7246 = vmatpush1.msra.mxu0 0.0
    %7247 = vmatprep.subr.mxu0 0.0
    %7248 = vmatpush1.msra.mxu0 0.0
    %7249 = vmatprep.subr.mxu0 0.0
    %7250 = vmatpush1.msra.mxu0 0.0
    %7251 = vmatprep.subr.mxu0 0.0
    %7252 = vmatpush1.msra.mxu0 0.0
    %7253 = vmatprep.subr.mxu0 0.0
    %7254 = vmatpush1.msra.mxu0 0.0
    %7255 = vmatprep.subr.mxu0 0.0
    %7256 = vmatpush1.msra.mxu0 0.0
    %7257 = vmatprep.subr.mxu0 0.0
    %7258 = vmatpush1.msra.mxu0 0.0
    %7259 = vmatprep.subr.mxu0 0.0
    %7260 = vmatpush1.msra.mxu0 0.0
    %7261 = vmatprep.subr.mxu0 0.0
    %7262 = vmatpush1.msra.mxu0 0.0
    %7263 = vmatprep.subr.mxu0 0.0
    %7264 = vmatpush1.msra.mxu0 0.0
    %7265 = vmatprep.subr.mxu0 0.0
    %7266 = vmatpush1.msra.mxu0 0.0
    %7267 = vmatprep.subr.mxu0 0.0
    %7268 = vmatpush1.msra.mxu0 0.0
    %7269 = vmatprep.subr.mxu0 0.0
    %7270 = vmatpush1.msra.mxu0 0.0
    %7271 = vmatprep.subr.mxu0 0.0
    %7272 = vmatpush1.msra.mxu0 0.0
    %7273 = vmatprep.subr.mxu0 0.0
    %7274 = vmatpush1.msra.mxu0 0.0
    %7275 = vmatprep.subr.mxu0 0.0
    %7276 = vmatpush1.msra.mxu0 0.0
    %7277 = vmatprep.subr.mxu0 0.0
    %7278 = vmatpush1.msra.mxu0 0.0
    %7279 = vmatprep.subr.mxu0 0.0
    %7280 = vmatpush1.msra.mxu0 0.0
    %7281 = vmatprep.subr.mxu0 0.0
    %7282 = vmatpush1.msra.mxu0 0.0
    %7283 = vmatprep.mubr.f32.mxu0 0.0
    %7284 = vmatmul.mubr.f32.gmra.mrb[0].mxu0 %v7004
    %v7285 = vpop.f32.mrb[0].mxu0
    %v7286 = vadd.f32 %v7000, %v7285
    %v7287 = vpop.f32.mrb[0].mxu0
    %v7288 = vadd.f32 %v7000, %v7287
    %7289 = vdwg.mxu0
    %7290 = vmatprep.subr.mxu0 %v6879
    %7291 = vmatpush1.msra.mxu0 %v6878
    %7292 = vmatprep.subr.mxu0 %v6893
    %7293 = vmatpush1.msra.mxu0 %v6892
    %7294 = vmatprep.subr.mxu0 %v6907
    %7295 = vmatpush1.msra.mxu0 %v6906
    %7296 = vmatprep.subr.mxu0 %v6921
    %7297 = vmatpush1.msra.mxu0 %v6920
    %7298 = vmatprep.subr.mxu0 %v6935
    %7299 = vmatpush1.msra.mxu0 %v6934
    %7300 = vmatprep.subr.mxu0 %v6949
    %7301 = vmatpush1.msra.mxu0 %v6948
    %7302 = vmatprep.subr.mxu0 %v6963
    %7303 = vmatpush1.msra.mxu0 %v6962
    %7304 = vmatprep.subr.mxu0 %v6977
    %7305 = vmatpush1.msra.mxu0 %v6976
    %7306 = vmatprep.subr.mxu0 %v6991
    %7307 = vmatpush1.msra.mxu0 %v6990
    %7308 = vmatprep.subr.mxu0 0.0
    %7309 = vmatpush1.msra.mxu0 0.0
    %7310 = vmatprep.subr.mxu0 0.0
    %7311 = vmatpush1.msra.mxu0 0.0
    %7312 = vmatprep.subr.mxu0 0.0
    %7313 = vmatpush1.msra.mxu0 0.0
    %7314 = vmatprep.subr.mxu0 0.0
    %7315 = vmatpush1.msra.mxu0 0.0
    %7316 = vmatprep.subr.mxu0 0.0
    %7317 = vmatpush1.msra.mxu0 0.0
    %7318 = vmatprep.subr.mxu0 0.0
    %7319 = vmatpush1.msra.mxu0 0.0
    %7320 = vmatprep.subr.mxu0 0.0
    %7321 = vmatpush1.msra.mxu0 0.0
    %7322 = vmatprep.subr.mxu0 0.0
    %7323 = vmatpush1.msra.mxu0 0.0
    %7324 = vmatprep.subr.mxu0 0.0
    %7325 = vmatpush1.msra.mxu0 0.0
    %7326 = vmatprep.subr.mxu0 0.0
    %7327 = vmatpush1.msra.mxu0 0.0
    %7328 = vmatprep.subr.mxu0 0.0
    %7329 = vmatpush1.msra.mxu0 0.0
    %7330 = vmatprep.subr.mxu0 0.0
    %7331 = vmatpush1.msra.mxu0 0.0
    %7332 = vmatprep.subr.mxu0 0.0
    %7333 = vmatpush1.msra.mxu0 0.0
    %7334 = vmatprep.subr.mxu0 0.0
    %7335 = vmatpush1.msra.mxu0 0.0
    %7336 = vmatprep.subr.mxu0 0.0
    %7337 = vmatpush1.msra.mxu0 0.0
    %7338 = vmatprep.subr.mxu0 0.0
    %7339 = vmatpush1.msra.mxu0 0.0
    %7340 = vmatprep.subr.mxu0 0.0
    %7341 = vmatpush1.msra.mxu0 0.0
    %7342 = vmatprep.subr.mxu0 0.0
    %7343 = vmatpush1.msra.mxu0 0.0
    %7344 = vmatprep.subr.mxu0 0.0
    %7345 = vmatpush1.msra.mxu0 0.0
    %7346 = vmatprep.subr.mxu0 0.0
    %7347 = vmatpush1.msra.mxu0 0.0
    %7348 = vmatprep.subr.mxu0 0.0
    %7349 = vmatpush1.msra.mxu0 0.0
    %7350 = vmatprep.subr.mxu0 0.0
    %7351 = vmatpush1.msra.mxu0 0.0
    %7352 = vmatprep.subr.mxu0 0.0
    %7353 = vmatpush1.msra.mxu0 0.0
    %7354 = vmatprep.mubr.f32.mxu0 0.0
    %7355 = vmatmul.mubr.f32.gmra.mrb[0].mxu0 %v7004
    %v7356 = vpop.f32.mrb[0].mxu0
    %v7357 = vadd.f32 %v7000, %v7356
    %v7358 = vpop.f32.mrb[0].mxu0
    %v7359 = vadd.f32 %v7000, %v7358
    %7360 = vdwg.mxu0
    %7361 = vmatprep.subr.mxu0 %v6881
    %7362 = vmatpush1.msra.mxu0 %v6880
    %7363 = vmatprep.subr.mxu0 %v6895
    %7364 = vmatpush1.msra.mxu0 %v6894
    %7365 = vmatprep.subr.mxu0 %v6909
    %7366 = vmatpush1.msra.mxu0 %v6908
    %7367 = vmatprep.subr.mxu0 %v6923
    %7368 = vmatpush1.msra.mxu0 %v6922
    %7369 = vmatprep.subr.mxu0 %v6937
    %7370 = vmatpush1.msra.mxu0 %v6936
    %7371 = vmatprep.subr.mxu0 %v6951
    %7372 = vmatpush1.msra.mxu0 %v6950
    %7373 = vmatprep.subr.mxu0 %v6965
    %7374 = vmatpush1.msra.mxu0 %v6964
    %7375 = vmatprep.subr.mxu0 %v6979
    %7376 = vmatpush1.msra.mxu0 %v6978
    %7377 = vmatprep.subr.mxu0 %v6993
    %7378 = vmatpush1.msra.mxu0 %v6992
    %7379 = vmatprep.subr.mxu0 0.0
    %7380 = vmatpush1.msra.mxu0 0.0
    %7381 = vmatprep.subr.mxu0 0.0
    %7382 = vmatpush1.msra.mxu0 0.0
    %7383 = vmatprep.subr.mxu0 0.0
    %7384 = vmatpush1.msra.mxu0 0.0
    %7385 = vmatprep.subr.mxu0 0.0
    %7386 = vmatpush1.msra.mxu0 0.0
    %7387 = vmatprep.subr.mxu0 0.0
    %7388 = vmatpush1.msra.mxu0 0.0
    %7389 = vmatprep.subr.mxu0 0.0
    %7390 = vmatpush1.msra.mxu0 0.0
    %7391 = vmatprep.subr.mxu0 0.0
    %7392 = vmatpush1.msra.mxu0 0.0
    %7393 = vmatprep.subr.mxu0 0.0
    %7394 = vmatpush1.msra.mxu0 0.0
    %7395 = vmatprep.subr.mxu0 0.0
    %7396 = vmatpush1.msra.mxu0 0.0
    %7397 = vmatprep.subr.mxu0 0.0
    %7398 = vmatpush1.msra.mxu0 0.0
    %7399 = vmatprep.subr.mxu0 0.0
    %7400 = vmatpush1.msra.mxu0 0.0
    %7401 = vmatprep.subr.mxu0 0.0
    %7402 = vmatpush1.msra.mxu0 0.0
    %7403 = vmatprep.subr.mxu0 0.0
    %7404 = vmatpush1.msra.mxu0 0.0
    %7405 = vmatprep.subr.mxu0 0.0
    %7406 = vmatpush1.msra.mxu0 0.0
    %7407 = vmatprep.subr.mxu0 0.0
    %7408 = vmatpush1.msra.mxu0 0.0
    %7409 = vmatprep.subr.mxu0 0.0
    %7410 = vmatpush1.msra.mxu0 0.0
    %7411 = vmatprep.subr.mxu0 0.0
    %7412 = vmatpush1.msra.mxu0 0.0
    %7413 = vmatprep.subr.mxu0 0.0
    %7414 = vmatpush1.msra.mxu0 0.0
    %7415 = vmatprep.subr.mxu0 0.0
    %7416 = vmatpush1.msra.mxu0 0.0
    %7417 = vmatprep.subr.mxu0 0.0
    %7418 = vmatpush1.msra.mxu0 0.0
    %7419 = vmatprep.subr.mxu0 0.0
    %7420 = vmatpush1.msra.mxu0 0.0
    %7421 = vmatprep.subr.mxu0 0.0
    %7422 = vmatpush1.msra.mxu0 0.0
    %7423 = vmatprep.subr.mxu0 0.0
    %7424 = vmatpush1.msra.mxu0 0.0
    %7425 = vmatprep.mubr.f32.mxu0 0.0
    %7426 = vmatmul.mubr.f32.gmra.mrb[0].mxu0 %v7004
    %v7427 = vpop.f32.mrb[0].mxu0
    %v7428 = vadd.f32 %v7000, %v7427
    %v7429 = vpop.f32.mrb[0].mxu0
    %v7430 = vadd.f32 %v7000, %v7429
    %7431 = vdwg.mxu0
    %7432 = vmatprep.subr.mxu0 %v6883
    %7433 = vmatpush1.msra.mxu0 %v6882
    %7434 = vmatprep.subr.mxu0 %v6897
    %7435 = vmatpush1.msra.mxu0 %v6896
    %7436 = vmatprep.subr.mxu0 %v6911
    %7437 = vmatpush1.msra.mxu0 %v6910
    %7438 = vmatprep.subr.mxu0 %v6925
    %7439 = vmatpush1.msra.mxu0 %v6924
    %7440 = vmatprep.subr.mxu0 %v6939
    %7441 = vmatpush1.msra.mxu0 %v6938
    %7442 = vmatprep.subr.mxu0 %v6953
    %7443 = vmatpush1.msra.mxu0 %v6952
    %7444 = vmatprep.subr.mxu0 %v6967
    %7445 = vmatpush1.msra.mxu0 %v6966
    %7446 = vmatprep.subr.mxu0 %v6981
    %7447 = vmatpush1.msra.mxu0 %v6980
    %7448 = vmatprep.subr.mxu0 %v6995
    %7449 = vmatpush1.msra.mxu0 %v6994
    %7450 = vmatprep.subr.mxu0 0.0
    %7451 = vmatpush1.msra.mxu0 0.0
    %7452 = vmatprep.subr.mxu0 0.0
    %7453 = vmatpush1.msra.mxu0 0.0
    %7454 = vmatprep.subr.mxu0 0.0
    %7455 = vmatpush1.msra.mxu0 0.0
    %7456 = vmatprep.subr.mxu0 0.0
    %7457 = vmatpush1.msra.mxu0 0.0
    %7458 = vmatprep.subr.mxu0 0.0
    %7459 = vmatpush1.msra.mxu0 0.0
    %7460 = vmatprep.subr.mxu0 0.0
    %7461 = vmatpush1.msra.mxu0 0.0
    %7462 = vmatprep.subr.mxu0 0.0
    %7463 = vmatpush1.msra.mxu0 0.0
    %7464 = vmatprep.subr.mxu0 0.0
    %7465 = vmatpush1.msra.mxu0 0.0
    %7466 = vmatprep.subr.mxu0 0.0
    %7467 = vmatpush1.msra.mxu0 0.0
    %7468 = vmatprep.subr.mxu0 0.0
    %7469 = vmatpush1.msra.mxu0 0.0
    %7470 = vmatprep.subr.mxu0 0.0
    %7471 = vmatpush1.msra.mxu0 0.0
    %7472 = vmatprep.subr.mxu0 0.0
    %7473 = vmatpush1.msra.mxu0 0.0
    %7474 = vmatprep.subr.mxu0 0.0
    %7475 = vmatpush1.msra.mxu0 0.0
    %7476 = vmatprep.subr.mxu0 0.0
    %7477 = vmatpush1.msra.mxu0 0.0
    %7478 = vmatprep.subr.mxu0 0.0
    %7479 = vmatpush1.msra.mxu0 0.0
    %7480 = vmatprep.subr.mxu0 0.0
    %7481 = vmatpush1.msra.mxu0 0.0
    %7482 = vmatprep.subr.mxu0 0.0
    %7483 = vmatpush1.msra.mxu0 0.0
    %7484 = vmatprep.subr.mxu0 0.0
    %7485 = vmatpush1.msra.mxu0 0.0
    %7486 = vmatprep.subr.mxu0 0.0
    %7487 = vmatpush1.msra.mxu0 0.0
    %7488 = vmatprep.subr.mxu0 0.0
    %7489 = vmatpush1.msra.mxu0 0.0
    %7490 = vmatprep.subr.mxu0 0.0
    %7491 = vmatpush1.msra.mxu0 0.0
    %7492 = vmatprep.subr.mxu0 0.0
    %7493 = vmatpush1.msra.mxu0 0.0
    %7494 = vmatprep.subr.mxu0 0.0
    %7495 = vmatpush1.msra.mxu0 0.0
    %7496 = vmatprep.mubr.f32.mxu0 0.0
    %7497 = vmatmul.mubr.f32.gmra.mrb[0].mxu0 %v7004
    %v7498 = vpop.f32.mrb[0].mxu0
    %v7499 = vadd.f32 %v7000, %v7498
    %v7500 = vpop.f32.mrb[0].mxu0
    %v7501 = vadd.f32 %v7000, %v7500
    %7502 = vdwg.mxu0
    %v7503 = vxor.u32 %v7073, 2147483648
    %v7504 = vxor.u32 %v7075, 2147483648
    %v7505 = vxor.u32 %v7144, 2147483648
    %v7506 = vxor.u32 %v7146, 2147483648
    %v7507 = vxor.u32 %v7215, 2147483648
    %v7508 = vxor.u32 %v7217, 2147483648
    %v7509 = vxor.u32 %v7286, 2147483648
    %v7510 = vxor.u32 %v7288, 2147483648
    %v7511 = vxor.u32 %v7357, 2147483648
    %v7512 = vxor.u32 %v7359, 2147483648
    %v7513 = vxor.u32 %v7428, 2147483648
    %v7514 = vxor.u32 %v7430, 2147483648
    %v7515 = vxor.u32 %v7499, 2147483648
    %v7516 = vxor.u32 %v7501, 2147483648
    %v7517 = vmul.f32 %v7503, 1.442695
    %v7518 = vpow.pop %v7517
    %v7519 = vmul.f32 %v7504, 1.442695
    %v7520 = vpow.pop %v7519
    %v7521 = vmul.f32 %v7505, 1.442695
    %v7522 = vpow.pop %v7521
    %v7523 = vmul.f32 %v7506, 1.442695
    %v7524 = vpow.pop %v7523
    %v7525 = vmul.f32 %v7507, 1.442695
    %v7526 = vpow.pop %v7525
    %v7527 = vmul.f32 %v7508, 1.442695
    %v7528 = vpow.pop %v7527
    %v7529 = vmul.f32 %v7509, 1.442695
    %v7530 = vpow.pop %v7529
    %v7531 = vmul.f32 %v7510, 1.442695
    %v7532 = vpow.pop %v7531
    %v7533 = vmul.f32 %v7511, 1.442695
    %v7534 = vpow.pop %v7533
    %v7535 = vmul.f32 %v7512, 1.442695
    %v7536 = vpow.pop %v7535
    %v7537 = vmul.f32 %v7513, 1.442695
    %v7538 = vpow.pop %v7537
    %v7539 = vmul.f32 %v7514, 1.442695
    %v7540 = vpow.pop %v7539
    %v7541 = vmul.f32 %v7515, 1.442695
    %v7542 = vpow.pop %v7541
    %v7543 = vmul.f32 %v7516, 1.442695
    %v7544 = vpow.pop %v7543
    %v7545 = vadd.f32 %v7518, 1.0
    %v7546 = vadd.f32 %v7520, 1.0
    %v7547 = vadd.f32 %v7522, 1.0
    %v7548 = vadd.f32 %v7524, 1.0
    %v7549 = vadd.f32 %v7526, 1.0
    %v7550 = vadd.f32 %v7528, 1.0
    %v7551 = vadd.f32 %v7530, 1.0
    %v7552 = vadd.f32 %v7532, 1.0
    %v7553 = vadd.f32 %v7534, 1.0
    %v7554 = vadd.f32 %v7536, 1.0
    %v7555 = vadd.f32 %v7538, 1.0
    %v7556 = vadd.f32 %v7540, 1.0
    %v7557 = vadd.f32 %v7542, 1.0
    %v7558 = vadd.f32 %v7544, 1.0
    %v7559 = vrcp.pop %v7545
    %v7560 = vmul.f32 1.0, %v7559
    %v7561 = vrcp.pop %v7546
    %v7562 = vmul.f32 1.0, %v7561
    %v7563 = vrcp.pop %v7547
    %v7564 = vmul.f32 1.0, %v7563
    %v7565 = vrcp.pop %v7548
    %v7566 = vmul.f32 1.0, %v7565
    %v7567 = vrcp.pop %v7549
    %v7568 = vmul.f32 1.0, %v7567
    %v7569 = vrcp.pop %v7550
    %v7570 = vmul.f32 1.0, %v7569
    %v7571 = vrcp.pop %v7551
    %v7572 = vmul.f32 1.0, %v7571
    %v7573 = vrcp.pop %v7552
    %v7574 = vmul.f32 1.0, %v7573
    %v7575 = vrcp.pop %v7553
    %v7576 = vmul.f32 1.0, %v7575
    %v7577 = vrcp.pop %v7554
    %v7578 = vmul.f32 1.0, %v7577
    %v7579 = vrcp.pop %v7555
    %v7580 = vmul.f32 1.0, %v7579
    %v7581 = vrcp.pop %v7556
    %v7582 = vmul.f32 1.0, %v7581
    %v7583 = vrcp.pop %v7557
    %v7584 = vmul.f32 1.0, %v7583
    %v7585 = vrcp.pop %v7558
    %v7586 = vmul.f32 1.0, %v7585
    %vm7587 = vcmask 221184
    %7588 = vst.msk [vmem:[#allocation8] sm:$0x1] %vm7587, %v7560
    %7590 = vrot.lane.b32.xlu0 %v7560, 98
    %v7591 = vpop.permute.xlu0 %7590
    %7593 = vst.msk [vmem:[#allocation8 + $0x1] sm:$0x1] %vm7587, %v7591
    %7594 = vrot.lane.b32.xlu0 %v7560, 68
    %v7595 = vpop.permute.xlu0 %7594
    %7597 = vst.msk [vmem:[#allocation8 + $0x2] sm:$0x1] %vm7587, %v7595
    %7598 = vrot.lane.b32.xlu0 %v7560, 38
    %v7599 = vpop.permute.xlu0 %7598
    %7601 = vst.msk [vmem:[#allocation8 + $0x3] sm:$0x1] %vm7587, %v7599
    %7603 = vrot.lane.b32.xlu0 %v7560, 8
    %v7604 = vpop.permute.xlu0 %7603
    %7605 = vrot.lane.b32.xlu0 %v7562, 8
    %v7606 = vpop.permute.xlu0 %7605
    %v7607 = vsel %vm6255, %v7604, %v7606
    %7609 = vst.msk [vmem:[#allocation8 + $0x4] sm:$0x1] %vm7587, %v7607
    %7610 = vrot.lane.b32.xlu0 %v7562, 106
    %v7611 = vpop.permute.xlu0 %7610
    %7613 = vst.msk [vmem:[#allocation8 + $0x5] sm:$0x1] %vm7587, %v7611
    %7614 = vrot.lane.b32.xlu0 %v7562, 76
    %v7615 = vpop.permute.xlu0 %7614
    %7617 = vst.msk [vmem:[#allocation8 + $0x6] sm:$0x1] %vm7587, %v7615
    %7618 = vrot.lane.b32.xlu0 %v7562, 46
    %v7619 = vpop.permute.xlu0 %7618
    %7621 = vst.msk [vmem:[#allocation8 + $0x7] sm:$0x1] %vm7587, %v7619
    %7623 = vrot.lane.b32.xlu0 %v7562, 16
    %v7624 = vpop.permute.xlu0 %7623
    %7625 = vrot.lane.b32.xlu0 %v7564, 16
    %v7626 = vpop.permute.xlu0 %7625
    %v7627 = vsel %vm3747, %v7624, %v7626
    %7629 = vst.msk [vmem:[#allocation8 + $0x8] sm:$0x1] %vm7587, %v7627
    %7630 = vrot.lane.b32.xlu0 %v7564, 114
    %v7631 = vpop.permute.xlu0 %7630
    %7633 = vst.msk [vmem:[#allocation8 + $0x9] sm:$0x1] %vm7587, %v7631
    %7634 = vrot.lane.b32.xlu0 %v7564, 84
    %v7635 = vpop.permute.xlu0 %7634
    %7637 = vst.msk [vmem:[#allocation8 + $0xa] sm:$0x1] %vm7587, %v7635
    %7638 = vrot.lane.b32.xlu0 %v7564, 54
    %v7639 = vpop.permute.xlu0 %7638
    %7641 = vst.msk [vmem:[#allocation8 + $0xb] sm:$0x1] %vm7587, %v7639
    %7643 = vrot.lane.b32.xlu0 %v7564, 24
    %v7644 = vpop.permute.xlu0 %7643
    %7645 = vrot.lane.b32.xlu0 %v7566, 24
    %v7646 = vpop.permute.xlu0 %7645
    %v7647 = vsel %vm5983, %v7644, %v7646
    %7649 = vst.msk [vmem:[#allocation8 + $0xc] sm:$0x1] %vm7587, %v7647
    %7650 = vrot.lane.b32.xlu0 %v7566, 122
    %v7651 = vpop.permute.xlu0 %7650
    %7653 = vst.msk [vmem:[#allocation8 + $0xd] sm:$0x1] %vm7587, %v7651
    %7654 = vrot.lane.b32.xlu0 %v7566, 92
    %v7655 = vpop.permute.xlu0 %7654
    %7657 = vst.msk [vmem:[#allocation8 + $0xe] sm:$0x1] %vm7587, %v7655
    %7658 = vrot.lane.b32.xlu0 %v7566, 62
    %v7659 = vpop.permute.xlu0 %7658
    %7661 = vst.msk [vmem:[#allocation8 + $0xf] sm:$0x1] %vm7587, %v7659
    %7662 = vrot.lane.b32.xlu0 %v7566, 32
    %v7663 = vpop.permute.xlu0 %7662
    %7665 = vst.msk [vmem:[#allocation8 + $0x10] sm:$0x1] %vm7587, %v7663
    %7667 = vrot.lane.b32.xlu0 %v7566, 2
    %v7668 = vpop.permute.xlu0 %7667
    %7669 = vrot.lane.b32.xlu0 %v7568, 2
    %v7670 = vpop.permute.xlu0 %7669
    %v7671 = vsel %vm3097, %v7668, %v7670
    %7673 = vst.msk [vmem:[#allocation8 + $0x11] sm:$0x1] %vm7587, %v7671
    %7674 = vrot.lane.b32.xlu0 %v7568, 100
    %v7675 = vpop.permute.xlu0 %7674
    %7677 = vst.msk [vmem:[#allocation8 + $0x12] sm:$0x1] %vm7587, %v7675
    %7678 = vrot.lane.b32.xlu0 %v7568, 70
    %v7679 = vpop.permute.xlu0 %7678
    %7681 = vst.msk [vmem:[#allocation8 + $0x13] sm:$0x1] %vm7587, %v7679
    %7682 = vrot.lane.b32.xlu0 %v7568, 40
    %v7683 = vpop.permute.xlu0 %7682
    %7685 = vst.msk [vmem:[#allocation8 + $0x14] sm:$0x1] %vm7587, %v7683
    %7687 = vrot.lane.b32.xlu0 %v7568, 10
    %v7688 = vpop.permute.xlu0 %7687
    %7689 = vrot.lane.b32.xlu0 %v7570, 10
    %v7690 = vpop.permute.xlu0 %7689
    %vm7691 = vcmask 80896
    %v7692 = vsel %vm7691, %v7688, %v7690
    %7694 = vst.msk [vmem:[#allocation8 + $0x15] sm:$0x1] %vm7587, %v7692
    %7695 = vrot.lane.b32.xlu0 %v7570, 108
    %v7696 = vpop.permute.xlu0 %7695
    %7698 = vst.msk [vmem:[#allocation8 + $0x16] sm:$0x1] %vm7587, %v7696
    %7699 = vrot.lane.b32.xlu0 %v7570, 78
    %v7700 = vpop.permute.xlu0 %7699
    %7702 = vst.msk [vmem:[#allocation8 + $0x17] sm:$0x1] %vm7587, %v7700
    %7703 = vrot.lane.b32.xlu0 %v7570, 48
    %v7704 = vpop.permute.xlu0 %7703
    %7706 = vst.msk [vmem:[#allocation8 + $0x18] sm:$0x1] %vm7587, %v7704
    %7708 = vrot.lane.b32.xlu0 %v7570, 18
    %v7709 = vpop.permute.xlu0 %7708
    %7710 = vrot.lane.b32.xlu0 %v7572, 18
    %v7711 = vpop.permute.xlu0 %7710
    %vm7712 = vcmask 146432
    %v7713 = vsel %vm7712, %v7709, %v7711
    %7715 = vst.msk [vmem:[#allocation8 + $0x19] sm:$0x1] %vm7587, %v7713
    %7716 = vrot.lane.b32.xlu0 %v7572, 116
    %v7717 = vpop.permute.xlu0 %7716
    %7719 = vst.msk [vmem:[#allocation8 + $0x1a] sm:$0x1] %vm7587, %v7717
    %7720 = vrot.lane.b32.xlu0 %v7572, 86
    %v7721 = vpop.permute.xlu0 %7720
    %7723 = vst.msk [vmem:[#allocation8 + $0x1b] sm:$0x1] %vm7587, %v7721
    %7725 = vrot.lane.b32.xlu0 %v7574, 124
    %v7726 = vpop.permute.xlu0 %7725
    %7728 = vst.msk [vmem:[#allocation8 + $0x1c] sm:$0x1] %vm7587, %v7726
    %7729 = vrot.lane.b32.xlu0 %v7574, 94
    %v7730 = vpop.permute.xlu0 %7729
    %7732 = vst.msk [vmem:[#allocation8 + $0x1d] sm:$0x1] %vm7587, %v7730
    %7733 = vrot.lane.b32.xlu0 %v7574, 64
    %v7734 = vpop.permute.xlu0 %7733
    %7736 = vst.msk [vmem:[#allocation8 + $0x1e] sm:$0x1] %vm7587, %v7734
    %7737 = vrot.lane.b32.xlu0 %v7574, 34
    %v7738 = vpop.permute.xlu0 %7737
    %7740 = vst.msk [vmem:[#allocation8 + $0x1f] sm:$0x1] %vm7587, %v7738
    %7742 = vrot.lane.b32.xlu0 %v7574, 4
    %v7743 = vpop.permute.xlu0 %7742
    %7744 = vrot.lane.b32.xlu0 %v7576, 4
    %v7745 = vpop.permute.xlu0 %7744
    %v7746 = vsel %vm170, %v7743, %v7745
    %7748 = vst.msk [vmem:[#allocation8 + $0x20] sm:$0x1] %vm7587, %v7746
    %7749 = vrot.lane.b32.xlu0 %v7576, 102
    %v7750 = vpop.permute.xlu0 %7749
    %7752 = vst.msk [vmem:[#allocation8 + $0x21] sm:$0x1] %vm7587, %v7750
    %7753 = vrot.lane.b32.xlu0 %v7576, 72
    %v7754 = vpop.permute.xlu0 %7753
    %7756 = vst.msk [vmem:[#allocation8 + $0x22] sm:$0x1] %vm7587, %v7754
    %7757 = vrot.lane.b32.xlu0 %v7576, 42
    %v7758 = vpop.permute.xlu0 %7757
    %7760 = vst.msk [vmem:[#allocation8 + $0x23] sm:$0x1] %vm7587, %v7758
    %7762 = vrot.lane.b32.xlu0 %v7576, 12
    %v7763 = vpop.permute.xlu0 %7762
    %7764 = vrot.lane.b32.xlu0 %v7578, 12
    %v7765 = vpop.permute.xlu0 %7764
    %v7766 = vsel %vm5023, %v7763, %v7765
    %7768 = vst.msk [vmem:[#allocation8 + $0x24] sm:$0x1] %vm7587, %v7766
    %7769 = vrot.lane.b32.xlu0 %v7578, 110
    %v7770 = vpop.permute.xlu0 %7769
    %7772 = vst.msk [vmem:[#allocation8 + $0x25] sm:$0x1] %vm7587, %v7770
    %7773 = vrot.lane.b32.xlu0 %v7578, 80
    %v7774 = vpop.permute.xlu0 %7773
    %7776 = vst.msk [vmem:[#allocation8 + $0x26] sm:$0x1] %vm7587, %v7774
    %7777 = vrot.lane.b32.xlu0 %v7578, 50
    %v7778 = vpop.permute.xlu0 %7777
    %7780 = vst.msk [vmem:[#allocation8 + $0x27] sm:$0x1] %vm7587, %v7778
    %7782 = vrot.lane.b32.xlu0 %v7578, 20
    %v7783 = vpop.permute.xlu0 %7782
    %7784 = vrot.lane.b32.xlu0 %v7580, 20
    %v7785 = vpop.permute.xlu0 %7784
    %v7786 = vsel %vm4861, %v7783, %v7785
    %7788 = vst.msk [vmem:[#allocation8 + $0x28] sm:$0x1] %vm7587, %v7786
    %7789 = vrot.lane.b32.xlu0 %v7580, 118
    %v7790 = vpop.permute.xlu0 %7789
    %7792 = vst.msk [vmem:[#allocation8 + $0x29] sm:$0x1] %vm7587, %v7790
    %7793 = vrot.lane.b32.xlu0 %v7580, 88
    %v7794 = vpop.permute.xlu0 %7793
    %7796 = vst.msk [vmem:[#allocation8 + $0x2a] sm:$0x1] %vm7587, %v7794
    %7797 = vrot.lane.b32.xlu0 %v7580, 58
    %v7798 = vpop.permute.xlu0 %7797
    %7800 = vst.msk [vmem:[#allocation8 + $0x2b] sm:$0x1] %vm7587, %v7798
    %7801 = vrot.lane.b32.xlu0 %v7580, 28
    %v7802 = vpop.permute.xlu0 %7801
    %7804 = vst.msk [vmem:[#allocation8 + $0x2c] sm:$0x1] %vm7587, %v7802
    %7806 = vrot.lane.b32.xlu0 %v7582, 126
    %v7807 = vpop.permute.xlu0 %7806
    %7809 = vst.msk [vmem:[#allocation8 + $0x2d] sm:$0x1] %vm7587, %v7807
    %7810 = vrot.lane.b32.xlu0 %v7582, 96
    %v7811 = vpop.permute.xlu0 %7810
    %7813 = vst.msk [vmem:[#allocation8 + $0x2e] sm:$0x1] %vm7587, %v7811
    %7814 = vrot.lane.b32.xlu0 %v7582, 66
    %v7815 = vpop.permute.xlu0 %7814
    %7817 = vst.msk [vmem:[#allocation8 + $0x2f] sm:$0x1] %vm7587, %v7815
    %7818 = vrot.lane.b32.xlu0 %v7582, 36
    %v7819 = vpop.permute.xlu0 %7818
    %7821 = vst.msk [vmem:[#allocation8 + $0x30] sm:$0x1] %vm7587, %v7819
    %7823 = vrot.lane.b32.xlu0 %v7582, 6
    %v7824 = vpop.permute.xlu0 %7823
    %7825 = vrot.lane.b32.xlu0 %v7584, 6
    %v7826 = vpop.permute.xlu0 %7825
    %vm7827 = vcmask 48128
    %v7828 = vsel %vm7827, %v7824, %v7826
    %7830 = vst.msk [vmem:[#allocation8 + $0x31] sm:$0x1] %vm7587, %v7828
    %7831 = vrot.lane.b32.xlu0 %v7584, 104
    %v7832 = vpop.permute.xlu0 %7831
    %7834 = vst.msk [vmem:[#allocation8 + $0x32] sm:$0x1] %vm7587, %v7832
    %7835 = vrot.lane.b32.xlu0 %v7584, 74
    %v7836 = vpop.permute.xlu0 %7835
    %7838 = vst.msk [vmem:[#allocation8 + $0x33] sm:$0x1] %vm7587, %v7836
    %7839 = vrot.lane.b32.xlu0 %v7584, 44
    %v7840 = vpop.permute.xlu0 %7839
    %7842 = vst.msk [vmem:[#allocation8 + $0x34] sm:$0x1] %vm7587, %v7840
    %7844 = vrot.lane.b32.xlu0 %v7584, 14
    %v7845 = vpop.permute.xlu0 %7844
    %7846 = vrot.lane.b32.xlu0 %v7586, 14
    %v7847 = vpop.permute.xlu0 %7846
    %v7848 = vsel %vm3976, %v7845, %v7847
    %7850 = vst.msk [vmem:[#allocation8 + $0x35] sm:$0x1] %vm7587, %v7848
    %7851 = vrot.lane.b32.xlu0 %v7586, 112
    %v7852 = vpop.permute.xlu0 %7851
    %7854 = vst.msk [vmem:[#allocation8 + $0x36] sm:$0x1] %vm7587, %v7852
    %7855 = vrot.lane.b32.xlu0 %v7586, 82
    %v7856 = vpop.permute.xlu0 %7855
    %7858 = vst.msk [vmem:[#allocation8 + $0x37] sm:$0x1] %vm7587, %v7856
    // Predicated region
    $region70: #{decoder_forward.1} parent=1 // pred_check
      _
    $region71: #{decoder_forward.1} parent=1 // pred_check_branch
      %7860 = sbr.rel (0) target = $region73
    $region72: #{decoder_forward.1} parent=1 // pred_region
      %s7862 = ssub.s32 896, 896
      %7863 = vsyncadd [#allocation9], %s7862
      %s7864 = sshll.u32 [#allocation8], 4
      %s7865 = int_to_ptr.vmem [resolvable:$true] %s7864
      %7870 = dma.vmem_to_hbm [thread:$0]  %s7865, 896, %s17, [#allocation9], 128, 128, 8
    $region73: #{decoder_forward.1} parent=1 // pred_fallthru
      _
    // Predicated region
    $region74: #{decoder_forward.1} parent=1 // pred_check
      _
    $region75: #{decoder_forward.1} parent=1 // pred_check_branch
      %7872 = sbr.rel (0) target = $region77
    $region76: #{decoder_forward.1} parent=1 // pred_region
      %7873 = dma.done [#allocation9], 896
    $region77: #{decoder_forward.1} parent=1 // pred_fallthru
      _
    %7874 = vsyncpa [#allocation9], 1

</llo_original>
